<compile_context>
chip_gen: v7x
topology: tpu7x:2x2x1
jax: 0.10.0
libtpu: 0.0.40
codegen_flags: <defaults>
</compile_context>

<pallas_src>
import functools

import jax
import jax.numpy as jnp
from jax.experimental import pallas as pl
from jax.experimental.pallas import tpu as pltpu

_VMEM_LIMIT = 48 * 1024 * 1024


def _round_up(x, m):
    return (x + m - 1) // m * m


# ----------------------------------------------------------------------------
# Kernel 1: hoisted, K-tiled input projection (bf16 MXU, f32 accum).
#   gates[t, b, :] = x[b, t, :] @ [W_ih_f | W_ih_r] + [b_f | b_r]
# Output is written time-major so the serial recurrence gets dense per-step rows.
# ----------------------------------------------------------------------------
def _input_proj_kernel(x_ref, w_ref, b_ref, g_ref, acc_ref, *, n_b, tt):
    k = pl.program_id(1)

    @pl.when(k == 0)
    def _():
        # fold (bias_ih + bias_hh) into the accumulator init
        acc_ref[...] = jnp.broadcast_to(b_ref[...], acc_ref.shape)

    # (B, tt, tk) -> (B*tt, tk): leading-dim merge, one big MXU pass per K tile
    x = x_ref[...].reshape(n_b * tt, x_ref.shape[-1])
    acc_ref[...] += jnp.dot(x, w_ref[...], preferred_element_type=jnp.float32)

    @pl.when(k == pl.num_programs(1) - 1)
    def _():
        # batch-major -> time-major relayout, once per chunk, inside the
        # parallel GEMM kernel (keeps the serial recurrence path clean).
        g = acc_ref[...].reshape(n_b, tt, acc_ref.shape[-1])
        for t in range(tt):
            g_ref[t] = g[:, t, :]


def _input_projection(x_p, w_cat, b_cat, *, tt, tk):
    n_b, t_pad, e_pad = x_p.shape
    eight_hd = w_cat.shape[1]
    num_tc = t_pad // tt
    num_k = e_pad // tk
    kernel = functools.partial(_input_proj_kernel, n_b=n_b, tt=tt)
    return pl.pallas_call(
        kernel,
        out_shape=jax.ShapeDtypeStruct((t_pad, n_b, eight_hd), jnp.float32),
        grid=(num_tc, num_k),
        in_specs=[
            pl.BlockSpec((n_b, tt, tk), lambda tc, k: (0, tc, k)),      # x chunk
            pl.BlockSpec((tk, eight_hd), lambda tc, k: (k, 0)),         # fused W_ih
            pl.BlockSpec((1, eight_hd), lambda tc, k: (0, 0)),          # fused bias
        ],
        out_specs=pl.BlockSpec((tt, n_b, eight_hd), lambda tc, k: (tc, 0, 0)),
        scratch_shapes=[pltpu.VMEM((n_b * tt, eight_hd), jnp.float32)],
        compiler_params=pltpu.CompilerParams(
            dimension_semantics=("parallel", "arbitrary"),
            vmem_limit_bytes=_VMEM_LIMIT),
    )(x_p, w_cat, b_cat)


# ----------------------------------------------------------------------------
# Kernel 2: fused bidirectional LSTM recurrence + output projection.
# grid=(direction, time_chunk); the direction axis is "parallel" (2 TCs on v7x).
# Gates are precomputed; per step only h @ W_hh + nonlinearities + a small
# bf16 projection matmul remain.  pack_padded semantics: state frozen and
# outputs zeroed past each sequence's length.
# ----------------------------------------------------------------------------
def _bilstm_proj_kernel(g_ref, len_ref, whh_ref, wp_ref, bp_ref, out_ref,
                        h_scr, c_scr, *, n_b, hd_p, nt_pad, tt, num_chunks):
    d = pl.program_id(0)          # 0 = forward, 1 = reverse
    c_idx = pl.program_id(1)

    @pl.when(c_idx == 0)
    def _():
        h_scr[...] = jnp.zeros_like(h_scr)
        c_scr[...] = jnp.zeros_like(c_scr)

    # first original-time index covered by this chunk (reverse walks backwards)
    time_block = c_idx + d * (num_chunks - 1 - 2 * c_idx)
    base = time_block * tt

    # hoisted once per chunk (broadcast_in_dim is not CSE'd inside the loop)
    lens_bc = jnp.broadcast_to(len_ref[...], (n_b, hd_p))
    bias_bc = jnp.broadcast_to(bp_ref[0], (n_b, nt_pad))

    def step(ti, h, c):
        # per-step loads straight from VMEM refs (no whole-chunk value hoist)
        gates = g_ref[ti] + jnp.dot(h, whh_ref[0],
                                    preferred_element_type=jnp.float32)
        # reordered gate layout [i | f | o | g]: one contiguous sigmoid block
        sig = jax.nn.sigmoid(gates[:, :3 * hd_p])
        i_g = sig[:, 0 * hd_p:1 * hd_p]
        f_g = sig[:, 1 * hd_p:2 * hd_p]
        o_g = sig[:, 2 * hd_p:3 * hd_p]
        g_g = jnp.tanh(gates[:, 3 * hd_p:])

        c_new = f_g * c + i_g * g_g
        h_new = o_g * jnp.tanh(c_new)

        valid = (base + ti) < lens_bc
        h = jnp.where(valid, h_new, h)
        c = jnp.where(valid, c_new, c)
        y = jnp.where(valid, h_new, 0.0)

        # fused output projection for this direction (bf16 MXU, f32 accum);
        # bias is nonzero only for d == 0 so the sum of partials adds it once.
        out_ref[0, ti] = (jnp.dot(y.astype(jnp.bfloat16), wp_ref[0],
                                  preferred_element_type=jnp.float32)
                          + bias_bc)
        return h, c

    def run(order):
        h = h_scr[...]
        c = c_scr[...]
        for ti in order:
            h, c = step(ti, h, c)
        h_scr[...] = h
        c_scr[...] = c

    @pl.when(d == 0)
    def _():
        run(range(tt))

    @pl.when(d != 0)
    def _():
        run(range(tt - 1, -1, -1))


def _bilstm_projection(gates, lens, whh2, wp2, bp2, *, tt):
    t_pad, n_b, eight_hd = gates.shape
    hd_p = eight_hd // 8
    four_hd = 4 * hd_p
    nt_pad = wp2.shape[2]
    num_chunks = t_pad // tt
    kernel = functools.partial(_bilstm_proj_kernel, n_b=n_b, hd_p=hd_p,
                               nt_pad=nt_pad, tt=tt, num_chunks=num_chunks)

    def time_block(d, c):
        # d == 0 -> c ; d == 1 -> num_chunks - 1 - c
        return c + d * (num_chunks - 1 - 2 * c)

    return pl.pallas_call(
        kernel,
        out_shape=jax.ShapeDtypeStruct((2, t_pad, n_b, nt_pad), jnp.float32),
        grid=(2, num_chunks),
        in_specs=[
            # time-major gate chunk; last-dim block index picks the direction half
            pl.BlockSpec((tt, n_b, four_hd),
                         lambda d, c: (time_block(d, c), 0, d)),
            pl.BlockSpec((n_b, 1), lambda d, c: (0, 0)),          # lengths
            pl.BlockSpec((1, hd_p, four_hd), lambda d, c: (d, 0, 0)),   # W_hh[d]
            pl.BlockSpec((1, hd_p, nt_pad), lambda d, c: (d, 0, 0)),    # W_proj[d]
            pl.BlockSpec((1, 1, nt_pad), lambda d, c: (d, 0, 0)),       # bias[d]
        ],
        out_specs=pl.BlockSpec((1, tt, n_b, nt_pad),
                               lambda d, c: (d, time_block(d, c), 0, 0)),
        scratch_shapes=[pltpu.VMEM((n_b, hd_p), jnp.float32),   # h carried state
                        pltpu.VMEM((n_b, hd_p), jnp.float32)],  # c carried state
        compiler_params=pltpu.CompilerParams(
            dimension_semantics=("parallel", "arbitrary"),
            vmem_limit_bytes=_VMEM_LIMIT),
    )(gates, lens, whh2, wp2, bp2)


# ----------------------------------------------------------------------------
# One-time parameter prep (outside jit): gate reorder [i,f,g,o] -> [i,f,o,g],
# hd padded to 128 lanes, E padded to 128, tags padded to 128, bf16 casts for
# the two MXU GEMM weights.  All padding is with zeros and is exact (padded
# gate lanes stay at h == c == 0 forever; padded rows/cols contribute 0).
# ----------------------------------------------------------------------------
def prepare_mner_params(params, *, e_align=128, hd_align=128, tag_align=128):
    e_in = params["wih_f"].shape[0]
    hd = params["whh_f"].shape[0]
    num_tags = params["w_proj"].shape[1]
    hd_p = _round_up(hd, hd_align)
    nt_pad = _round_up(num_tags, tag_align)
    e_pad = _round_up(e_in, e_align)

    def gate_cols(w):
        # (..., 4hd) in torch order [i, f, g, o] -> [i, f, o, g], each gate
        # padded to hd_p columns
        blocks = [w[..., 0 * hd:1 * hd], w[..., 1 * hd:2 * hd],
                  w[..., 3 * hd:4 * hd], w[..., 2 * hd:3 * hd]]
        pad = [(0, 0)] * (w.ndim - 1) + [(0, hd_p - hd)]
        return jnp.concatenate([jnp.pad(b, pad) for b in blocks], axis=-1)

    wih_f = jnp.pad(gate_cols(params["wih_f"]), ((0, e_pad - e_in), (0, 0)))
    wih_r = jnp.pad(gate_cols(params["wih_r"]), ((0, e_pad - e_in), (0, 0)))
    w_cat = jnp.concatenate([wih_f, wih_r], axis=1).astype(jnp.bfloat16)
    b_cat = jnp.concatenate([gate_cols(params["b_f"]),
                             gate_cols(params["b_r"])], axis=1).astype(jnp.float32)

    def prep_whh(w):
        return jnp.pad(gate_cols(w), ((0, hd_p - hd), (0, 0)))

    whh2 = jnp.stack([prep_whh(params["whh_f"]),
                      prep_whh(params["whh_r"])]).astype(jnp.float32)

    wp = params["w_proj"]

    def prep_wp(w_half):
        return jnp.pad(w_half, ((0, hd_p - hd), (0, nt_pad - num_tags)))

    wp2 = jnp.stack([prep_wp(wp[:hd]), prep_wp(wp[hd:])]).astype(jnp.bfloat16)
    bp = jnp.pad(params["b_proj"], (0, nt_pad - num_tags)).reshape(1, nt_pad)
    bp2 = jnp.stack([bp, jnp.zeros_like(bp)]).astype(jnp.float32)

    return {"w_cat": w_cat, "b_cat": b_cat, "whh2": whh2,
            "wp2": wp2, "bp2": bp2}


# ----------------------------------------------------------------------------
# MNER forward (core compute path)
# ----------------------------------------------------------------------------
def mner_forward(embed_flair, sentence_lens, prepped, *, num_tags,
                 tt_max=32, tk_max=512):
    """embed_flair: [B, T, E] float32; sentence_lens: [B] int32.
    Returns out: [T, B, num_tags] — same as PyTorch's out.permute(1, 0, 2)."""
    n_b, t_len, e_in = embed_flair.shape
    e_pad = prepped["w_cat"].shape[0]

    tt = min(tt_max, _round_up(t_len, 8))
    t_pad = _round_up(t_len, tt)
    tk = min(tk_max, e_pad)
    while e_pad % tk:           # e_pad is a multiple of 128, so this terminates
        tk -= 128

    x = jnp.pad(embed_flair.astype(jnp.bfloat16),
                ((0, 0), (0, t_pad - t_len), (0, e_pad - e_in)))
    lens = sentence_lens.reshape(n_b, 1).astype(jnp.int32)

    # 1) hoisted, K-tiled, bf16 input projection -> time-major fused gates
    gates = _input_projection(x, prepped["w_cat"], prepped["b_cat"], tt=tt, tk=tk)

    # 2) fused bidirectional recurrence + per-direction projected partials
    out2 = _bilstm_projection(gates, lens, prepped["whh2"], prepped["wp2"],
                              prepped["bp2"], tt=tt)

    # 3) combine direction partials (bias was added once, in the fwd partial)
    out = out2[0] + out2[1]
    return out[:t_len, :, :num_tags]           # [T, B, num_tags]


# ----------------------------------------------------------------------------
# Pure-JAX reference (same semantics & same bf16/f32 mixed precision) for a
# correctness check.
# ----------------------------------------------------------------------------
def mner_forward_ref(embed_flair, sentence_lens, params):
    x = jnp.transpose(embed_flair, (1, 0, 2))          # (T, B, E)
    lens = sentence_lens.astype(jnp.int32)
    bf = jnp.bfloat16

    def run(wih, whh, b, reverse):
        t_len, n_b, _ = x.shape
        hd = whh.shape[0]
        gx = jnp.dot(x.astype(bf), wih.astype(bf),
                     preferred_element_type=jnp.float32)   # (T, B, 4hd)
        h = jnp.zeros((n_b, hd), jnp.float32)
        c = jnp.zeros((n_b, hd), jnp.float32)
        ys = [None] * t_len
        order = range(t_len - 1, -1, -1) if reverse else range(t_len)
        for pos in order:
            gates = gx[pos] + jnp.dot(h, whh) + b
            i = jax.nn.sigmoid(gates[:, :hd])
            f = jax.nn.sigmoid(gates[:, hd:2 * hd])
            g = jnp.tanh(gates[:, 2 * hd:3 * hd])
            o = jax.nn.sigmoid(gates[:, 3 * hd:])
            c_new = f * c + i * g
            h_new = o * jnp.tanh(c_new)
            m = (pos < lens)[:, None]
            h = jnp.where(m, h_new, h)
            c = jnp.where(m, c_new, c)
            ys[pos] = jnp.where(m, h_new, 0.0)
        return jnp.stack(ys, axis=0)

    h_f = run(params["wih_f"], params["whh_f"], params["b_f"], False)
    h_r = run(params["wih_r"], params["whh_r"], params["b_r"], True)
    y = jnp.concatenate([h_f, h_r], axis=-1)
    return (jnp.dot(y.astype(bf), params["w_proj"].astype(bf),
                    preferred_element_type=jnp.float32)
            + params["b_proj"])


# ----------------------------------------------------------------------------
if __name__ == "__main__":
    # small synthetic shapes (the real module has E = 768 + flair emb length)
    B, T = 2, 8
    E = 64                       # input_embeddding_size (synthetic, small)
    hidden_dimension = 32        # params.hidden_dimension
    hd = hidden_dimension // 2   # per-direction hidden size
    num_tags = 10                # num_of_tags
    # params.n_layers == 1 here

    key = jax.random.PRNGKey(0)
    ks = jax.random.split(key, 12)
    s = 1.0 / jnp.sqrt(hd)

    params = {
        # forward direction: W_ih^T [E, 4hd], W_hh^T [hd, 4hd], bias_ih+bias_hh [1, 4hd]
        "wih_f": jax.random.uniform(ks[0], (E, 4 * hd), jnp.float32, -s, s),
        "whh_f": jax.random.uniform(ks[1], (hd, 4 * hd), jnp.float32, -s, s),
        "b_f": jax.random.uniform(ks[2], (1, 4 * hd), jnp.float32, -s, s)
               + jax.random.uniform(ks[3], (1, 4 * hd), jnp.float32, -s, s),
        # reverse direction
        "wih_r": jax.random.uniform(ks[4], (E, 4 * hd), jnp.float32, -s, s),
        "whh_r": jax.random.uniform(ks[5], (hd, 4 * hd), jnp.float32, -s, s),
        "b_r": jax.random.uniform(ks[6], (1, 4 * hd), jnp.float32, -s, s)
               + jax.random.uniform(ks[7], (1, 4 * hd), jnp.float32, -s, s),
        # projection Linear(hidden_dimension, num_tags)
        "w_proj": jax.random.uniform(ks[8], (hidden_dimension, num_tags),
                                     jnp.float32, -0.1, 0.1),
        "b_proj": jax.random.uniform(ks[9], (num_tags,), jnp.float32, -0.1, 0.1),
    }

    embed_flair = jax.random.normal(ks[10], (B, T, E), jnp.float32)  # [B, T, E]
    sentence_lens = jnp.array([T, 5], dtype=jnp.int32)               # sorted desc

    prepped = prepare_mner_params(params)          # one-time, outside jit
    fwd = jax.jit(functools.partial(mner_forward, num_tags=num_tags))
    out = fwd(embed_flair, sentence_lens, prepped)
    out = jax.block_until_ready(out)

    ref = mner_forward_ref(embed_flair, sentence_lens, params)
    assert out.shape == (T, B, num_tags), out.shape
    assert jnp.allclose(out, ref, atol=2e-3, rtol=2e-3), \
        float(jnp.max(jnp.abs(out - ref)))

    print("KERNEL_OK")
</pallas_src>

<mosaic_0001>
module attributes {stable_mosaic.version = 11 : i64} {
  func.func @_input_proj_kernel(%arg0: i32, %arg1: i32, %arg2: memref<2x8x128xbf16, #tpu.memory_space<vmem>>, %arg3: memref<128x1024xbf16, #tpu.memory_space<vmem>>, %arg4: memref<1x1024xf32, #tpu.memory_space<vmem>>, %arg5: memref<8x2x1024xf32, #tpu.memory_space<vmem>>, %arg6: memref<16x1024xf32, #tpu.memory_space<vmem>>) attributes {dimension_semantics = [#tpu.dimension_semantics<parallel>, #tpu.dimension_semantics<arbitrary>], iteration_bounds = array<i64: 1, 1>, scalar_prefetch = 0 : i64, scratch_operands = 1 : i64, tpu.core_type = #tpu.core_type<tc>, window_params = [{transform_indices = @transform_0, window_bounds = array<i64: 2, 8, 128>}, {transform_indices = @transform_1, window_bounds = array<i64: 128, 1024>}, {pipeline_mode = #tpu.pipeline_mode<synchronous>, transform_indices = @transform_2, window_bounds = array<i64: 1, 1024>}, {transform_indices = @transform_3, window_bounds = array<i64: 8, 2, 1024>}]} {
    %c0_i32 = arith.constant 0 : i32
    %0 = arith.cmpi eq, %arg1, %c0_i32 : i32
    %1 = arith.extui %0 : i1 to i32
    %c0_i32_0 = arith.constant 0 : i32
    %2 = arith.cmpi ne, %1, %c0_i32_0 : i32
    scf.if %2 {
      %c0_11 = arith.constant 0 : index
      %c0_12 = arith.constant 0 : index
      %13 = vector.load %arg4[%c0_11, %c0_12] : memref<1x1024xf32, #tpu.memory_space<vmem>>, vector<1x1024xf32>
      %14 = vector.shape_cast %13 : vector<1x1024xf32> to vector<1x1024xf32>
      %15 = vector.broadcast %14 : vector<1x1024xf32> to vector<16x1024xf32>
      %c0_13 = arith.constant 0 : index
      %c0_14 = arith.constant 0 : index
      %16 = vector.load %arg6[%c0_13, %c0_14] : memref<16x1024xf32, #tpu.memory_space<vmem>>, vector<16x1024xf32>
      tpu.vector_store %arg6[%c0_13, %c0_14], %15 {strides = array<i32>} : memref<16x1024xf32, #tpu.memory_space<vmem>>, vector<16x1024xf32>,
    } else {
    }
    %c0 = arith.constant 0 : index
    %c0_1 = arith.constant 0 : index
    %c0_2 = arith.constant 0 : index
    %3 = vector.load %arg2[%c0, %c0_1, %c0_2] : memref<2x8x128xbf16, #tpu.memory_space<vmem>>, vector<2x8x128xbf16>
    %4 = vector.shape_cast %3 : vector<2x8x128xbf16> to vector<16x128xbf16>
    %c0_3 = arith.constant 0 : index
    %c0_4 = arith.constant 0 : index
    %5 = vector.load %arg6[%c0_3, %c0_4] : memref<16x1024xf32, #tpu.memory_space<vmem>>, vector<16x1024xf32>
    %c0_5 = arith.constant 0 : index
    %c0_6 = arith.constant 0 : index
    %6 = vector.load %arg3[%c0_5, %c0_6] : memref<128x1024xbf16, #tpu.memory_space<vmem>>, vector<128x1024xbf16>
    %cst = arith.constant dense<0.000000e+00> : vector<16x1024xf32>
    %7 = tpu.matmul %4, %6, %cst {dimension_numbers = #tpu.dot_dimension_numbers<[1], [0], [0], [1], [0, 0, 1, 1], [], []>} : vector<16x128xbf16>, vector<128x1024xbf16>, vector<16x1024xf32> -> vector<16x1024xf32>
    %8 = arith.addf %5, %7 : vector<16x1024xf32>
    %c0_7 = arith.constant 0 : index
    %c0_8 = arith.constant 0 : index
    %9 = vector.load %arg6[%c0_7, %c0_8] : memref<16x1024xf32, #tpu.memory_space<vmem>>, vector<16x1024xf32>
    tpu.vector_store %arg6[%c0_7, %c0_8], %8 {strides = array<i32>} : memref<16x1024xf32, #tpu.memory_space<vmem>>, vector<16x1024xf32>,
    %c0_i32_9 = arith.constant 0 : i32
    %10 = arith.cmpi eq, %arg1, %c0_i32_9 : i32
    %11 = arith.extui %10 : i1 to i32
    %c0_i32_10 = arith.constant 0 : i32
    %12 = arith.cmpi ne, %11, %c0_i32_10 : i32
    scf.if %12 {
      %c0_11 = arith.constant 0 : index
      %c0_12 = arith.constant 0 : index
      %13 = vector.load %arg6[%c0_11, %c0_12] : memref<16x1024xf32, #tpu.memory_space<vmem>>, vector<16x1024xf32>
      %14 = vector.shape_cast %13 : vector<16x1024xf32> to vector<2x8x1024xf32>
      %15 = vector.extract_strided_slice %14 {offsets = [0, 0, 0], sizes = [2, 1, 1024], strides = [1, 1, 1]} : vector<2x8x1024xf32> to vector<2x1x1024xf32>
      %16 = vector.shape_cast %15 : vector<2x1x1024xf32> to vector<2x1024xf32>
      %c0_13 = arith.constant 0 : index
      %c0_14 = arith.constant 0 : index
      %c0_15 = arith.constant 0 : index
      %17 = vector.load %arg5[%c0_13, %c0_14, %c0_15] : memref<8x2x1024xf32, #tpu.memory_space<vmem>>, vector<1x2x1024xf32>
      %18 = vector.shape_cast %17 : vector<1x2x1024xf32> to vector<2x1024xf32>
      %19 = vector.shape_cast %16 : vector<2x1024xf32> to vector<1x2x1024xf32>
      tpu.vector_store %arg5[%c0_13, %c0_14, %c0_15], %19 {strides = array<i32>} : memref<8x2x1024xf32, #tpu.memory_space<vmem>>, vector<1x2x1024xf32>,
      %20 = vector.extract_strided_slice %14 {offsets = [0, 1, 0], sizes = [2, 1, 1024], strides = [1, 1, 1]} : vector<2x8x1024xf32> to vector<2x1x1024xf32>
      %21 = vector.shape_cast %20 : vector<2x1x1024xf32> to vector<2x1024xf32>
      %c1 = arith.constant 1 : index
      %c0_16 = arith.constant 0 : index
      %c0_17 = arith.constant 0 : index
      %22 = vector.load %arg5[%c1, %c0_16, %c0_17] : memref<8x2x1024xf32, #tpu.memory_space<vmem>>, vector<1x2x1024xf32>
      %23 = vector.shape_cast %22 : vector<1x2x1024xf32> to vector<2x1024xf32>
      %24 = vector.shape_cast %21 : vector<2x1024xf32> to vector<1x2x1024xf32>
      tpu.vector_store %arg5[%c1, %c0_16, %c0_17], %24 {strides = array<i32>} : memref<8x2x1024xf32, #tpu.memory_space<vmem>>, vector<1x2x1024xf32>,
      %25 = vector.extract_strided_slice %14 {offsets = [0, 2, 0], sizes = [2, 1, 1024], strides = [1, 1, 1]} : vector<2x8x1024xf32> to vector<2x1x1024xf32>
      %26 = vector.shape_cast %25 : vector<2x1x1024xf32> to vector<2x1024xf32>
      %c2 = arith.constant 2 : index
      %c0_18 = arith.constant 0 : index
      %c0_19 = arith.constant 0 : index
      %27 = vector.load %arg5[%c2, %c0_18, %c0_19] : memref<8x2x1024xf32, #tpu.memory_space<vmem>>, vector<1x2x1024xf32>
      %28 = vector.shape_cast %27 : vector<1x2x1024xf32> to vector<2x1024xf32>
      %29 = vector.shape_cast %26 : vector<2x1024xf32> to vector<1x2x1024xf32>
      tpu.vector_store %arg5[%c2, %c0_18, %c0_19], %29 {strides = array<i32>} : memref<8x2x1024xf32, #tpu.memory_space<vmem>>, vector<1x2x1024xf32>,
      %30 = vector.extract_strided_slice %14 {offsets = [0, 3, 0], sizes = [2, 1, 1024], strides = [1, 1, 1]} : vector<2x8x1024xf32> to vector<2x1x1024xf32>
      %31 = vector.shape_cast %30 : vector<2x1x1024xf32> to vector<2x1024xf32>
      %c3 = arith.constant 3 : index
      %c0_20 = arith.constant 0 : index
      %c0_21 = arith.constant 0 : index
      %32 = vector.load %arg5[%c3, %c0_20, %c0_21] : memref<8x2x1024xf32, #tpu.memory_space<vmem>>, vector<1x2x1024xf32>
      %33 = vector.shape_cast %32 : vector<1x2x1024xf32> to vector<2x1024xf32>
      %34 = vector.shape_cast %31 : vector<2x1024xf32> to vector<1x2x1024xf32>
      tpu.vector_store %arg5[%c3, %c0_20, %c0_21], %34 {strides = array<i32>} : memref<8x2x1024xf32, #tpu.memory_space<vmem>>, vector<1x2x1024xf32>,
      %35 = vector.extract_strided_slice %14 {offsets = [0, 4, 0], sizes = [2, 1, 1024], strides = [1, 1, 1]} : vector<2x8x1024xf32> to vector<2x1x1024xf32>
      %36 = vector.shape_cast %35 : vector<2x1x1024xf32> to vector<2x1024xf32>
      %c4 = arith.constant 4 : index
      %c0_22 = arith.constant 0 : index
      %c0_23 = arith.constant 0 : index
      %37 = vector.load %arg5[%c4, %c0_22, %c0_23] : memref<8x2x1024xf32, #tpu.memory_space<vmem>>, vector<1x2x1024xf32>
      %38 = vector.shape_cast %37 : vector<1x2x1024xf32> to vector<2x1024xf32>
      %39 = vector.shape_cast %36 : vector<2x1024xf32> to vector<1x2x1024xf32>
      tpu.vector_store %arg5[%c4, %c0_22, %c0_23], %39 {strides = array<i32>} : memref<8x2x1024xf32, #tpu.memory_space<vmem>>, vector<1x2x1024xf32>,
      %40 = vector.extract_strided_slice %14 {offsets = [0, 5, 0], sizes = [2, 1, 1024], strides = [1, 1, 1]} : vector<2x8x1024xf32> to vector<2x1x1024xf32>
      %41 = vector.shape_cast %40 : vector<2x1x1024xf32> to vector<2x1024xf32>
      %c5 = arith.constant 5 : index
      %c0_24 = arith.constant 0 : index
      %c0_25 = arith.constant 0 : index
      %42 = vector.load %arg5[%c5, %c0_24, %c0_25] : memref<8x2x1024xf32, #tpu.memory_space<vmem>>, vector<1x2x1024xf32>
      %43 = vector.shape_cast %42 : vector<1x2x1024xf32> to vector<2x1024xf32>
      %44 = vector.shape_cast %41 : vector<2x1024xf32> to vector<1x2x1024xf32>
      tpu.vector_store %arg5[%c5, %c0_24, %c0_25], %44 {strides = array<i32>} : memref<8x2x1024xf32, #tpu.memory_space<vmem>>, vector<1x2x1024xf32>,
      %45 = vector.extract_strided_slice %14 {offsets = [0, 6, 0], sizes = [2, 1, 1024], strides = [1, 1, 1]} : vector<2x8x1024xf32> to vector<2x1x1024xf32>
      %46 = vector.shape_cast %45 : vector<2x1x1024xf32> to vector<2x1024xf32>
      %c6 = arith.constant 6 : index
      %c0_26 = arith.constant 0 : index
      %c0_27 = arith.constant 0 : index
      %47 = vector.load %arg5[%c6, %c0_26, %c0_27] : memref<8x2x1024xf32, #tpu.memory_space<vmem>>, vector<1x2x1024xf32>
      %48 = vector.shape_cast %47 : vector<1x2x1024xf32> to vector<2x1024xf32>
      %49 = vector.shape_cast %46 : vector<2x1024xf32> to vector<1x2x1024xf32>
      tpu.vector_store %arg5[%c6, %c0_26, %c0_27], %49 {strides = array<i32>} : memref<8x2x1024xf32, #tpu.memory_space<vmem>>, vector<1x2x1024xf32>,
      %50 = vector.extract_strided_slice %14 {offsets = [0, 7, 0], sizes = [2, 1, 1024], strides = [1, 1, 1]} : vector<2x8x1024xf32> to vector<2x1x1024xf32>
      %51 = vector.shape_cast %50 : vector<2x1x1024xf32> to vector<2x1024xf32>
      %c7 = arith.constant 7 : index
      %c0_28 = arith.constant 0 : index
      %c0_29 = arith.constant 0 : index
      %52 = vector.load %arg5[%c7, %c0_28, %c0_29] : memref<8x2x1024xf32, #tpu.memory_space<vmem>>, vector<1x2x1024xf32>
      %53 = vector.shape_cast %52 : vector<1x2x1024xf32> to vector<2x1024xf32>
      %54 = vector.shape_cast %51 : vector<2x1024xf32> to vector<1x2x1024xf32>
      tpu.vector_store %arg5[%c7, %c0_28, %c0_29], %54 {strides = array<i32>} : memref<8x2x1024xf32, #tpu.memory_space<vmem>>, vector<1x2x1024xf32>,
    } else {
    }
    return
  }
  func.func @transform_0(%arg0: i32, %arg1: i32) -> (i32, i32, i32) {
    %c0_i32 = arith.constant 0 : i32
    %c0_i32_0 = arith.constant 0 : i32
    return %c0_i32, %arg0, %arg1 : i32, i32, i32
  }
  func.func @transform_1(%arg0: i32, %arg1: i32) -> (i32, i32) {
    %c0_i32 = arith.constant 0 : i32
    %c0_i32_0 = arith.constant 0 : i32
    return %arg1, %c0_i32 : i32, i32
  }
  func.func @transform_2(%arg0: i32, %arg1: i32) -> (i32, i32) {
    %c0_i32 = arith.constant 0 : i32
    %c0_i32_0 = arith.constant 0 : i32
    %c0_i32_1 = arith.constant 0 : i32
    return %c0_i32, %c0_i32_0 : i32, i32
  }
  func.func @transform_3(%arg0: i32, %arg1: i32) -> (i32, i32, i32) {
    %c0_i32 = arith.constant 0 : i32
    %c0_i32_0 = arith.constant 0 : i32
    %c0_i32_1 = arith.constant 0 : i32
    return %arg0, %c0_i32, %c0_i32_0 : i32, i32, i32
  }
}

module attributes {stable_mosaic.version = 11 : i64} {
  func.func @_bilstm_proj_kernel(%arg0: i32, %arg1: i32, %arg2: memref<8x2x512xf32, #tpu.memory_space<vmem>>, %arg3: memref<2x1xi32, #tpu.memory_space<vmem>>, %arg4: memref<1x128x512xf32, #tpu.memory_space<vmem>>, %arg5: memref<1x128x128xbf16, #tpu.memory_space<vmem>>, %arg6: memref<1x1x128xf32, #tpu.memory_space<vmem>>, %arg7: memref<1x8x2x128xf32, #tpu.memory_space<vmem>>, %arg8: memref<2x128xf32, #tpu.memory_space<vmem>>, %arg9: memref<2x128xf32, #tpu.memory_space<vmem>>) attributes {dimension_semantics = [#tpu.dimension_semantics<parallel>, #tpu.dimension_semantics<arbitrary>], iteration_bounds = array<i64: 2, 1>, scalar_prefetch = 0 : i64, scratch_operands = 2 : i64, tpu.core_type = #tpu.core_type<tc>, window_params = [{transform_indices = @transform_0, window_bounds = array<i64: 8, 2, 512>}, {pipeline_mode = #tpu.pipeline_mode<synchronous>, transform_indices = @transform_1, window_bounds = array<i64: 2, 1>}, {transform_indices = @transform_2, window_bounds = array<i64: 1, 128, 512>}, {transform_indices = @transform_3, window_bounds = array<i64: 1, 128, 128>}, {transform_indices = @transform_4, window_bounds = array<i64: 1, 1, 128>}, {transform_indices = @transform_5, window_bounds = array<i64: 1, 8, 2, 128>}]} {
    %c0_i32 = arith.constant 0 : i32
    %0 = arith.cmpi eq, %arg1, %c0_i32 : i32
    %1 = arith.extui %0 : i1 to i32
    %c0_i32_0 = arith.constant 0 : i32
    %2 = arith.cmpi ne, %1, %c0_i32_0 : i32
    scf.if %2 {
      %cst = arith.constant 0.000000e+00 : f32
      %21 = vector.broadcast %cst : f32 to vector<2x128xf32>
      %c0_10 = arith.constant 0 : index
      %c0_11 = arith.constant 0 : index
      %22 = vector.load %arg8[%c0_10, %c0_11] : memref<2x128xf32, #tpu.memory_space<vmem>>, vector<2x128xf32>
      tpu.vector_store %arg8[%c0_10, %c0_11], %21 {strides = array<i32>} : memref<2x128xf32, #tpu.memory_space<vmem>>, vector<2x128xf32>,
      %cst_12 = arith.constant 0.000000e+00 : f32
      %23 = vector.broadcast %cst_12 : f32 to vector<2x128xf32>
      %c0_13 = arith.constant 0 : index
      %c0_14 = arith.constant 0 : index
      %24 = vector.load %arg9[%c0_13, %c0_14] : memref<2x128xf32, #tpu.memory_space<vmem>>, vector<2x128xf32>
      tpu.vector_store %arg9[%c0_13, %c0_14], %23 {strides = array<i32>} : memref<2x128xf32, #tpu.memory_space<vmem>>, vector<2x128xf32>,
    } else {
    }
    %c2_i32 = arith.constant 2 : i32
    %3 = arith.muli %c2_i32, %arg1 : i32
    %c0_i32_1 = arith.constant 0 : i32
    %4 = arith.subi %c0_i32_1, %3 : i32
    %5 = arith.muli %arg0, %4 : i32
    %6 = arith.addi %arg1, %5 : i32
    %c8_i32 = arith.constant 8 : i32
    %7 = arith.muli %6, %c8_i32 : i32
    %c0 = arith.constant 0 : index
    %c0_2 = arith.constant 0 : index
    %8 = vector.load %arg3[%c0, %c0_2] : memref<2x1xi32, #tpu.memory_space<vmem>>, vector<2x1xi32>
    %9 = vector.shape_cast %8 : vector<2x1xi32> to vector<2x1xi32>
    %10 = vector.broadcast %9 : vector<2x1xi32> to vector<2x128xi32>
    %c0_3 = arith.constant 0 : index
    %c0_4 = arith.constant 0 : index
    %c0_5 = arith.constant 0 : index
    %11 = vector.load %arg6[%c0_3, %c0_4, %c0_5] : memref<1x1x128xf32, #tpu.memory_space<vmem>>, vector<1x1x128xf32>
    %12 = vector.shape_cast %11 : vector<1x1x128xf32> to vector<1x128xf32>
    %13 = vector.shape_cast %12 : vector<1x128xf32> to vector<1x128xf32>
    %14 = vector.broadcast %13 : vector<1x128xf32> to vector<2x128xf32>
    %c0_i32_6 = arith.constant 0 : i32
    %15 = arith.cmpi eq, %arg0, %c0_i32_6 : i32
    %16 = arith.extui %15 : i1 to i32
    %c0_i32_7 = arith.constant 0 : i32
    %17 = arith.cmpi ne, %16, %c0_i32_7 : i32
    scf.if %17 {
      %c0_10 = arith.constant 0 : index
      %c0_11 = arith.constant 0 : index
      %21 = vector.load %arg8[%c0_10, %c0_11] : memref<2x128xf32, #tpu.memory_space<vmem>>, vector<2x128xf32>
      %c0_12 = arith.constant 0 : index
      %c0_13 = arith.constant 0 : index
      %22 = vector.load %arg9[%c0_12, %c0_13] : memref<2x128xf32, #tpu.memory_space<vmem>>, vector<2x128xf32>
      %c0_14 = arith.constant 0 : index
      %c0_15 = arith.constant 0 : index
      %c0_16 = arith.constant 0 : index
      %23 = vector.load %arg2[%c0_14, %c0_15, %c0_16] : memref<8x2x512xf32, #tpu.memory_space<vmem>>, vector<1x2x512xf32>
      %24 = vector.shape_cast %23 : vector<1x2x512xf32> to vector<2x512xf32>
      %c0_17 = arith.constant 0 : index
      %c0_18 = arith.constant 0 : index
      %c0_19 = arith.constant 0 : index
      %25 = vector.load %arg4[%c0_17, %c0_18, %c0_19] : memref<1x128x512xf32, #tpu.memory_space<vmem>>, vector<1x128x512xf32>
      %26 = vector.shape_cast %25 : vector<1x128x512xf32> to vector<128x512xf32>
      %cst = arith.constant dense<0.000000e+00> : vector<2x512xf32>
      %27 = tpu.matmul %21, %26, %cst {dimension_numbers = #tpu.dot_dimension_numbers<[1], [0], [0], [1], [0, 0, 1, 1], [], []>} : vector<2x128xf32>, vector<128x512xf32>, vector<2x512xf32> -> vector<2x512xf32>
      %28 = arith.addf %24, %27 : vector<2x512xf32>
      %29 = vector.extract_strided_slice %28 {offsets = [0, 0], sizes = [2, 384], strides = [1, 1]} : vector<2x512xf32> to vector<2x384xf32>
      %30 = arith.negf %29 : vector<2x384xf32>
      %31 = math.exp %30 : vector<2x384xf32>
      %cst_20 = arith.constant 1.000000e+00 : f32
      %32 = vector.broadcast %cst_20 : f32 to vector<2x384xf32>
      %33 = arith.addf %32, %31 : vector<2x384xf32>
      %34 = arith.divf %32, %33 : vector<2x384xf32>
      %35 = vector.extract_strided_slice %34 {offsets = [0, 0], sizes = [2, 128], strides = [1, 1]} : vector<2x384xf32> to vector<2x128xf32>
      %36 = vector.extract_strided_slice %34 {offsets = [0, 128], sizes = [2, 128], strides = [1, 1]} : vector<2x384xf32> to vector<2x128xf32>
      %37 = vector.extract_strided_slice %34 {offsets = [0, 256], sizes = [2, 128], strides = [1, 1]} : vector<2x384xf32> to vector<2x128xf32>
      %38 = vector.extract_strided_slice %28 {offsets = [0, 384], sizes = [2, 128], strides = [1, 1]} : vector<2x512xf32> to vector<2x128xf32>
      %39 = math.tanh %38 : vector<2x128xf32>
      %40 = arith.mulf %36, %22 : vector<2x128xf32>
      %41 = arith.mulf %35, %39 : vector<2x128xf32>
      %42 = arith.addf %40, %41 : vector<2x128xf32>
      %43 = math.tanh %42 : vector<2x128xf32>
      %44 = arith.mulf %37, %43 : vector<2x128xf32>
      %c0_i32_21 = arith.constant 0 : i32
      %45 = arith.addi %7, %c0_i32_21 : i32
      %46 = vector.broadcast %45 : i32 to vector<2x128xi32>
      %47 = arith.cmpi slt, %46, %10 : vector<2x128xi32>
      %48 = arith.select %47, %44, %21 : vector<2x128xi1>, vector<2x128xf32>
      %49 = arith.select %47, %42, %22 : vector<2x128xi1>, vector<2x128xf32>
      %cst_22 = arith.constant 0.000000e+00 : f32
      %50 = vector.broadcast %cst_22 : f32 to vector<2x128xf32>
      %51 = arith.select %47, %44, %50 : vector<2x128xi1>, vector<2x128xf32>
      %52 = arith.truncf %51 : vector<2x128xf32> to vector<2x128xbf16>
      %c0_23 = arith.constant 0 : index
      %c0_24 = arith.constant 0 : index
      %c0_25 = arith.constant 0 : index
      %53 = vector.load %arg5[%c0_23, %c0_24, %c0_25] : memref<1x128x128xbf16, #tpu.memory_space<vmem>>, vector<1x128x128xbf16>
      %54 = vector.shape_cast %53 : vector<1x128x128xbf16> to vector<128x128xbf16>
      %cst_26 = arith.constant dense<0.000000e+00> : vector<2x128xf32>
      %55 = tpu.matmul %52, %54, %cst_26 {dimension_numbers = #tpu.dot_dimension_numbers<[1], [0], [0], [1], [0, 0, 1, 1], [], []>} : vector<2x128xbf16>, vector<128x128xbf16>, vector<2x128xf32> -> vector<2x128xf32>
      %56 = arith.addf %55, %14 : vector<2x128xf32>
      %c0_27 = arith.constant 0 : index
      %c0_28 = arith.constant 0 : index
      %c0_29 = arith.constant 0 : index
      %c0_30 = arith.constant 0 : index
      %57 = vector.load %arg7[%c0_27, %c0_28, %c0_29, %c0_30] : memref<1x8x2x128xf32, #tpu.memory_space<vmem>>, vector<1x1x2x128xf32>
      %58 = vector.shape_cast %57 : vector<1x1x2x128xf32> to vector<2x128xf32>
      %59 = vector.shape_cast %56 : vector<2x128xf32> to vector<1x1x2x128xf32>
      tpu.vector_store %arg7[%c0_27, %c0_28, %c0_29, %c0_30], %59 {strides = array<i32>} : memref<1x8x2x128xf32, #tpu.memory_space<vmem>>, vector<1x1x2x128xf32>,
      %c1 = arith.constant 1 : index
      %c0_31 = arith.constant 0 : index
      %c0_32 = arith.constant 0 : index
      %60 = vector.load %arg2[%c1, %c0_31, %c0_32] : memref<8x2x512xf32, #tpu.memory_space<vmem>>, vector<1x2x512xf32>
      %61 = vector.shape_cast %60 : vector<1x2x512xf32> to vector<2x512xf32>
      %c0_33 = arith.constant 0 : index
      %c0_34 = arith.constant 0 : index
      %c0_35 = arith.constant 0 : index
      %62 = vector.load %arg4[%c0_33, %c0_34, %c0_35] : memref<1x128x512xf32, #tpu.memory_space<vmem>>, vector<1x128x512xf32>
      %63 = vector.shape_cast %62 : vector<1x128x512xf32> to vector<128x512xf32>
      %cst_36 = arith.constant dense<0.000000e+00> : vector<2x512xf32>
      %64 = tpu.matmul %48, %63, %cst_36 {dimension_numbers = #tpu.dot_dimension_numbers<[1], [0], [0], [1], [0, 0, 1, 1], [], []>} : vector<2x128xf32>, vector<128x512xf32>, vector<2x512xf32> -> vector<2x512xf32>
      %65 = arith.addf %61, %64 : vector<2x512xf32>
      %66 = vector.extract_strided_slice %65 {offsets = [0, 0], sizes = [2, 384], strides = [1, 1]} : vector<2x512xf32> to vector<2x384xf32>
      %67 = arith.negf %66 : vector<2x384xf32>
      %68 = math.exp %67 : vector<2x384xf32>
      %cst_37 = arith.constant 1.000000e+00 : f32
      %69 = vector.broadcast %cst_37 : f32 to vector<2x384xf32>
      %70 = arith.addf %69, %68 : vector<2x384xf32>
      %71 = arith.divf %69, %70 : vector<2x384xf32>
      %72 = vector.extract_strided_slice %71 {offsets = [0, 0], sizes = [2, 128], strides = [1, 1]} : vector<2x384xf32> to vector<2x128xf32>
      %73 = vector.extract_strided_slice %71 {offsets = [0, 128], sizes = [2, 128], strides = [1, 1]} : vector<2x384xf32> to vector<2x128xf32>
      %74 = vector.extract_strided_slice %71 {offsets = [0, 256], sizes = [2, 128], strides = [1, 1]} : vector<2x384xf32> to vector<2x128xf32>
      %75 = vector.extract_strided_slice %65 {offsets = [0, 384], sizes = [2, 128], strides = [1, 1]} : vector<2x512xf32> to vector<2x128xf32>
      %76 = math.tanh %75 : vector<2x128xf32>
      %77 = arith.mulf %73, %49 : vector<2x128xf32>
      %78 = arith.mulf %72, %76 : vector<2x128xf32>
      %79 = arith.addf %77, %78 : vector<2x128xf32>
      %80 = math.tanh %79 : vector<2x128xf32>
      %81 = arith.mulf %74, %80 : vector<2x128xf32>
      %c1_i32 = arith.constant 1 : i32
      %82 = arith.addi %7, %c1_i32 : i32
      %83 = vector.broadcast %82 : i32 to vector<2x128xi32>
      %84 = arith.cmpi slt, %83, %10 : vector<2x128xi32>
      %85 = arith.select %84, %81, %48 : vector<2x128xi1>, vector<2x128xf32>
      %86 = arith.select %84, %79, %49 : vector<2x128xi1>, vector<2x128xf32>
      %cst_38 = arith.constant 0.000000e+00 : f32
      %87 = vector.broadcast %cst_38 : f32 to vector<2x128xf32>
      %88 = arith.select %84, %81, %87 : vector<2x128xi1>, vector<2x128xf32>
      %89 = arith.truncf %88 : vector<2x128xf32> to vector<2x128xbf16>
      %c0_39 = arith.constant 0 : index
      %c0_40 = arith.constant 0 : index
      %c0_41 = arith.constant 0 : index
      %90 = vector.load %arg5[%c0_39, %c0_40, %c0_41] : memref<1x128x128xbf16, #tpu.memory_space<vmem>>, vector<1x128x128xbf16>
      %91 = vector.shape_cast %90 : vector<1x128x128xbf16> to vector<128x128xbf16>
      %cst_42 = arith.constant dense<0.000000e+00> : vector<2x128xf32>
      %92 = tpu.matmul %89, %91, %cst_42 {dimension_numbers = #tpu.dot_dimension_numbers<[1], [0], [0], [1], [0, 0, 1, 1], [], []>} : vector<2x128xbf16>, vector<128x128xbf16>, vector<2x128xf32> -> vector<2x128xf32>
      %93 = arith.addf %92, %14 : vector<2x128xf32>
      %c0_43 = arith.constant 0 : index
      %c1_44 = arith.constant 1 : index
      %c0_45 = arith.constant 0 : index
      %c0_46 = arith.constant 0 : index
      %94 = vector.load %arg7[%c0_43, %c1_44, %c0_45, %c0_46] : memref<1x8x2x128xf32, #tpu.memory_space<vmem>>, vector<1x1x2x128xf32>
      %95 = vector.shape_cast %94 : vector<1x1x2x128xf32> to vector<2x128xf32>
      %96 = vector.shape_cast %93 : vector<2x128xf32> to vector<1x1x2x128xf32>
      tpu.vector_store %arg7[%c0_43, %c1_44, %c0_45, %c0_46], %96 {strides = array<i32>} : memref<1x8x2x128xf32, #tpu.memory_space<vmem>>, vector<1x1x2x128xf32>,
      %c2 = arith.constant 2 : index
      %c0_47 = arith.constant 0 : index
      %c0_48 = arith.constant 0 : index
      %97 = vector.load %arg2[%c2, %c0_47, %c0_48] : memref<8x2x512xf32, #tpu.memory_space<vmem>>, vector<1x2x512xf32>
      %98 = vector.shape_cast %97 : vector<1x2x512xf32> to vector<2x512xf32>
      %c0_49 = arith.constant 0 : index
      %c0_50 = arith.constant 0 : index
      %c0_51 = arith.constant 0 : index
      %99 = vector.load %arg4[%c0_49, %c0_50, %c0_51] : memref<1x128x512xf32, #tpu.memory_space<vmem>>, vector<1x128x512xf32>
      %100 = vector.shape_cast %99 : vector<1x128x512xf32> to vector<128x512xf32>
      %cst_52 = arith.constant dense<0.000000e+00> : vector<2x512xf32>
      %101 = tpu.matmul %85, %100, %cst_52 {dimension_numbers = #tpu.dot_dimension_numbers<[1], [0], [0], [1], [0, 0, 1, 1], [], []>} : vector<2x128xf32>, vector<128x512xf32>, vector<2x512xf32> -> vector<2x512xf32>
      %102 = arith.addf %98, %101 : vector<2x512xf32>
      %103 = vector.extract_strided_slice %102 {offsets = [0, 0], sizes = [2, 384], strides = [1, 1]} : vector<2x512xf32> to vector<2x384xf32>
      %104 = arith.negf %103 : vector<2x384xf32>
      %105 = math.exp %104 : vector<2x384xf32>
      %cst_53 = arith.constant 1.000000e+00 : f32
      %106 = vector.broadcast %cst_53 : f32 to vector<2x384xf32>
      %107 = arith.addf %106, %105 : vector<2x384xf32>
      %108 = arith.divf %106, %107 : vector<2x384xf32>
      %109 = vector.extract_strided_slice %108 {offsets = [0, 0], sizes = [2, 128], strides = [1, 1]} : vector<2x384xf32> to vector<2x128xf32>
      %110 = vector.extract_strided_slice %108 {offsets = [0, 128], sizes = [2, 128], strides = [1, 1]} : vector<2x384xf32> to vector<2x128xf32>
      %111 = vector.extract_strided_slice %108 {offsets = [0, 256], sizes = [2, 128], strides = [1, 1]} : vector<2x384xf32> to vector<2x128xf32>
      %112 = vector.extract_strided_slice %102 {offsets = [0, 384], sizes = [2, 128], strides = [1, 1]} : vector<2x512xf32> to vector<2x128xf32>
      %113 = math.tanh %112 : vector<2x128xf32>
      %114 = arith.mulf %110, %86 : vector<2x128xf32>
      %115 = arith.mulf %109, %113 : vector<2x128xf32>
      %116 = arith.addf %114, %115 : vector<2x128xf32>
      %117 = math.tanh %116 : vector<2x128xf32>
      %118 = arith.mulf %111, %117 : vector<2x128xf32>
      %c2_i32_54 = arith.constant 2 : i32
      %119 = arith.addi %7, %c2_i32_54 : i32
      %120 = vector.broadcast %119 : i32 to vector<2x128xi32>
      %121 = arith.cmpi slt, %120, %10 : vector<2x128xi32>
      %122 = arith.select %121, %118, %85 : vector<2x128xi1>, vector<2x128xf32>
      %123 = arith.select %121, %116, %86 : vector<2x128xi1>, vector<2x128xf32>
      %cst_55 = arith.constant 0.000000e+00 : f32
      %124 = vector.broadcast %cst_55 : f32 to vector<2x128xf32>
      %125 = arith.select %121, %118, %124 : vector<2x128xi1>, vector<2x128xf32>
      %126 = arith.truncf %125 : vector<2x128xf32> to vector<2x128xbf16>
      %c0_56 = arith.constant 0 : index
      %c0_57 = arith.constant 0 : index
      %c0_58 = arith.constant 0 : index
      %127 = vector.load %arg5[%c0_56, %c0_57, %c0_58] : memref<1x128x128xbf16, #tpu.memory_space<vmem>>, vector<1x128x128xbf16>
      %128 = vector.shape_cast %127 : vector<1x128x128xbf16> to vector<128x128xbf16>
      %cst_59 = arith.constant dense<0.000000e+00> : vector<2x128xf32>
      %129 = tpu.matmul %126, %128, %cst_59 {dimension_numbers = #tpu.dot_dimension_numbers<[1], [0], [0], [1], [0, 0, 1, 1], [], []>} : vector<2x128xbf16>, vector<128x128xbf16>, vector<2x128xf32> -> vector<2x128xf32>
      %130 = arith.addf %129, %14 : vector<2x128xf32>
      %c0_60 = arith.constant 0 : index
      %c2_61 = arith.constant 2 : index
      %c0_62 = arith.constant 0 : index
      %c0_63 = arith.constant 0 : index
      %131 = vector.load %arg7[%c0_60, %c2_61, %c0_62, %c0_63] : memref<1x8x2x128xf32, #tpu.memory_space<vmem>>, vector<1x1x2x128xf32>
      %132 = vector.shape_cast %131 : vector<1x1x2x128xf32> to vector<2x128xf32>
      %133 = vector.shape_cast %130 : vector<2x128xf32> to vector<1x1x2x128xf32>
      tpu.vector_store %arg7[%c0_60, %c2_61, %c0_62, %c0_63], %133 {strides = array<i32>} : memref<1x8x2x128xf32, #tpu.memory_space<vmem>>, vector<1x1x2x128xf32>,
      %c3 = arith.constant 3 : index
      %c0_64 = arith.constant 0 : index
      %c0_65 = arith.constant 0 : index
      %134 = vector.load %arg2[%c3, %c0_64, %c0_65] : memref<8x2x512xf32, #tpu.memory_space<vmem>>, vector<1x2x512xf32>
      %135 = vector.shape_cast %134 : vector<1x2x512xf32> to vector<2x512xf32>
      %c0_66 = arith.constant 0 : index
      %c0_67 = arith.constant 0 : index
      %c0_68 = arith.constant 0 : index
      %136 = vector.load %arg4[%c0_66, %c0_67, %c0_68] : memref<1x128x512xf32, #tpu.memory_space<vmem>>, vector<1x128x512xf32>
      %137 = vector.shape_cast %136 : vector<1x128x512xf32> to vector<128x512xf32>
      %cst_69 = arith.constant dense<0.000000e+00> : vector<2x512xf32>
      %138 = tpu.matmul %122, %137, %cst_69 {dimension_numbers = #tpu.dot_dimension_numbers<[1], [0], [0], [1], [0, 0, 1, 1], [], []>} : vector<2x128xf32>, vector<128x512xf32>, vector<2x512xf32> -> vector<2x512xf32>
      %139 = arith.addf %135, %138 : vector<2x512xf32>
      %140 = vector.extract_strided_slice %139 {offsets = [0, 0], sizes = [2, 384], strides = [1, 1]} : vector<2x512xf32> to vector<2x384xf32>
      %141 = arith.negf %140 : vector<2x384xf32>
      %142 = math.exp %141 : vector<2x384xf32>
      %cst_70 = arith.constant 1.000000e+00 : f32
      %143 = vector.broadcast %cst_70 : f32 to vector<2x384xf32>
      %144 = arith.addf %143, %142 : vector<2x384xf32>
      %145 = arith.divf %143, %144 : vector<2x384xf32>
      %146 = vector.extract_strided_slice %145 {offsets = [0, 0], sizes = [2, 128], strides = [1, 1]} : vector<2x384xf32> to vector<2x128xf32>
      %147 = vector.extract_strided_slice %145 {offsets = [0, 128], sizes = [2, 128], strides = [1, 1]} : vector<2x384xf32> to vector<2x128xf32>
      %148 = vector.extract_strided_slice %145 {offsets = [0, 256], sizes = [2, 128], strides = [1, 1]} : vector<2x384xf32> to vector<2x128xf32>
      %149 = vector.extract_strided_slice %139 {offsets = [0, 384], sizes = [2, 128], strides = [1, 1]} : vector<2x512xf32> to vector<2x128xf32>
      %150 = math.tanh %149 : vector<2x128xf32>
      %151 = arith.mulf %147, %123 : vector<2x128xf32>
      %152 = arith.mulf %146, %150 : vector<2x128xf32>
      %153 = arith.addf %151, %152 : vector<2x128xf32>
      %154 = math.tanh %153 : vector<2x128xf32>
      %155 = arith.mulf %148, %154 : vector<2x128xf32>
      %c3_i32 = arith.constant 3 : i32
      %156 = arith.addi %7, %c3_i32 : i32
      %157 = vector.broadcast %156 : i32 to vector<2x128xi32>
      %158 = arith.cmpi slt, %157, %10 : vector<2x128xi32>
      %159 = arith.select %158, %155, %122 : vector<2x128xi1>, vector<2x128xf32>
      %160 = arith.select %158, %153, %123 : vector<2x128xi1>, vector<2x128xf32>
      %cst_71 = arith.constant 0.000000e+00 : f32
      %161 = vector.broadcast %cst_71 : f32 to vector<2x128xf32>
      %162 = arith.select %158, %155, %161 : vector<2x128xi1>, vector<2x128xf32>
      %163 = arith.truncf %162 : vector<2x128xf32> to vector<2x128xbf16>
      %c0_72 = arith.constant 0 : index
      %c0_73 = arith.constant 0 : index
      %c0_74 = arith.constant 0 : index
      %164 = vector.load %arg5[%c0_72, %c0_73, %c0_74] : memref<1x128x128xbf16, #tpu.memory_space<vmem>>, vector<1x128x128xbf16>
      %165 = vector.shape_cast %164 : vector<1x128x128xbf16> to vector<128x128xbf16>
      %cst_75 = arith.constant dense<0.000000e+00> : vector<2x128xf32>
      %166 = tpu.matmul %163, %165, %cst_75 {dimension_numbers = #tpu.dot_dimension_numbers<[1], [0], [0], [1], [0, 0, 1, 1], [], []>} : vector<2x128xbf16>, vector<128x128xbf16>, vector<2x128xf32> -> vector<2x128xf32>
      %167 = arith.addf %166, %14 : vector<2x128xf32>
      %c0_76 = arith.constant 0 : index
      %c3_77 = arith.constant 3 : index
      %c0_78 = arith.constant 0 : index
      %c0_79 = arith.constant 0 : index
      %168 = vector.load %arg7[%c0_76, %c3_77, %c0_78, %c0_79] : memref<1x8x2x128xf32, #tpu.memory_space<vmem>>, vector<1x1x2x128xf32>
      %169 = vector.shape_cast %168 : vector<1x1x2x128xf32> to vector<2x128xf32>
      %170 = vector.shape_cast %167 : vector<2x128xf32> to vector<1x1x2x128xf32>
      tpu.vector_store %arg7[%c0_76, %c3_77, %c0_78, %c0_79], %170 {strides = array<i32>} : memref<1x8x2x128xf32, #tpu.memory_space<vmem>>, vector<1x1x2x128xf32>,
      %c4 = arith.constant 4 : index
      %c0_80 = arith.constant 0 : index
      %c0_81 = arith.constant 0 : index
      %171 = vector.load %arg2[%c4, %c0_80, %c0_81] : memref<8x2x512xf32, #tpu.memory_space<vmem>>, vector<1x2x512xf32>
      %172 = vector.shape_cast %171 : vector<1x2x512xf32> to vector<2x512xf32>
      %c0_82 = arith.constant 0 : index
      %c0_83 = arith.constant 0 : index
      %c0_84 = arith.constant 0 : index
      %173 = vector.load %arg4[%c0_82, %c0_83, %c0_84] : memref<1x128x512xf32, #tpu.memory_space<vmem>>, vector<1x128x512xf32>
      %174 = vector.shape_cast %173 : vector<1x128x512xf32> to vector<128x512xf32>
      %cst_85 = arith.constant dense<0.000000e+00> : vector<2x512xf32>
      %175 = tpu.matmul %159, %174, %cst_85 {dimension_numbers = #tpu.dot_dimension_numbers<[1], [0], [0], [1], [0, 0, 1, 1], [], []>} : vector<2x128xf32>, vector<128x512xf32>, vector<2x512xf32> -> vector<2x512xf32>
      %176 = arith.addf %172, %175 : vector<2x512xf32>
      %177 = vector.extract_strided_slice %176 {offsets = [0, 0], sizes = [2, 384], strides = [1, 1]} : vector<2x512xf32> to vector<2x384xf32>
      %178 = arith.negf %177 : vector<2x384xf32>
      %179 = math.exp %178 : vector<2x384xf32>
      %cst_86 = arith.constant 1.000000e+00 : f32
      %180 = vector.broadcast %cst_86 : f32 to vector<2x384xf32>
      %181 = arith.addf %180, %179 : vector<2x384xf32>
      %182 = arith.divf %180, %181 : vector<2x384xf32>
      %183 = vector.extract_strided_slice %182 {offsets = [0, 0], sizes = [2, 128], strides = [1, 1]} : vector<2x384xf32> to vector<2x128xf32>
      %184 = vector.extract_strided_slice %182 {offsets = [0, 128], sizes = [2, 128], strides = [1, 1]} : vector<2x384xf32> to vector<2x128xf32>
      %185 = vector.extract_strided_slice %182 {offsets = [0, 256], sizes = [2, 128], strides = [1, 1]} : vector<2x384xf32> to vector<2x128xf32>
      %186 = vector.extract_strided_slice %176 {offsets = [0, 384], sizes = [2, 128], strides = [1, 1]} : vector<2x512xf32> to vector<2x128xf32>
      %187 = math.tanh %186 : vector<2x128xf32>
      %188 = arith.mulf %184, %160 : vector<2x128xf32>
      %189 = arith.mulf %183, %187 : vector<2x128xf32>
      %190 = arith.addf %188, %189 : vector<2x128xf32>
      %191 = math.tanh %190 : vector<2x128xf32>
      %192 = arith.mulf %185, %191 : vector<2x128xf32>
      %c4_i32 = arith.constant 4 : i32
      %193 = arith.addi %7, %c4_i32 : i32
      %194 = vector.broadcast %193 : i32 to vector<2x128xi32>
      %195 = arith.cmpi slt, %194, %10 : vector<2x128xi32>
      %196 = arith.select %195, %192, %159 : vector<2x128xi1>, vector<2x128xf32>
      %197 = arith.select %195, %190, %160 : vector<2x128xi1>, vector<2x128xf32>
      %cst_87 = arith.constant 0.000000e+00 : f32
      %198 = vector.broadcast %cst_87 : f32 to vector<2x128xf32>
      %199 = arith.select %195, %192, %198 : vector<2x128xi1>, vector<2x128xf32>
      %200 = arith.truncf %199 : vector<2x128xf32> to vector<2x128xbf16>
      %c0_88 = arith.constant 0 : index
      %c0_89 = arith.constant 0 : index
      %c0_90 = arith.constant 0 : index
      %201 = vector.load %arg5[%c0_88, %c0_89, %c0_90] : memref<1x128x128xbf16, #tpu.memory_space<vmem>>, vector<1x128x128xbf16>
      %202 = vector.shape_cast %201 : vector<1x128x128xbf16> to vector<128x128xbf16>
      %cst_91 = arith.constant dense<0.000000e+00> : vector<2x128xf32>
      %203 = tpu.matmul %200, %202, %cst_91 {dimension_numbers = #tpu.dot_dimension_numbers<[1], [0], [0], [1], [0, 0, 1, 1], [], []>} : vector<2x128xbf16>, vector<128x128xbf16>, vector<2x128xf32> -> vector<2x128xf32>
      %204 = arith.addf %203, %14 : vector<2x128xf32>
      %c0_92 = arith.constant 0 : index
      %c4_93 = arith.constant 4 : index
      %c0_94 = arith.constant 0 : index
      %c0_95 = arith.constant 0 : index
      %205 = vector.load %arg7[%c0_92, %c4_93, %c0_94, %c0_95] : memref<1x8x2x128xf32, #tpu.memory_space<vmem>>, vector<1x1x2x128xf32>
      %206 = vector.shape_cast %205 : vector<1x1x2x128xf32> to vector<2x128xf32>
      %207 = vector.shape_cast %204 : vector<2x128xf32> to vector<1x1x2x128xf32>
      tpu.vector_store %arg7[%c0_92, %c4_93, %c0_94, %c0_95], %207 {strides = array<i32>} : memref<1x8x2x128xf32, #tpu.memory_space<vmem>>, vector<1x1x2x128xf32>,
      %c5 = arith.constant 5 : index
      %c0_96 = arith.constant 0 : index
      %c0_97 = arith.constant 0 : index
      %208 = vector.load %arg2[%c5, %c0_96, %c0_97] : memref<8x2x512xf32, #tpu.memory_space<vmem>>, vector<1x2x512xf32>
      %209 = vector.shape_cast %208 : vector<1x2x512xf32> to vector<2x512xf32>
      %c0_98 = arith.constant 0 : index
      %c0_99 = arith.constant 0 : index
      %c0_100 = arith.constant 0 : index
      %210 = vector.load %arg4[%c0_98, %c0_99, %c0_100] : memref<1x128x512xf32, #tpu.memory_space<vmem>>, vector<1x128x512xf32>
      %211 = vector.shape_cast %210 : vector<1x128x512xf32> to vector<128x512xf32>
      %cst_101 = arith.constant dense<0.000000e+00> : vector<2x512xf32>
      %212 = tpu.matmul %196, %211, %cst_101 {dimension_numbers = #tpu.dot_dimension_numbers<[1], [0], [0], [1], [0, 0, 1, 1], [], []>} : vector<2x128xf32>, vector<128x512xf32>, vector<2x512xf32> -> vector<2x512xf32>
      %213 = arith.addf %209, %212 : vector<2x512xf32>
      %214 = vector.extract_strided_slice %213 {offsets = [0, 0], sizes = [2, 384], strides = [1, 1]} : vector<2x512xf32> to vector<2x384xf32>
      %215 = arith.negf %214 : vector<2x384xf32>
      %216 = math.exp %215 : vector<2x384xf32>
      %cst_102 = arith.constant 1.000000e+00 : f32
      %217 = vector.broadcast %cst_102 : f32 to vector<2x384xf32>
      %218 = arith.addf %217, %216 : vector<2x384xf32>
      %219 = arith.divf %217, %218 : vector<2x384xf32>
      %220 = vector.extract_strided_slice %219 {offsets = [0, 0], sizes = [2, 128], strides = [1, 1]} : vector<2x384xf32> to vector<2x128xf32>
      %221 = vector.extract_strided_slice %219 {offsets = [0, 128], sizes = [2, 128], strides = [1, 1]} : vector<2x384xf32> to vector<2x128xf32>
      %222 = vector.extract_strided_slice %219 {offsets = [0, 256], sizes = [2, 128], strides = [1, 1]} : vector<2x384xf32> to vector<2x128xf32>
      %223 = vector.extract_strided_slice %213 {offsets = [0, 384], sizes = [2, 128], strides = [1, 1]} : vector<2x512xf32> to vector<2x128xf32>
      %224 = math.tanh %223 : vector<2x128xf32>
      %225 = arith.mulf %221, %197 : vector<2x128xf32>
      %226 = arith.mulf %220, %224 : vector<2x128xf32>
      %227 = arith.addf %225, %226 : vector<2x128xf32>
      %228 = math.tanh %227 : vector<2x128xf32>
      %229 = arith.mulf %222, %228 : vector<2x128xf32>
      %c5_i32 = arith.constant 5 : i32
      %230 = arith.addi %7, %c5_i32 : i32
      %231 = vector.broadcast %230 : i32 to vector<2x128xi32>
      %232 = arith.cmpi slt, %231, %10 : vector<2x128xi32>
      %233 = arith.select %232, %229, %196 : vector<2x128xi1>, vector<2x128xf32>
      %234 = arith.select %232, %227, %197 : vector<2x128xi1>, vector<2x128xf32>
      %cst_103 = arith.constant 0.000000e+00 : f32
      %235 = vector.broadcast %cst_103 : f32 to vector<2x128xf32>
      %236 = arith.select %232, %229, %235 : vector<2x128xi1>, vector<2x128xf32>
      %237 = arith.truncf %236 : vector<2x128xf32> to vector<2x128xbf16>
      %c0_104 = arith.constant 0 : index
      %c0_105 = arith.constant 0 : index
      %c0_106 = arith.constant 0 : index
      %238 = vector.load %arg5[%c0_104, %c0_105, %c0_106] : memref<1x128x128xbf16, #tpu.memory_space<vmem>>, vector<1x128x128xbf16>
      %239 = vector.shape_cast %238 : vector<1x128x128xbf16> to vector<128x128xbf16>
      %cst_107 = arith.constant dense<0.000000e+00> : vector<2x128xf32>
      %240 = tpu.matmul %237, %239, %cst_107 {dimension_numbers = #tpu.dot_dimension_numbers<[1], [0], [0], [1], [0, 0, 1, 1], [], []>} : vector<2x128xbf16>, vector<128x128xbf16>, vector<2x128xf32> -> vector<2x128xf32>
      %241 = arith.addf %240, %14 : vector<2x128xf32>
      %c0_108 = arith.constant 0 : index
      %c5_109 = arith.constant 5 : index
      %c0_110 = arith.constant 0 : index
      %c0_111 = arith.constant 0 : index
      %242 = vector.load %arg7[%c0_108, %c5_109, %c0_110, %c0_111] : memref<1x8x2x128xf32, #tpu.memory_space<vmem>>, vector<1x1x2x128xf32>
      %243 = vector.shape_cast %242 : vector<1x1x2x128xf32> to vector<2x128xf32>
      %244 = vector.shape_cast %241 : vector<2x128xf32> to vector<1x1x2x128xf32>
      tpu.vector_store %arg7[%c0_108, %c5_109, %c0_110, %c0_111], %244 {strides = array<i32>} : memref<1x8x2x128xf32, #tpu.memory_space<vmem>>, vector<1x1x2x128xf32>,
      %c6 = arith.constant 6 : index
      %c0_112 = arith.constant 0 : index
      %c0_113 = arith.constant 0 : index
      %245 = vector.load %arg2[%c6, %c0_112, %c0_113] : memref<8x2x512xf32, #tpu.memory_space<vmem>>, vector<1x2x512xf32>
      %246 = vector.shape_cast %245 : vector<1x2x512xf32> to vector<2x512xf32>
      %c0_114 = arith.constant 0 : index
      %c0_115 = arith.constant 0 : index
      %c0_116 = arith.constant 0 : index
      %247 = vector.load %arg4[%c0_114, %c0_115, %c0_116] : memref<1x128x512xf32, #tpu.memory_space<vmem>>, vector<1x128x512xf32>
      %248 = vector.shape_cast %247 : vector<1x128x512xf32> to vector<128x512xf32>
      %cst_117 = arith.constant dense<0.000000e+00> : vector<2x512xf32>
      %249 = tpu.matmul %233, %248, %cst_117 {dimension_numbers = #tpu.dot_dimension_numbers<[1], [0], [0], [1], [0, 0, 1, 1], [], []>} : vector<2x128xf32>, vector<128x512xf32>, vector<2x512xf32> -> vector<2x512xf32>
      %250 = arith.addf %246, %249 : vector<2x512xf32>
      %251 = vector.extract_strided_slice %250 {offsets = [0, 0], sizes = [2, 384], strides = [1, 1]} : vector<2x512xf32> to vector<2x384xf32>
      %252 = arith.negf %251 : vector<2x384xf32>
      %253 = math.exp %252 : vector<2x384xf32>
      %cst_118 = arith.constant 1.000000e+00 : f32
      %254 = vector.broadcast %cst_118 : f32 to vector<2x384xf32>
      %255 = arith.addf %254, %253 : vector<2x384xf32>
      %256 = arith.divf %254, %255 : vector<2x384xf32>
      %257 = vector.extract_strided_slice %256 {offsets = [0, 0], sizes = [2, 128], strides = [1, 1]} : vector<2x384xf32> to vector<2x128xf32>
      %258 = vector.extract_strided_slice %256 {offsets = [0, 128], sizes = [2, 128], strides = [1, 1]} : vector<2x384xf32> to vector<2x128xf32>
      %259 = vector.extract_strided_slice %256 {offsets = [0, 256], sizes = [2, 128], strides = [1, 1]} : vector<2x384xf32> to vector<2x128xf32>
      %260 = vector.extract_strided_slice %250 {offsets = [0, 384], sizes = [2, 128], strides = [1, 1]} : vector<2x512xf32> to vector<2x128xf32>
      %261 = math.tanh %260 : vector<2x128xf32>
      %262 = arith.mulf %258, %234 : vector<2x128xf32>
      %263 = arith.mulf %257, %261 : vector<2x128xf32>
      %264 = arith.addf %262, %263 : vector<2x128xf32>
      %265 = math.tanh %264 : vector<2x128xf32>
      %266 = arith.mulf %259, %265 : vector<2x128xf32>
      %c6_i32 = arith.constant 6 : i32
      %267 = arith.addi %7, %c6_i32 : i32
      %268 = vector.broadcast %267 : i32 to vector<2x128xi32>
      %269 = arith.cmpi slt, %268, %10 : vector<2x128xi32>
      %270 = arith.select %269, %266, %233 : vector<2x128xi1>, vector<2x128xf32>
      %271 = arith.select %269, %264, %234 : vector<2x128xi1>, vector<2x128xf32>
      %cst_119 = arith.constant 0.000000e+00 : f32
      %272 = vector.broadcast %cst_119 : f32 to vector<2x128xf32>
      %273 = arith.select %269, %266, %272 : vector<2x128xi1>, vector<2x128xf32>
      %274 = arith.truncf %273 : vector<2x128xf32> to vector<2x128xbf16>
      %c0_120 = arith.constant 0 : index
      %c0_121 = arith.constant 0 : index
      %c0_122 = arith.constant 0 : index
      %275 = vector.load %arg5[%c0_120, %c0_121, %c0_122] : memref<1x128x128xbf16, #tpu.memory_space<vmem>>, vector<1x128x128xbf16>
      %276 = vector.shape_cast %275 : vector<1x128x128xbf16> to vector<128x128xbf16>
      %cst_123 = arith.constant dense<0.000000e+00> : vector<2x128xf32>
      %277 = tpu.matmul %274, %276, %cst_123 {dimension_numbers = #tpu.dot_dimension_numbers<[1], [0], [0], [1], [0, 0, 1, 1], [], []>} : vector<2x128xbf16>, vector<128x128xbf16>, vector<2x128xf32> -> vector<2x128xf32>
      %278 = arith.addf %277, %14 : vector<2x128xf32>
      %c0_124 = arith.constant 0 : index
      %c6_125 = arith.constant 6 : index
      %c0_126 = arith.constant 0 : index
      %c0_127 = arith.constant 0 : index
      %279 = vector.load %arg7[%c0_124, %c6_125, %c0_126, %c0_127] : memref<1x8x2x128xf32, #tpu.memory_space<vmem>>, vector<1x1x2x128xf32>
      %280 = vector.shape_cast %279 : vector<1x1x2x128xf32> to vector<2x128xf32>
      %281 = vector.shape_cast %278 : vector<2x128xf32> to vector<1x1x2x128xf32>
      tpu.vector_store %arg7[%c0_124, %c6_125, %c0_126, %c0_127], %281 {strides = array<i32>} : memref<1x8x2x128xf32, #tpu.memory_space<vmem>>, vector<1x1x2x128xf32>,
      %c7 = arith.constant 7 : index
      %c0_128 = arith.constant 0 : index
      %c0_129 = arith.constant 0 : index
      %282 = vector.load %arg2[%c7, %c0_128, %c0_129] : memref<8x2x512xf32, #tpu.memory_space<vmem>>, vector<1x2x512xf32>
      %283 = vector.shape_cast %282 : vector<1x2x512xf32> to vector<2x512xf32>
      %c0_130 = arith.constant 0 : index
      %c0_131 = arith.constant 0 : index
      %c0_132 = arith.constant 0 : index
      %284 = vector.load %arg4[%c0_130, %c0_131, %c0_132] : memref<1x128x512xf32, #tpu.memory_space<vmem>>, vector<1x128x512xf32>
      %285 = vector.shape_cast %284 : vector<1x128x512xf32> to vector<128x512xf32>
      %cst_133 = arith.constant dense<0.000000e+00> : vector<2x512xf32>
      %286 = tpu.matmul %270, %285, %cst_133 {dimension_numbers = #tpu.dot_dimension_numbers<[1], [0], [0], [1], [0, 0, 1, 1], [], []>} : vector<2x128xf32>, vector<128x512xf32>, vector<2x512xf32> -> vector<2x512xf32>
      %287 = arith.addf %283, %286 : vector<2x512xf32>
      %288 = vector.extract_strided_slice %287 {offsets = [0, 0], sizes = [2, 384], strides = [1, 1]} : vector<2x512xf32> to vector<2x384xf32>
      %289 = arith.negf %288 : vector<2x384xf32>
      %290 = math.exp %289 : vector<2x384xf32>
      %cst_134 = arith.constant 1.000000e+00 : f32
      %291 = vector.broadcast %cst_134 : f32 to vector<2x384xf32>
      %292 = arith.addf %291, %290 : vector<2x384xf32>
      %293 = arith.divf %291, %292 : vector<2x384xf32>
      %294 = vector.extract_strided_slice %293 {offsets = [0, 0], sizes = [2, 128], strides = [1, 1]} : vector<2x384xf32> to vector<2x128xf32>
      %295 = vector.extract_strided_slice %293 {offsets = [0, 128], sizes = [2, 128], strides = [1, 1]} : vector<2x384xf32> to vector<2x128xf32>
      %296 = vector.extract_strided_slice %293 {offsets = [0, 256], sizes = [2, 128], strides = [1, 1]} : vector<2x384xf32> to vector<2x128xf32>
      %297 = vector.extract_strided_slice %287 {offsets = [0, 384], sizes = [2, 128], strides = [1, 1]} : vector<2x512xf32> to vector<2x128xf32>
      %298 = math.tanh %297 : vector<2x128xf32>
      %299 = arith.mulf %295, %271 : vector<2x128xf32>
      %300 = arith.mulf %294, %298 : vector<2x128xf32>
      %301 = arith.addf %299, %300 : vector<2x128xf32>
      %302 = math.tanh %301 : vector<2x128xf32>
      %303 = arith.mulf %296, %302 : vector<2x128xf32>
      %c7_i32 = arith.constant 7 : i32
      %304 = arith.addi %7, %c7_i32 : i32
      %305 = vector.broadcast %304 : i32 to vector<2x128xi32>
      %306 = arith.cmpi slt, %305, %10 : vector<2x128xi32>
      %307 = arith.select %306, %303, %270 : vector<2x128xi1>, vector<2x128xf32>
      %308 = arith.select %306, %301, %271 : vector<2x128xi1>, vector<2x128xf32>
      %cst_135 = arith.constant 0.000000e+00 : f32
      %309 = vector.broadcast %cst_135 : f32 to vector<2x128xf32>
      %310 = arith.select %306, %303, %309 : vector<2x128xi1>, vector<2x128xf32>
      %311 = arith.truncf %310 : vector<2x128xf32> to vector<2x128xbf16>
      %c0_136 = arith.constant 0 : index
      %c0_137 = arith.constant 0 : index
      %c0_138 = arith.constant 0 : index
      %312 = vector.load %arg5[%c0_136, %c0_137, %c0_138] : memref<1x128x128xbf16, #tpu.memory_space<vmem>>, vector<1x128x128xbf16>
      %313 = vector.shape_cast %312 : vector<1x128x128xbf16> to vector<128x128xbf16>
      %cst_139 = arith.constant dense<0.000000e+00> : vector<2x128xf32>
      %314 = tpu.matmul %311, %313, %cst_139 {dimension_numbers = #tpu.dot_dimension_numbers<[1], [0], [0], [1], [0, 0, 1, 1], [], []>} : vector<2x128xbf16>, vector<128x128xbf16>, vector<2x128xf32> -> vector<2x128xf32>
      %315 = arith.addf %314, %14 : vector<2x128xf32>
      %c0_140 = arith.constant 0 : index
      %c7_141 = arith.constant 7 : index
      %c0_142 = arith.constant 0 : index
      %c0_143 = arith.constant 0 : index
      %316 = vector.load %arg7[%c0_140, %c7_141, %c0_142, %c0_143] : memref<1x8x2x128xf32, #tpu.memory_space<vmem>>, vector<1x1x2x128xf32>
      %317 = vector.shape_cast %316 : vector<1x1x2x128xf32> to vector<2x128xf32>
      %318 = vector.shape_cast %315 : vector<2x128xf32> to vector<1x1x2x128xf32>
      tpu.vector_store %arg7[%c0_140, %c7_141, %c0_142, %c0_143], %318 {strides = array<i32>} : memref<1x8x2x128xf32, #tpu.memory_space<vmem>>, vector<1x1x2x128xf32>,
      %c0_144 = arith.constant 0 : index
      %c0_145 = arith.constant 0 : index
      %319 = vector.load %arg8[%c0_144, %c0_145] : memref<2x128xf32, #tpu.memory_space<vmem>>, vector<2x128xf32>
      tpu.vector_store %arg8[%c0_144, %c0_145], %307 {strides = array<i32>} : memref<2x128xf32, #tpu.memory_space<vmem>>, vector<2x128xf32>,
      %c0_146 = arith.constant 0 : index
      %c0_147 = arith.constant 0 : index
      %320 = vector.load %arg9[%c0_146, %c0_147] : memref<2x128xf32, #tpu.memory_space<vmem>>, vector<2x128xf32>
      tpu.vector_store %arg9[%c0_146, %c0_147], %308 {strides = array<i32>} : memref<2x128xf32, #tpu.memory_space<vmem>>, vector<2x128xf32>,
    } else {
    }
    %c0_i32_8 = arith.constant 0 : i32
    %18 = arith.cmpi ne, %arg0, %c0_i32_8 : i32
    %19 = arith.extui %18 : i1 to i32
    %c0_i32_9 = arith.constant 0 : i32
    %20 = arith.cmpi ne, %19, %c0_i32_9 : i32
    scf.if %20 {
      %c0_10 = arith.constant 0 : index
      %c0_11 = arith.constant 0 : index
      %21 = vector.load %arg8[%c0_10, %c0_11] : memref<2x128xf32, #tpu.memory_space<vmem>>, vector<2x128xf32>
      %c0_12 = arith.constant 0 : index
      %c0_13 = arith.constant 0 : index
      %22 = vector.load %arg9[%c0_12, %c0_13] : memref<2x128xf32, #tpu.memory_space<vmem>>, vector<2x128xf32>
      %c7 = arith.constant 7 : index
      %c0_14 = arith.constant 0 : index
      %c0_15 = arith.constant 0 : index
      %23 = vector.load %arg2[%c7, %c0_14, %c0_15] : memref<8x2x512xf32, #tpu.memory_space<vmem>>, vector<1x2x512xf32>
      %24 = vector.shape_cast %23 : vector<1x2x512xf32> to vector<2x512xf32>
      %c0_16 = arith.constant 0 : index
      %c0_17 = arith.constant 0 : index
      %c0_18 = arith.constant 0 : index
      %25 = vector.load %arg4[%c0_16, %c0_17, %c0_18] : memref<1x128x512xf32, #tpu.memory_space<vmem>>, vector<1x128x512xf32>
      %26 = vector.shape_cast %25 : vector<1x128x512xf32> to vector<128x512xf32>
      %cst = arith.constant dense<0.000000e+00> : vector<2x512xf32>
      %27 = tpu.matmul %21, %26, %cst {dimension_numbers = #tpu.dot_dimension_numbers<[1], [0], [0], [1], [0, 0, 1, 1], [], []>} : vector<2x128xf32>, vector<128x512xf32>, vector<2x512xf32> -> vector<2x512xf32>
      %28 = arith.addf %24, %27 : vector<2x512xf32>
      %29 = vector.extract_strided_slice %28 {offsets = [0, 0], sizes = [2, 384], strides = [1, 1]} : vector<2x512xf32> to vector<2x384xf32>
      %30 = arith.negf %29 : vector<2x384xf32>
      %31 = math.exp %30 : vector<2x384xf32>
      %cst_19 = arith.constant 1.000000e+00 : f32
      %32 = vector.broadcast %cst_19 : f32 to vector<2x384xf32>
      %33 = arith.addf %32, %31 : vector<2x384xf32>
      %34 = arith.divf %32, %33 : vector<2x384xf32>
      %35 = vector.extract_strided_slice %34 {offsets = [0, 0], sizes = [2, 128], strides = [1, 1]} : vector<2x384xf32> to vector<2x128xf32>
      %36 = vector.extract_strided_slice %34 {offsets = [0, 128], sizes = [2, 128], strides = [1, 1]} : vector<2x384xf32> to vector<2x128xf32>
      %37 = vector.extract_strided_slice %34 {offsets = [0, 256], sizes = [2, 128], strides = [1, 1]} : vector<2x384xf32> to vector<2x128xf32>
      %38 = vector.extract_strided_slice %28 {offsets = [0, 384], sizes = [2, 128], strides = [1, 1]} : vector<2x512xf32> to vector<2x128xf32>
      %39 = math.tanh %38 : vector<2x128xf32>
      %40 = arith.mulf %36, %22 : vector<2x128xf32>
      %41 = arith.mulf %35, %39 : vector<2x128xf32>
      %42 = arith.addf %40, %41 : vector<2x128xf32>
      %43 = math.tanh %42 : vector<2x128xf32>
      %44 = arith.mulf %37, %43 : vector<2x128xf32>
      %c7_i32 = arith.constant 7 : i32
      %45 = arith.addi %7, %c7_i32 : i32
      %46 = vector.broadcast %45 : i32 to vector<2x128xi32>
      %47 = arith.cmpi slt, %46, %10 : vector<2x128xi32>
      %48 = arith.select %47, %44, %21 : vector<2x128xi1>, vector<2x128xf32>
      %49 = arith.select %47, %42, %22 : vector<2x128xi1>, vector<2x128xf32>
      %cst_20 = arith.constant 0.000000e+00 : f32
      %50 = vector.broadcast %cst_20 : f32 to vector<2x128xf32>
      %51 = arith.select %47, %44, %50 : vector<2x128xi1>, vector<2x128xf32>
      %52 = arith.truncf %51 : vector<2x128xf32> to vector<2x128xbf16>
      %c0_21 = arith.constant 0 : index
      %c0_22 = arith.constant 0 : index
      %c0_23 = arith.constant 0 : index
      %53 = vector.load %arg5[%c0_21, %c0_22, %c0_23] : memref<1x128x128xbf16, #tpu.memory_space<vmem>>, vector<1x128x128xbf16>
      %54 = vector.shape_cast %53 : vector<1x128x128xbf16> to vector<128x128xbf16>
      %cst_24 = arith.constant dense<0.000000e+00> : vector<2x128xf32>
      %55 = tpu.matmul %52, %54, %cst_24 {dimension_numbers = #tpu.dot_dimension_numbers<[1], [0], [0], [1], [0, 0, 1, 1], [], []>} : vector<2x128xbf16>, vector<128x128xbf16>, vector<2x128xf32> -> vector<2x128xf32>
      %56 = arith.addf %55, %14 : vector<2x128xf32>
      %c0_25 = arith.constant 0 : index
      %c7_26 = arith.constant 7 : index
      %c0_27 = arith.constant 0 : index
      %c0_28 = arith.constant 0 : index
      %57 = vector.load %arg7[%c0_25, %c7_26, %c0_27, %c0_28] : memref<1x8x2x128xf32, #tpu.memory_space<vmem>>, vector<1x1x2x128xf32>
      %58 = vector.shape_cast %57 : vector<1x1x2x128xf32> to vector<2x128xf32>
      %59 = vector.shape_cast %56 : vector<2x128xf32> to vector<1x1x2x128xf32>
      tpu.vector_store %arg7[%c0_25, %c7_26, %c0_27, %c0_28], %59 {strides = array<i32>} : memref<1x8x2x128xf32, #tpu.memory_space<vmem>>, vector<1x1x2x128xf32>,
      %c6 = arith.constant 6 : index
      %c0_29 = arith.constant 0 : index
      %c0_30 = arith.constant 0 : index
      %60 = vector.load %arg2[%c6, %c0_29, %c0_30] : memref<8x2x512xf32, #tpu.memory_space<vmem>>, vector<1x2x512xf32>
      %61 = vector.shape_cast %60 : vector<1x2x512xf32> to vector<2x512xf32>
      %c0_31 = arith.constant 0 : index
      %c0_32 = arith.constant 0 : index
      %c0_33 = arith.constant 0 : index
      %62 = vector.load %arg4[%c0_31, %c0_32, %c0_33] : memref<1x128x512xf32, #tpu.memory_space<vmem>>, vector<1x128x512xf32>
      %63 = vector.shape_cast %62 : vector<1x128x512xf32> to vector<128x512xf32>
      %cst_34 = arith.constant dense<0.000000e+00> : vector<2x512xf32>
      %64 = tpu.matmul %48, %63, %cst_34 {dimension_numbers = #tpu.dot_dimension_numbers<[1], [0], [0], [1], [0, 0, 1, 1], [], []>} : vector<2x128xf32>, vector<128x512xf32>, vector<2x512xf32> -> vector<2x512xf32>
      %65 = arith.addf %61, %64 : vector<2x512xf32>
      %66 = vector.extract_strided_slice %65 {offsets = [0, 0], sizes = [2, 384], strides = [1, 1]} : vector<2x512xf32> to vector<2x384xf32>
      %67 = arith.negf %66 : vector<2x384xf32>
      %68 = math.exp %67 : vector<2x384xf32>
      %cst_35 = arith.constant 1.000000e+00 : f32
      %69 = vector.broadcast %cst_35 : f32 to vector<2x384xf32>
      %70 = arith.addf %69, %68 : vector<2x384xf32>
      %71 = arith.divf %69, %70 : vector<2x384xf32>
      %72 = vector.extract_strided_slice %71 {offsets = [0, 0], sizes = [2, 128], strides = [1, 1]} : vector<2x384xf32> to vector<2x128xf32>
      %73 = vector.extract_strided_slice %71 {offsets = [0, 128], sizes = [2, 128], strides = [1, 1]} : vector<2x384xf32> to vector<2x128xf32>
      %74 = vector.extract_strided_slice %71 {offsets = [0, 256], sizes = [2, 128], strides = [1, 1]} : vector<2x384xf32> to vector<2x128xf32>
      %75 = vector.extract_strided_slice %65 {offsets = [0, 384], sizes = [2, 128], strides = [1, 1]} : vector<2x512xf32> to vector<2x128xf32>
      %76 = math.tanh %75 : vector<2x128xf32>
      %77 = arith.mulf %73, %49 : vector<2x128xf32>
      %78 = arith.mulf %72, %76 : vector<2x128xf32>
      %79 = arith.addf %77, %78 : vector<2x128xf32>
      %80 = math.tanh %79 : vector<2x128xf32>
      %81 = arith.mulf %74, %80 : vector<2x128xf32>
      %c6_i32 = arith.constant 6 : i32
      %82 = arith.addi %7, %c6_i32 : i32
      %83 = vector.broadcast %82 : i32 to vector<2x128xi32>
      %84 = arith.cmpi slt, %83, %10 : vector<2x128xi32>
      %85 = arith.select %84, %81, %48 : vector<2x128xi1>, vector<2x128xf32>
      %86 = arith.select %84, %79, %49 : vector<2x128xi1>, vector<2x128xf32>
      %cst_36 = arith.constant 0.000000e+00 : f32
      %87 = vector.broadcast %cst_36 : f32 to vector<2x128xf32>
      %88 = arith.select %84, %81, %87 : vector<2x128xi1>, vector<2x128xf32>
      %89 = arith.truncf %88 : vector<2x128xf32> to vector<2x128xbf16>
      %c0_37 = arith.constant 0 : index
      %c0_38 = arith.constant 0 : index
      %c0_39 = arith.constant 0 : index
      %90 = vector.load %arg5[%c0_37, %c0_38, %c0_39] : memref<1x128x128xbf16, #tpu.memory_space<vmem>>, vector<1x128x128xbf16>
      %91 = vector.shape_cast %90 : vector<1x128x128xbf16> to vector<128x128xbf16>
      %cst_40 = arith.constant dense<0.000000e+00> : vector<2x128xf32>
      %92 = tpu.matmul %89, %91, %cst_40 {dimension_numbers = #tpu.dot_dimension_numbers<[1], [0], [0], [1], [0, 0, 1, 1], [], []>} : vector<2x128xbf16>, vector<128x128xbf16>, vector<2x128xf32> -> vector<2x128xf32>
      %93 = arith.addf %92, %14 : vector<2x128xf32>
      %c0_41 = arith.constant 0 : index
      %c6_42 = arith.constant 6 : index
      %c0_43 = arith.constant 0 : index
      %c0_44 = arith.constant 0 : index
      %94 = vector.load %arg7[%c0_41, %c6_42, %c0_43, %c0_44] : memref<1x8x2x128xf32, #tpu.memory_space<vmem>>, vector<1x1x2x128xf32>
      %95 = vector.shape_cast %94 : vector<1x1x2x128xf32> to vector<2x128xf32>
      %96 = vector.shape_cast %93 : vector<2x128xf32> to vector<1x1x2x128xf32>
      tpu.vector_store %arg7[%c0_41, %c6_42, %c0_43, %c0_44], %96 {strides = array<i32>} : memref<1x8x2x128xf32, #tpu.memory_space<vmem>>, vector<1x1x2x128xf32>,
      %c5 = arith.constant 5 : index
      %c0_45 = arith.constant 0 : index
      %c0_46 = arith.constant 0 : index
      %97 = vector.load %arg2[%c5, %c0_45, %c0_46] : memref<8x2x512xf32, #tpu.memory_space<vmem>>, vector<1x2x512xf32>
      %98 = vector.shape_cast %97 : vector<1x2x512xf32> to vector<2x512xf32>
      %c0_47 = arith.constant 0 : index
      %c0_48 = arith.constant 0 : index
      %c0_49 = arith.constant 0 : index
      %99 = vector.load %arg4[%c0_47, %c0_48, %c0_49] : memref<1x128x512xf32, #tpu.memory_space<vmem>>, vector<1x128x512xf32>
      %100 = vector.shape_cast %99 : vector<1x128x512xf32> to vector<128x512xf32>
      %cst_50 = arith.constant dense<0.000000e+00> : vector<2x512xf32>
      %101 = tpu.matmul %85, %100, %cst_50 {dimension_numbers = #tpu.dot_dimension_numbers<[1], [0], [0], [1], [0, 0, 1, 1], [], []>} : vector<2x128xf32>, vector<128x512xf32>, vector<2x512xf32> -> vector<2x512xf32>
      %102 = arith.addf %98, %101 : vector<2x512xf32>
      %103 = vector.extract_strided_slice %102 {offsets = [0, 0], sizes = [2, 384], strides = [1, 1]} : vector<2x512xf32> to vector<2x384xf32>
      %104 = arith.negf %103 : vector<2x384xf32>
      %105 = math.exp %104 : vector<2x384xf32>
      %cst_51 = arith.constant 1.000000e+00 : f32
      %106 = vector.broadcast %cst_51 : f32 to vector<2x384xf32>
      %107 = arith.addf %106, %105 : vector<2x384xf32>
      %108 = arith.divf %106, %107 : vector<2x384xf32>
      %109 = vector.extract_strided_slice %108 {offsets = [0, 0], sizes = [2, 128], strides = [1, 1]} : vector<2x384xf32> to vector<2x128xf32>
      %110 = vector.extract_strided_slice %108 {offsets = [0, 128], sizes = [2, 128], strides = [1, 1]} : vector<2x384xf32> to vector<2x128xf32>
      %111 = vector.extract_strided_slice %108 {offsets = [0, 256], sizes = [2, 128], strides = [1, 1]} : vector<2x384xf32> to vector<2x128xf32>
      %112 = vector.extract_strided_slice %102 {offsets = [0, 384], sizes = [2, 128], strides = [1, 1]} : vector<2x512xf32> to vector<2x128xf32>
      %113 = math.tanh %112 : vector<2x128xf32>
      %114 = arith.mulf %110, %86 : vector<2x128xf32>
      %115 = arith.mulf %109, %113 : vector<2x128xf32>
      %116 = arith.addf %114, %115 : vector<2x128xf32>
      %117 = math.tanh %116 : vector<2x128xf32>
      %118 = arith.mulf %111, %117 : vector<2x128xf32>
      %c5_i32 = arith.constant 5 : i32
      %119 = arith.addi %7, %c5_i32 : i32
      %120 = vector.broadcast %119 : i32 to vector<2x128xi32>
      %121 = arith.cmpi slt, %120, %10 : vector<2x128xi32>
      %122 = arith.select %121, %118, %85 : vector<2x128xi1>, vector<2x128xf32>
      %123 = arith.select %121, %116, %86 : vector<2x128xi1>, vector<2x128xf32>
      %cst_52 = arith.constant 0.000000e+00 : f32
      %124 = vector.broadcast %cst_52 : f32 to vector<2x128xf32>
      %125 = arith.select %121, %118, %124 : vector<2x128xi1>, vector<2x128xf32>
      %126 = arith.truncf %125 : vector<2x128xf32> to vector<2x128xbf16>
      %c0_53 = arith.constant 0 : index
      %c0_54 = arith.constant 0 : index
      %c0_55 = arith.constant 0 : index
      %127 = vector.load %arg5[%c0_53, %c0_54, %c0_55] : memref<1x128x128xbf16, #tpu.memory_space<vmem>>, vector<1x128x128xbf16>
      %128 = vector.shape_cast %127 : vector<1x128x128xbf16> to vector<128x128xbf16>
      %cst_56 = arith.constant dense<0.000000e+00> : vector<2x128xf32>
      %129 = tpu.matmul %126, %128, %cst_56 {dimension_numbers = #tpu.dot_dimension_numbers<[1], [0], [0], [1], [0, 0, 1, 1], [], []>} : vector<2x128xbf16>, vector<128x128xbf16>, vector<2x128xf32> -> vector<2x128xf32>
      %130 = arith.addf %129, %14 : vector<2x128xf32>
      %c0_57 = arith.constant 0 : index
      %c5_58 = arith.constant 5 : index
      %c0_59 = arith.constant 0 : index
      %c0_60 = arith.constant 0 : index
      %131 = vector.load %arg7[%c0_57, %c5_58, %c0_59, %c0_60] : memref<1x8x2x128xf32, #tpu.memory_space<vmem>>, vector<1x1x2x128xf32>
      %132 = vector.shape_cast %131 : vector<1x1x2x128xf32> to vector<2x128xf32>
      %133 = vector.shape_cast %130 : vector<2x128xf32> to vector<1x1x2x128xf32>
      tpu.vector_store %arg7[%c0_57, %c5_58, %c0_59, %c0_60], %133 {strides = array<i32>} : memref<1x8x2x128xf32, #tpu.memory_space<vmem>>, vector<1x1x2x128xf32>,
      %c4 = arith.constant 4 : index
      %c0_61 = arith.constant 0 : index
      %c0_62 = arith.constant 0 : index
      %134 = vector.load %arg2[%c4, %c0_61, %c0_62] : memref<8x2x512xf32, #tpu.memory_space<vmem>>, vector<1x2x512xf32>
      %135 = vector.shape_cast %134 : vector<1x2x512xf32> to vector<2x512xf32>
      %c0_63 = arith.constant 0 : index
      %c0_64 = arith.constant 0 : index
      %c0_65 = arith.constant 0 : index
      %136 = vector.load %arg4[%c0_63, %c0_64, %c0_65] : memref<1x128x512xf32, #tpu.memory_space<vmem>>, vector<1x128x512xf32>
      %137 = vector.shape_cast %136 : vector<1x128x512xf32> to vector<128x512xf32>
      %cst_66 = arith.constant dense<0.000000e+00> : vector<2x512xf32>
      %138 = tpu.matmul %122, %137, %cst_66 {dimension_numbers = #tpu.dot_dimension_numbers<[1], [0], [0], [1], [0, 0, 1, 1], [], []>} : vector<2x128xf32>, vector<128x512xf32>, vector<2x512xf32> -> vector<2x512xf32>
      %139 = arith.addf %135, %138 : vector<2x512xf32>
      %140 = vector.extract_strided_slice %139 {offsets = [0, 0], sizes = [2, 384], strides = [1, 1]} : vector<2x512xf32> to vector<2x384xf32>
      %141 = arith.negf %140 : vector<2x384xf32>
      %142 = math.exp %141 : vector<2x384xf32>
      %cst_67 = arith.constant 1.000000e+00 : f32
      %143 = vector.broadcast %cst_67 : f32 to vector<2x384xf32>
      %144 = arith.addf %143, %142 : vector<2x384xf32>
      %145 = arith.divf %143, %144 : vector<2x384xf32>
      %146 = vector.extract_strided_slice %145 {offsets = [0, 0], sizes = [2, 128], strides = [1, 1]} : vector<2x384xf32> to vector<2x128xf32>
      %147 = vector.extract_strided_slice %145 {offsets = [0, 128], sizes = [2, 128], strides = [1, 1]} : vector<2x384xf32> to vector<2x128xf32>
      %148 = vector.extract_strided_slice %145 {offsets = [0, 256], sizes = [2, 128], strides = [1, 1]} : vector<2x384xf32> to vector<2x128xf32>
      %149 = vector.extract_strided_slice %139 {offsets = [0, 384], sizes = [2, 128], strides = [1, 1]} : vector<2x512xf32> to vector<2x128xf32>
      %150 = math.tanh %149 : vector<2x128xf32>
      %151 = arith.mulf %147, %123 : vector<2x128xf32>
      %152 = arith.mulf %146, %150 : vector<2x128xf32>
      %153 = arith.addf %151, %152 : vector<2x128xf32>
      %154 = math.tanh %153 : vector<2x128xf32>
      %155 = arith.mulf %148, %154 : vector<2x128xf32>
      %c4_i32 = arith.constant 4 : i32
      %156 = arith.addi %7, %c4_i32 : i32
      %157 = vector.broadcast %156 : i32 to vector<2x128xi32>
      %158 = arith.cmpi slt, %157, %10 : vector<2x128xi32>
      %159 = arith.select %158, %155, %122 : vector<2x128xi1>, vector<2x128xf32>
      %160 = arith.select %158, %153, %123 : vector<2x128xi1>, vector<2x128xf32>
      %cst_68 = arith.constant 0.000000e+00 : f32
      %161 = vector.broadcast %cst_68 : f32 to vector<2x128xf32>
      %162 = arith.select %158, %155, %161 : vector<2x128xi1>, vector<2x128xf32>
      %163 = arith.truncf %162 : vector<2x128xf32> to vector<2x128xbf16>
      %c0_69 = arith.constant 0 : index
      %c0_70 = arith.constant 0 : index
      %c0_71 = arith.constant 0 : index
      %164 = vector.load %arg5[%c0_69, %c0_70, %c0_71] : memref<1x128x128xbf16, #tpu.memory_space<vmem>>, vector<1x128x128xbf16>
      %165 = vector.shape_cast %164 : vector<1x128x128xbf16> to vector<128x128xbf16>
      %cst_72 = arith.constant dense<0.000000e+00> : vector<2x128xf32>
      %166 = tpu.matmul %163, %165, %cst_72 {dimension_numbers = #tpu.dot_dimension_numbers<[1], [0], [0], [1], [0, 0, 1, 1], [], []>} : vector<2x128xbf16>, vector<128x128xbf16>, vector<2x128xf32> -> vector<2x128xf32>
      %167 = arith.addf %166, %14 : vector<2x128xf32>
      %c0_73 = arith.constant 0 : index
      %c4_74 = arith.constant 4 : index
      %c0_75 = arith.constant 0 : index
      %c0_76 = arith.constant 0 : index
      %168 = vector.load %arg7[%c0_73, %c4_74, %c0_75, %c0_76] : memref<1x8x2x128xf32, #tpu.memory_space<vmem>>, vector<1x1x2x128xf32>
      %169 = vector.shape_cast %168 : vector<1x1x2x128xf32> to vector<2x128xf32>
      %170 = vector.shape_cast %167 : vector<2x128xf32> to vector<1x1x2x128xf32>
      tpu.vector_store %arg7[%c0_73, %c4_74, %c0_75, %c0_76], %170 {strides = array<i32>} : memref<1x8x2x128xf32, #tpu.memory_space<vmem>>, vector<1x1x2x128xf32>,
      %c3 = arith.constant 3 : index
      %c0_77 = arith.constant 0 : index
      %c0_78 = arith.constant 0 : index
      %171 = vector.load %arg2[%c3, %c0_77, %c0_78] : memref<8x2x512xf32, #tpu.memory_space<vmem>>, vector<1x2x512xf32>
      %172 = vector.shape_cast %171 : vector<1x2x512xf32> to vector<2x512xf32>
      %c0_79 = arith.constant 0 : index
      %c0_80 = arith.constant 0 : index
      %c0_81 = arith.constant 0 : index
      %173 = vector.load %arg4[%c0_79, %c0_80, %c0_81] : memref<1x128x512xf32, #tpu.memory_space<vmem>>, vector<1x128x512xf32>
      %174 = vector.shape_cast %173 : vector<1x128x512xf32> to vector<128x512xf32>
      %cst_82 = arith.constant dense<0.000000e+00> : vector<2x512xf32>
      %175 = tpu.matmul %159, %174, %cst_82 {dimension_numbers = #tpu.dot_dimension_numbers<[1], [0], [0], [1], [0, 0, 1, 1], [], []>} : vector<2x128xf32>, vector<128x512xf32>, vector<2x512xf32> -> vector<2x512xf32>
      %176 = arith.addf %172, %175 : vector<2x512xf32>
      %177 = vector.extract_strided_slice %176 {offsets = [0, 0], sizes = [2, 384], strides = [1, 1]} : vector<2x512xf32> to vector<2x384xf32>
      %178 = arith.negf %177 : vector<2x384xf32>
      %179 = math.exp %178 : vector<2x384xf32>
      %cst_83 = arith.constant 1.000000e+00 : f32
      %180 = vector.broadcast %cst_83 : f32 to vector<2x384xf32>
      %181 = arith.addf %180, %179 : vector<2x384xf32>
      %182 = arith.divf %180, %181 : vector<2x384xf32>
      %183 = vector.extract_strided_slice %182 {offsets = [0, 0], sizes = [2, 128], strides = [1, 1]} : vector<2x384xf32> to vector<2x128xf32>
      %184 = vector.extract_strided_slice %182 {offsets = [0, 128], sizes = [2, 128], strides = [1, 1]} : vector<2x384xf32> to vector<2x128xf32>
      %185 = vector.extract_strided_slice %182 {offsets = [0, 256], sizes = [2, 128], strides = [1, 1]} : vector<2x384xf32> to vector<2x128xf32>
      %186 = vector.extract_strided_slice %176 {offsets = [0, 384], sizes = [2, 128], strides = [1, 1]} : vector<2x512xf32> to vector<2x128xf32>
      %187 = math.tanh %186 : vector<2x128xf32>
      %188 = arith.mulf %184, %160 : vector<2x128xf32>
      %189 = arith.mulf %183, %187 : vector<2x128xf32>
      %190 = arith.addf %188, %189 : vector<2x128xf32>
      %191 = math.tanh %190 : vector<2x128xf32>
      %192 = arith.mulf %185, %191 : vector<2x128xf32>
      %c3_i32 = arith.constant 3 : i32
      %193 = arith.addi %7, %c3_i32 : i32
      %194 = vector.broadcast %193 : i32 to vector<2x128xi32>
      %195 = arith.cmpi slt, %194, %10 : vector<2x128xi32>
      %196 = arith.select %195, %192, %159 : vector<2x128xi1>, vector<2x128xf32>
      %197 = arith.select %195, %190, %160 : vector<2x128xi1>, vector<2x128xf32>
      %cst_84 = arith.constant 0.000000e+00 : f32
      %198 = vector.broadcast %cst_84 : f32 to vector<2x128xf32>
      %199 = arith.select %195, %192, %198 : vector<2x128xi1>, vector<2x128xf32>
      %200 = arith.truncf %199 : vector<2x128xf32> to vector<2x128xbf16>
      %c0_85 = arith.constant 0 : index
      %c0_86 = arith.constant 0 : index
      %c0_87 = arith.constant 0 : index
      %201 = vector.load %arg5[%c0_85, %c0_86, %c0_87] : memref<1x128x128xbf16, #tpu.memory_space<vmem>>, vector<1x128x128xbf16>
      %202 = vector.shape_cast %201 : vector<1x128x128xbf16> to vector<128x128xbf16>
      %cst_88 = arith.constant dense<0.000000e+00> : vector<2x128xf32>
      %203 = tpu.matmul %200, %202, %cst_88 {dimension_numbers = #tpu.dot_dimension_numbers<[1], [0], [0], [1], [0, 0, 1, 1], [], []>} : vector<2x128xbf16>, vector<128x128xbf16>, vector<2x128xf32> -> vector<2x128xf32>
      %204 = arith.addf %203, %14 : vector<2x128xf32>
      %c0_89 = arith.constant 0 : index
      %c3_90 = arith.constant 3 : index
      %c0_91 = arith.constant 0 : index
      %c0_92 = arith.constant 0 : index
      %205 = vector.load %arg7[%c0_89, %c3_90, %c0_91, %c0_92] : memref<1x8x2x128xf32, #tpu.memory_space<vmem>>, vector<1x1x2x128xf32>
      %206 = vector.shape_cast %205 : vector<1x1x2x128xf32> to vector<2x128xf32>
      %207 = vector.shape_cast %204 : vector<2x128xf32> to vector<1x1x2x128xf32>
      tpu.vector_store %arg7[%c0_89, %c3_90, %c0_91, %c0_92], %207 {strides = array<i32>} : memref<1x8x2x128xf32, #tpu.memory_space<vmem>>, vector<1x1x2x128xf32>,
      %c2 = arith.constant 2 : index
      %c0_93 = arith.constant 0 : index
      %c0_94 = arith.constant 0 : index
      %208 = vector.load %arg2[%c2, %c0_93, %c0_94] : memref<8x2x512xf32, #tpu.memory_space<vmem>>, vector<1x2x512xf32>
      %209 = vector.shape_cast %208 : vector<1x2x512xf32> to vector<2x512xf32>
      %c0_95 = arith.constant 0 : index
      %c0_96 = arith.constant 0 : index
      %c0_97 = arith.constant 0 : index
      %210 = vector.load %arg4[%c0_95, %c0_96, %c0_97] : memref<1x128x512xf32, #tpu.memory_space<vmem>>, vector<1x128x512xf32>
      %211 = vector.shape_cast %210 : vector<1x128x512xf32> to vector<128x512xf32>
      %cst_98 = arith.constant dense<0.000000e+00> : vector<2x512xf32>
      %212 = tpu.matmul %196, %211, %cst_98 {dimension_numbers = #tpu.dot_dimension_numbers<[1], [0], [0], [1], [0, 0, 1, 1], [], []>} : vector<2x128xf32>, vector<128x512xf32>, vector<2x512xf32> -> vector<2x512xf32>
      %213 = arith.addf %209, %212 : vector<2x512xf32>
      %214 = vector.extract_strided_slice %213 {offsets = [0, 0], sizes = [2, 384], strides = [1, 1]} : vector<2x512xf32> to vector<2x384xf32>
      %215 = arith.negf %214 : vector<2x384xf32>
      %216 = math.exp %215 : vector<2x384xf32>
      %cst_99 = arith.constant 1.000000e+00 : f32
      %217 = vector.broadcast %cst_99 : f32 to vector<2x384xf32>
      %218 = arith.addf %217, %216 : vector<2x384xf32>
      %219 = arith.divf %217, %218 : vector<2x384xf32>
      %220 = vector.extract_strided_slice %219 {offsets = [0, 0], sizes = [2, 128], strides = [1, 1]} : vector<2x384xf32> to vector<2x128xf32>
      %221 = vector.extract_strided_slice %219 {offsets = [0, 128], sizes = [2, 128], strides = [1, 1]} : vector<2x384xf32> to vector<2x128xf32>
      %222 = vector.extract_strided_slice %219 {offsets = [0, 256], sizes = [2, 128], strides = [1, 1]} : vector<2x384xf32> to vector<2x128xf32>
      %223 = vector.extract_strided_slice %213 {offsets = [0, 384], sizes = [2, 128], strides = [1, 1]} : vector<2x512xf32> to vector<2x128xf32>
      %224 = math.tanh %223 : vector<2x128xf32>
      %225 = arith.mulf %221, %197 : vector<2x128xf32>
      %226 = arith.mulf %220, %224 : vector<2x128xf32>
      %227 = arith.addf %225, %226 : vector<2x128xf32>
      %228 = math.tanh %227 : vector<2x128xf32>
      %229 = arith.mulf %222, %228 : vector<2x128xf32>
      %c2_i32_100 = arith.constant 2 : i32
      %230 = arith.addi %7, %c2_i32_100 : i32
      %231 = vector.broadcast %230 : i32 to vector<2x128xi32>
      %232 = arith.cmpi slt, %231, %10 : vector<2x128xi32>
      %233 = arith.select %232, %229, %196 : vector<2x128xi1>, vector<2x128xf32>
      %234 = arith.select %232, %227, %197 : vector<2x128xi1>, vector<2x128xf32>
      %cst_101 = arith.constant 0.000000e+00 : f32
      %235 = vector.broadcast %cst_101 : f32 to vector<2x128xf32>
      %236 = arith.select %232, %229, %235 : vector<2x128xi1>, vector<2x128xf32>
      %237 = arith.truncf %236 : vector<2x128xf32> to vector<2x128xbf16>
      %c0_102 = arith.constant 0 : index
      %c0_103 = arith.constant 0 : index
      %c0_104 = arith.constant 0 : index
      %238 = vector.load %arg5[%c0_102, %c0_103, %c0_104] : memref<1x128x128xbf16, #tpu.memory_space<vmem>>, vector<1x128x128xbf16>
      %239 = vector.shape_cast %238 : vector<1x128x128xbf16> to vector<128x128xbf16>
      %cst_105 = arith.constant dense<0.000000e+00> : vector<2x128xf32>
      %240 = tpu.matmul %237, %239, %cst_105 {dimension_numbers = #tpu.dot_dimension_numbers<[1], [0], [0], [1], [0, 0, 1, 1], [], []>} : vector<2x128xbf16>, vector<128x128xbf16>, vector<2x128xf32> -> vector<2x128xf32>
      %241 = arith.addf %240, %14 : vector<2x128xf32>
      %c0_106 = arith.constant 0 : index
      %c2_107 = arith.constant 2 : index
      %c0_108 = arith.constant 0 : index
      %c0_109 = arith.constant 0 : index
      %242 = vector.load %arg7[%c0_106, %c2_107, %c0_108, %c0_109] : memref<1x8x2x128xf32, #tpu.memory_space<vmem>>, vector<1x1x2x128xf32>
      %243 = vector.shape_cast %242 : vector<1x1x2x128xf32> to vector<2x128xf32>
      %244 = vector.shape_cast %241 : vector<2x128xf32> to vector<1x1x2x128xf32>
      tpu.vector_store %arg7[%c0_106, %c2_107, %c0_108, %c0_109], %244 {strides = array<i32>} : memref<1x8x2x128xf32, #tpu.memory_space<vmem>>, vector<1x1x2x128xf32>,
      %c1 = arith.constant 1 : index
      %c0_110 = arith.constant 0 : index
      %c0_111 = arith.constant 0 : index
      %245 = vector.load %arg2[%c1, %c0_110, %c0_111] : memref<8x2x512xf32, #tpu.memory_space<vmem>>, vector<1x2x512xf32>
      %246 = vector.shape_cast %245 : vector<1x2x512xf32> to vector<2x512xf32>
      %c0_112 = arith.constant 0 : index
      %c0_113 = arith.constant 0 : index
      %c0_114 = arith.constant 0 : index
      %247 = vector.load %arg4[%c0_112, %c0_113, %c0_114] : memref<1x128x512xf32, #tpu.memory_space<vmem>>, vector<1x128x512xf32>
      %248 = vector.shape_cast %247 : vector<1x128x512xf32> to vector<128x512xf32>
      %cst_115 = arith.constant dense<0.000000e+00> : vector<2x512xf32>
      %249 = tpu.matmul %233, %248, %cst_115 {dimension_numbers = #tpu.dot_dimension_numbers<[1], [0], [0], [1], [0, 0, 1, 1], [], []>} : vector<2x128xf32>, vector<128x512xf32>, vector<2x512xf32> -> vector<2x512xf32>
      %250 = arith.addf %246, %249 : vector<2x512xf32>
      %251 = vector.extract_strided_slice %250 {offsets = [0, 0], sizes = [2, 384], strides = [1, 1]} : vector<2x512xf32> to vector<2x384xf32>
      %252 = arith.negf %251 : vector<2x384xf32>
      %253 = math.exp %252 : vector<2x384xf32>
      %cst_116 = arith.constant 1.000000e+00 : f32
      %254 = vector.broadcast %cst_116 : f32 to vector<2x384xf32>
      %255 = arith.addf %254, %253 : vector<2x384xf32>
      %256 = arith.divf %254, %255 : vector<2x384xf32>
      %257 = vector.extract_strided_slice %256 {offsets = [0, 0], sizes = [2, 128], strides = [1, 1]} : vector<2x384xf32> to vector<2x128xf32>
      %258 = vector.extract_strided_slice %256 {offsets = [0, 128], sizes = [2, 128], strides = [1, 1]} : vector<2x384xf32> to vector<2x128xf32>
      %259 = vector.extract_strided_slice %256 {offsets = [0, 256], sizes = [2, 128], strides = [1, 1]} : vector<2x384xf32> to vector<2x128xf32>
      %260 = vector.extract_strided_slice %250 {offsets = [0, 384], sizes = [2, 128], strides = [1, 1]} : vector<2x512xf32> to vector<2x128xf32>
      %261 = math.tanh %260 : vector<2x128xf32>
      %262 = arith.mulf %258, %234 : vector<2x128xf32>
      %263 = arith.mulf %257, %261 : vector<2x128xf32>
      %264 = arith.addf %262, %263 : vector<2x128xf32>
      %265 = math.tanh %264 : vector<2x128xf32>
      %266 = arith.mulf %259, %265 : vector<2x128xf32>
      %c1_i32 = arith.constant 1 : i32
      %267 = arith.addi %7, %c1_i32 : i32
      %268 = vector.broadcast %267 : i32 to vector<2x128xi32>
      %269 = arith.cmpi slt, %268, %10 : vector<2x128xi32>
      %270 = arith.select %269, %266, %233 : vector<2x128xi1>, vector<2x128xf32>
      %271 = arith.select %269, %264, %234 : vector<2x128xi1>, vector<2x128xf32>
      %cst_117 = arith.constant 0.000000e+00 : f32
      %272 = vector.broadcast %cst_117 : f32 to vector<2x128xf32>
      %273 = arith.select %269, %266, %272 : vector<2x128xi1>, vector<2x128xf32>
      %274 = arith.truncf %273 : vector<2x128xf32> to vector<2x128xbf16>
      %c0_118 = arith.constant 0 : index
      %c0_119 = arith.constant 0 : index
      %c0_120 = arith.constant 0 : index
      %275 = vector.load %arg5[%c0_118, %c0_119, %c0_120] : memref<1x128x128xbf16, #tpu.memory_space<vmem>>, vector<1x128x128xbf16>
      %276 = vector.shape_cast %275 : vector<1x128x128xbf16> to vector<128x128xbf16>
      %cst_121 = arith.constant dense<0.000000e+00> : vector<2x128xf32>
      %277 = tpu.matmul %274, %276, %cst_121 {dimension_numbers = #tpu.dot_dimension_numbers<[1], [0], [0], [1], [0, 0, 1, 1], [], []>} : vector<2x128xbf16>, vector<128x128xbf16>, vector<2x128xf32> -> vector<2x128xf32>
      %278 = arith.addf %277, %14 : vector<2x128xf32>
      %c0_122 = arith.constant 0 : index
      %c1_123 = arith.constant 1 : index
      %c0_124 = arith.constant 0 : index
      %c0_125 = arith.constant 0 : index
      %279 = vector.load %arg7[%c0_122, %c1_123, %c0_124, %c0_125] : memref<1x8x2x128xf32, #tpu.memory_space<vmem>>, vector<1x1x2x128xf32>
      %280 = vector.shape_cast %279 : vector<1x1x2x128xf32> to vector<2x128xf32>
      %281 = vector.shape_cast %278 : vector<2x128xf32> to vector<1x1x2x128xf32>
      tpu.vector_store %arg7[%c0_122, %c1_123, %c0_124, %c0_125], %281 {strides = array<i32>} : memref<1x8x2x128xf32, #tpu.memory_space<vmem>>, vector<1x1x2x128xf32>,
      %c0_126 = arith.constant 0 : index
      %c0_127 = arith.constant 0 : index
      %c0_128 = arith.constant 0 : index
      %282 = vector.load %arg2[%c0_126, %c0_127, %c0_128] : memref<8x2x512xf32, #tpu.memory_space<vmem>>, vector<1x2x512xf32>
      %283 = vector.shape_cast %282 : vector<1x2x512xf32> to vector<2x512xf32>
      %c0_129 = arith.constant 0 : index
      %c0_130 = arith.constant 0 : index
      %c0_131 = arith.constant 0 : index
      %284 = vector.load %arg4[%c0_129, %c0_130, %c0_131] : memref<1x128x512xf32, #tpu.memory_space<vmem>>, vector<1x128x512xf32>
      %285 = vector.shape_cast %284 : vector<1x128x512xf32> to vector<128x512xf32>
      %cst_132 = arith.constant dense<0.000000e+00> : vector<2x512xf32>
      %286 = tpu.matmul %270, %285, %cst_132 {dimension_numbers = #tpu.dot_dimension_numbers<[1], [0], [0], [1], [0, 0, 1, 1], [], []>} : vector<2x128xf32>, vector<128x512xf32>, vector<2x512xf32> -> vector<2x512xf32>
      %287 = arith.addf %283, %286 : vector<2x512xf32>
      %288 = vector.extract_strided_slice %287 {offsets = [0, 0], sizes = [2, 384], strides = [1, 1]} : vector<2x512xf32> to vector<2x384xf32>
      %289 = arith.negf %288 : vector<2x384xf32>
      %290 = math.exp %289 : vector<2x384xf32>
      %cst_133 = arith.constant 1.000000e+00 : f32
      %291 = vector.broadcast %cst_133 : f32 to vector<2x384xf32>
      %292 = arith.addf %291, %290 : vector<2x384xf32>
      %293 = arith.divf %291, %292 : vector<2x384xf32>
      %294 = vector.extract_strided_slice %293 {offsets = [0, 0], sizes = [2, 128], strides = [1, 1]} : vector<2x384xf32> to vector<2x128xf32>
      %295 = vector.extract_strided_slice %293 {offsets = [0, 128], sizes = [2, 128], strides = [1, 1]} : vector<2x384xf32> to vector<2x128xf32>
      %296 = vector.extract_strided_slice %293 {offsets = [0, 256], sizes = [2, 128], strides = [1, 1]} : vector<2x384xf32> to vector<2x128xf32>
      %297 = vector.extract_strided_slice %287 {offsets = [0, 384], sizes = [2, 128], strides = [1, 1]} : vector<2x512xf32> to vector<2x128xf32>
      %298 = math.tanh %297 : vector<2x128xf32>
      %299 = arith.mulf %295, %271 : vector<2x128xf32>
      %300 = arith.mulf %294, %298 : vector<2x128xf32>
      %301 = arith.addf %299, %300 : vector<2x128xf32>
      %302 = math.tanh %301 : vector<2x128xf32>
      %303 = arith.mulf %296, %302 : vector<2x128xf32>
      %c0_i32_134 = arith.constant 0 : i32
      %304 = arith.addi %7, %c0_i32_134 : i32
      %305 = vector.broadcast %304 : i32 to vector<2x128xi32>
      %306 = arith.cmpi slt, %305, %10 : vector<2x128xi32>
      %307 = arith.select %306, %303, %270 : vector<2x128xi1>, vector<2x128xf32>
      %308 = arith.select %306, %301, %271 : vector<2x128xi1>, vector<2x128xf32>
      %cst_135 = arith.constant 0.000000e+00 : f32
      %309 = vector.broadcast %cst_135 : f32 to vector<2x128xf32>
      %310 = arith.select %306, %303, %309 : vector<2x128xi1>, vector<2x128xf32>
      %311 = arith.truncf %310 : vector<2x128xf32> to vector<2x128xbf16>
      %c0_136 = arith.constant 0 : index
      %c0_137 = arith.constant 0 : index
      %c0_138 = arith.constant 0 : index
      %312 = vector.load %arg5[%c0_136, %c0_137, %c0_138] : memref<1x128x128xbf16, #tpu.memory_space<vmem>>, vector<1x128x128xbf16>
      %313 = vector.shape_cast %312 : vector<1x128x128xbf16> to vector<128x128xbf16>
      %cst_139 = arith.constant dense<0.000000e+00> : vector<2x128xf32>
      %314 = tpu.matmul %311, %313, %cst_139 {dimension_numbers = #tpu.dot_dimension_numbers<[1], [0], [0], [1], [0, 0, 1, 1], [], []>} : vector<2x128xbf16>, vector<128x128xbf16>, vector<2x128xf32> -> vector<2x128xf32>
      %315 = arith.addf %314, %14 : vector<2x128xf32>
      %c0_140 = arith.constant 0 : index
      %c0_141 = arith.constant 0 : index
      %c0_142 = arith.constant 0 : index
      %c0_143 = arith.constant 0 : index
      %316 = vector.load %arg7[%c0_140, %c0_141, %c0_142, %c0_143] : memref<1x8x2x128xf32, #tpu.memory_space<vmem>>, vector<1x1x2x128xf32>
      %317 = vector.shape_cast %316 : vector<1x1x2x128xf32> to vector<2x128xf32>
      %318 = vector.shape_cast %315 : vector<2x128xf32> to vector<1x1x2x128xf32>
      tpu.vector_store %arg7[%c0_140, %c0_141, %c0_142, %c0_143], %318 {strides = array<i32>} : memref<1x8x2x128xf32, #tpu.memory_space<vmem>>, vector<1x1x2x128xf32>,
      %c0_144 = arith.constant 0 : index
      %c0_145 = arith.constant 0 : index
      %319 = vector.load %arg8[%c0_144, %c0_145] : memref<2x128xf32, #tpu.memory_space<vmem>>, vector<2x128xf32>
      tpu.vector_store %arg8[%c0_144, %c0_145], %307 {strides = array<i32>} : memref<2x128xf32, #tpu.memory_space<vmem>>, vector<2x128xf32>,
      %c0_146 = arith.constant 0 : index
      %c0_147 = arith.constant 0 : index
      %320 = vector.load %arg9[%c0_146, %c0_147] : memref<2x128xf32, #tpu.memory_space<vmem>>, vector<2x128xf32>
      tpu.vector_store %arg9[%c0_146, %c0_147], %308 {strides = array<i32>} : memref<2x128xf32, #tpu.memory_space<vmem>>, vector<2x128xf32>,
    } else {
    }
    return
  }
  func.func @transform_0(%arg0: i32, %arg1: i32) -> (i32, i32, i32) {
    %c2_i32 = arith.constant 2 : i32
    %0 = arith.muli %c2_i32, %arg1 : i32
    %c0_i32 = arith.constant 0 : i32
    %1 = arith.subi %c0_i32, %0 : i32
    %2 = arith.muli %arg0, %1 : i32
    %3 = arith.addi %arg1, %2 : i32
    %c0_i32_0 = arith.constant 0 : i32
    %c0_i32_1 = arith.constant 0 : i32
    return %3, %c0_i32_0, %arg0 : i32, i32, i32
  }
  func.func @transform_1(%arg0: i32, %arg1: i32) -> (i32, i32) {
    %c0_i32 = arith.constant 0 : i32
    %c0_i32_0 = arith.constant 0 : i32
    %c0_i32_1 = arith.constant 0 : i32
    return %c0_i32, %c0_i32_0 : i32, i32
  }
  func.func @transform_2(%arg0: i32, %arg1: i32) -> (i32, i32, i32) {
    %c0_i32 = arith.constant 0 : i32
    %c0_i32_0 = arith.constant 0 : i32
    %c0_i32_1 = arith.constant 0 : i32
    return %arg0, %c0_i32, %c0_i32_0 : i32, i32, i32
  }
  func.func @transform_3(%arg0: i32, %arg1: i32) -> (i32, i32, i32) {
    %c0_i32 = arith.constant 0 : i32
    %c0_i32_0 = arith.constant 0 : i32
    %c0_i32_1 = arith.constant 0 : i32
    return %arg0, %c0_i32, %c0_i32_0 : i32, i32, i32
  }
  func.func @transform_4(%arg0: i32, %arg1: i32) -> (i32, i32, i32) {
    %c0_i32 = arith.constant 0 : i32
    %c0_i32_0 = arith.constant 0 : i32
    %c0_i32_1 = arith.constant 0 : i32
    return %arg0, %c0_i32, %c0_i32_0 : i32, i32, i32
  }
  func.func @transform_5(%arg0: i32, %arg1: i32) -> (i32, i32, i32, i32) {
    %c2_i32 = arith.constant 2 : i32
    %0 = arith.muli %c2_i32, %arg1 : i32
    %c0_i32 = arith.constant 0 : i32
    %1 = arith.subi %c0_i32, %0 : i32
    %2 = arith.muli %arg0, %1 : i32
    %3 = arith.addi %arg1, %2 : i32
    %c0_i32_0 = arith.constant 0 : i32
    %c0_i32_1 = arith.constant 0 : i32
    %c0_i32_2 = arith.constant 0 : i32
    return %arg0, %3, %c0_i32_0, %c0_i32_1 : i32, i32, i32, i32
  }
}

</mosaic_0001>

<llo_original>
// kernel: mner_forward.2
$region0: #{mner_forward.2}
  #allocation0 [shape = 'u32[]', space=smem, size = 0x4, offset = 0x4, fixed_abs, tag = 'smem constant byte address 0x4 - core index']
  #allocation1 [shape = 'u32[144,128]{1,0:T(1,128)}', space=vmem, size = 0x12000, scoped, tag = 'internal scratch']
  #allocation2 [shape = 'f32[16,1024]{1,0:T(8,128)}', space=vmem, size = 0x10000, scoped, tag = 'scratch operand']
  %s0 = inlined_call_operand.vmem [shape: bf16[2,8,128], index: 0, kind: input, shape index: {}]
  %s1 = inlined_call_operand.hbm [shape: bf16[128,1024], index: 1, kind: input, shape index: {}]
  %s2 = inlined_call_operand.vmem [shape: f32[1,1024], index: 2, kind: input, shape index: {}]
  %s3 = inlined_call_operand.vmem [shape: f32[8,2,1024], index: 3, kind: output, shape index: {}]
  %s4 = sld [smem:[#allocation0]]
  $region34: #{mner_forward.2} parent=0
    _
  %s6 = ssub.s32 1, %s4
  %s7 = scalar_select 0, %s6, %s4
  $region1: #{mner_forward.2} parent=0
    #allocation3 [shape = 'u8[262144]{0}', space=vmem, size = 0x40000, scoped, tag = 'input window, operand 1, single buffered']
    #allocation4 [shape = 's32[1]{0}', space=sflag, size = 0x4, scoped, tag = 'scoped memory for mner_forward.2']
    %8 = vsyncpa [#allocation4], 0
    // Predicated region
    $region2: #{mner_forward.2} parent=1 // pred_check
      _
    $region3: #{mner_forward.2} parent=1 // pred_check_branch
      %10 = sbr.rel (0) target = $region5
    $region4: #{mner_forward.2} parent=1 // pred_region
      _
    $region5: #{mner_forward.2} parent=1 // pred_fallthru
      _
    // Predicated region
    $region6: #{mner_forward.2} parent=1 // pred_check
      _
    $region7: #{mner_forward.2} parent=1 // pred_check_branch
      %12 = sbr.rel (0) target = $region9
    $region8: #{mner_forward.2} parent=1 // pred_region
      %s14 = ssub.s32 8192, 8192
      %15 = vsyncadd [#allocation4], %s14
      %s16 = sshll.u32 [#allocation3], 4
      %s17 = int_to_ptr.vmem [resolvable:$true] %s16
      %22 = dma.hbm_to_vmem [thread:$0]  %s1, 8192, %s17, [#allocation4], 512, 512, 32
    $region9: #{mner_forward.2} parent=1 // pred_fallthru
      _
    // Predicated region
    $region10: #{mner_forward.2} parent=1 // pred_check
      _
    $region11: #{mner_forward.2} parent=1 // pred_check_branch
      %24 = sbr.rel (0) target = $region13
    $region12: #{mner_forward.2} parent=1 // pred_region
      _
    $region13: #{mner_forward.2} parent=1 // pred_fallthru
      _
    // Predicated region
    $region14: #{mner_forward.2} parent=1 // pred_check
      _
    $region15: #{mner_forward.2} parent=1 // pred_check_branch
      %26 = sbr.rel (0) target = $region17
    $region16: #{mner_forward.2} parent=1 // pred_region
      %27 = dma.done [#allocation4], 8192
    $region17: #{mner_forward.2} parent=1 // pred_fallthru
      _
    %p29 = scmp.eq.s32.totalorder 0, 0
    // Predicated region
    $region18: #{mner_forward.2} parent=1 // pred_check
      %p30 = pneg %p29
    $region19: #{mner_forward.2} parent=1 // pred_check_branch
      %32 = sbr.rel (%p30) target = $region21
    $region20: #{mner_forward.2} parent=1 // pred_region
      %v33 = vld [vmem:[%s2] sm:$0xff]
      %v35 = vlaneseq
      %v36 = vshrl.u32 %v35, 7
      %v37 = vsub.s32 0, %v36
      %v38 = vrot.slane %v33, %v37
      %v39 = vlaneseq
      %v40 = vshrl.u32 %v39, 7
      %v41 = vsub.s32 1, %v40
      %v42 = vrot.slane %v33, %v41
      %v43 = vlaneseq
      %v44 = vshrl.u32 %v43, 7
      %v45 = vsub.s32 2, %v44
      %v46 = vrot.slane %v33, %v45
      %v47 = vlaneseq
      %v48 = vshrl.u32 %v47, 7
      %v49 = vsub.s32 3, %v48
      %v50 = vrot.slane %v33, %v49
      %v51 = vlaneseq
      %v52 = vshrl.u32 %v51, 7
      %v53 = vsub.s32 4, %v52
      %v54 = vrot.slane %v33, %v53
      %v55 = vlaneseq
      %v56 = vshrl.u32 %v55, 7
      %v57 = vsub.s32 5, %v56
      %v58 = vrot.slane %v33, %v57
      %v59 = vlaneseq
      %v60 = vshrl.u32 %v59, 7
      %v61 = vsub.s32 6, %v60
      %v62 = vrot.slane %v33, %v61
      %v63 = vlaneseq
      %v64 = vshrl.u32 %v63, 7
      %v65 = vsub.s32 7, %v64
      %v66 = vrot.slane %v33, %v65
      %75 = vst [vmem:[#allocation2] sm:$0xff] %v38
      %76 = vst [vmem:[#allocation2 + $0x8] sm:$0xff] %v42
      %77 = vst [vmem:[#allocation2 + $0x10] sm:$0xff] %v46
      %78 = vst [vmem:[#allocation2 + $0x18] sm:$0xff] %v50
      %79 = vst [vmem:[#allocation2 + $0x20] sm:$0xff] %v54
      %80 = vst [vmem:[#allocation2 + $0x28] sm:$0xff] %v58
      %81 = vst [vmem:[#allocation2 + $0x30] sm:$0xff] %v62
      %82 = vst [vmem:[#allocation2 + $0x38] sm:$0xff] %v66
      %83 = vst [vmem:[#allocation2 + $0x40] sm:$0xff] %v38
      %84 = vst [vmem:[#allocation2 + $0x48] sm:$0xff] %v42
      %85 = vst [vmem:[#allocation2 + $0x50] sm:$0xff] %v46
      %86 = vst [vmem:[#allocation2 + $0x58] sm:$0xff] %v50
      %87 = vst [vmem:[#allocation2 + $0x60] sm:$0xff] %v54
      %88 = vst [vmem:[#allocation2 + $0x68] sm:$0xff] %v58
      %89 = vst [vmem:[#allocation2 + $0x70] sm:$0xff] %v62
      %90 = vst [vmem:[#allocation2 + $0x78] sm:$0xff] %v66
    $region21: #{mner_forward.2} parent=1 // pred_fallthru
      _
    %v91 = vld [vmem:[%s0] sm:$0xf]
    %v92 = vld [vmem:[%s0 + $0x4] sm:$0xf]
    %v93 = vld [vmem:[#allocation2] sm:$0xff]
    %v94 = vld [vmem:[#allocation2 + $0x8] sm:$0xff]
    %v95 = vld [vmem:[#allocation2 + $0x10] sm:$0xff]
    %v96 = vld [vmem:[#allocation2 + $0x18] sm:$0xff]
    %v97 = vld [vmem:[#allocation2 + $0x20] sm:$0xff]
    %v98 = vld [vmem:[#allocation2 + $0x28] sm:$0xff]
    %v99 = vld [vmem:[#allocation2 + $0x30] sm:$0xff]
    %v100 = vld [vmem:[#allocation2 + $0x38] sm:$0xff]
    %v101 = vld [vmem:[#allocation2 + $0x40] sm:$0xff]
    %v102 = vld [vmem:[#allocation2 + $0x48] sm:$0xff]
    %v103 = vld [vmem:[#allocation2 + $0x50] sm:$0xff]
    %v104 = vld [vmem:[#allocation2 + $0x58] sm:$0xff]
    %v105 = vld [vmem:[#allocation2 + $0x60] sm:$0xff]
    %v106 = vld [vmem:[#allocation2 + $0x68] sm:$0xff]
    %v107 = vld [vmem:[#allocation2 + $0x70] sm:$0xff]
    %v108 = vld [vmem:[#allocation2 + $0x78] sm:$0xff]
    %v109 = vld [vmem:[#allocation3] sm:$0xff]
    %v110 = vld [vmem:[#allocation3 + $0x8] sm:$0xff]
    %v111 = vld [vmem:[#allocation3 + $0x10] sm:$0xff]
    %v112 = vld [vmem:[#allocation3 + $0x18] sm:$0xff]
    %v113 = vld [vmem:[#allocation3 + $0x20] sm:$0xff]
    %v114 = vld [vmem:[#allocation3 + $0x28] sm:$0xff]
    %v115 = vld [vmem:[#allocation3 + $0x30] sm:$0xff]
    %v116 = vld [vmem:[#allocation3 + $0x38] sm:$0xff]
    %v117 = vld [vmem:[#allocation3 + $0x40] sm:$0xff]
    %v118 = vld [vmem:[#allocation3 + $0x48] sm:$0xff]
    %v119 = vld [vmem:[#allocation3 + $0x50] sm:$0xff]
    %v120 = vld [vmem:[#allocation3 + $0x58] sm:$0xff]
    %v121 = vld [vmem:[#allocation3 + $0x60] sm:$0xff]
    %v122 = vld [vmem:[#allocation3 + $0x68] sm:$0xff]
    %v123 = vld [vmem:[#allocation3 + $0x70] sm:$0xff]
    %v124 = vld [vmem:[#allocation3 + $0x78] sm:$0xff]
    %v125 = vld [vmem:[#allocation3 + $0x80] sm:$0xff]
    %v126 = vld [vmem:[#allocation3 + $0x88] sm:$0xff]
    %v127 = vld [vmem:[#allocation3 + $0x90] sm:$0xff]
    %v128 = vld [vmem:[#allocation3 + $0x98] sm:$0xff]
    %v129 = vld [vmem:[#allocation3 + $0xa0] sm:$0xff]
    %v130 = vld [vmem:[#allocation3 + $0xa8] sm:$0xff]
    %v131 = vld [vmem:[#allocation3 + $0xb0] sm:$0xff]
    %v132 = vld [vmem:[#allocation3 + $0xb8] sm:$0xff]
    %v133 = vld [vmem:[#allocation3 + $0xc0] sm:$0xff]
    %v134 = vld [vmem:[#allocation3 + $0xc8] sm:$0xff]
    %v135 = vld [vmem:[#allocation3 + $0xd0] sm:$0xff]
    %v136 = vld [vmem:[#allocation3 + $0xd8] sm:$0xff]
    %v137 = vld [vmem:[#allocation3 + $0xe0] sm:$0xff]
    %v138 = vld [vmem:[#allocation3 + $0xe8] sm:$0xff]
    %v139 = vld [vmem:[#allocation3 + $0xf0] sm:$0xff]
    %v140 = vld [vmem:[#allocation3 + $0xf8] sm:$0xff]
    %v141 = vld [vmem:[#allocation3 + $0x100] sm:$0xff]
    %v142 = vld [vmem:[#allocation3 + $0x108] sm:$0xff]
    %v143 = vld [vmem:[#allocation3 + $0x110] sm:$0xff]
    %v144 = vld [vmem:[#allocation3 + $0x118] sm:$0xff]
    %v145 = vld [vmem:[#allocation3 + $0x120] sm:$0xff]
    %v146 = vld [vmem:[#allocation3 + $0x128] sm:$0xff]
    %v147 = vld [vmem:[#allocation3 + $0x130] sm:$0xff]
    %v148 = vld [vmem:[#allocation3 + $0x138] sm:$0xff]
    %v149 = vld [vmem:[#allocation3 + $0x140] sm:$0xff]
    %v150 = vld [vmem:[#allocation3 + $0x148] sm:$0xff]
    %v151 = vld [vmem:[#allocation3 + $0x150] sm:$0xff]
    %v152 = vld [vmem:[#allocation3 + $0x158] sm:$0xff]
    %v153 = vld [vmem:[#allocation3 + $0x160] sm:$0xff]
    %v154 = vld [vmem:[#allocation3 + $0x168] sm:$0xff]
    %v155 = vld [vmem:[#allocation3 + $0x170] sm:$0xff]
    %v156 = vld [vmem:[#allocation3 + $0x178] sm:$0xff]
    %v157 = vld [vmem:[#allocation3 + $0x180] sm:$0xff]
    %v158 = vld [vmem:[#allocation3 + $0x188] sm:$0xff]
    %v159 = vld [vmem:[#allocation3 + $0x190] sm:$0xff]
    %v160 = vld [vmem:[#allocation3 + $0x198] sm:$0xff]
    %v161 = vld [vmem:[#allocation3 + $0x1a0] sm:$0xff]
    %v162 = vld [vmem:[#allocation3 + $0x1a8] sm:$0xff]
    %v163 = vld [vmem:[#allocation3 + $0x1b0] sm:$0xff]
    %v164 = vld [vmem:[#allocation3 + $0x1b8] sm:$0xff]
    %v165 = vld [vmem:[#allocation3 + $0x1c0] sm:$0xff]
    %v166 = vld [vmem:[#allocation3 + $0x1c8] sm:$0xff]
    %v167 = vld [vmem:[#allocation3 + $0x1d0] sm:$0xff]
    %v168 = vld [vmem:[#allocation3 + $0x1d8] sm:$0xff]
    %v169 = vld [vmem:[#allocation3 + $0x1e0] sm:$0xff]
    %v170 = vld [vmem:[#allocation3 + $0x1e8] sm:$0xff]
    %v171 = vld [vmem:[#allocation3 + $0x1f0] sm:$0xff]
    %v172 = vld [vmem:[#allocation3 + $0x1f8] sm:$0xff]
    %v175 = vunpack.c.l.b16 %v91
    %v176 = vunpack.c.l.b16 %v92
    %v177 = vpack.c.b16 %v176, %v175
    %v243 = vunpack.c.l.b16 %v109
    %v244 = vunpack.c.h.b16 %v109
    %v245 = vunpack.c.l.b16 %v110
    %v246 = vunpack.c.h.b16 %v110
    %v247 = vunpack.c.l.b16 %v111
    %v248 = vunpack.c.h.b16 %v111
    %v249 = vunpack.c.l.b16 %v112
    %v250 = vunpack.c.h.b16 %v112
    %v251 = vunpack.c.l.b16 %v113
    %v252 = vunpack.c.h.b16 %v113
    %v253 = vunpack.c.l.b16 %v114
    %v254 = vunpack.c.h.b16 %v114
    %v255 = vunpack.c.l.b16 %v115
    %v256 = vunpack.c.h.b16 %v115
    %v257 = vunpack.c.l.b16 %v116
    %v258 = vunpack.c.h.b16 %v116
    %v259 = vunpack.c.l.b16 %v117
    %v260 = vunpack.c.h.b16 %v117
    %v261 = vunpack.c.l.b16 %v118
    %v262 = vunpack.c.h.b16 %v118
    %v263 = vunpack.c.l.b16 %v119
    %v264 = vunpack.c.h.b16 %v119
    %v265 = vunpack.c.l.b16 %v120
    %v266 = vunpack.c.h.b16 %v120
    %v267 = vunpack.c.l.b16 %v121
    %v268 = vunpack.c.h.b16 %v121
    %v269 = vunpack.c.l.b16 %v122
    %v270 = vunpack.c.h.b16 %v122
    %v271 = vunpack.c.l.b16 %v123
    %v272 = vunpack.c.h.b16 %v123
    %v273 = vunpack.c.l.b16 %v124
    %v274 = vunpack.c.h.b16 %v124
    %v275 = vunpack.c.l.b16 %v125
    %v276 = vunpack.c.h.b16 %v125
    %v277 = vunpack.c.l.b16 %v126
    %v278 = vunpack.c.h.b16 %v126
    %v279 = vunpack.c.l.b16 %v127
    %v280 = vunpack.c.h.b16 %v127
    %v281 = vunpack.c.l.b16 %v128
    %v282 = vunpack.c.h.b16 %v128
    %v283 = vunpack.c.l.b16 %v129
    %v284 = vunpack.c.h.b16 %v129
    %v285 = vunpack.c.l.b16 %v130
    %v286 = vunpack.c.h.b16 %v130
    %v287 = vunpack.c.l.b16 %v131
    %v288 = vunpack.c.h.b16 %v131
    %v289 = vunpack.c.l.b16 %v132
    %v290 = vunpack.c.h.b16 %v132
    %v291 = vunpack.c.l.b16 %v133
    %v292 = vunpack.c.h.b16 %v133
    %v293 = vunpack.c.l.b16 %v134
    %v294 = vunpack.c.h.b16 %v134
    %v295 = vunpack.c.l.b16 %v135
    %v296 = vunpack.c.h.b16 %v135
    %v297 = vunpack.c.l.b16 %v136
    %v298 = vunpack.c.h.b16 %v136
    %v299 = vunpack.c.l.b16 %v137
    %v300 = vunpack.c.h.b16 %v137
    %v301 = vunpack.c.l.b16 %v138
    %v302 = vunpack.c.h.b16 %v138
    %v303 = vunpack.c.l.b16 %v139
    %v304 = vunpack.c.h.b16 %v139
    %v305 = vunpack.c.l.b16 %v140
    %v306 = vunpack.c.h.b16 %v140
    %v307 = vunpack.c.l.b16 %v141
    %v308 = vunpack.c.h.b16 %v141
    %v309 = vunpack.c.l.b16 %v142
    %v310 = vunpack.c.h.b16 %v142
    %v311 = vunpack.c.l.b16 %v143
    %v312 = vunpack.c.h.b16 %v143
    %v313 = vunpack.c.l.b16 %v144
    %v314 = vunpack.c.h.b16 %v144
    %v315 = vunpack.c.l.b16 %v145
    %v316 = vunpack.c.h.b16 %v145
    %v317 = vunpack.c.l.b16 %v146
    %v318 = vunpack.c.h.b16 %v146
    %v319 = vunpack.c.l.b16 %v147
    %v320 = vunpack.c.h.b16 %v147
    %v321 = vunpack.c.l.b16 %v148
    %v322 = vunpack.c.h.b16 %v148
    %v323 = vunpack.c.l.b16 %v149
    %v324 = vunpack.c.h.b16 %v149
    %v325 = vunpack.c.l.b16 %v150
    %v326 = vunpack.c.h.b16 %v150
    %v327 = vunpack.c.l.b16 %v151
    %v328 = vunpack.c.h.b16 %v151
    %v329 = vunpack.c.l.b16 %v152
    %v330 = vunpack.c.h.b16 %v152
    %v331 = vunpack.c.l.b16 %v153
    %v332 = vunpack.c.h.b16 %v153
    %v333 = vunpack.c.l.b16 %v154
    %v334 = vunpack.c.h.b16 %v154
    %v335 = vunpack.c.l.b16 %v155
    %v336 = vunpack.c.h.b16 %v155
    %v337 = vunpack.c.l.b16 %v156
    %v338 = vunpack.c.h.b16 %v156
    %v339 = vunpack.c.l.b16 %v157
    %v340 = vunpack.c.h.b16 %v157
    %v341 = vunpack.c.l.b16 %v158
    %v342 = vunpack.c.h.b16 %v158
    %v343 = vunpack.c.l.b16 %v159
    %v344 = vunpack.c.h.b16 %v159
    %v345 = vunpack.c.l.b16 %v160
    %v346 = vunpack.c.h.b16 %v160
    %v347 = vunpack.c.l.b16 %v161
    %v348 = vunpack.c.h.b16 %v161
    %v349 = vunpack.c.l.b16 %v162
    %v350 = vunpack.c.h.b16 %v162
    %v351 = vunpack.c.l.b16 %v163
    %v352 = vunpack.c.h.b16 %v163
    %v353 = vunpack.c.l.b16 %v164
    %v354 = vunpack.c.h.b16 %v164
    %v355 = vunpack.c.l.b16 %v165
    %v356 = vunpack.c.h.b16 %v165
    %v357 = vunpack.c.l.b16 %v166
    %v358 = vunpack.c.h.b16 %v166
    %v359 = vunpack.c.l.b16 %v167
    %v360 = vunpack.c.h.b16 %v167
    %v361 = vunpack.c.l.b16 %v168
    %v362 = vunpack.c.h.b16 %v168
    %v363 = vunpack.c.l.b16 %v169
    %v364 = vunpack.c.h.b16 %v169
    %v365 = vunpack.c.l.b16 %v170
    %v366 = vunpack.c.h.b16 %v170
    %v367 = vunpack.c.l.b16 %v171
    %v368 = vunpack.c.h.b16 %v171
    %v369 = vunpack.c.l.b16 %v172
    %v370 = vunpack.c.h.b16 %v172
    %v371 = vpack.c.b16 %v251, %v243
    %v372 = vpack.c.b16 %v252, %v244
    %v373 = vpack.c.b16 %v253, %v245
    %v374 = vpack.c.b16 %v254, %v246
    %v375 = vpack.c.b16 %v255, %v247
    %v376 = vpack.c.b16 %v256, %v248
    %v377 = vpack.c.b16 %v257, %v249
    %v378 = vpack.c.b16 %v258, %v250
    %v379 = vpack.c.b16 %v267, %v259
    %v380 = vpack.c.b16 %v268, %v260
    %v381 = vpack.c.b16 %v269, %v261
    %v382 = vpack.c.b16 %v270, %v262
    %v383 = vpack.c.b16 %v271, %v263
    %v384 = vpack.c.b16 %v272, %v264
    %v385 = vpack.c.b16 %v273, %v265
    %v386 = vpack.c.b16 %v274, %v266
    %v387 = vpack.c.b16 %v283, %v275
    %v388 = vpack.c.b16 %v284, %v276
    %v389 = vpack.c.b16 %v285, %v277
    %v390 = vpack.c.b16 %v286, %v278
    %v391 = vpack.c.b16 %v287, %v279
    %v392 = vpack.c.b16 %v288, %v280
    %v393 = vpack.c.b16 %v289, %v281
    %v394 = vpack.c.b16 %v290, %v282
    %v395 = vpack.c.b16 %v299, %v291
    %v396 = vpack.c.b16 %v300, %v292
    %v397 = vpack.c.b16 %v301, %v293
    %v398 = vpack.c.b16 %v302, %v294
    %v399 = vpack.c.b16 %v303, %v295
    %v400 = vpack.c.b16 %v304, %v296
    %v401 = vpack.c.b16 %v305, %v297
    %v402 = vpack.c.b16 %v306, %v298
    %v403 = vpack.c.b16 %v315, %v307
    %v404 = vpack.c.b16 %v316, %v308
    %v405 = vpack.c.b16 %v317, %v309
    %v406 = vpack.c.b16 %v318, %v310
    %v407 = vpack.c.b16 %v319, %v311
    %v408 = vpack.c.b16 %v320, %v312
    %v409 = vpack.c.b16 %v321, %v313
    %v410 = vpack.c.b16 %v322, %v314
    %v411 = vpack.c.b16 %v331, %v323
    %v412 = vpack.c.b16 %v332, %v324
    %v413 = vpack.c.b16 %v333, %v325
    %v414 = vpack.c.b16 %v334, %v326
    %v415 = vpack.c.b16 %v335, %v327
    %v416 = vpack.c.b16 %v336, %v328
    %v417 = vpack.c.b16 %v337, %v329
    %v418 = vpack.c.b16 %v338, %v330
    %v419 = vpack.c.b16 %v347, %v339
    %v420 = vpack.c.b16 %v348, %v340
    %v421 = vpack.c.b16 %v349, %v341
    %v422 = vpack.c.b16 %v350, %v342
    %v423 = vpack.c.b16 %v351, %v343
    %v424 = vpack.c.b16 %v352, %v344
    %v425 = vpack.c.b16 %v353, %v345
    %v426 = vpack.c.b16 %v354, %v346
    %v427 = vpack.c.b16 %v363, %v355
    %v428 = vpack.c.b16 %v364, %v356
    %v429 = vpack.c.b16 %v365, %v357
    %v430 = vpack.c.b16 %v366, %v358
    %v431 = vpack.c.b16 %v367, %v359
    %v432 = vpack.c.b16 %v368, %v360
    %v433 = vpack.c.b16 %v369, %v361
    %v434 = vpack.c.b16 %v370, %v362
    %499 = vmatprep.subr.bf16.mxu0 %v372
    %500 = vmatpush1.bf16.msra.mxu0 %v371
    %501 = vmatprep.subr.bf16.mxu0 %v380
    %502 = vmatpush1.bf16.msra.mxu0 %v379
    %503 = vmatprep.subr.bf16.mxu0 %v388
    %504 = vmatpush1.bf16.msra.mxu0 %v387
    %505 = vmatprep.subr.bf16.mxu0 %v396
    %506 = vmatpush1.bf16.msra.mxu0 %v395
    %507 = vmatprep.subr.bf16.mxu0 %v404
    %508 = vmatpush1.bf16.msra.mxu0 %v403
    %509 = vmatprep.subr.bf16.mxu0 %v412
    %510 = vmatpush1.bf16.msra.mxu0 %v411
    %511 = vmatprep.subr.bf16.mxu0 %v420
    %512 = vmatpush1.bf16.msra.mxu0 %v419
    %513 = vmatprep.subr.bf16.mxu0 %v428
    %514 = vmatpush1.bf16.msra.mxu0 %v427
    %515 = vmatprep.subr.bf16.mxu0 0
    %516 = vmatpush1.bf16.msra.mxu0 0
    %517 = vmatprep.subr.bf16.mxu0 0
    %518 = vmatpush1.bf16.msra.mxu0 0
    %519 = vmatprep.subr.bf16.mxu0 0
    %520 = vmatpush1.bf16.msra.mxu0 0
    %521 = vmatprep.subr.bf16.mxu0 0
    %522 = vmatpush1.bf16.msra.mxu0 0
    %523 = vmatprep.subr.bf16.mxu0 0
    %524 = vmatpush1.bf16.msra.mxu0 0
    %525 = vmatprep.subr.bf16.mxu0 0
    %526 = vmatpush1.bf16.msra.mxu0 0
    %527 = vmatprep.subr.bf16.mxu0 0
    %528 = vmatpush1.bf16.msra.mxu0 0
    %529 = vmatprep.subr.bf16.mxu0 0
    %530 = vmatpush1.bf16.msra.mxu0 0
    %531 = vmatprep.mubr.bf16.mxu0 0
    %532 = vmatmul.mubr.bf16.gmra.mrb[0].mxu0 %v177
    %v533 = vpop.f32.mrb[0].mxu0
    %v534 = vadd.f32 0.0, %v533
    %v535 = vpop.f32.mrb[0].mxu0
    %v536 = vadd.f32 0.0, %v535
    %v537 = vpop.f32.mrb[0].mxu0
    %v538 = vadd.f32 0.0, %v537
    %v539 = vpop.f32.mrb[0].mxu0
    %v540 = vadd.f32 0.0, %v539
    %541 = vdwg.mxu0
    %542 = vmatprep.subr.bf16.mxu0 %v374
    %543 = vmatpush1.bf16.msra.mxu0 %v373
    %544 = vmatprep.subr.bf16.mxu0 %v382
    %545 = vmatpush1.bf16.msra.mxu0 %v381
    %546 = vmatprep.subr.bf16.mxu0 %v390
    %547 = vmatpush1.bf16.msra.mxu0 %v389
    %548 = vmatprep.subr.bf16.mxu0 %v398
    %549 = vmatpush1.bf16.msra.mxu0 %v397
    %550 = vmatprep.subr.bf16.mxu0 %v406
    %551 = vmatpush1.bf16.msra.mxu0 %v405
    %552 = vmatprep.subr.bf16.mxu0 %v414
    %553 = vmatpush1.bf16.msra.mxu0 %v413
    %554 = vmatprep.subr.bf16.mxu0 %v422
    %555 = vmatpush1.bf16.msra.mxu0 %v421
    %556 = vmatprep.subr.bf16.mxu0 %v430
    %557 = vmatpush1.bf16.msra.mxu0 %v429
    %558 = vmatprep.subr.bf16.mxu0 0
    %559 = vmatpush1.bf16.msra.mxu0 0
    %560 = vmatprep.subr.bf16.mxu0 0
    %561 = vmatpush1.bf16.msra.mxu0 0
    %562 = vmatprep.subr.bf16.mxu0 0
    %563 = vmatpush1.bf16.msra.mxu0 0
    %564 = vmatprep.subr.bf16.mxu0 0
    %565 = vmatpush1.bf16.msra.mxu0 0
    %566 = vmatprep.subr.bf16.mxu0 0
    %567 = vmatpush1.bf16.msra.mxu0 0
    %568 = vmatprep.subr.bf16.mxu0 0
    %569 = vmatpush1.bf16.msra.mxu0 0
    %570 = vmatprep.subr.bf16.mxu0 0
    %571 = vmatpush1.bf16.msra.mxu0 0
    %572 = vmatprep.subr.bf16.mxu0 0
    %573 = vmatpush1.bf16.msra.mxu0 0
    %574 = vmatprep.mubr.bf16.mxu0 0
    %575 = vmatmul.mubr.bf16.gmra.mrb[0].mxu0 %v177
    %v576 = vpop.f32.mrb[0].mxu0
    %v577 = vadd.f32 0.0, %v576
    %v578 = vpop.f32.mrb[0].mxu0
    %v579 = vadd.f32 0.0, %v578
    %v580 = vpop.f32.mrb[0].mxu0
    %v581 = vadd.f32 0.0, %v580
    %v582 = vpop.f32.mrb[0].mxu0
    %v583 = vadd.f32 0.0, %v582
    %584 = vdwg.mxu0
    %585 = vmatprep.subr.bf16.mxu0 %v376
    %586 = vmatpush1.bf16.msra.mxu0 %v375
    %587 = vmatprep.subr.bf16.mxu0 %v384
    %588 = vmatpush1.bf16.msra.mxu0 %v383
    %589 = vmatprep.subr.bf16.mxu0 %v392
    %590 = vmatpush1.bf16.msra.mxu0 %v391
    %591 = vmatprep.subr.bf16.mxu0 %v400
    %592 = vmatpush1.bf16.msra.mxu0 %v399
    %593 = vmatprep.subr.bf16.mxu0 %v408
    %594 = vmatpush1.bf16.msra.mxu0 %v407
    %595 = vmatprep.subr.bf16.mxu0 %v416
    %596 = vmatpush1.bf16.msra.mxu0 %v415
    %597 = vmatprep.subr.bf16.mxu0 %v424
    %598 = vmatpush1.bf16.msra.mxu0 %v423
    %599 = vmatprep.subr.bf16.mxu0 %v432
    %600 = vmatpush1.bf16.msra.mxu0 %v431
    %601 = vmatprep.subr.bf16.mxu0 0
    %602 = vmatpush1.bf16.msra.mxu0 0
    %603 = vmatprep.subr.bf16.mxu0 0
    %604 = vmatpush1.bf16.msra.mxu0 0
    %605 = vmatprep.subr.bf16.mxu0 0
    %606 = vmatpush1.bf16.msra.mxu0 0
    %607 = vmatprep.subr.bf16.mxu0 0
    %608 = vmatpush1.bf16.msra.mxu0 0
    %609 = vmatprep.subr.bf16.mxu0 0
    %610 = vmatpush1.bf16.msra.mxu0 0
    %611 = vmatprep.subr.bf16.mxu0 0
    %612 = vmatpush1.bf16.msra.mxu0 0
    %613 = vmatprep.subr.bf16.mxu0 0
    %614 = vmatpush1.bf16.msra.mxu0 0
    %615 = vmatprep.subr.bf16.mxu0 0
    %616 = vmatpush1.bf16.msra.mxu0 0
    %617 = vmatprep.mubr.bf16.mxu0 0
    %618 = vmatmul.mubr.bf16.gmra.mrb[0].mxu0 %v177
    %v619 = vpop.f32.mrb[0].mxu0
    %v620 = vadd.f32 0.0, %v619
    %v621 = vpop.f32.mrb[0].mxu0
    %v622 = vadd.f32 0.0, %v621
    %v623 = vpop.f32.mrb[0].mxu0
    %v624 = vadd.f32 0.0, %v623
    %v625 = vpop.f32.mrb[0].mxu0
    %v626 = vadd.f32 0.0, %v625
    %627 = vdwg.mxu0
    %628 = vmatprep.subr.bf16.mxu0 %v378
    %629 = vmatpush1.bf16.msra.mxu0 %v377
    %630 = vmatprep.subr.bf16.mxu0 %v386
    %631 = vmatpush1.bf16.msra.mxu0 %v385
    %632 = vmatprep.subr.bf16.mxu0 %v394
    %633 = vmatpush1.bf16.msra.mxu0 %v393
    %634 = vmatprep.subr.bf16.mxu0 %v402
    %635 = vmatpush1.bf16.msra.mxu0 %v401
    %636 = vmatprep.subr.bf16.mxu0 %v410
    %637 = vmatpush1.bf16.msra.mxu0 %v409
    %638 = vmatprep.subr.bf16.mxu0 %v418
    %639 = vmatpush1.bf16.msra.mxu0 %v417
    %640 = vmatprep.subr.bf16.mxu0 %v426
    %641 = vmatpush1.bf16.msra.mxu0 %v425
    %642 = vmatprep.subr.bf16.mxu0 %v434
    %643 = vmatpush1.bf16.msra.mxu0 %v433
    %644 = vmatprep.subr.bf16.mxu0 0
    %645 = vmatpush1.bf16.msra.mxu0 0
    %646 = vmatprep.subr.bf16.mxu0 0
    %647 = vmatpush1.bf16.msra.mxu0 0
    %648 = vmatprep.subr.bf16.mxu0 0
    %649 = vmatpush1.bf16.msra.mxu0 0
    %650 = vmatprep.subr.bf16.mxu0 0
    %651 = vmatpush1.bf16.msra.mxu0 0
    %652 = vmatprep.subr.bf16.mxu0 0
    %653 = vmatpush1.bf16.msra.mxu0 0
    %654 = vmatprep.subr.bf16.mxu0 0
    %655 = vmatpush1.bf16.msra.mxu0 0
    %656 = vmatprep.subr.bf16.mxu0 0
    %657 = vmatpush1.bf16.msra.mxu0 0
    %658 = vmatprep.subr.bf16.mxu0 0
    %659 = vmatpush1.bf16.msra.mxu0 0
    %660 = vmatprep.mubr.bf16.mxu0 0
    %661 = vmatmul.mubr.bf16.gmra.mrb[0].mxu0 %v177
    %v662 = vpop.f32.mrb[0].mxu0
    %v663 = vadd.f32 0.0, %v662
    %v664 = vpop.f32.mrb[0].mxu0
    %v665 = vadd.f32 0.0, %v664
    %v666 = vpop.f32.mrb[0].mxu0
    %v667 = vadd.f32 0.0, %v666
    %v668 = vpop.f32.mrb[0].mxu0
    %v669 = vadd.f32 0.0, %v668
    %670 = vdwg.mxu0
    %v671 = vadd.f32 %v93, %v534
    %v672 = vadd.f32 %v94, %v536
    %v673 = vadd.f32 %v95, %v577
    %v674 = vadd.f32 %v96, %v579
    %v675 = vadd.f32 %v97, %v620
    %v676 = vadd.f32 %v98, %v622
    %v677 = vadd.f32 %v99, %v663
    %v678 = vadd.f32 %v100, %v665
    %v679 = vadd.f32 %v101, %v538
    %v680 = vadd.f32 %v102, %v540
    %v681 = vadd.f32 %v103, %v581
    %v682 = vadd.f32 %v104, %v583
    %v683 = vadd.f32 %v105, %v624
    %v684 = vadd.f32 %v106, %v626
    %v685 = vadd.f32 %v107, %v667
    %v686 = vadd.f32 %v108, %v669
    %687 = vst [vmem:[#allocation2] sm:$0xff] %v671
    %688 = vst [vmem:[#allocation2 + $0x8] sm:$0xff] %v672
    %689 = vst [vmem:[#allocation2 + $0x10] sm:$0xff] %v673
    %690 = vst [vmem:[#allocation2 + $0x18] sm:$0xff] %v674
    %691 = vst [vmem:[#allocation2 + $0x20] sm:$0xff] %v675
    %692 = vst [vmem:[#allocation2 + $0x28] sm:$0xff] %v676
    %693 = vst [vmem:[#allocation2 + $0x30] sm:$0xff] %v677
    %694 = vst [vmem:[#allocation2 + $0x38] sm:$0xff] %v678
    %695 = vst [vmem:[#allocation2 + $0x40] sm:$0xff] %v679
    %696 = vst [vmem:[#allocation2 + $0x48] sm:$0xff] %v680
    %697 = vst [vmem:[#allocation2 + $0x50] sm:$0xff] %v681
    %698 = vst [vmem:[#allocation2 + $0x58] sm:$0xff] %v682
    %699 = vst [vmem:[#allocation2 + $0x60] sm:$0xff] %v683
    %700 = vst [vmem:[#allocation2 + $0x68] sm:$0xff] %v684
    %701 = vst [vmem:[#allocation2 + $0x70] sm:$0xff] %v685
    %702 = vst [vmem:[#allocation2 + $0x78] sm:$0xff] %v686
    // Predicated region
    $region22: #{mner_forward.2} parent=1 // pred_check
      %p703 = pneg %p29
    $region23: #{mner_forward.2} parent=1 // pred_check_branch
      %705 = sbr.rel (%p703) target = $region25
    $region24: #{mner_forward.2} parent=1 // pred_region
      %v706 = vld [vmem:[#allocation2] sm:$0xff]
      %v707 = vld [vmem:[#allocation2 + $0x8] sm:$0xff]
      %v708 = vld [vmem:[#allocation2 + $0x10] sm:$0xff]
      %v709 = vld [vmem:[#allocation2 + $0x18] sm:$0xff]
      %v710 = vld [vmem:[#allocation2 + $0x20] sm:$0xff]
      %v711 = vld [vmem:[#allocation2 + $0x28] sm:$0xff]
      %v712 = vld [vmem:[#allocation2 + $0x30] sm:$0xff]
      %v713 = vld [vmem:[#allocation2 + $0x38] sm:$0xff]
      %v714 = vld [vmem:[#allocation2 + $0x40] sm:$0xff]
      %v715 = vld [vmem:[#allocation2 + $0x48] sm:$0xff]
      %v716 = vld [vmem:[#allocation2 + $0x50] sm:$0xff]
      %v717 = vld [vmem:[#allocation2 + $0x58] sm:$0xff]
      %v718 = vld [vmem:[#allocation2 + $0x60] sm:$0xff]
      %v719 = vld [vmem:[#allocation2 + $0x68] sm:$0xff]
      %v720 = vld [vmem:[#allocation2 + $0x70] sm:$0xff]
      %v721 = vld [vmem:[#allocation2 + $0x78] sm:$0xff]
      %v738 = vcombine.low %v706, %v707
      %v739 = vcombine.low %v708, %v709
      %v741 = vunpack.c.l.s4 1983009808
      %v742 = vunpack.c.0.s8 %v741
      %v743 = vlaneseq
      %v744 = vshrl.u32 %v743, 7
      %v745 = vsub.s32 %v742, %v744
      %v746 = vrot.slane %v738, %v745
      %v748 = vunpack.c.l.s4 1983009808
      %v749 = vunpack.c.0.s8 %v748
      %v750 = vlaneseq
      %v751 = vshrl.u32 %v750, 7
      %v752 = vsub.s32 %v749, %v751
      %v753 = vrot.slane %v739, %v752
      %v754 = vcombine.low %v746, %v753
      %v755 = vcombine.low %v710, %v711
      %v756 = vcombine.low %v712, %v713
      %v758 = vunpack.c.l.s4 1983009808
      %v759 = vunpack.c.0.s8 %v758
      %v760 = vlaneseq
      %v761 = vshrl.u32 %v760, 7
      %v762 = vsub.s32 %v759, %v761
      %v763 = vrot.slane %v755, %v762
      %v765 = vunpack.c.l.s4 1983009808
      %v766 = vunpack.c.0.s8 %v765
      %v767 = vlaneseq
      %v768 = vshrl.u32 %v767, 7
      %v769 = vsub.s32 %v766, %v768
      %v770 = vrot.slane %v756, %v769
      %v771 = vcombine.low %v763, %v770
      %v772 = vcombine.low %v714, %v715
      %v773 = vcombine.low %v716, %v717
      %v775 = vunpack.c.l.s4 1983009808
      %v776 = vunpack.c.0.s8 %v775
      %v777 = vlaneseq
      %v778 = vshrl.u32 %v777, 7
      %v779 = vsub.s32 %v776, %v778
      %v780 = vrot.slane %v772, %v779
      %v782 = vunpack.c.l.s4 1983009808
      %v783 = vunpack.c.0.s8 %v782
      %v784 = vlaneseq
      %v785 = vshrl.u32 %v784, 7
      %v786 = vsub.s32 %v783, %v785
      %v787 = vrot.slane %v773, %v786
      %v788 = vcombine.low %v780, %v787
      %v789 = vcombine.low %v718, %v719
      %v790 = vcombine.low %v720, %v721
      %v792 = vunpack.c.l.s4 1983009808
      %v793 = vunpack.c.0.s8 %v792
      %v794 = vlaneseq
      %v795 = vshrl.u32 %v794, 7
      %v796 = vsub.s32 %v793, %v795
      %v797 = vrot.slane %v789, %v796
      %v799 = vunpack.c.l.s4 1983009808
      %v800 = vunpack.c.0.s8 %v799
      %v801 = vlaneseq
      %v802 = vshrl.u32 %v801, 7
      %v803 = vsub.s32 %v800, %v802
      %v804 = vrot.slane %v790, %v803
      %v805 = vcombine.low %v797, %v804
      %vm806 = vcmask 1044484
      %v807 = vsel %vm806, %v754, %v754
      %vm808 = vcmask 1046534
      %v809 = vsel %vm808, %v754, %v807
      %v810 = vrot.slane %v788, 7
      %vm811 = vcmask 1041409
      %v812 = vsel %vm811, %v810, %v809
      %vm813 = vcmask 1043459
      %v814 = vsel %vm813, %v810, %v812
      %vm815 = vcmask 1045509
      %v816 = vsel %vm815, %v810, %v814
      %vm817 = vcmask 1047559
      %v818 = vsel %vm817, %v810, %v816
      %v819 = vsel %vm806, %v771, %v771
      %v820 = vsel %vm808, %v771, %v819
      %v821 = vrot.slane %v805, 7
      %v822 = vsel %vm811, %v821, %v820
      %v823 = vsel %vm813, %v821, %v822
      %v824 = vsel %vm815, %v821, %v823
      %v825 = vsel %vm817, %v821, %v824
      %828 = vst [vmem:[%s3] sm:$0xff] %v818
      %829 = vst [vmem:[%s3 + $0x8] sm:$0xff] %v825
      %v830 = vrot.slane %v754, 1
      %v831 = vsel %vm806, %v830, %v830
      %v832 = vsel %vm808, %v830, %v831
      %v833 = vsel %vm811, %v788, %v832
      %v834 = vsel %vm813, %v788, %v833
      %v835 = vsel %vm815, %v788, %v834
      %v836 = vsel %vm817, %v788, %v835
      %v837 = vrot.slane %v771, 1
      %v838 = vsel %vm806, %v837, %v837
      %v839 = vsel %vm808, %v837, %v838
      %v840 = vsel %vm811, %v805, %v839
      %v841 = vsel %vm813, %v805, %v840
      %v842 = vsel %vm815, %v805, %v841
      %v843 = vsel %vm817, %v805, %v842
      %s846 = scalar_lea.vmem %s3, 16
      %847 = vst [vmem:[%s846] sm:$0xff] %v836
      %848 = vst [vmem:[%s846 + $0x8] sm:$0xff] %v843
      %v849 = vcombine.high %v746, %v753
      %v850 = vcombine.high %v763, %v770
      %v851 = vcombine.high %v780, %v787
      %v852 = vcombine.high %v797, %v804
      %v853 = vsel %vm806, %v849, %v849
      %v854 = vsel %vm808, %v849, %v853
      %v855 = vrot.slane %v851, 7
      %v856 = vsel %vm811, %v855, %v854
      %v857 = vsel %vm813, %v855, %v856
      %v858 = vsel %vm815, %v855, %v857
      %v859 = vsel %vm817, %v855, %v858
      %v860 = vsel %vm806, %v850, %v850
      %v861 = vsel %vm808, %v850, %v860
      %v862 = vrot.slane %v852, 7
      %v863 = vsel %vm811, %v862, %v861
      %v864 = vsel %vm813, %v862, %v863
      %v865 = vsel %vm815, %v862, %v864
      %v866 = vsel %vm817, %v862, %v865
      %s869 = scalar_lea.vmem %s3, 32
      %870 = vst [vmem:[%s869] sm:$0xff] %v859
      %871 = vst [vmem:[%s869 + $0x8] sm:$0xff] %v866
      %v872 = vrot.slane %v849, 1
      %v873 = vsel %vm806, %v872, %v872
      %v874 = vsel %vm808, %v872, %v873
      %v875 = vsel %vm811, %v851, %v874
      %v876 = vsel %vm813, %v851, %v875
      %v877 = vsel %vm815, %v851, %v876
      %v878 = vsel %vm817, %v851, %v877
      %v879 = vrot.slane %v850, 1
      %v880 = vsel %vm806, %v879, %v879
      %v881 = vsel %vm808, %v879, %v880
      %v882 = vsel %vm811, %v852, %v881
      %v883 = vsel %vm813, %v852, %v882
      %v884 = vsel %vm815, %v852, %v883
      %v885 = vsel %vm817, %v852, %v884
      %s888 = scalar_lea.vmem %s3, 48
      %889 = vst [vmem:[%s888] sm:$0xff] %v878
      %890 = vst [vmem:[%s888 + $0x8] sm:$0xff] %v885
      %v891 = vcombine.high %v706, %v707
      %v892 = vcombine.high %v708, %v709
      %v894 = vunpack.c.l.s4 1983009808
      %v895 = vunpack.c.0.s8 %v894
      %v896 = vlaneseq
      %v897 = vshrl.u32 %v896, 7
      %v898 = vsub.s32 %v895, %v897
      %v899 = vrot.slane %v891, %v898
      %v901 = vunpack.c.l.s4 1983009808
      %v902 = vunpack.c.0.s8 %v901
      %v903 = vlaneseq
      %v904 = vshrl.u32 %v903, 7
      %v905 = vsub.s32 %v902, %v904
      %v906 = vrot.slane %v892, %v905
      %v907 = vcombine.low %v899, %v906
      %v908 = vcombine.high %v710, %v711
      %v909 = vcombine.high %v712, %v713
      %v911 = vunpack.c.l.s4 1983009808
      %v912 = vunpack.c.0.s8 %v911
      %v913 = vlaneseq
      %v914 = vshrl.u32 %v913, 7
      %v915 = vsub.s32 %v912, %v914
      %v916 = vrot.slane %v908, %v915
      %v918 = vunpack.c.l.s4 1983009808
      %v919 = vunpack.c.0.s8 %v918
      %v920 = vlaneseq
      %v921 = vshrl.u32 %v920, 7
      %v922 = vsub.s32 %v919, %v921
      %v923 = vrot.slane %v909, %v922
      %v924 = vcombine.low %v916, %v923
      %v925 = vcombine.high %v714, %v715
      %v926 = vcombine.high %v716, %v717
      %v928 = vunpack.c.l.s4 1983009808
      %v929 = vunpack.c.0.s8 %v928
      %v930 = vlaneseq
      %v931 = vshrl.u32 %v930, 7
      %v932 = vsub.s32 %v929, %v931
      %v933 = vrot.slane %v925, %v932
      %v935 = vunpack.c.l.s4 1983009808
      %v936 = vunpack.c.0.s8 %v935
      %v937 = vlaneseq
      %v938 = vshrl.u32 %v937, 7
      %v939 = vsub.s32 %v936, %v938
      %v940 = vrot.slane %v926, %v939
      %v941 = vcombine.low %v933, %v940
      %v942 = vcombine.high %v718, %v719
      %v943 = vcombine.high %v720, %v721
      %v945 = vunpack.c.l.s4 1983009808
      %v946 = vunpack.c.0.s8 %v945
      %v947 = vlaneseq
      %v948 = vshrl.u32 %v947, 7
      %v949 = vsub.s32 %v946, %v948
      %v950 = vrot.slane %v942, %v949
      %v952 = vunpack.c.l.s4 1983009808
      %v953 = vunpack.c.0.s8 %v952
      %v954 = vlaneseq
      %v955 = vshrl.u32 %v954, 7
      %v956 = vsub.s32 %v953, %v955
      %v957 = vrot.slane %v943, %v956
      %v958 = vcombine.low %v950, %v957
      %v959 = vsel %vm806, %v907, %v907
      %v960 = vsel %vm808, %v907, %v959
      %v961 = vrot.slane %v941, 7
      %v962 = vsel %vm811, %v961, %v960
      %v963 = vsel %vm813, %v961, %v962
      %v964 = vsel %vm815, %v961, %v963
      %v965 = vsel %vm817, %v961, %v964
      %v966 = vsel %vm806, %v924, %v924
      %v967 = vsel %vm808, %v924, %v966
      %v968 = vrot.slane %v958, 7
      %v969 = vsel %vm811, %v968, %v967
      %v970 = vsel %vm813, %v968, %v969
      %v971 = vsel %vm815, %v968, %v970
      %v972 = vsel %vm817, %v968, %v971
      %s975 = scalar_lea.vmem %s3, 64
      %976 = vst [vmem:[%s975] sm:$0xff] %v965
      %977 = vst [vmem:[%s975 + $0x8] sm:$0xff] %v972
      %v978 = vrot.slane %v907, 1
      %v979 = vsel %vm806, %v978, %v978
      %v980 = vsel %vm808, %v978, %v979
      %v981 = vsel %vm811, %v941, %v980
      %v982 = vsel %vm813, %v941, %v981
      %v983 = vsel %vm815, %v941, %v982
      %v984 = vsel %vm817, %v941, %v983
      %v985 = vrot.slane %v924, 1
      %v986 = vsel %vm806, %v985, %v985
      %v987 = vsel %vm808, %v985, %v986
      %v988 = vsel %vm811, %v958, %v987
      %v989 = vsel %vm813, %v958, %v988
      %v990 = vsel %vm815, %v958, %v989
      %v991 = vsel %vm817, %v958, %v990
      %s994 = scalar_lea.vmem %s3, 80
      %995 = vst [vmem:[%s994] sm:$0xff] %v984
      %996 = vst [vmem:[%s994 + $0x8] sm:$0xff] %v991
      %v997 = vcombine.high %v899, %v906
      %v998 = vcombine.high %v916, %v923
      %v999 = vcombine.high %v933, %v940
      %v1000 = vcombine.high %v950, %v957
      %v1001 = vsel %vm806, %v997, %v997
      %v1002 = vsel %vm808, %v997, %v1001
      %v1003 = vrot.slane %v999, 7
      %v1004 = vsel %vm811, %v1003, %v1002
      %v1005 = vsel %vm813, %v1003, %v1004
      %v1006 = vsel %vm815, %v1003, %v1005
      %v1007 = vsel %vm817, %v1003, %v1006
      %v1008 = vsel %vm806, %v998, %v998
      %v1009 = vsel %vm808, %v998, %v1008
      %v1010 = vrot.slane %v1000, 7
      %v1011 = vsel %vm811, %v1010, %v1009
      %v1012 = vsel %vm813, %v1010, %v1011
      %v1013 = vsel %vm815, %v1010, %v1012
      %v1014 = vsel %vm817, %v1010, %v1013
      %s1017 = scalar_lea.vmem %s3, 96
      %1018 = vst [vmem:[%s1017] sm:$0xff] %v1007
      %1019 = vst [vmem:[%s1017 + $0x8] sm:$0xff] %v1014
      %v1020 = vrot.slane %v997, 1
      %v1021 = vsel %vm806, %v1020, %v1020
      %v1022 = vsel %vm808, %v1020, %v1021
      %v1023 = vsel %vm811, %v999, %v1022
      %v1024 = vsel %vm813, %v999, %v1023
      %v1025 = vsel %vm815, %v999, %v1024
      %v1026 = vsel %vm817, %v999, %v1025
      %v1027 = vrot.slane %v998, 1
      %v1028 = vsel %vm806, %v1027, %v1027
      %v1029 = vsel %vm808, %v1027, %v1028
      %v1030 = vsel %vm811, %v1000, %v1029
      %v1031 = vsel %vm813, %v1000, %v1030
      %v1032 = vsel %vm815, %v1000, %v1031
      %v1033 = vsel %vm817, %v1000, %v1032
      %s1036 = scalar_lea.vmem %s3, 112
      %1037 = vst [vmem:[%s1036] sm:$0xff] %v1026
      %1038 = vst [vmem:[%s1036 + $0x8] sm:$0xff] %v1033
    $region25: #{mner_forward.2} parent=1 // pred_fallthru
      _
    // Predicated region
    $region26: #{mner_forward.2} parent=1 // pred_check
      _
    $region27: #{mner_forward.2} parent=1 // pred_check_branch
      %1040 = sbr.rel (0) target = $region29
    $region28: #{mner_forward.2} parent=1 // pred_region
      _
    $region29: #{mner_forward.2} parent=1 // pred_fallthru
      _
    // Predicated region
    $region30: #{mner_forward.2} parent=1 // pred_check
      _
    $region31: #{mner_forward.2} parent=1 // pred_check_branch
      %1042 = sbr.rel (0) target = $region33
    $region32: #{mner_forward.2} parent=1 // pred_region
      _
    $region33: #{mner_forward.2} parent=1 // pred_fallthru
      _
    %1043 = vsyncpa [#allocation4], 1

// kernel: mner_forward.3
$region0: #{mner_forward.3}
  #allocation0 [shape = 'u32[]', space=smem, size = 0x4, offset = 0x4, fixed_abs, tag = 'smem constant byte address 0x4 - core index']
  #allocation1 [shape = 'u32[144,128]{1,0:T(1,128)}', space=vmem, size = 0x12000, scoped, tag = 'internal scratch']
  #allocation2 [shape = 'f32[2,128]{1,0:T(2,128)}', space=vmem, size = 0x400, scoped, tag = 'scratch operand']
  #allocation3 [shape = 'f32[2,128]{1,0:T(2,128)}', space=vmem, size = 0x400, scoped, tag = 'scratch operand']
  %s0 = inlined_call_operand.vmem [shape: f32[8,2,1024], index: 0, kind: input, shape index: {}]
  %s1 = inlined_call_operand.vmem [shape: s32[2,1], index: 1, kind: input, shape index: {}]
  %s2 = inlined_call_operand.hbm [shape: f32[2,128,512], index: 2, kind: input, shape index: {}]
  %s3 = inlined_call_operand.vmem [shape: bf16[2,128,128], index: 3, kind: input, shape index: {}]
  %s4 = inlined_call_operand.vmem [shape: f32[2,1,128], index: 4, kind: input, shape index: {}]
  %s5 = inlined_call_operand.vmem [shape: f32[2,8,2,128], index: 5, kind: output, shape index: {}]
  %s6 = sld [smem:[#allocation0]]
  $region107: #{mner_forward.3} parent=0
    _
  %s8 = ssub.s32 1, %s6
  %s9 = scalar_select 0, %s8, %s6
  $region1: #{mner_forward.3} parent=0
    #allocation4 [shape = 'u8[65536]{0}', space=vmem, size = 0x10000, scoped, tag = 'input window, operand 0']
    #allocation5 [shape = 'u8[524288]{0}', space=vmem, size = 0x80000, scoped, tag = 'input window, operand 2']
    #allocation6 [shape = 's32[2]{0}', space=sflag, size = 0x8, scoped, tag = 'scoped memory for mner_forward.3']
    %10 = vsyncpa [#allocation6], 0
    %s11 = scalar_lea.sflag [#allocation6], 1
    %12 = vsyncpa %s11, 0
    loop: start=0, step=1, limit=4
    $region2: #{mner_forward.3} parent=1 // loop_pre_header
      _
    $region3: #{mner_forward.3} parent=1 // loop_header
      %s14 = sphi 0, %s18
      %p15 = scmp.ge.s32.totalorder %s14, 4
      %s21 = sphi 0, %s33
      %s22 = sphi 0, %s29
      %s23 = sphi 0, %s21
      %s24 = sphi 0, %s22
      %s25 = sphi 0, %s23
      %s26 = sphi 0, %s24
      %s46 = sphi 0, %s48
      %s49 = sphi 0, %s46
      %s50 = sphi 0, %s49
      %s66 = sphi 0, %s50
      %s70 = sphi 0, %s70
      %s72 = sphi 0, %s70
      %s73 = sphi 0, %s72
      %s87 = sphi 0, %s73
      %s93 = sphi 0, %s95
      %s96 = sphi 0, %s93
      %s97 = sphi 0, %s96
      %s113 = sphi 0, %s97
      %s119 = sphi 0, %s121
      %s122 = sphi 0, %s119
      %s123 = sphi 0, %s122
      %s139 = sphi 0, %s123
      %s145 = sphi 0, %s147
      %s148 = sphi 0, %s145
      %s149 = sphi 0, %s148
      %s165 = sphi 0, %s149
      %s181 = sphi 0, %s183
      %s184 = sphi 0, %s181
      %s185 = sphi 0, %s184
      %s201 = sphi 0, %s185
    $region4: #{mner_forward.3} parent=1 // loop_header_branch
      %17 = sbr.rel (%p15) target = $region8
    $region5: #{mner_forward.3} parent=1 // loop_body
      %s19 = ssub.s32 %s14, 1
      %s20 = ssub.s32 %s14, 2
      %s27 = sadd.s32 1, %s22
      %p28 = scmp.ge.s32.totalorder %s27, 1
      %s29 = scalar_select %p28, 0, %s27
      %s30 = sadd.s32 1, %s21
      %s31 = scalar_select %p28, %s30, %s21
      %p32 = scmp.ge.s32.totalorder %s31, 2
      %s33 = scalar_select %p32, 0, %s31
      %s34 = smul.u32 %s22, 2
      %s35 = ssub.s32 0, %s34
      %s36 = smul.u32 %s21, %s35
      %s37 = sadd.s32 %s22, %s36
      %s38 = smul.u32 %s29, 2
      %s39 = ssub.s32 0, %s38
      %s40 = smul.u32 %s33, %s39
      %s41 = sadd.s32 %s29, %s40
      %s42 = ssub.s32 %s37, %s41
      %s43 = ssub.s32 %s21, %s33
      %s44 = sor.u32 %s42, %s43
      %p45 = scmp.eq.s32.totalorder %s44, 0
      %s47 = sadd.s32 %s46, 1
      %s48 = scalar_select %p45, %s46, %s47
      %p51 = pneg %p45
      %p52 = scmp.eq.s32.totalorder %s14, 1
      %p53 = por %p51, %p52
      %p54 = scmp.ne.s32.totalorder %s46, %s49
      %p55 = scmp.eq.s32.totalorder %s14, 0
      %p56 = por %p54, %p55
      %p57 = scmp.ne.s32.totalorder %s46, %s49
      %p58 = scmp.eq.s32.totalorder %s19, 1
      %p59 = por %p57, %p58
      %p60 = scmp.ne.s32.totalorder %s49, %s50
      %p61 = scmp.eq.s32.totalorder %s19, 0
      %p62 = por %p60, %p61
      %p63 = scmp.ne.s32.totalorder %s49, %s50
      %p64 = scmp.eq.s32.totalorder %s20, 1
      %p65 = por %p63, %p64
      %p67 = scmp.ne.s32.totalorder %s50, %s66
      %p68 = scmp.eq.s32.totalorder %s20, 0
      %p69 = por %p67, %p68
      %s71 = sadd.s32 %s70, 1
      %p74 = scmp.eq.s32.totalorder %s14, 1
      %p75 = scmp.ne.s32.totalorder %s70, %s72
      %p76 = scmp.eq.s32.totalorder %s14, 0
      %p77 = por %p75, %p76
      %p78 = scmp.ne.s32.totalorder %s70, %s72
      %p79 = scmp.eq.s32.totalorder %s19, 1
      %p80 = por %p78, %p79
      %p81 = scmp.ne.s32.totalorder %s72, %s73
      %p82 = scmp.eq.s32.totalorder %s19, 0
      %p83 = por %p81, %p82
      %p84 = scmp.ne.s32.totalorder %s72, %s73
      %p85 = scmp.eq.s32.totalorder %s20, 1
      %p86 = por %p84, %p85
      %p88 = scmp.ne.s32.totalorder %s73, %s87
      %p89 = scmp.eq.s32.totalorder %s20, 0
      %p90 = por %p88, %p89
      %s91 = ssub.s32 %s21, %s33
      %p92 = scmp.eq.s32.totalorder %s91, 0
      %s94 = sadd.s32 %s93, 1
      %s95 = scalar_select %p92, %s93, %s94
      %p98 = pneg %p92
      %p99 = scmp.eq.s32.totalorder %s14, 1
      %p100 = por %p98, %p99
      %p101 = scmp.ne.s32.totalorder %s93, %s96
      %p102 = scmp.eq.s32.totalorder %s14, 0
      %p103 = por %p101, %p102
      %p104 = scmp.ne.s32.totalorder %s93, %s96
      %p105 = scmp.eq.s32.totalorder %s19, 1
      %p106 = por %p104, %p105
      %p107 = scmp.ne.s32.totalorder %s96, %s97
      %p108 = scmp.eq.s32.totalorder %s19, 0
      %p109 = por %p107, %p108
      %p110 = scmp.ne.s32.totalorder %s96, %s97
      %p111 = scmp.eq.s32.totalorder %s20, 1
      %p112 = por %p110, %p111
      %p114 = scmp.ne.s32.totalorder %s97, %s113
      %p115 = scmp.eq.s32.totalorder %s20, 0
      %p116 = por %p114, %p115
      %s117 = ssub.s32 %s21, %s33
      %p118 = scmp.eq.s32.totalorder %s117, 0
      %s120 = sadd.s32 %s119, 1
      %s121 = scalar_select %p118, %s119, %s120
      %p124 = pneg %p118
      %p125 = scmp.eq.s32.totalorder %s14, 1
      %p126 = por %p124, %p125
      %p127 = scmp.ne.s32.totalorder %s119, %s122
      %p128 = scmp.eq.s32.totalorder %s14, 0
      %p129 = por %p127, %p128
      %p130 = scmp.ne.s32.totalorder %s119, %s122
      %p131 = scmp.eq.s32.totalorder %s19, 1
      %p132 = por %p130, %p131
      %p133 = scmp.ne.s32.totalorder %s122, %s123
      %p134 = scmp.eq.s32.totalorder %s19, 0
      %p135 = por %p133, %p134
      %p136 = scmp.ne.s32.totalorder %s122, %s123
      %p137 = scmp.eq.s32.totalorder %s20, 1
      %p138 = por %p136, %p137
      %p140 = scmp.ne.s32.totalorder %s123, %s139
      %p141 = scmp.eq.s32.totalorder %s20, 0
      %p142 = por %p140, %p141
      %s143 = ssub.s32 %s21, %s33
      %p144 = scmp.eq.s32.totalorder %s143, 0
      %s146 = sadd.s32 %s145, 1
      %s147 = scalar_select %p144, %s145, %s146
      %p150 = pneg %p144
      %p151 = scmp.eq.s32.totalorder %s14, 1
      %p152 = por %p150, %p151
      %p153 = scmp.ne.s32.totalorder %s145, %s148
      %p154 = scmp.eq.s32.totalorder %s14, 0
      %p155 = por %p153, %p154
      %p156 = scmp.ne.s32.totalorder %s145, %s148
      %p157 = scmp.eq.s32.totalorder %s19, 1
      %p158 = por %p156, %p157
      %p159 = scmp.ne.s32.totalorder %s148, %s149
      %p160 = scmp.eq.s32.totalorder %s19, 0
      %p161 = por %p159, %p160
      %p162 = scmp.ne.s32.totalorder %s148, %s149
      %p163 = scmp.eq.s32.totalorder %s20, 1
      %p164 = por %p162, %p163
      %p166 = scmp.ne.s32.totalorder %s149, %s165
      %p167 = scmp.eq.s32.totalorder %s20, 0
      %p168 = por %p166, %p167
      %s169 = smul.u32 %s22, 2
      %s170 = ssub.s32 0, %s169
      %s171 = smul.u32 %s21, %s170
      %s172 = sadd.s32 %s22, %s171
      %s173 = smul.u32 %s29, 2
      %s174 = ssub.s32 0, %s173
      %s175 = smul.u32 %s33, %s174
      %s176 = sadd.s32 %s29, %s175
      %s177 = ssub.s32 %s21, %s33
      %s178 = ssub.s32 %s172, %s176
      %s179 = sor.u32 %s177, %s178
      %p180 = scmp.eq.s32.totalorder %s179, 0
      %s182 = sadd.s32 %s181, 1
      %s183 = scalar_select %p180, %s181, %s182
      %p186 = pneg %p180
      %p187 = scmp.eq.s32.totalorder %s14, 1
      %p188 = por %p186, %p187
      %p189 = scmp.ne.s32.totalorder %s181, %s184
      %p190 = scmp.eq.s32.totalorder %s14, 0
      %p191 = por %p189, %p190
      %p192 = scmp.ne.s32.totalorder %s181, %s184
      %p193 = scmp.eq.s32.totalorder %s19, 1
      %p194 = por %p192, %p193
      %p195 = scmp.ne.s32.totalorder %s184, %s185
      %p196 = scmp.eq.s32.totalorder %s19, 0
      %p197 = por %p195, %p196
      %p198 = scmp.ne.s32.totalorder %s184, %s185
      %p199 = scmp.eq.s32.totalorder %s20, 1
      %p200 = por %p198, %p199
      %p202 = scmp.ne.s32.totalorder %s185, %s201
      %p203 = scmp.eq.s32.totalorder %s20, 0
      %p204 = por %p202, %p203
      %p205 = scmp.le.s32.totalorder 1, %s14
      %p206 = scmp.lt.s32.totalorder %s14, 3
      %p207 = pnand %p205, %p206
      %p208 = pneg %p207
      // Predicated region
      $region9: #{mner_forward.3} parent=5 // pred_check
        _
      $region10: #{mner_forward.3} parent=5 // pred_check_branch
        %210 = sbr.rel (%p207) target = $region12
      $region11: #{mner_forward.3} parent=5 // pred_region
        %s211 = ssub.s32 %s14, 1
        // Predicated region
        $region13: #{mner_forward.3} parent=11 // pred_check
          %p212 = pneg %p83
        $region14: #{mner_forward.3} parent=11 // pred_check_branch
          %214 = sbr.rel (%p212) target = $region16
        $region15: #{mner_forward.3} parent=11 // pred_region
          _
        $region16: #{mner_forward.3} parent=11 // pred_fallthru
          _
      $region12: #{mner_forward.3} parent=5 // pred_fallthru
        _
      %p215 = scmp.lt.s32.totalorder %s14, 2
      // Predicated region
      $region17: #{mner_forward.3} parent=5 // pred_check
        %p216 = pneg %p215
      $region18: #{mner_forward.3} parent=5 // pred_check_branch
        %218 = sbr.rel (%p216) target = $region20
      $region19: #{mner_forward.3} parent=5 // pred_region
        // Predicated region
        $region21: #{mner_forward.3} parent=19 // pred_check
          %p219 = pneg %p56
        $region22: #{mner_forward.3} parent=19 // pred_check_branch
          %221 = sbr.rel (%p219) target = $region24
        $region23: #{mner_forward.3} parent=19 // pred_region
          %s222 = sand.u32 %s46, 1
          %s223 = sand.u32 %s46, 1
          %s224 = smul.addr %s223, 64
          %s225 = scalar_lea.vmem [#allocation4], %s224
          %s226 = smul.u32 %s22, 2
          %s227 = ssub.s32 0, %s226
          %s228 = smul.u32 %s21, %s227
          %s229 = sadd.s32 %s22, %s228
          %s230 = smul.u32 8, %s229
          %s231 = smul.u32 4, %s21
          %s232 = smul.addr %s230, 8
          %s233 = sadd.s32 %s231, %s232
          %s234 = smul.addr %s233, 2
          %s235 = scalar_lea.vmem %s0, %s234
          // Predicated region
          $region25: #{mner_forward.3} parent=23 // pred_check
            _
          $region26: #{mner_forward.3} parent=23 // pred_check_branch
            %237 = sbr.rel (0) target = $region28
          $region27: #{mner_forward.3} parent=23 // pred_region
            // Predicated region
            $region29: #{mner_forward.3} parent=27 // pred_check
              _
            $region30: #{mner_forward.3} parent=27 // pred_check_branch
              %239 = sbr.rel (0) target = $region32
            $region31: #{mner_forward.3} parent=27 // pred_region
              // Predicated region
              $region44: #{mner_forward.3} parent=31 // pred_check
                _
              $region45: #{mner_forward.3} parent=31 // pred_check_branch
                %268 = sbr.rel (0) target = $region47
              $region46: #{mner_forward.3} parent=31 // pred_region
                loop: start=0, step=1, limit=1
                $region48: #{mner_forward.3} parent=46 // loop_pre_header
                  _
                $region49: #{mner_forward.3} parent=46 // loop_header
                  %s270 = sphi 0, %s274
                  %p271 = scmp.ge.s32.totalorder %s270, 1
                  %s275 = sphi %s235, %s235
                  %s276 = sphi %s225, %s225
                $region50: #{mner_forward.3} parent=46 // loop_header_branch
                  %273 = sbr.rel (%p271) target = $region54
                $region51: #{mner_forward.3} parent=46 // loop_body
                  %v277 = vld [vmem:[%s275] sm:$0xff]
                  %278 = vst [vmem:[%s276] sm:$0xff] %v277
                  %v279 = vld [vmem:[%s275 + $0x10] sm:$0xff]
                  %280 = vst [vmem:[%s276 + $0x8] sm:$0xff] %v279
                  %v281 = vld [vmem:[%s275 + $0x20] sm:$0xff]
                  %282 = vst [vmem:[%s276 + $0x10] sm:$0xff] %v281
                  %v283 = vld [vmem:[%s275 + $0x30] sm:$0xff]
                  %284 = vst [vmem:[%s276 + $0x18] sm:$0xff] %v283
                  %v285 = vld [vmem:[%s275 + $0x40] sm:$0xff]
                  %286 = vst [vmem:[%s276 + $0x20] sm:$0xff] %v285
                  %v287 = vld [vmem:[%s275 + $0x50] sm:$0xff]
                  %288 = vst [vmem:[%s276 + $0x28] sm:$0xff] %v287
                  %v289 = vld [vmem:[%s275 + $0x60] sm:$0xff]
                  %290 = vst [vmem:[%s276 + $0x30] sm:$0xff] %v289
                  %v291 = vld [vmem:[%s275 + $0x70] sm:$0xff]
                  %292 = vst [vmem:[%s276 + $0x38] sm:$0xff] %v291
                $region52: #{mner_forward.3} parent=46 // loop_footer
                  %s274 = sadd.s32 1, %s270
                $region53: #{mner_forward.3} parent=46 // loop_footer_branch
                  %269 = sbr.rel target = $region49
                $region54: #{mner_forward.3} parent=46 // loop_exit
                  _
              $region47: #{mner_forward.3} parent=31 // pred_fallthru
                _
              // Predicated region
              $region55: #{mner_forward.3} parent=31 // pred_check
                _
              $region56: #{mner_forward.3} parent=31 // pred_check_branch
                %294 = sbr.rel target = $region58
              $region57: #{mner_forward.3} parent=31 // pred_region
                _
              $region58: #{mner_forward.3} parent=31 // pred_fallthru
                _
            $region32: #{mner_forward.3} parent=27 // pred_fallthru
              _
            // Predicated region
            $region33: #{mner_forward.3} parent=27 // pred_check
              _
            $region34: #{mner_forward.3} parent=27 // pred_check_branch
              %241 = sbr.rel target = $region36
            $region35: #{mner_forward.3} parent=27 // pred_region
              loop: start=0, step=1, limit=1
              $region37: #{mner_forward.3} parent=35 // loop_pre_header
                _
              $region38: #{mner_forward.3} parent=35 // loop_header
                %s244 = sphi 0, %s248
                %p245 = scmp.ge.s32.totalorder %s244, 1
                %s249 = sphi %s235, %s235
                %s250 = sphi %s225, %s225
              $region39: #{mner_forward.3} parent=35 // loop_header_branch
                %247 = sbr.rel (%p245) target = $region43
              $region40: #{mner_forward.3} parent=35 // loop_body
                %v251 = vld [vmem:[%s249] sm:$0xff]
                %252 = vst [vmem:[%s250] sm:$0xff] %v251
                %v253 = vld [vmem:[%s249 + $0x10] sm:$0xff]
                %254 = vst [vmem:[%s250 + $0x8] sm:$0xff] %v253
                %v255 = vld [vmem:[%s249 + $0x20] sm:$0xff]
                %256 = vst [vmem:[%s250 + $0x10] sm:$0xff] %v255
                %v257 = vld [vmem:[%s249 + $0x30] sm:$0xff]
                %258 = vst [vmem:[%s250 + $0x18] sm:$0xff] %v257
                %v259 = vld [vmem:[%s249 + $0x40] sm:$0xff]
                %260 = vst [vmem:[%s250 + $0x20] sm:$0xff] %v259
                %v261 = vld [vmem:[%s249 + $0x50] sm:$0xff]
                %262 = vst [vmem:[%s250 + $0x28] sm:$0xff] %v261
                %v263 = vld [vmem:[%s249 + $0x60] sm:$0xff]
                %264 = vst [vmem:[%s250 + $0x30] sm:$0xff] %v263
                %v265 = vld [vmem:[%s249 + $0x70] sm:$0xff]
                %266 = vst [vmem:[%s250 + $0x38] sm:$0xff] %v265
              $region41: #{mner_forward.3} parent=35 // loop_footer
                %s248 = sadd.s32 1, %s244
              $region42: #{mner_forward.3} parent=35 // loop_footer_branch
                %243 = sbr.rel target = $region38
              $region43: #{mner_forward.3} parent=35 // loop_exit
                _
            $region36: #{mner_forward.3} parent=27 // pred_fallthru
              _
          $region28: #{mner_forward.3} parent=23 // pred_fallthru
            _
          %295 = vnop
        $region24: #{mner_forward.3} parent=19 // pred_fallthru
          _
        // Predicated region
        $region59: #{mner_forward.3} parent=19 // pred_check
          %p296 = pneg %p103
        $region60: #{mner_forward.3} parent=19 // pred_check_branch
          %298 = sbr.rel (%p296) target = $region62
        $region61: #{mner_forward.3} parent=19 // pred_region
          %s299 = sand.u32 %s93, 1
          %s300 = scalar_lea.sflag [#allocation6], %s299
          %s301 = sand.u32 %s93, 1
          %s302 = smul.addr %s301, 512
          %s303 = scalar_lea.vmem [#allocation5], %s302
          %s305 = ssub.s32 8192, 8192
          %306 = vsyncadd %s300, %s305
          %s307 = smul.addr %s21, 64
          %s308 = smul.addr %s307, 128
          %s309 = scalar_lea.hbm %s2, %s308
          %s310 = sshll.u32 %s303, 4
          %s311 = int_to_ptr.vmem [resolvable:$true] %s310
          %316 = dma.hbm_to_vmem [thread:$0]  %s309, 8192, %s311, %s300, 512, 512, 32
        $region62: #{mner_forward.3} parent=19 // pred_fallthru
          _
        // Predicated region
        $region63: #{mner_forward.3} parent=19 // pred_check
          %p317 = pneg %p129
        $region64: #{mner_forward.3} parent=19 // pred_check_branch
          %319 = sbr.rel (%p317) target = $region66
        $region65: #{mner_forward.3} parent=19 // pred_region
          %p320 = scmp.lt.s32.totalorder %s21, 1
          %s321 = scalar_select %p320, %s21, 1
          %s322 = smul.addr %s321, 16
          %s323 = smul.addr %s322, 4
          %s324 = scalar_lea.vmem %s3, %s323
        $region66: #{mner_forward.3} parent=19 // pred_fallthru
          _
        // Predicated region
        $region67: #{mner_forward.3} parent=19 // pred_check
          %p325 = pneg %p155
        $region68: #{mner_forward.3} parent=19 // pred_check_branch
          %327 = sbr.rel (%p325) target = $region70
        $region69: #{mner_forward.3} parent=19 // pred_region
          %p328 = scmp.lt.s32.totalorder %s21, 1
          %s329 = scalar_select %p328, %s21, 1
          %s330 = scalar_lea.vmem %s4, %s329
        $region70: #{mner_forward.3} parent=19 // pred_fallthru
          _
      $region20: #{mner_forward.3} parent=5 // pred_fallthru
        _
      %p331 = scmp.le.s32.totalorder 1, %s14
      %p332 = scmp.lt.s32.totalorder %s14, 3
      %p333 = pnand %p331, %p332
      %p334 = pneg %p333
      // Predicated region
      $region71: #{mner_forward.3} parent=5 // pred_check
        _
      $region72: #{mner_forward.3} parent=5 // pred_check_branch
        %336 = sbr.rel (%p333) target = $region74
      $region73: #{mner_forward.3} parent=5 // pred_region
        %s337 = ssub.s32 %s14, 1
        %s338 = sand.u32 %s49, 1
        %s339 = sand.u32 %s49, 1
        %s340 = smul.addr %s339, 64
        %s341 = scalar_lea.vmem [#allocation4], %s340
        // Predicated region
        $region75: #{mner_forward.3} parent=73 // pred_check
          %p342 = pneg %p62
        $region76: #{mner_forward.3} parent=73 // pred_check_branch
          %344 = sbr.rel (%p342) target = $region78
        $region77: #{mner_forward.3} parent=73 // pred_region
          _
        $region78: #{mner_forward.3} parent=73 // pred_fallthru
          _
        %s345 = sand.u32 %s96, 1
        %s346 = scalar_lea.sflag [#allocation6], %s345
        %s347 = sand.u32 %s96, 1
        %s348 = smul.addr %s347, 512
        %s349 = scalar_lea.vmem [#allocation5], %s348
        // Predicated region
        $region79: #{mner_forward.3} parent=73 // pred_check
          %p350 = pneg %p109
        $region80: #{mner_forward.3} parent=73 // pred_check_branch
          %352 = sbr.rel (%p350) target = $region82
        $region81: #{mner_forward.3} parent=73 // pred_region
          %353 = dma.done %s346, 8192
        $region82: #{mner_forward.3} parent=73 // pred_fallthru
          _
        %s354 = sand.u32 %s49, 1
        %s355 = sand.u32 %s49, 1
        %s356 = smul.addr %s355, 64
        %s357 = scalar_lea.vmem [#allocation4], %s356
        %p358 = pneg %p62
        %p359 = pneg %p59
        %p360 = pneg %p83
        %p361 = pneg %p80
        %s362 = sand.u32 %s96, 1
        %s363 = scalar_lea.sflag [#allocation6], %s362
        %s364 = sand.u32 %s96, 1
        %s365 = smul.addr %s364, 512
        %s366 = scalar_lea.vmem [#allocation5], %s365
        %p367 = pneg %p109
        %p368 = pneg %p106
        %p369 = scmp.lt.s32.totalorder %s23, 1
        %s370 = scalar_select %p369, %s23, 1
        %s371 = smul.addr %s370, 16
        %s372 = smul.addr %s371, 4
        %s373 = scalar_lea.vmem %s3, %s372
        %p374 = pneg %p135
        %p375 = pneg %p132
        %p376 = scmp.lt.s32.totalorder %s23, 1
        %s377 = scalar_select %p376, %s23, 1
        %s378 = scalar_lea.vmem %s4, %s377
        %p379 = pneg %p161
        %p380 = pneg %p158
        %p381 = pneg %p197
        %p382 = pneg %p194
        %s383 = smul.u32 %s24, 2
        %s384 = ssub.s32 0, %s383
        %s385 = smul.u32 %s23, %s384
        %s386 = sadd.s32 %s24, %s385
        %s387 = smul.u32 8, %s386
        %p388 = scmp.lt.s32.totalorder %s23, 1
        %s389 = scalar_select %p388, %s23, 1
        %p390 = scmp.lt.s32.totalorder %s387, 7
        %s391 = scalar_select %p390, %s387, 7
        %s392 = smul.addr %s389, 8
        %s393 = sadd.s32 %s391, %s392
        %s394 = smul.addr %s393, 2
        %s395 = scalar_lea.vmem %s5, %s394
        %s396 = smul.u32 %s24, 2
        %s397 = ssub.s32 0, %s396
        %s398 = smul.u32 %s23, %s397
        %s399 = sadd.s32 %s24, %s398
        %s400 = smul.u32 8, %s399
        %s401 = smul.u32 4, %s23
        %p402 = scmp.lt.s32.totalorder %s23, 1
        %s403 = scalar_select %p402, %s23, 1
        %s404 = smul.addr %s403, 16
        %s405 = smul.addr %s404, 4
        %s406 = scalar_lea.vmem %s3, %s405
        %p407 = scmp.lt.s32.totalorder %s23, 1
        %s408 = scalar_select %p407, %s23, 1
        %s409 = scalar_lea.vmem %s4, %s408
        %s410 = smul.u32 %s24, 2
        %s411 = ssub.s32 0, %s410
        %s412 = smul.u32 %s23, %s411
        %s413 = sadd.s32 %s24, %s412
        %s414 = smul.u32 8, %s413
        %p415 = scmp.lt.s32.totalorder %s23, 1
        %s416 = scalar_select %p415, %s23, 1
        %p417 = scmp.lt.s32.totalorder %s414, 7
        %s418 = scalar_select %p417, %s414, 7
        %s419 = smul.addr %s416, 8
        %s420 = sadd.s32 %s418, %s419
        %s421 = smul.addr %s420, 2
        %s422 = scalar_lea.vmem %s5, %s421
        %s423 = smul.u32 %s24, 2
        %s424 = ssub.s32 0, %s423
        %s425 = smul.u32 %s23, %s424
        %s426 = sadd.s32 %s24, %s425
        %s427 = smul.u32 8, %s426
        %p429 = scmp.eq.s32.totalorder %s24, 0
        // Predicated region
        $region83: #{mner_forward.3} parent=73 // pred_check
          %p430 = pneg %p429
        $region84: #{mner_forward.3} parent=73 // pred_check_branch
          %432 = sbr.rel (%p430) target = $region86
        $region85: #{mner_forward.3} parent=73 // pred_region
          %433 = vst [vmem:[#allocation2] sm:$0x3] 0.0
          %434 = vst [vmem:[#allocation3] sm:$0x3] 0.0
        $region86: #{mner_forward.3} parent=73 // pred_fallthru
          _
        %s435 = smul.u32 %s24, 2
        %s436 = ssub.s32 0, %s435
        %s437 = smul.u32 %s23, %s436
        %s438 = sadd.s32 %s24, %s437
        %s439 = smul.u32 %s438, 8
        %v440 = vld [vmem:[%s1] sm:$0x3]
        %441 = vset.pattern.permute.xlu0 0
        %442 = vperm.xlu0 %441, %v440
        %v443 = vpop.permute.xlu0 %442
        %v444 = vld [vmem:[%s409] sm:$0x1]
        %v446 = vlaneseq
        %v447 = vshrl.u32 %v446, 7
        %v448 = vsub.s32 0, %v447
        %v449 = vrot.slane %v444, %v448
        %p451 = scmp.eq.s32.totalorder %s23, 0
        // Predicated region
        $region87: #{mner_forward.3} parent=73 // pred_check
          %p452 = pneg %p451
        $region88: #{mner_forward.3} parent=73 // pred_check_branch
          %454 = sbr.rel (%p452) target = $region90
        $region89: #{mner_forward.3} parent=73 // pred_region
          %v455 = vld [vmem:[#allocation2] sm:$0x3]
          %v456 = vld [vmem:[#allocation3] sm:$0x3]
          %v457 = vld [vmem:[%s341] sm:$0xff]
          %v458 = vld [vmem:[%s349] sm:$0xff]
          %v459 = vld [vmem:[%s349 + $0x8] sm:$0xff]
          %v460 = vld [vmem:[%s349 + $0x10] sm:$0xff]
          %v461 = vld [vmem:[%s349 + $0x18] sm:$0xff]
          %v462 = vld [vmem:[%s349 + $0x20] sm:$0xff]
          %v463 = vld [vmem:[%s349 + $0x28] sm:$0xff]
          %v464 = vld [vmem:[%s349 + $0x30] sm:$0xff]
          %v465 = vld [vmem:[%s349 + $0x38] sm:$0xff]
          %v466 = vld [vmem:[%s349 + $0x40] sm:$0xff]
          %v467 = vld [vmem:[%s349 + $0x48] sm:$0xff]
          %v468 = vld [vmem:[%s349 + $0x50] sm:$0xff]
          %v469 = vld [vmem:[%s349 + $0x58] sm:$0xff]
          %v470 = vld [vmem:[%s349 + $0x60] sm:$0xff]
          %v471 = vld [vmem:[%s349 + $0x68] sm:$0xff]
          %v472 = vld [vmem:[%s349 + $0x70] sm:$0xff]
          %v473 = vld [vmem:[%s349 + $0x78] sm:$0xff]
          %v474 = vld [vmem:[%s349 + $0x80] sm:$0xff]
          %v475 = vld [vmem:[%s349 + $0x88] sm:$0xff]
          %v476 = vld [vmem:[%s349 + $0x90] sm:$0xff]
          %v477 = vld [vmem:[%s349 + $0x98] sm:$0xff]
          %v478 = vld [vmem:[%s349 + $0xa0] sm:$0xff]
          %v479 = vld [vmem:[%s349 + $0xa8] sm:$0xff]
          %v480 = vld [vmem:[%s349 + $0xb0] sm:$0xff]
          %v481 = vld [vmem:[%s349 + $0xb8] sm:$0xff]
          %v482 = vld [vmem:[%s349 + $0xc0] sm:$0xff]
          %v483 = vld [vmem:[%s349 + $0xc8] sm:$0xff]
          %v484 = vld [vmem:[%s349 + $0xd0] sm:$0xff]
          %v485 = vld [vmem:[%s349 + $0xd8] sm:$0xff]
          %v486 = vld [vmem:[%s349 + $0xe0] sm:$0xff]
          %v487 = vld [vmem:[%s349 + $0xe8] sm:$0xff]
          %v488 = vld [vmem:[%s349 + $0xf0] sm:$0xff]
          %v489 = vld [vmem:[%s349 + $0xf8] sm:$0xff]
          %v490 = vld [vmem:[%s349 + $0x100] sm:$0xff]
          %v491 = vld [vmem:[%s349 + $0x108] sm:$0xff]
          %v492 = vld [vmem:[%s349 + $0x110] sm:$0xff]
          %v493 = vld [vmem:[%s349 + $0x118] sm:$0xff]
          %v494 = vld [vmem:[%s349 + $0x120] sm:$0xff]
          %v495 = vld [vmem:[%s349 + $0x128] sm:$0xff]
          %v496 = vld [vmem:[%s349 + $0x130] sm:$0xff]
          %v497 = vld [vmem:[%s349 + $0x138] sm:$0xff]
          %v498 = vld [vmem:[%s349 + $0x140] sm:$0xff]
          %v499 = vld [vmem:[%s349 + $0x148] sm:$0xff]
          %v500 = vld [vmem:[%s349 + $0x150] sm:$0xff]
          %v501 = vld [vmem:[%s349 + $0x158] sm:$0xff]
          %v502 = vld [vmem:[%s349 + $0x160] sm:$0xff]
          %v503 = vld [vmem:[%s349 + $0x168] sm:$0xff]
          %v504 = vld [vmem:[%s349 + $0x170] sm:$0xff]
          %v505 = vld [vmem:[%s349 + $0x178] sm:$0xff]
          %v506 = vld [vmem:[%s349 + $0x180] sm:$0xff]
          %v507 = vld [vmem:[%s349 + $0x188] sm:$0xff]
          %v508 = vld [vmem:[%s349 + $0x190] sm:$0xff]
          %v509 = vld [vmem:[%s349 + $0x198] sm:$0xff]
          %v510 = vld [vmem:[%s349 + $0x1a0] sm:$0xff]
          %v511 = vld [vmem:[%s349 + $0x1a8] sm:$0xff]
          %v512 = vld [vmem:[%s349 + $0x1b0] sm:$0xff]
          %v513 = vld [vmem:[%s349 + $0x1b8] sm:$0xff]
          %v514 = vld [vmem:[%s349 + $0x1c0] sm:$0xff]
          %v515 = vld [vmem:[%s349 + $0x1c8] sm:$0xff]
          %v516 = vld [vmem:[%s349 + $0x1d0] sm:$0xff]
          %v517 = vld [vmem:[%s349 + $0x1d8] sm:$0xff]
          %v518 = vld [vmem:[%s349 + $0x1e0] sm:$0xff]
          %v519 = vld [vmem:[%s349 + $0x1e8] sm:$0xff]
          %v520 = vld [vmem:[%s349 + $0x1f0] sm:$0xff]
          %v521 = vld [vmem:[%s349 + $0x1f8] sm:$0xff]
          %522 = vmatprep.subr.mxu0 %v459
          %523 = vmatpush1.msra.mxu0 %v458
          %524 = vmatprep.subr.mxu0 %v463
          %525 = vmatpush1.msra.mxu0 %v462
          %526 = vmatprep.subr.mxu0 %v467
          %527 = vmatpush1.msra.mxu0 %v466
          %528 = vmatprep.subr.mxu0 %v471
          %529 = vmatpush1.msra.mxu0 %v470
          %530 = vmatprep.subr.mxu0 %v475
          %531 = vmatpush1.msra.mxu0 %v474
          %532 = vmatprep.subr.mxu0 %v479
          %533 = vmatpush1.msra.mxu0 %v478
          %534 = vmatprep.subr.mxu0 %v483
          %535 = vmatpush1.msra.mxu0 %v482
          %536 = vmatprep.subr.mxu0 %v487
          %537 = vmatpush1.msra.mxu0 %v486
          %538 = vmatprep.subr.mxu0 %v491
          %539 = vmatpush1.msra.mxu0 %v490
          %540 = vmatprep.subr.mxu0 %v495
          %541 = vmatpush1.msra.mxu0 %v494
          %542 = vmatprep.subr.mxu0 %v499
          %543 = vmatpush1.msra.mxu0 %v498
          %544 = vmatprep.subr.mxu0 %v503
          %545 = vmatpush1.msra.mxu0 %v502
          %546 = vmatprep.subr.mxu0 %v507
          %547 = vmatpush1.msra.mxu0 %v506
          %548 = vmatprep.subr.mxu0 %v511
          %549 = vmatpush1.msra.mxu0 %v510
          %550 = vmatprep.subr.mxu0 %v515
          %551 = vmatpush1.msra.mxu0 %v514
          %552 = vmatprep.subr.mxu0 %v519
          %553 = vmatpush1.msra.mxu0 %v518
          %554 = vmatprep.subr.mxu0 0.0
          %555 = vmatpush1.msra.mxu0 0.0
          %556 = vmatprep.subr.mxu0 0.0
          %557 = vmatpush1.msra.mxu0 0.0
          %558 = vmatprep.subr.mxu0 0.0
          %559 = vmatpush1.msra.mxu0 0.0
          %560 = vmatprep.subr.mxu0 0.0
          %561 = vmatpush1.msra.mxu0 0.0
          %562 = vmatprep.subr.mxu0 0.0
          %563 = vmatpush1.msra.mxu0 0.0
          %564 = vmatprep.subr.mxu0 0.0
          %565 = vmatpush1.msra.mxu0 0.0
          %566 = vmatprep.subr.mxu0 0.0
          %567 = vmatpush1.msra.mxu0 0.0
          %568 = vmatprep.subr.mxu0 0.0
          %569 = vmatpush1.msra.mxu0 0.0
          %570 = vmatprep.subr.mxu0 0.0
          %571 = vmatpush1.msra.mxu0 0.0
          %572 = vmatprep.subr.mxu0 0.0
          %573 = vmatpush1.msra.mxu0 0.0
          %574 = vmatprep.subr.mxu0 0.0
          %575 = vmatpush1.msra.mxu0 0.0
          %576 = vmatprep.subr.mxu0 0.0
          %577 = vmatpush1.msra.mxu0 0.0
          %578 = vmatprep.subr.mxu0 0.0
          %579 = vmatpush1.msra.mxu0 0.0
          %580 = vmatprep.subr.mxu0 0.0
          %581 = vmatpush1.msra.mxu0 0.0
          %582 = vmatprep.subr.mxu0 0.0
          %583 = vmatpush1.msra.mxu0 0.0
          %584 = vmatprep.subr.mxu0 0.0
          %585 = vmatpush1.msra.mxu0 0.0
          %586 = vmatprep.mubr.f32.mxu0 0.0
          %587 = vmatmul.mubr.f32.gmra.mrb[0].mxu0 %v455
          %v588 = vpop.f32.mrb[0].mxu0
          %v589 = vadd.f32 0.0, %v588
          %v590 = vpop.f32.mrb[0].mxu0
          %v591 = vadd.f32 0.0, %v590
          %592 = vdwg.mxu0
          %593 = vmatprep.subr.mxu0 %v461
          %594 = vmatpush1.msra.mxu0 %v460
          %595 = vmatprep.subr.mxu0 %v465
          %596 = vmatpush1.msra.mxu0 %v464
          %597 = vmatprep.subr.mxu0 %v469
          %598 = vmatpush1.msra.mxu0 %v468
          %599 = vmatprep.subr.mxu0 %v473
          %600 = vmatpush1.msra.mxu0 %v472
          %601 = vmatprep.subr.mxu0 %v477
          %602 = vmatpush1.msra.mxu0 %v476
          %603 = vmatprep.subr.mxu0 %v481
          %604 = vmatpush1.msra.mxu0 %v480
          %605 = vmatprep.subr.mxu0 %v485
          %606 = vmatpush1.msra.mxu0 %v484
          %607 = vmatprep.subr.mxu0 %v489
          %608 = vmatpush1.msra.mxu0 %v488
          %609 = vmatprep.subr.mxu0 %v493
          %610 = vmatpush1.msra.mxu0 %v492
          %611 = vmatprep.subr.mxu0 %v497
          %612 = vmatpush1.msra.mxu0 %v496
          %613 = vmatprep.subr.mxu0 %v501
          %614 = vmatpush1.msra.mxu0 %v500
          %615 = vmatprep.subr.mxu0 %v505
          %616 = vmatpush1.msra.mxu0 %v504
          %617 = vmatprep.subr.mxu0 %v509
          %618 = vmatpush1.msra.mxu0 %v508
          %619 = vmatprep.subr.mxu0 %v513
          %620 = vmatpush1.msra.mxu0 %v512
          %621 = vmatprep.subr.mxu0 %v517
          %622 = vmatpush1.msra.mxu0 %v516
          %623 = vmatprep.subr.mxu0 %v521
          %624 = vmatpush1.msra.mxu0 %v520
          %625 = vmatprep.subr.mxu0 0.0
          %626 = vmatpush1.msra.mxu0 0.0
          %627 = vmatprep.subr.mxu0 0.0
          %628 = vmatpush1.msra.mxu0 0.0
          %629 = vmatprep.subr.mxu0 0.0
          %630 = vmatpush1.msra.mxu0 0.0
          %631 = vmatprep.subr.mxu0 0.0
          %632 = vmatpush1.msra.mxu0 0.0
          %633 = vmatprep.subr.mxu0 0.0
          %634 = vmatpush1.msra.mxu0 0.0
          %635 = vmatprep.subr.mxu0 0.0
          %636 = vmatpush1.msra.mxu0 0.0
          %637 = vmatprep.subr.mxu0 0.0
          %638 = vmatpush1.msra.mxu0 0.0
          %639 = vmatprep.subr.mxu0 0.0
          %640 = vmatpush1.msra.mxu0 0.0
          %641 = vmatprep.subr.mxu0 0.0
          %642 = vmatpush1.msra.mxu0 0.0
          %643 = vmatprep.subr.mxu0 0.0
          %644 = vmatpush1.msra.mxu0 0.0
          %645 = vmatprep.subr.mxu0 0.0
          %646 = vmatpush1.msra.mxu0 0.0
          %647 = vmatprep.subr.mxu0 0.0
          %648 = vmatpush1.msra.mxu0 0.0
          %649 = vmatprep.subr.mxu0 0.0
          %650 = vmatpush1.msra.mxu0 0.0
          %651 = vmatprep.subr.mxu0 0.0
          %652 = vmatpush1.msra.mxu0 0.0
          %653 = vmatprep.subr.mxu0 0.0
          %654 = vmatpush1.msra.mxu0 0.0
          %655 = vmatprep.subr.mxu0 0.0
          %656 = vmatpush1.msra.mxu0 0.0
          %657 = vmatprep.mubr.f32.mxu0 0.0
          %658 = vmatmul.mubr.f32.gmra.mrb[0].mxu0 %v455
          %v659 = vpop.f32.mrb[0].mxu0
          %v660 = vadd.f32 0.0, %v659
          %v661 = vpop.f32.mrb[0].mxu0
          %v662 = vadd.f32 0.0, %v661
          %663 = vdwg.mxu0
          %v668 = vcombine.low %v589, %v591
          %v669 = vcombine.low %v660, %v662
          %v671 = vunpack.c.l.s4 1983009808
          %v672 = vunpack.c.0.s8 %v671
          %v673 = vlaneseq
          %v674 = vshrl.u32 %v673, 7
          %v675 = vsub.s32 %v672, %v674
          %v676 = vrot.slane %v668, %v675
          %v678 = vunpack.c.l.s4 1983009808
          %v679 = vunpack.c.0.s8 %v678
          %v680 = vlaneseq
          %v681 = vshrl.u32 %v680, 7
          %v682 = vsub.s32 %v679, %v681
          %v683 = vrot.slane %v669, %v682
          %v684 = vcombine.low %v676, %v683
          %v686 = vadd.f32 %v457, %v684
          %v687 = vxor.u32 %v686, 2147483648
          %v688 = vmul.f32 %v687, 1.442695
          %v689 = vpow.pop %v688
          %v690 = vadd.f32 %v689, 1.0
          %v691 = vrcp.pop %v690
          %v692 = vmul.f32 1.0, %v691
          %v694 = vrot.slane %v686, 6
          %v696 = vtanh.pop %v694
          %v698 = vrot.slane %v692, 2
          %v700 = vmul.f32 %v698, %v456
          %v701 = vmul.f32 %v692, %v696
          %v702 = vadd.f32 %v700, %v701
          %v703 = vtanh.pop %v702
          %v704 = vrot.slane %v692, 4
          %v706 = vmul.f32 %v704, %v703
          %v707 = vstv %s439
          %vm708 = vcmp.lt.s32.totalorder %v707, %v443
          %v709 = vsel %vm708, %v706, %v455
          %v710 = vsel %vm708, %v702, %v456
          %v711 = vsel %vm708, %v706, 0.0
          %v712 = vpack.c.bf16 %v711, %v711
          %v713 = vld [vmem:[%s406] sm:$0xf]
          %v714 = vld [vmem:[%s406 + $0x4] sm:$0xf]
          %v715 = vld [vmem:[%s406 + $0x8] sm:$0xf]
          %v716 = vld [vmem:[%s406 + $0xc] sm:$0xf]
          %v717 = vld [vmem:[%s406 + $0x10] sm:$0xf]
          %v718 = vld [vmem:[%s406 + $0x14] sm:$0xf]
          %v719 = vld [vmem:[%s406 + $0x18] sm:$0xf]
          %v720 = vld [vmem:[%s406 + $0x1c] sm:$0xf]
          %v721 = vld [vmem:[%s406 + $0x20] sm:$0xf]
          %v722 = vld [vmem:[%s406 + $0x24] sm:$0xf]
          %v723 = vld [vmem:[%s406 + $0x28] sm:$0xf]
          %v724 = vld [vmem:[%s406 + $0x2c] sm:$0xf]
          %v725 = vld [vmem:[%s406 + $0x30] sm:$0xf]
          %v726 = vld [vmem:[%s406 + $0x34] sm:$0xf]
          %v727 = vld [vmem:[%s406 + $0x38] sm:$0xf]
          %v728 = vld [vmem:[%s406 + $0x3c] sm:$0xf]
          %v745 = vunpack.c.l.b16 %v713
          %v746 = vunpack.c.l.b16 %v714
          %v747 = vunpack.c.l.b16 %v715
          %v748 = vunpack.c.l.b16 %v716
          %v749 = vunpack.c.l.b16 %v717
          %v750 = vunpack.c.l.b16 %v718
          %v751 = vunpack.c.l.b16 %v719
          %v752 = vunpack.c.l.b16 %v720
          %v753 = vunpack.c.l.b16 %v721
          %v754 = vunpack.c.l.b16 %v722
          %v755 = vunpack.c.l.b16 %v723
          %v756 = vunpack.c.l.b16 %v724
          %v757 = vunpack.c.l.b16 %v725
          %v758 = vunpack.c.l.b16 %v726
          %v759 = vunpack.c.l.b16 %v727
          %v760 = vunpack.c.l.b16 %v728
          %v761 = vpack.c.b16 %v746, %v745
          %v762 = vpack.c.b16 %v748, %v747
          %v763 = vpack.c.b16 %v750, %v749
          %v764 = vpack.c.b16 %v752, %v751
          %v765 = vpack.c.b16 %v754, %v753
          %v766 = vpack.c.b16 %v756, %v755
          %v767 = vpack.c.b16 %v758, %v757
          %v768 = vpack.c.b16 %v760, %v759
          %777 = vmatprep.subr.bf16.mxu0 0
          %778 = vmatpush1.bf16.msra.mxu0 %v761
          %779 = vmatprep.subr.bf16.mxu0 0
          %780 = vmatpush1.bf16.msra.mxu0 %v762
          %781 = vmatprep.subr.bf16.mxu0 0
          %782 = vmatpush1.bf16.msra.mxu0 %v763
          %783 = vmatprep.subr.bf16.mxu0 0
          %784 = vmatpush1.bf16.msra.mxu0 %v764
          %785 = vmatprep.subr.bf16.mxu0 0
          %786 = vmatpush1.bf16.msra.mxu0 %v765
          %787 = vmatprep.subr.bf16.mxu0 0
          %788 = vmatpush1.bf16.msra.mxu0 %v766
          %789 = vmatprep.subr.bf16.mxu0 0
          %790 = vmatpush1.bf16.msra.mxu0 %v767
          %791 = vmatprep.subr.bf16.mxu0 0
          %792 = vmatpush1.bf16.msra.mxu0 %v768
          %793 = vmatprep.subr.bf16.mxu0 0
          %794 = vmatpush1.bf16.msra.mxu0 0
          %795 = vmatprep.subr.bf16.mxu0 0
          %796 = vmatpush1.bf16.msra.mxu0 0
          %797 = vmatprep.subr.bf16.mxu0 0
          %798 = vmatpush1.bf16.msra.mxu0 0
          %799 = vmatprep.subr.bf16.mxu0 0
          %800 = vmatpush1.bf16.msra.mxu0 0
          %801 = vmatprep.subr.bf16.mxu0 0
          %802 = vmatpush1.bf16.msra.mxu0 0
          %803 = vmatprep.subr.bf16.mxu0 0
          %804 = vmatpush1.bf16.msra.mxu0 0
          %805 = vmatprep.subr.bf16.mxu0 0
          %806 = vmatpush1.bf16.msra.mxu0 0
          %807 = vmatprep.subr.bf16.mxu0 0
          %808 = vmatpush1.bf16.msra.mxu0 0
          %809 = vmatprep.mubr.bf16.mxu0 0
          %810 = vmatmul.mubr.bf16.gmra.mrb[0].mxu0 %v712
          %v811 = vpop.f32.mrb[0].mxu0
          %v812 = vadd.f32 %v449, %v811
          %v813 = vpop.f32.mrb[0].mxu0
          %v814 = vpop.f32.mrb[0].mxu0
          %v815 = vpop.f32.mrb[0].mxu0
          %816 = vdwg.mxu0
          %817 = vst [vmem:[%s422] sm:$0x3] %v812
          %s818 = scalar_lea.vmem %s341, 8 [#allocation4]
          %v819 = vld [vmem:[%s818] sm:$0xff]
          %v820 = vld [vmem:[%s349] sm:$0xff]
          %v821 = vld [vmem:[%s349 + $0x8] sm:$0xff]
          %v822 = vld [vmem:[%s349 + $0x10] sm:$0xff]
          %v823 = vld [vmem:[%s349 + $0x18] sm:$0xff]
          %v824 = vld [vmem:[%s349 + $0x20] sm:$0xff]
          %v825 = vld [vmem:[%s349 + $0x28] sm:$0xff]
          %v826 = vld [vmem:[%s349 + $0x30] sm:$0xff]
          %v827 = vld [vmem:[%s349 + $0x38] sm:$0xff]
          %v828 = vld [vmem:[%s349 + $0x40] sm:$0xff]
          %v829 = vld [vmem:[%s349 + $0x48] sm:$0xff]
          %v830 = vld [vmem:[%s349 + $0x50] sm:$0xff]
          %v831 = vld [vmem:[%s349 + $0x58] sm:$0xff]
          %v832 = vld [vmem:[%s349 + $0x60] sm:$0xff]
          %v833 = vld [vmem:[%s349 + $0x68] sm:$0xff]
          %v834 = vld [vmem:[%s349 + $0x70] sm:$0xff]
          %v835 = vld [vmem:[%s349 + $0x78] sm:$0xff]
          %v836 = vld [vmem:[%s349 + $0x80] sm:$0xff]
          %v837 = vld [vmem:[%s349 + $0x88] sm:$0xff]
          %v838 = vld [vmem:[%s349 + $0x90] sm:$0xff]
          %v839 = vld [vmem:[%s349 + $0x98] sm:$0xff]
          %v840 = vld [vmem:[%s349 + $0xa0] sm:$0xff]
          %v841 = vld [vmem:[%s349 + $0xa8] sm:$0xff]
          %v842 = vld [vmem:[%s349 + $0xb0] sm:$0xff]
          %v843 = vld [vmem:[%s349 + $0xb8] sm:$0xff]
          %v844 = vld [vmem:[%s349 + $0xc0] sm:$0xff]
          %v845 = vld [vmem:[%s349 + $0xc8] sm:$0xff]
          %v846 = vld [vmem:[%s349 + $0xd0] sm:$0xff]
          %v847 = vld [vmem:[%s349 + $0xd8] sm:$0xff]
          %v848 = vld [vmem:[%s349 + $0xe0] sm:$0xff]
          %v849 = vld [vmem:[%s349 + $0xe8] sm:$0xff]
          %v850 = vld [vmem:[%s349 + $0xf0] sm:$0xff]
          %v851 = vld [vmem:[%s349 + $0xf8] sm:$0xff]
          %v852 = vld [vmem:[%s349 + $0x100] sm:$0xff]
          %v853 = vld [vmem:[%s349 + $0x108] sm:$0xff]
          %v854 = vld [vmem:[%s349 + $0x110] sm:$0xff]
          %v855 = vld [vmem:[%s349 + $0x118] sm:$0xff]
          %v856 = vld [vmem:[%s349 + $0x120] sm:$0xff]
          %v857 = vld [vmem:[%s349 + $0x128] sm:$0xff]
          %v858 = vld [vmem:[%s349 + $0x130] sm:$0xff]
          %v859 = vld [vmem:[%s349 + $0x138] sm:$0xff]
          %v860 = vld [vmem:[%s349 + $0x140] sm:$0xff]
          %v861 = vld [vmem:[%s349 + $0x148] sm:$0xff]
          %v862 = vld [vmem:[%s349 + $0x150] sm:$0xff]
          %v863 = vld [vmem:[%s349 + $0x158] sm:$0xff]
          %v864 = vld [vmem:[%s349 + $0x160] sm:$0xff]
          %v865 = vld [vmem:[%s349 + $0x168] sm:$0xff]
          %v866 = vld [vmem:[%s349 + $0x170] sm:$0xff]
          %v867 = vld [vmem:[%s349 + $0x178] sm:$0xff]
          %v868 = vld [vmem:[%s349 + $0x180] sm:$0xff]
          %v869 = vld [vmem:[%s349 + $0x188] sm:$0xff]
          %v870 = vld [vmem:[%s349 + $0x190] sm:$0xff]
          %v871 = vld [vmem:[%s349 + $0x198] sm:$0xff]
          %v872 = vld [vmem:[%s349 + $0x1a0] sm:$0xff]
          %v873 = vld [vmem:[%s349 + $0x1a8] sm:$0xff]
          %v874 = vld [vmem:[%s349 + $0x1b0] sm:$0xff]
          %v875 = vld [vmem:[%s349 + $0x1b8] sm:$0xff]
          %v876 = vld [vmem:[%s349 + $0x1c0] sm:$0xff]
          %v877 = vld [vmem:[%s349 + $0x1c8] sm:$0xff]
          %v878 = vld [vmem:[%s349 + $0x1d0] sm:$0xff]
          %v879 = vld [vmem:[%s349 + $0x1d8] sm:$0xff]
          %v880 = vld [vmem:[%s349 + $0x1e0] sm:$0xff]
          %v881 = vld [vmem:[%s349 + $0x1e8] sm:$0xff]
          %v882 = vld [vmem:[%s349 + $0x1f0] sm:$0xff]
          %v883 = vld [vmem:[%s349 + $0x1f8] sm:$0xff]
          %884 = vmatprep.subr.mxu0 %v821
          %885 = vmatpush1.msra.mxu0 %v820
          %886 = vmatprep.subr.mxu0 %v825
          %887 = vmatpush1.msra.mxu0 %v824
          %888 = vmatprep.subr.mxu0 %v829
          %889 = vmatpush1.msra.mxu0 %v828
          %890 = vmatprep.subr.mxu0 %v833
          %891 = vmatpush1.msra.mxu0 %v832
          %892 = vmatprep.subr.mxu0 %v837
          %893 = vmatpush1.msra.mxu0 %v836
          %894 = vmatprep.subr.mxu0 %v841
          %895 = vmatpush1.msra.mxu0 %v840
          %896 = vmatprep.subr.mxu0 %v845
          %897 = vmatpush1.msra.mxu0 %v844
          %898 = vmatprep.subr.mxu0 %v849
          %899 = vmatpush1.msra.mxu0 %v848
          %900 = vmatprep.subr.mxu0 %v853
          %901 = vmatpush1.msra.mxu0 %v852
          %902 = vmatprep.subr.mxu0 %v857
          %903 = vmatpush1.msra.mxu0 %v856
          %904 = vmatprep.subr.mxu0 %v861
          %905 = vmatpush1.msra.mxu0 %v860
          %906 = vmatprep.subr.mxu0 %v865
          %907 = vmatpush1.msra.mxu0 %v864
          %908 = vmatprep.subr.mxu0 %v869
          %909 = vmatpush1.msra.mxu0 %v868
          %910 = vmatprep.subr.mxu0 %v873
          %911 = vmatpush1.msra.mxu0 %v872
          %912 = vmatprep.subr.mxu0 %v877
          %913 = vmatpush1.msra.mxu0 %v876
          %914 = vmatprep.subr.mxu0 %v881
          %915 = vmatpush1.msra.mxu0 %v880
          %916 = vmatprep.subr.mxu0 0.0
          %917 = vmatpush1.msra.mxu0 0.0
          %918 = vmatprep.subr.mxu0 0.0
          %919 = vmatpush1.msra.mxu0 0.0
          %920 = vmatprep.subr.mxu0 0.0
          %921 = vmatpush1.msra.mxu0 0.0
          %922 = vmatprep.subr.mxu0 0.0
          %923 = vmatpush1.msra.mxu0 0.0
          %924 = vmatprep.subr.mxu0 0.0
          %925 = vmatpush1.msra.mxu0 0.0
          %926 = vmatprep.subr.mxu0 0.0
          %927 = vmatpush1.msra.mxu0 0.0
          %928 = vmatprep.subr.mxu0 0.0
          %929 = vmatpush1.msra.mxu0 0.0
          %930 = vmatprep.subr.mxu0 0.0
          %931 = vmatpush1.msra.mxu0 0.0
          %932 = vmatprep.subr.mxu0 0.0
          %933 = vmatpush1.msra.mxu0 0.0
          %934 = vmatprep.subr.mxu0 0.0
          %935 = vmatpush1.msra.mxu0 0.0
          %936 = vmatprep.subr.mxu0 0.0
          %937 = vmatpush1.msra.mxu0 0.0
          %938 = vmatprep.subr.mxu0 0.0
          %939 = vmatpush1.msra.mxu0 0.0
          %940 = vmatprep.subr.mxu0 0.0
          %941 = vmatpush1.msra.mxu0 0.0
          %942 = vmatprep.subr.mxu0 0.0
          %943 = vmatpush1.msra.mxu0 0.0
          %944 = vmatprep.subr.mxu0 0.0
          %945 = vmatpush1.msra.mxu0 0.0
          %946 = vmatprep.subr.mxu0 0.0
          %947 = vmatpush1.msra.mxu0 0.0
          %948 = vmatprep.mubr.f32.mxu0 0.0
          %949 = vmatmul.mubr.f32.gmra.mrb[0].mxu0 %v709
          %v950 = vpop.f32.mrb[0].mxu0
          %v951 = vadd.f32 0.0, %v950
          %v952 = vpop.f32.mrb[0].mxu0
          %v953 = vadd.f32 0.0, %v952
          %954 = vdwg.mxu0
          %955 = vmatprep.subr.mxu0 %v823
          %956 = vmatpush1.msra.mxu0 %v822
          %957 = vmatprep.subr.mxu0 %v827
          %958 = vmatpush1.msra.mxu0 %v826
          %959 = vmatprep.subr.mxu0 %v831
          %960 = vmatpush1.msra.mxu0 %v830
          %961 = vmatprep.subr.mxu0 %v835
          %962 = vmatpush1.msra.mxu0 %v834
          %963 = vmatprep.subr.mxu0 %v839
          %964 = vmatpush1.msra.mxu0 %v838
          %965 = vmatprep.subr.mxu0 %v843
          %966 = vmatpush1.msra.mxu0 %v842
          %967 = vmatprep.subr.mxu0 %v847
          %968 = vmatpush1.msra.mxu0 %v846
          %969 = vmatprep.subr.mxu0 %v851
          %970 = vmatpush1.msra.mxu0 %v850
          %971 = vmatprep.subr.mxu0 %v855
          %972 = vmatpush1.msra.mxu0 %v854
          %973 = vmatprep.subr.mxu0 %v859
          %974 = vmatpush1.msra.mxu0 %v858
          %975 = vmatprep.subr.mxu0 %v863
          %976 = vmatpush1.msra.mxu0 %v862
          %977 = vmatprep.subr.mxu0 %v867
          %978 = vmatpush1.msra.mxu0 %v866
          %979 = vmatprep.subr.mxu0 %v871
          %980 = vmatpush1.msra.mxu0 %v870
          %981 = vmatprep.subr.mxu0 %v875
          %982 = vmatpush1.msra.mxu0 %v874
          %983 = vmatprep.subr.mxu0 %v879
          %984 = vmatpush1.msra.mxu0 %v878
          %985 = vmatprep.subr.mxu0 %v883
          %986 = vmatpush1.msra.mxu0 %v882
          %987 = vmatprep.subr.mxu0 0.0
          %988 = vmatpush1.msra.mxu0 0.0
          %989 = vmatprep.subr.mxu0 0.0
          %990 = vmatpush1.msra.mxu0 0.0
          %991 = vmatprep.subr.mxu0 0.0
          %992 = vmatpush1.msra.mxu0 0.0
          %993 = vmatprep.subr.mxu0 0.0
          %994 = vmatpush1.msra.mxu0 0.0
          %995 = vmatprep.subr.mxu0 0.0
          %996 = vmatpush1.msra.mxu0 0.0
          %997 = vmatprep.subr.mxu0 0.0
          %998 = vmatpush1.msra.mxu0 0.0
          %999 = vmatprep.subr.mxu0 0.0
          %1000 = vmatpush1.msra.mxu0 0.0
          %1001 = vmatprep.subr.mxu0 0.0
          %1002 = vmatpush1.msra.mxu0 0.0
          %1003 = vmatprep.subr.mxu0 0.0
          %1004 = vmatpush1.msra.mxu0 0.0
          %1005 = vmatprep.subr.mxu0 0.0
          %1006 = vmatpush1.msra.mxu0 0.0
          %1007 = vmatprep.subr.mxu0 0.0
          %1008 = vmatpush1.msra.mxu0 0.0
          %1009 = vmatprep.subr.mxu0 0.0
          %1010 = vmatpush1.msra.mxu0 0.0
          %1011 = vmatprep.subr.mxu0 0.0
          %1012 = vmatpush1.msra.mxu0 0.0
          %1013 = vmatprep.subr.mxu0 0.0
          %1014 = vmatpush1.msra.mxu0 0.0
          %1015 = vmatprep.subr.mxu0 0.0
          %1016 = vmatpush1.msra.mxu0 0.0
          %1017 = vmatprep.subr.mxu0 0.0
          %1018 = vmatpush1.msra.mxu0 0.0
          %1019 = vmatprep.mubr.f32.mxu0 0.0
          %1020 = vmatmul.mubr.f32.gmra.mrb[0].mxu0 %v709
          %v1021 = vpop.f32.mrb[0].mxu0
          %v1022 = vadd.f32 0.0, %v1021
          %v1023 = vpop.f32.mrb[0].mxu0
          %v1024 = vadd.f32 0.0, %v1023
          %1025 = vdwg.mxu0
          %v1030 = vcombine.low %v951, %v953
          %v1031 = vcombine.low %v1022, %v1024
          %v1033 = vunpack.c.l.s4 1983009808
          %v1034 = vunpack.c.0.s8 %v1033
          %v1035 = vlaneseq
          %v1036 = vshrl.u32 %v1035, 7
          %v1037 = vsub.s32 %v1034, %v1036
          %v1038 = vrot.slane %v1030, %v1037
          %v1040 = vunpack.c.l.s4 1983009808
          %v1041 = vunpack.c.0.s8 %v1040
          %v1042 = vlaneseq
          %v1043 = vshrl.u32 %v1042, 7
          %v1044 = vsub.s32 %v1041, %v1043
          %v1045 = vrot.slane %v1031, %v1044
          %v1046 = vcombine.low %v1038, %v1045
          %v1048 = vadd.f32 %v819, %v1046
          %v1049 = vxor.u32 %v1048, 2147483648
          %v1050 = vmul.f32 %v1049, 1.442695
          %v1051 = vpow.pop %v1050
          %v1052 = vadd.f32 %v1051, 1.0
          %v1053 = vrcp.pop %v1052
          %v1054 = vmul.f32 1.0, %v1053
          %v1056 = vrot.slane %v1048, 6
          %v1058 = vtanh.pop %v1056
          %v1060 = vrot.slane %v1054, 2
          %v1062 = vmul.f32 %v1060, %v710
          %v1063 = vmul.f32 %v1054, %v1058
          %v1064 = vadd.f32 %v1062, %v1063
          %v1065 = vtanh.pop %v1064
          %v1066 = vrot.slane %v1054, 4
          %v1068 = vmul.f32 %v1066, %v1065
          %s1069 = sadd.s32 %s439, 1
          %v1070 = vstv %s1069
          %vm1071 = vcmp.lt.s32.totalorder %v1070, %v443
          %v1072 = vsel %vm1071, %v1068, %v709
          %v1073 = vsel %vm1071, %v1064, %v710
          %v1074 = vsel %vm1071, %v1068, 0.0
          %v1075 = vpack.c.bf16 %v1074, %v1074
          %v1076 = vld [vmem:[%s406] sm:$0xf]
          %v1077 = vld [vmem:[%s406 + $0x4] sm:$0xf]
          %v1078 = vld [vmem:[%s406 + $0x8] sm:$0xf]
          %v1079 = vld [vmem:[%s406 + $0xc] sm:$0xf]
          %v1080 = vld [vmem:[%s406 + $0x10] sm:$0xf]
          %v1081 = vld [vmem:[%s406 + $0x14] sm:$0xf]
          %v1082 = vld [vmem:[%s406 + $0x18] sm:$0xf]
          %v1083 = vld [vmem:[%s406 + $0x1c] sm:$0xf]
          %v1084 = vld [vmem:[%s406 + $0x20] sm:$0xf]
          %v1085 = vld [vmem:[%s406 + $0x24] sm:$0xf]
          %v1086 = vld [vmem:[%s406 + $0x28] sm:$0xf]
          %v1087 = vld [vmem:[%s406 + $0x2c] sm:$0xf]
          %v1088 = vld [vmem:[%s406 + $0x30] sm:$0xf]
          %v1089 = vld [vmem:[%s406 + $0x34] sm:$0xf]
          %v1090 = vld [vmem:[%s406 + $0x38] sm:$0xf]
          %v1091 = vld [vmem:[%s406 + $0x3c] sm:$0xf]
          %v1108 = vunpack.c.l.b16 %v1076
          %v1109 = vunpack.c.l.b16 %v1077
          %v1110 = vunpack.c.l.b16 %v1078
          %v1111 = vunpack.c.l.b16 %v1079
          %v1112 = vunpack.c.l.b16 %v1080
          %v1113 = vunpack.c.l.b16 %v1081
          %v1114 = vunpack.c.l.b16 %v1082
          %v1115 = vunpack.c.l.b16 %v1083
          %v1116 = vunpack.c.l.b16 %v1084
          %v1117 = vunpack.c.l.b16 %v1085
          %v1118 = vunpack.c.l.b16 %v1086
          %v1119 = vunpack.c.l.b16 %v1087
          %v1120 = vunpack.c.l.b16 %v1088
          %v1121 = vunpack.c.l.b16 %v1089
          %v1122 = vunpack.c.l.b16 %v1090
          %v1123 = vunpack.c.l.b16 %v1091
          %v1124 = vpack.c.b16 %v1109, %v1108
          %v1125 = vpack.c.b16 %v1111, %v1110
          %v1126 = vpack.c.b16 %v1113, %v1112
          %v1127 = vpack.c.b16 %v1115, %v1114
          %v1128 = vpack.c.b16 %v1117, %v1116
          %v1129 = vpack.c.b16 %v1119, %v1118
          %v1130 = vpack.c.b16 %v1121, %v1120
          %v1131 = vpack.c.b16 %v1123, %v1122
          %1140 = vmatprep.subr.bf16.mxu0 0
          %1141 = vmatpush1.bf16.msra.mxu0 %v1124
          %1142 = vmatprep.subr.bf16.mxu0 0
          %1143 = vmatpush1.bf16.msra.mxu0 %v1125
          %1144 = vmatprep.subr.bf16.mxu0 0
          %1145 = vmatpush1.bf16.msra.mxu0 %v1126
          %1146 = vmatprep.subr.bf16.mxu0 0
          %1147 = vmatpush1.bf16.msra.mxu0 %v1127
          %1148 = vmatprep.subr.bf16.mxu0 0
          %1149 = vmatpush1.bf16.msra.mxu0 %v1128
          %1150 = vmatprep.subr.bf16.mxu0 0
          %1151 = vmatpush1.bf16.msra.mxu0 %v1129
          %1152 = vmatprep.subr.bf16.mxu0 0
          %1153 = vmatpush1.bf16.msra.mxu0 %v1130
          %1154 = vmatprep.subr.bf16.mxu0 0
          %1155 = vmatpush1.bf16.msra.mxu0 %v1131
          %1156 = vmatprep.subr.bf16.mxu0 0
          %1157 = vmatpush1.bf16.msra.mxu0 0
          %1158 = vmatprep.subr.bf16.mxu0 0
          %1159 = vmatpush1.bf16.msra.mxu0 0
          %1160 = vmatprep.subr.bf16.mxu0 0
          %1161 = vmatpush1.bf16.msra.mxu0 0
          %1162 = vmatprep.subr.bf16.mxu0 0
          %1163 = vmatpush1.bf16.msra.mxu0 0
          %1164 = vmatprep.subr.bf16.mxu0 0
          %1165 = vmatpush1.bf16.msra.mxu0 0
          %1166 = vmatprep.subr.bf16.mxu0 0
          %1167 = vmatpush1.bf16.msra.mxu0 0
          %1168 = vmatprep.subr.bf16.mxu0 0
          %1169 = vmatpush1.bf16.msra.mxu0 0
          %1170 = vmatprep.subr.bf16.mxu0 0
          %1171 = vmatpush1.bf16.msra.mxu0 0
          %1172 = vmatprep.mubr.bf16.mxu0 0
          %1173 = vmatmul.mubr.bf16.gmra.mrb[0].mxu0 %v1075
          %v1174 = vpop.f32.mrb[0].mxu0
          %v1175 = vadd.f32 %v449, %v1174
          %v1176 = vpop.f32.mrb[0].mxu0
          %v1177 = vpop.f32.mrb[0].mxu0
          %v1178 = vpop.f32.mrb[0].mxu0
          %1179 = vdwg.mxu0
          %s1180 = scalar_lea.vmem %s422, 2
          %1181 = vst [vmem:[%s1180] sm:$0x3] %v1175
          %s1182 = scalar_lea.vmem %s341, 16 [#allocation4]
          %v1183 = vld [vmem:[%s1182] sm:$0xff]
          %v1184 = vld [vmem:[%s349] sm:$0xff]
          %v1185 = vld [vmem:[%s349 + $0x8] sm:$0xff]
          %v1186 = vld [vmem:[%s349 + $0x10] sm:$0xff]
          %v1187 = vld [vmem:[%s349 + $0x18] sm:$0xff]
          %v1188 = vld [vmem:[%s349 + $0x20] sm:$0xff]
          %v1189 = vld [vmem:[%s349 + $0x28] sm:$0xff]
          %v1190 = vld [vmem:[%s349 + $0x30] sm:$0xff]
          %v1191 = vld [vmem:[%s349 + $0x38] sm:$0xff]
          %v1192 = vld [vmem:[%s349 + $0x40] sm:$0xff]
          %v1193 = vld [vmem:[%s349 + $0x48] sm:$0xff]
          %v1194 = vld [vmem:[%s349 + $0x50] sm:$0xff]
          %v1195 = vld [vmem:[%s349 + $0x58] sm:$0xff]
          %v1196 = vld [vmem:[%s349 + $0x60] sm:$0xff]
          %v1197 = vld [vmem:[%s349 + $0x68] sm:$0xff]
          %v1198 = vld [vmem:[%s349 + $0x70] sm:$0xff]
          %v1199 = vld [vmem:[%s349 + $0x78] sm:$0xff]
          %v1200 = vld [vmem:[%s349 + $0x80] sm:$0xff]
          %v1201 = vld [vmem:[%s349 + $0x88] sm:$0xff]
          %v1202 = vld [vmem:[%s349 + $0x90] sm:$0xff]
          %v1203 = vld [vmem:[%s349 + $0x98] sm:$0xff]
          %v1204 = vld [vmem:[%s349 + $0xa0] sm:$0xff]
          %v1205 = vld [vmem:[%s349 + $0xa8] sm:$0xff]
          %v1206 = vld [vmem:[%s349 + $0xb0] sm:$0xff]
          %v1207 = vld [vmem:[%s349 + $0xb8] sm:$0xff]
          %v1208 = vld [vmem:[%s349 + $0xc0] sm:$0xff]
          %v1209 = vld [vmem:[%s349 + $0xc8] sm:$0xff]
          %v1210 = vld [vmem:[%s349 + $0xd0] sm:$0xff]
          %v1211 = vld [vmem:[%s349 + $0xd8] sm:$0xff]
          %v1212 = vld [vmem:[%s349 + $0xe0] sm:$0xff]
          %v1213 = vld [vmem:[%s349 + $0xe8] sm:$0xff]
          %v1214 = vld [vmem:[%s349 + $0xf0] sm:$0xff]
          %v1215 = vld [vmem:[%s349 + $0xf8] sm:$0xff]
          %v1216 = vld [vmem:[%s349 + $0x100] sm:$0xff]
          %v1217 = vld [vmem:[%s349 + $0x108] sm:$0xff]
          %v1218 = vld [vmem:[%s349 + $0x110] sm:$0xff]
          %v1219 = vld [vmem:[%s349 + $0x118] sm:$0xff]
          %v1220 = vld [vmem:[%s349 + $0x120] sm:$0xff]
          %v1221 = vld [vmem:[%s349 + $0x128] sm:$0xff]
          %v1222 = vld [vmem:[%s349 + $0x130] sm:$0xff]
          %v1223 = vld [vmem:[%s349 + $0x138] sm:$0xff]
          %v1224 = vld [vmem:[%s349 + $0x140] sm:$0xff]
          %v1225 = vld [vmem:[%s349 + $0x148] sm:$0xff]
          %v1226 = vld [vmem:[%s349 + $0x150] sm:$0xff]
          %v1227 = vld [vmem:[%s349 + $0x158] sm:$0xff]
          %v1228 = vld [vmem:[%s349 + $0x160] sm:$0xff]
          %v1229 = vld [vmem:[%s349 + $0x168] sm:$0xff]
          %v1230 = vld [vmem:[%s349 + $0x170] sm:$0xff]
          %v1231 = vld [vmem:[%s349 + $0x178] sm:$0xff]
          %v1232 = vld [vmem:[%s349 + $0x180] sm:$0xff]
          %v1233 = vld [vmem:[%s349 + $0x188] sm:$0xff]
          %v1234 = vld [vmem:[%s349 + $0x190] sm:$0xff]
          %v1235 = vld [vmem:[%s349 + $0x198] sm:$0xff]
          %v1236 = vld [vmem:[%s349 + $0x1a0] sm:$0xff]
          %v1237 = vld [vmem:[%s349 + $0x1a8] sm:$0xff]
          %v1238 = vld [vmem:[%s349 + $0x1b0] sm:$0xff]
          %v1239 = vld [vmem:[%s349 + $0x1b8] sm:$0xff]
          %v1240 = vld [vmem:[%s349 + $0x1c0] sm:$0xff]
          %v1241 = vld [vmem:[%s349 + $0x1c8] sm:$0xff]
          %v1242 = vld [vmem:[%s349 + $0x1d0] sm:$0xff]
          %v1243 = vld [vmem:[%s349 + $0x1d8] sm:$0xff]
          %v1244 = vld [vmem:[%s349 + $0x1e0] sm:$0xff]
          %v1245 = vld [vmem:[%s349 + $0x1e8] sm:$0xff]
          %v1246 = vld [vmem:[%s349 + $0x1f0] sm:$0xff]
          %v1247 = vld [vmem:[%s349 + $0x1f8] sm:$0xff]
          %1248 = vmatprep.subr.mxu0 %v1185
          %1249 = vmatpush1.msra.mxu0 %v1184
          %1250 = vmatprep.subr.mxu0 %v1189
          %1251 = vmatpush1.msra.mxu0 %v1188
          %1252 = vmatprep.subr.mxu0 %v1193
          %1253 = vmatpush1.msra.mxu0 %v1192
          %1254 = vmatprep.subr.mxu0 %v1197
          %1255 = vmatpush1.msra.mxu0 %v1196
          %1256 = vmatprep.subr.mxu0 %v1201
          %1257 = vmatpush1.msra.mxu0 %v1200
          %1258 = vmatprep.subr.mxu0 %v1205
          %1259 = vmatpush1.msra.mxu0 %v1204
          %1260 = vmatprep.subr.mxu0 %v1209
          %1261 = vmatpush1.msra.mxu0 %v1208
          %1262 = vmatprep.subr.mxu0 %v1213
          %1263 = vmatpush1.msra.mxu0 %v1212
          %1264 = vmatprep.subr.mxu0 %v1217
          %1265 = vmatpush1.msra.mxu0 %v1216
          %1266 = vmatprep.subr.mxu0 %v1221
          %1267 = vmatpush1.msra.mxu0 %v1220
          %1268 = vmatprep.subr.mxu0 %v1225
          %1269 = vmatpush1.msra.mxu0 %v1224
          %1270 = vmatprep.subr.mxu0 %v1229
          %1271 = vmatpush1.msra.mxu0 %v1228
          %1272 = vmatprep.subr.mxu0 %v1233
          %1273 = vmatpush1.msra.mxu0 %v1232
          %1274 = vmatprep.subr.mxu0 %v1237
          %1275 = vmatpush1.msra.mxu0 %v1236
          %1276 = vmatprep.subr.mxu0 %v1241
          %1277 = vmatpush1.msra.mxu0 %v1240
          %1278 = vmatprep.subr.mxu0 %v1245
          %1279 = vmatpush1.msra.mxu0 %v1244
          %1280 = vmatprep.subr.mxu0 0.0
          %1281 = vmatpush1.msra.mxu0 0.0
          %1282 = vmatprep.subr.mxu0 0.0
          %1283 = vmatpush1.msra.mxu0 0.0
          %1284 = vmatprep.subr.mxu0 0.0
          %1285 = vmatpush1.msra.mxu0 0.0
          %1286 = vmatprep.subr.mxu0 0.0
          %1287 = vmatpush1.msra.mxu0 0.0
          %1288 = vmatprep.subr.mxu0 0.0
          %1289 = vmatpush1.msra.mxu0 0.0
          %1290 = vmatprep.subr.mxu0 0.0
          %1291 = vmatpush1.msra.mxu0 0.0
          %1292 = vmatprep.subr.mxu0 0.0
          %1293 = vmatpush1.msra.mxu0 0.0
          %1294 = vmatprep.subr.mxu0 0.0
          %1295 = vmatpush1.msra.mxu0 0.0
          %1296 = vmatprep.subr.mxu0 0.0
          %1297 = vmatpush1.msra.mxu0 0.0
          %1298 = vmatprep.subr.mxu0 0.0
          %1299 = vmatpush1.msra.mxu0 0.0
          %1300 = vmatprep.subr.mxu0 0.0
          %1301 = vmatpush1.msra.mxu0 0.0
          %1302 = vmatprep.subr.mxu0 0.0
          %1303 = vmatpush1.msra.mxu0 0.0
          %1304 = vmatprep.subr.mxu0 0.0
          %1305 = vmatpush1.msra.mxu0 0.0
          %1306 = vmatprep.subr.mxu0 0.0
          %1307 = vmatpush1.msra.mxu0 0.0
          %1308 = vmatprep.subr.mxu0 0.0
          %1309 = vmatpush1.msra.mxu0 0.0
          %1310 = vmatprep.subr.mxu0 0.0
          %1311 = vmatpush1.msra.mxu0 0.0
          %1312 = vmatprep.mubr.f32.mxu0 0.0
          %1313 = vmatmul.mubr.f32.gmra.mrb[0].mxu0 %v1072
          %v1314 = vpop.f32.mrb[0].mxu0
          %v1315 = vadd.f32 0.0, %v1314
          %v1316 = vpop.f32.mrb[0].mxu0
          %v1317 = vadd.f32 0.0, %v1316
          %1318 = vdwg.mxu0
          %1319 = vmatprep.subr.mxu0 %v1187
          %1320 = vmatpush1.msra.mxu0 %v1186
          %1321 = vmatprep.subr.mxu0 %v1191
          %1322 = vmatpush1.msra.mxu0 %v1190
          %1323 = vmatprep.subr.mxu0 %v1195
          %1324 = vmatpush1.msra.mxu0 %v1194
          %1325 = vmatprep.subr.mxu0 %v1199
          %1326 = vmatpush1.msra.mxu0 %v1198
          %1327 = vmatprep.subr.mxu0 %v1203
          %1328 = vmatpush1.msra.mxu0 %v1202
          %1329 = vmatprep.subr.mxu0 %v1207
          %1330 = vmatpush1.msra.mxu0 %v1206
          %1331 = vmatprep.subr.mxu0 %v1211
          %1332 = vmatpush1.msra.mxu0 %v1210
          %1333 = vmatprep.subr.mxu0 %v1215
          %1334 = vmatpush1.msra.mxu0 %v1214
          %1335 = vmatprep.subr.mxu0 %v1219
          %1336 = vmatpush1.msra.mxu0 %v1218
          %1337 = vmatprep.subr.mxu0 %v1223
          %1338 = vmatpush1.msra.mxu0 %v1222
          %1339 = vmatprep.subr.mxu0 %v1227
          %1340 = vmatpush1.msra.mxu0 %v1226
          %1341 = vmatprep.subr.mxu0 %v1231
          %1342 = vmatpush1.msra.mxu0 %v1230
          %1343 = vmatprep.subr.mxu0 %v1235
          %1344 = vmatpush1.msra.mxu0 %v1234
          %1345 = vmatprep.subr.mxu0 %v1239
          %1346 = vmatpush1.msra.mxu0 %v1238
          %1347 = vmatprep.subr.mxu0 %v1243
          %1348 = vmatpush1.msra.mxu0 %v1242
          %1349 = vmatprep.subr.mxu0 %v1247
          %1350 = vmatpush1.msra.mxu0 %v1246
          %1351 = vmatprep.subr.mxu0 0.0
          %1352 = vmatpush1.msra.mxu0 0.0
          %1353 = vmatprep.subr.mxu0 0.0
          %1354 = vmatpush1.msra.mxu0 0.0
          %1355 = vmatprep.subr.mxu0 0.0
          %1356 = vmatpush1.msra.mxu0 0.0
          %1357 = vmatprep.subr.mxu0 0.0
          %1358 = vmatpush1.msra.mxu0 0.0
          %1359 = vmatprep.subr.mxu0 0.0
          %1360 = vmatpush1.msra.mxu0 0.0
          %1361 = vmatprep.subr.mxu0 0.0
          %1362 = vmatpush1.msra.mxu0 0.0
          %1363 = vmatprep.subr.mxu0 0.0
          %1364 = vmatpush1.msra.mxu0 0.0
          %1365 = vmatprep.subr.mxu0 0.0
          %1366 = vmatpush1.msra.mxu0 0.0
          %1367 = vmatprep.subr.mxu0 0.0
          %1368 = vmatpush1.msra.mxu0 0.0
          %1369 = vmatprep.subr.mxu0 0.0
          %1370 = vmatpush1.msra.mxu0 0.0
          %1371 = vmatprep.subr.mxu0 0.0
          %1372 = vmatpush1.msra.mxu0 0.0
          %1373 = vmatprep.subr.mxu0 0.0
          %1374 = vmatpush1.msra.mxu0 0.0
          %1375 = vmatprep.subr.mxu0 0.0
          %1376 = vmatpush1.msra.mxu0 0.0
          %1377 = vmatprep.subr.mxu0 0.0
          %1378 = vmatpush1.msra.mxu0 0.0
          %1379 = vmatprep.subr.mxu0 0.0
          %1380 = vmatpush1.msra.mxu0 0.0
          %1381 = vmatprep.subr.mxu0 0.0
          %1382 = vmatpush1.msra.mxu0 0.0
          %1383 = vmatprep.mubr.f32.mxu0 0.0
          %1384 = vmatmul.mubr.f32.gmra.mrb[0].mxu0 %v1072
          %v1385 = vpop.f32.mrb[0].mxu0
          %v1386 = vadd.f32 0.0, %v1385
          %v1387 = vpop.f32.mrb[0].mxu0
          %v1388 = vadd.f32 0.0, %v1387
          %1389 = vdwg.mxu0
          %v1394 = vcombine.low %v1315, %v1317
          %v1395 = vcombine.low %v1386, %v1388
          %v1397 = vunpack.c.l.s4 1983009808
          %v1398 = vunpack.c.0.s8 %v1397
          %v1399 = vlaneseq
          %v1400 = vshrl.u32 %v1399, 7
          %v1401 = vsub.s32 %v1398, %v1400
          %v1402 = vrot.slane %v1394, %v1401
          %v1404 = vunpack.c.l.s4 1983009808
          %v1405 = vunpack.c.0.s8 %v1404
          %v1406 = vlaneseq
          %v1407 = vshrl.u32 %v1406, 7
          %v1408 = vsub.s32 %v1405, %v1407
          %v1409 = vrot.slane %v1395, %v1408
          %v1410 = vcombine.low %v1402, %v1409
          %v1412 = vadd.f32 %v1183, %v1410
          %v1413 = vxor.u32 %v1412, 2147483648
          %v1414 = vmul.f32 %v1413, 1.442695
          %v1415 = vpow.pop %v1414
          %v1416 = vadd.f32 %v1415, 1.0
          %v1417 = vrcp.pop %v1416
          %v1418 = vmul.f32 1.0, %v1417
          %v1420 = vrot.slane %v1412, 6
          %v1422 = vtanh.pop %v1420
          %v1424 = vrot.slane %v1418, 2
          %v1426 = vmul.f32 %v1424, %v1073
          %v1427 = vmul.f32 %v1418, %v1422
          %v1428 = vadd.f32 %v1426, %v1427
          %v1429 = vtanh.pop %v1428
          %v1430 = vrot.slane %v1418, 4
          %v1432 = vmul.f32 %v1430, %v1429
          %s1433 = sadd.s32 %s439, 2
          %v1434 = vstv %s1433
          %vm1435 = vcmp.lt.s32.totalorder %v1434, %v443
          %v1436 = vsel %vm1435, %v1432, %v1072
          %v1437 = vsel %vm1435, %v1428, %v1073
          %v1438 = vsel %vm1435, %v1432, 0.0
          %v1439 = vpack.c.bf16 %v1438, %v1438
          %v1440 = vld [vmem:[%s406] sm:$0xf]
          %v1441 = vld [vmem:[%s406 + $0x4] sm:$0xf]
          %v1442 = vld [vmem:[%s406 + $0x8] sm:$0xf]
          %v1443 = vld [vmem:[%s406 + $0xc] sm:$0xf]
          %v1444 = vld [vmem:[%s406 + $0x10] sm:$0xf]
          %v1445 = vld [vmem:[%s406 + $0x14] sm:$0xf]
          %v1446 = vld [vmem:[%s406 + $0x18] sm:$0xf]
          %v1447 = vld [vmem:[%s406 + $0x1c] sm:$0xf]
          %v1448 = vld [vmem:[%s406 + $0x20] sm:$0xf]
          %v1449 = vld [vmem:[%s406 + $0x24] sm:$0xf]
          %v1450 = vld [vmem:[%s406 + $0x28] sm:$0xf]
          %v1451 = vld [vmem:[%s406 + $0x2c] sm:$0xf]
          %v1452 = vld [vmem:[%s406 + $0x30] sm:$0xf]
          %v1453 = vld [vmem:[%s406 + $0x34] sm:$0xf]
          %v1454 = vld [vmem:[%s406 + $0x38] sm:$0xf]
          %v1455 = vld [vmem:[%s406 + $0x3c] sm:$0xf]
          %v1472 = vunpack.c.l.b16 %v1440
          %v1473 = vunpack.c.l.b16 %v1441
          %v1474 = vunpack.c.l.b16 %v1442
          %v1475 = vunpack.c.l.b16 %v1443
          %v1476 = vunpack.c.l.b16 %v1444
          %v1477 = vunpack.c.l.b16 %v1445
          %v1478 = vunpack.c.l.b16 %v1446
          %v1479 = vunpack.c.l.b16 %v1447
          %v1480 = vunpack.c.l.b16 %v1448
          %v1481 = vunpack.c.l.b16 %v1449
          %v1482 = vunpack.c.l.b16 %v1450
          %v1483 = vunpack.c.l.b16 %v1451
          %v1484 = vunpack.c.l.b16 %v1452
          %v1485 = vunpack.c.l.b16 %v1453
          %v1486 = vunpack.c.l.b16 %v1454
          %v1487 = vunpack.c.l.b16 %v1455
          %v1488 = vpack.c.b16 %v1473, %v1472
          %v1489 = vpack.c.b16 %v1475, %v1474
          %v1490 = vpack.c.b16 %v1477, %v1476
          %v1491 = vpack.c.b16 %v1479, %v1478
          %v1492 = vpack.c.b16 %v1481, %v1480
          %v1493 = vpack.c.b16 %v1483, %v1482
          %v1494 = vpack.c.b16 %v1485, %v1484
          %v1495 = vpack.c.b16 %v1487, %v1486
          %1504 = vmatprep.subr.bf16.mxu0 0
          %1505 = vmatpush1.bf16.msra.mxu0 %v1488
          %1506 = vmatprep.subr.bf16.mxu0 0
          %1507 = vmatpush1.bf16.msra.mxu0 %v1489
          %1508 = vmatprep.subr.bf16.mxu0 0
          %1509 = vmatpush1.bf16.msra.mxu0 %v1490
          %1510 = vmatprep.subr.bf16.mxu0 0
          %1511 = vmatpush1.bf16.msra.mxu0 %v1491
          %1512 = vmatprep.subr.bf16.mxu0 0
          %1513 = vmatpush1.bf16.msra.mxu0 %v1492
          %1514 = vmatprep.subr.bf16.mxu0 0
          %1515 = vmatpush1.bf16.msra.mxu0 %v1493
          %1516 = vmatprep.subr.bf16.mxu0 0
          %1517 = vmatpush1.bf16.msra.mxu0 %v1494
          %1518 = vmatprep.subr.bf16.mxu0 0
          %1519 = vmatpush1.bf16.msra.mxu0 %v1495
          %1520 = vmatprep.subr.bf16.mxu0 0
          %1521 = vmatpush1.bf16.msra.mxu0 0
          %1522 = vmatprep.subr.bf16.mxu0 0
          %1523 = vmatpush1.bf16.msra.mxu0 0
          %1524 = vmatprep.subr.bf16.mxu0 0
          %1525 = vmatpush1.bf16.msra.mxu0 0
          %1526 = vmatprep.subr.bf16.mxu0 0
          %1527 = vmatpush1.bf16.msra.mxu0 0
          %1528 = vmatprep.subr.bf16.mxu0 0
          %1529 = vmatpush1.bf16.msra.mxu0 0
          %1530 = vmatprep.subr.bf16.mxu0 0
          %1531 = vmatpush1.bf16.msra.mxu0 0
          %1532 = vmatprep.subr.bf16.mxu0 0
          %1533 = vmatpush1.bf16.msra.mxu0 0
          %1534 = vmatprep.subr.bf16.mxu0 0
          %1535 = vmatpush1.bf16.msra.mxu0 0
          %1536 = vmatprep.mubr.bf16.mxu0 0
          %1537 = vmatmul.mubr.bf16.gmra.mrb[0].mxu0 %v1439
          %v1538 = vpop.f32.mrb[0].mxu0
          %v1539 = vadd.f32 %v449, %v1538
          %v1540 = vpop.f32.mrb[0].mxu0
          %v1541 = vpop.f32.mrb[0].mxu0
          %v1542 = vpop.f32.mrb[0].mxu0
          %1543 = vdwg.mxu0
          %s1544 = scalar_lea.vmem %s422, 4
          %1545 = vst [vmem:[%s1544] sm:$0x3] %v1539
          %s1546 = scalar_lea.vmem %s341, 24 [#allocation4]
          %v1547 = vld [vmem:[%s1546] sm:$0xff]
          %v1548 = vld [vmem:[%s349] sm:$0xff]
          %v1549 = vld [vmem:[%s349 + $0x8] sm:$0xff]
          %v1550 = vld [vmem:[%s349 + $0x10] sm:$0xff]
          %v1551 = vld [vmem:[%s349 + $0x18] sm:$0xff]
          %v1552 = vld [vmem:[%s349 + $0x20] sm:$0xff]
          %v1553 = vld [vmem:[%s349 + $0x28] sm:$0xff]
          %v1554 = vld [vmem:[%s349 + $0x30] sm:$0xff]
          %v1555 = vld [vmem:[%s349 + $0x38] sm:$0xff]
          %v1556 = vld [vmem:[%s349 + $0x40] sm:$0xff]
          %v1557 = vld [vmem:[%s349 + $0x48] sm:$0xff]
          %v1558 = vld [vmem:[%s349 + $0x50] sm:$0xff]
          %v1559 = vld [vmem:[%s349 + $0x58] sm:$0xff]
          %v1560 = vld [vmem:[%s349 + $0x60] sm:$0xff]
          %v1561 = vld [vmem:[%s349 + $0x68] sm:$0xff]
          %v1562 = vld [vmem:[%s349 + $0x70] sm:$0xff]
          %v1563 = vld [vmem:[%s349 + $0x78] sm:$0xff]
          %v1564 = vld [vmem:[%s349 + $0x80] sm:$0xff]
          %v1565 = vld [vmem:[%s349 + $0x88] sm:$0xff]
          %v1566 = vld [vmem:[%s349 + $0x90] sm:$0xff]
          %v1567 = vld [vmem:[%s349 + $0x98] sm:$0xff]
          %v1568 = vld [vmem:[%s349 + $0xa0] sm:$0xff]
          %v1569 = vld [vmem:[%s349 + $0xa8] sm:$0xff]
          %v1570 = vld [vmem:[%s349 + $0xb0] sm:$0xff]
          %v1571 = vld [vmem:[%s349 + $0xb8] sm:$0xff]
          %v1572 = vld [vmem:[%s349 + $0xc0] sm:$0xff]
          %v1573 = vld [vmem:[%s349 + $0xc8] sm:$0xff]
          %v1574 = vld [vmem:[%s349 + $0xd0] sm:$0xff]
          %v1575 = vld [vmem:[%s349 + $0xd8] sm:$0xff]
          %v1576 = vld [vmem:[%s349 + $0xe0] sm:$0xff]
          %v1577 = vld [vmem:[%s349 + $0xe8] sm:$0xff]
          %v1578 = vld [vmem:[%s349 + $0xf0] sm:$0xff]
          %v1579 = vld [vmem:[%s349 + $0xf8] sm:$0xff]
          %v1580 = vld [vmem:[%s349 + $0x100] sm:$0xff]
          %v1581 = vld [vmem:[%s349 + $0x108] sm:$0xff]
          %v1582 = vld [vmem:[%s349 + $0x110] sm:$0xff]
          %v1583 = vld [vmem:[%s349 + $0x118] sm:$0xff]
          %v1584 = vld [vmem:[%s349 + $0x120] sm:$0xff]
          %v1585 = vld [vmem:[%s349 + $0x128] sm:$0xff]
          %v1586 = vld [vmem:[%s349 + $0x130] sm:$0xff]
          %v1587 = vld [vmem:[%s349 + $0x138] sm:$0xff]
          %v1588 = vld [vmem:[%s349 + $0x140] sm:$0xff]
          %v1589 = vld [vmem:[%s349 + $0x148] sm:$0xff]
          %v1590 = vld [vmem:[%s349 + $0x150] sm:$0xff]
          %v1591 = vld [vmem:[%s349 + $0x158] sm:$0xff]
          %v1592 = vld [vmem:[%s349 + $0x160] sm:$0xff]
          %v1593 = vld [vmem:[%s349 + $0x168] sm:$0xff]
          %v1594 = vld [vmem:[%s349 + $0x170] sm:$0xff]
          %v1595 = vld [vmem:[%s349 + $0x178] sm:$0xff]
          %v1596 = vld [vmem:[%s349 + $0x180] sm:$0xff]
          %v1597 = vld [vmem:[%s349 + $0x188] sm:$0xff]
          %v1598 = vld [vmem:[%s349 + $0x190] sm:$0xff]
          %v1599 = vld [vmem:[%s349 + $0x198] sm:$0xff]
          %v1600 = vld [vmem:[%s349 + $0x1a0] sm:$0xff]
          %v1601 = vld [vmem:[%s349 + $0x1a8] sm:$0xff]
          %v1602 = vld [vmem:[%s349 + $0x1b0] sm:$0xff]
          %v1603 = vld [vmem:[%s349 + $0x1b8] sm:$0xff]
          %v1604 = vld [vmem:[%s349 + $0x1c0] sm:$0xff]
          %v1605 = vld [vmem:[%s349 + $0x1c8] sm:$0xff]
          %v1606 = vld [vmem:[%s349 + $0x1d0] sm:$0xff]
          %v1607 = vld [vmem:[%s349 + $0x1d8] sm:$0xff]
          %v1608 = vld [vmem:[%s349 + $0x1e0] sm:$0xff]
          %v1609 = vld [vmem:[%s349 + $0x1e8] sm:$0xff]
          %v1610 = vld [vmem:[%s349 + $0x1f0] sm:$0xff]
          %v1611 = vld [vmem:[%s349 + $0x1f8] sm:$0xff]
          %1612 = vmatprep.subr.mxu0 %v1549
          %1613 = vmatpush1.msra.mxu0 %v1548
          %1614 = vmatprep.subr.mxu0 %v1553
          %1615 = vmatpush1.msra.mxu0 %v1552
          %1616 = vmatprep.subr.mxu0 %v1557
          %1617 = vmatpush1.msra.mxu0 %v1556
          %1618 = vmatprep.subr.mxu0 %v1561
          %1619 = vmatpush1.msra.mxu0 %v1560
          %1620 = vmatprep.subr.mxu0 %v1565
          %1621 = vmatpush1.msra.mxu0 %v1564
          %1622 = vmatprep.subr.mxu0 %v1569
          %1623 = vmatpush1.msra.mxu0 %v1568
          %1624 = vmatprep.subr.mxu0 %v1573
          %1625 = vmatpush1.msra.mxu0 %v1572
          %1626 = vmatprep.subr.mxu0 %v1577
          %1627 = vmatpush1.msra.mxu0 %v1576
          %1628 = vmatprep.subr.mxu0 %v1581
          %1629 = vmatpush1.msra.mxu0 %v1580
          %1630 = vmatprep.subr.mxu0 %v1585
          %1631 = vmatpush1.msra.mxu0 %v1584
          %1632 = vmatprep.subr.mxu0 %v1589
          %1633 = vmatpush1.msra.mxu0 %v1588
          %1634 = vmatprep.subr.mxu0 %v1593
          %1635 = vmatpush1.msra.mxu0 %v1592
          %1636 = vmatprep.subr.mxu0 %v1597
          %1637 = vmatpush1.msra.mxu0 %v1596
          %1638 = vmatprep.subr.mxu0 %v1601
          %1639 = vmatpush1.msra.mxu0 %v1600
          %1640 = vmatprep.subr.mxu0 %v1605
          %1641 = vmatpush1.msra.mxu0 %v1604
          %1642 = vmatprep.subr.mxu0 %v1609
          %1643 = vmatpush1.msra.mxu0 %v1608
          %1644 = vmatprep.subr.mxu0 0.0
          %1645 = vmatpush1.msra.mxu0 0.0
          %1646 = vmatprep.subr.mxu0 0.0
          %1647 = vmatpush1.msra.mxu0 0.0
          %1648 = vmatprep.subr.mxu0 0.0
          %1649 = vmatpush1.msra.mxu0 0.0
          %1650 = vmatprep.subr.mxu0 0.0
          %1651 = vmatpush1.msra.mxu0 0.0
          %1652 = vmatprep.subr.mxu0 0.0
          %1653 = vmatpush1.msra.mxu0 0.0
          %1654 = vmatprep.subr.mxu0 0.0
          %1655 = vmatpush1.msra.mxu0 0.0
          %1656 = vmatprep.subr.mxu0 0.0
          %1657 = vmatpush1.msra.mxu0 0.0
          %1658 = vmatprep.subr.mxu0 0.0
          %1659 = vmatpush1.msra.mxu0 0.0
          %1660 = vmatprep.subr.mxu0 0.0
          %1661 = vmatpush1.msra.mxu0 0.0
          %1662 = vmatprep.subr.mxu0 0.0
          %1663 = vmatpush1.msra.mxu0 0.0
          %1664 = vmatprep.subr.mxu0 0.0
          %1665 = vmatpush1.msra.mxu0 0.0
          %1666 = vmatprep.subr.mxu0 0.0
          %1667 = vmatpush1.msra.mxu0 0.0
          %1668 = vmatprep.subr.mxu0 0.0
          %1669 = vmatpush1.msra.mxu0 0.0
          %1670 = vmatprep.subr.mxu0 0.0
          %1671 = vmatpush1.msra.mxu0 0.0
          %1672 = vmatprep.subr.mxu0 0.0
          %1673 = vmatpush1.msra.mxu0 0.0
          %1674 = vmatprep.subr.mxu0 0.0
          %1675 = vmatpush1.msra.mxu0 0.0
          %1676 = vmatprep.mubr.f32.mxu0 0.0
          %1677 = vmatmul.mubr.f32.gmra.mrb[0].mxu0 %v1436
          %v1678 = vpop.f32.mrb[0].mxu0
          %v1679 = vadd.f32 0.0, %v1678
          %v1680 = vpop.f32.mrb[0].mxu0
          %v1681 = vadd.f32 0.0, %v1680
          %1682 = vdwg.mxu0
          %1683 = vmatprep.subr.mxu0 %v1551
          %1684 = vmatpush1.msra.mxu0 %v1550
          %1685 = vmatprep.subr.mxu0 %v1555
          %1686 = vmatpush1.msra.mxu0 %v1554
          %1687 = vmatprep.subr.mxu0 %v1559
          %1688 = vmatpush1.msra.mxu0 %v1558
          %1689 = vmatprep.subr.mxu0 %v1563
          %1690 = vmatpush1.msra.mxu0 %v1562
          %1691 = vmatprep.subr.mxu0 %v1567
          %1692 = vmatpush1.msra.mxu0 %v1566
          %1693 = vmatprep.subr.mxu0 %v1571
          %1694 = vmatpush1.msra.mxu0 %v1570
          %1695 = vmatprep.subr.mxu0 %v1575
          %1696 = vmatpush1.msra.mxu0 %v1574
          %1697 = vmatprep.subr.mxu0 %v1579
          %1698 = vmatpush1.msra.mxu0 %v1578
          %1699 = vmatprep.subr.mxu0 %v1583
          %1700 = vmatpush1.msra.mxu0 %v1582
          %1701 = vmatprep.subr.mxu0 %v1587
          %1702 = vmatpush1.msra.mxu0 %v1586
          %1703 = vmatprep.subr.mxu0 %v1591
          %1704 = vmatpush1.msra.mxu0 %v1590
          %1705 = vmatprep.subr.mxu0 %v1595
          %1706 = vmatpush1.msra.mxu0 %v1594
          %1707 = vmatprep.subr.mxu0 %v1599
          %1708 = vmatpush1.msra.mxu0 %v1598
          %1709 = vmatprep.subr.mxu0 %v1603
          %1710 = vmatpush1.msra.mxu0 %v1602
          %1711 = vmatprep.subr.mxu0 %v1607
          %1712 = vmatpush1.msra.mxu0 %v1606
          %1713 = vmatprep.subr.mxu0 %v1611
          %1714 = vmatpush1.msra.mxu0 %v1610
          %1715 = vmatprep.subr.mxu0 0.0
          %1716 = vmatpush1.msra.mxu0 0.0
          %1717 = vmatprep.subr.mxu0 0.0
          %1718 = vmatpush1.msra.mxu0 0.0
          %1719 = vmatprep.subr.mxu0 0.0
          %1720 = vmatpush1.msra.mxu0 0.0
          %1721 = vmatprep.subr.mxu0 0.0
          %1722 = vmatpush1.msra.mxu0 0.0
          %1723 = vmatprep.subr.mxu0 0.0
          %1724 = vmatpush1.msra.mxu0 0.0
          %1725 = vmatprep.subr.mxu0 0.0
          %1726 = vmatpush1.msra.mxu0 0.0
          %1727 = vmatprep.subr.mxu0 0.0
          %1728 = vmatpush1.msra.mxu0 0.0
          %1729 = vmatprep.subr.mxu0 0.0
          %1730 = vmatpush1.msra.mxu0 0.0
          %1731 = vmatprep.subr.mxu0 0.0
          %1732 = vmatpush1.msra.mxu0 0.0
          %1733 = vmatprep.subr.mxu0 0.0
          %1734 = vmatpush1.msra.mxu0 0.0
          %1735 = vmatprep.subr.mxu0 0.0
          %1736 = vmatpush1.msra.mxu0 0.0
          %1737 = vmatprep.subr.mxu0 0.0
          %1738 = vmatpush1.msra.mxu0 0.0
          %1739 = vmatprep.subr.mxu0 0.0
          %1740 = vmatpush1.msra.mxu0 0.0
          %1741 = vmatprep.subr.mxu0 0.0
          %1742 = vmatpush1.msra.mxu0 0.0
          %1743 = vmatprep.subr.mxu0 0.0
          %1744 = vmatpush1.msra.mxu0 0.0
          %1745 = vmatprep.subr.mxu0 0.0
          %1746 = vmatpush1.msra.mxu0 0.0
          %1747 = vmatprep.mubr.f32.mxu0 0.0
          %1748 = vmatmul.mubr.f32.gmra.mrb[0].mxu0 %v1436
          %v1749 = vpop.f32.mrb[0].mxu0
          %v1750 = vadd.f32 0.0, %v1749
          %v1751 = vpop.f32.mrb[0].mxu0
          %v1752 = vadd.f32 0.0, %v1751
          %1753 = vdwg.mxu0
          %v1758 = vcombine.low %v1679, %v1681
          %v1759 = vcombine.low %v1750, %v1752
          %v1761 = vunpack.c.l.s4 1983009808
          %v1762 = vunpack.c.0.s8 %v1761
          %v1763 = vlaneseq
          %v1764 = vshrl.u32 %v1763, 7
          %v1765 = vsub.s32 %v1762, %v1764
          %v1766 = vrot.slane %v1758, %v1765
          %v1768 = vunpack.c.l.s4 1983009808
          %v1769 = vunpack.c.0.s8 %v1768
          %v1770 = vlaneseq
          %v1771 = vshrl.u32 %v1770, 7
          %v1772 = vsub.s32 %v1769, %v1771
          %v1773 = vrot.slane %v1759, %v1772
          %v1774 = vcombine.low %v1766, %v1773
          %v1776 = vadd.f32 %v1547, %v1774
          %v1777 = vxor.u32 %v1776, 2147483648
          %v1778 = vmul.f32 %v1777, 1.442695
          %v1779 = vpow.pop %v1778
          %v1780 = vadd.f32 %v1779, 1.0
          %v1781 = vrcp.pop %v1780
          %v1782 = vmul.f32 1.0, %v1781
          %v1784 = vrot.slane %v1776, 6
          %v1786 = vtanh.pop %v1784
          %v1788 = vrot.slane %v1782, 2
          %v1790 = vmul.f32 %v1788, %v1437
          %v1791 = vmul.f32 %v1782, %v1786
          %v1792 = vadd.f32 %v1790, %v1791
          %v1793 = vtanh.pop %v1792
          %v1794 = vrot.slane %v1782, 4
          %v1796 = vmul.f32 %v1794, %v1793
          %s1797 = sadd.s32 %s439, 3
          %v1798 = vstv %s1797
          %vm1799 = vcmp.lt.s32.totalorder %v1798, %v443
          %v1800 = vsel %vm1799, %v1796, %v1436
          %v1801 = vsel %vm1799, %v1792, %v1437
          %v1802 = vsel %vm1799, %v1796, 0.0
          %v1803 = vpack.c.bf16 %v1802, %v1802
          %v1804 = vld [vmem:[%s406] sm:$0xf]
          %v1805 = vld [vmem:[%s406 + $0x4] sm:$0xf]
          %v1806 = vld [vmem:[%s406 + $0x8] sm:$0xf]
          %v1807 = vld [vmem:[%s406 + $0xc] sm:$0xf]
          %v1808 = vld [vmem:[%s406 + $0x10] sm:$0xf]
          %v1809 = vld [vmem:[%s406 + $0x14] sm:$0xf]
          %v1810 = vld [vmem:[%s406 + $0x18] sm:$0xf]
          %v1811 = vld [vmem:[%s406 + $0x1c] sm:$0xf]
          %v1812 = vld [vmem:[%s406 + $0x20] sm:$0xf]
          %v1813 = vld [vmem:[%s406 + $0x24] sm:$0xf]
          %v1814 = vld [vmem:[%s406 + $0x28] sm:$0xf]
          %v1815 = vld [vmem:[%s406 + $0x2c] sm:$0xf]
          %v1816 = vld [vmem:[%s406 + $0x30] sm:$0xf]
          %v1817 = vld [vmem:[%s406 + $0x34] sm:$0xf]
          %v1818 = vld [vmem:[%s406 + $0x38] sm:$0xf]
          %v1819 = vld [vmem:[%s406 + $0x3c] sm:$0xf]
          %v1836 = vunpack.c.l.b16 %v1804
          %v1837 = vunpack.c.l.b16 %v1805
          %v1838 = vunpack.c.l.b16 %v1806
          %v1839 = vunpack.c.l.b16 %v1807
          %v1840 = vunpack.c.l.b16 %v1808
          %v1841 = vunpack.c.l.b16 %v1809
          %v1842 = vunpack.c.l.b16 %v1810
          %v1843 = vunpack.c.l.b16 %v1811
          %v1844 = vunpack.c.l.b16 %v1812
          %v1845 = vunpack.c.l.b16 %v1813
          %v1846 = vunpack.c.l.b16 %v1814
          %v1847 = vunpack.c.l.b16 %v1815
          %v1848 = vunpack.c.l.b16 %v1816
          %v1849 = vunpack.c.l.b16 %v1817
          %v1850 = vunpack.c.l.b16 %v1818
          %v1851 = vunpack.c.l.b16 %v1819
          %v1852 = vpack.c.b16 %v1837, %v1836
          %v1853 = vpack.c.b16 %v1839, %v1838
          %v1854 = vpack.c.b16 %v1841, %v1840
          %v1855 = vpack.c.b16 %v1843, %v1842
          %v1856 = vpack.c.b16 %v1845, %v1844
          %v1857 = vpack.c.b16 %v1847, %v1846
          %v1858 = vpack.c.b16 %v1849, %v1848
          %v1859 = vpack.c.b16 %v1851, %v1850
          %1868 = vmatprep.subr.bf16.mxu0 0
          %1869 = vmatpush1.bf16.msra.mxu0 %v1852
          %1870 = vmatprep.subr.bf16.mxu0 0
          %1871 = vmatpush1.bf16.msra.mxu0 %v1853
          %1872 = vmatprep.subr.bf16.mxu0 0
          %1873 = vmatpush1.bf16.msra.mxu0 %v1854
          %1874 = vmatprep.subr.bf16.mxu0 0
          %1875 = vmatpush1.bf16.msra.mxu0 %v1855
          %1876 = vmatprep.subr.bf16.mxu0 0
          %1877 = vmatpush1.bf16.msra.mxu0 %v1856
          %1878 = vmatprep.subr.bf16.mxu0 0
          %1879 = vmatpush1.bf16.msra.mxu0 %v1857
          %1880 = vmatprep.subr.bf16.mxu0 0
          %1881 = vmatpush1.bf16.msra.mxu0 %v1858
          %1882 = vmatprep.subr.bf16.mxu0 0
          %1883 = vmatpush1.bf16.msra.mxu0 %v1859
          %1884 = vmatprep.subr.bf16.mxu0 0
          %1885 = vmatpush1.bf16.msra.mxu0 0
          %1886 = vmatprep.subr.bf16.mxu0 0
          %1887 = vmatpush1.bf16.msra.mxu0 0
          %1888 = vmatprep.subr.bf16.mxu0 0
          %1889 = vmatpush1.bf16.msra.mxu0 0
          %1890 = vmatprep.subr.bf16.mxu0 0
          %1891 = vmatpush1.bf16.msra.mxu0 0
          %1892 = vmatprep.subr.bf16.mxu0 0
          %1893 = vmatpush1.bf16.msra.mxu0 0
          %1894 = vmatprep.subr.bf16.mxu0 0
          %1895 = vmatpush1.bf16.msra.mxu0 0
          %1896 = vmatprep.subr.bf16.mxu0 0
          %1897 = vmatpush1.bf16.msra.mxu0 0
          %1898 = vmatprep.subr.bf16.mxu0 0
          %1899 = vmatpush1.bf16.msra.mxu0 0
          %1900 = vmatprep.mubr.bf16.mxu0 0
          %1901 = vmatmul.mubr.bf16.gmra.mrb[0].mxu0 %v1803
          %v1902 = vpop.f32.mrb[0].mxu0
          %v1903 = vadd.f32 %v449, %v1902
          %v1904 = vpop.f32.mrb[0].mxu0
          %v1905 = vpop.f32.mrb[0].mxu0
          %v1906 = vpop.f32.mrb[0].mxu0
          %1907 = vdwg.mxu0
          %s1908 = scalar_lea.vmem %s422, 6
          %1909 = vst [vmem:[%s1908] sm:$0x3] %v1903
          %s1910 = scalar_lea.vmem %s341, 32 [#allocation4]
          %v1911 = vld [vmem:[%s1910] sm:$0xff]
          %v1912 = vld [vmem:[%s349] sm:$0xff]
          %v1913 = vld [vmem:[%s349 + $0x8] sm:$0xff]
          %v1914 = vld [vmem:[%s349 + $0x10] sm:$0xff]
          %v1915 = vld [vmem:[%s349 + $0x18] sm:$0xff]
          %v1916 = vld [vmem:[%s349 + $0x20] sm:$0xff]
          %v1917 = vld [vmem:[%s349 + $0x28] sm:$0xff]
          %v1918 = vld [vmem:[%s349 + $0x30] sm:$0xff]
          %v1919 = vld [vmem:[%s349 + $0x38] sm:$0xff]
          %v1920 = vld [vmem:[%s349 + $0x40] sm:$0xff]
          %v1921 = vld [vmem:[%s349 + $0x48] sm:$0xff]
          %v1922 = vld [vmem:[%s349 + $0x50] sm:$0xff]
          %v1923 = vld [vmem:[%s349 + $0x58] sm:$0xff]
          %v1924 = vld [vmem:[%s349 + $0x60] sm:$0xff]
          %v1925 = vld [vmem:[%s349 + $0x68] sm:$0xff]
          %v1926 = vld [vmem:[%s349 + $0x70] sm:$0xff]
          %v1927 = vld [vmem:[%s349 + $0x78] sm:$0xff]
          %v1928 = vld [vmem:[%s349 + $0x80] sm:$0xff]
          %v1929 = vld [vmem:[%s349 + $0x88] sm:$0xff]
          %v1930 = vld [vmem:[%s349 + $0x90] sm:$0xff]
          %v1931 = vld [vmem:[%s349 + $0x98] sm:$0xff]
          %v1932 = vld [vmem:[%s349 + $0xa0] sm:$0xff]
          %v1933 = vld [vmem:[%s349 + $0xa8] sm:$0xff]
          %v1934 = vld [vmem:[%s349 + $0xb0] sm:$0xff]
          %v1935 = vld [vmem:[%s349 + $0xb8] sm:$0xff]
          %v1936 = vld [vmem:[%s349 + $0xc0] sm:$0xff]
          %v1937 = vld [vmem:[%s349 + $0xc8] sm:$0xff]
          %v1938 = vld [vmem:[%s349 + $0xd0] sm:$0xff]
          %v1939 = vld [vmem:[%s349 + $0xd8] sm:$0xff]
          %v1940 = vld [vmem:[%s349 + $0xe0] sm:$0xff]
          %v1941 = vld [vmem:[%s349 + $0xe8] sm:$0xff]
          %v1942 = vld [vmem:[%s349 + $0xf0] sm:$0xff]
          %v1943 = vld [vmem:[%s349 + $0xf8] sm:$0xff]
          %v1944 = vld [vmem:[%s349 + $0x100] sm:$0xff]
          %v1945 = vld [vmem:[%s349 + $0x108] sm:$0xff]
          %v1946 = vld [vmem:[%s349 + $0x110] sm:$0xff]
          %v1947 = vld [vmem:[%s349 + $0x118] sm:$0xff]
          %v1948 = vld [vmem:[%s349 + $0x120] sm:$0xff]
          %v1949 = vld [vmem:[%s349 + $0x128] sm:$0xff]
          %v1950 = vld [vmem:[%s349 + $0x130] sm:$0xff]
          %v1951 = vld [vmem:[%s349 + $0x138] sm:$0xff]
          %v1952 = vld [vmem:[%s349 + $0x140] sm:$0xff]
          %v1953 = vld [vmem:[%s349 + $0x148] sm:$0xff]
          %v1954 = vld [vmem:[%s349 + $0x150] sm:$0xff]
          %v1955 = vld [vmem:[%s349 + $0x158] sm:$0xff]
          %v1956 = vld [vmem:[%s349 + $0x160] sm:$0xff]
          %v1957 = vld [vmem:[%s349 + $0x168] sm:$0xff]
          %v1958 = vld [vmem:[%s349 + $0x170] sm:$0xff]
          %v1959 = vld [vmem:[%s349 + $0x178] sm:$0xff]
          %v1960 = vld [vmem:[%s349 + $0x180] sm:$0xff]
          %v1961 = vld [vmem:[%s349 + $0x188] sm:$0xff]
          %v1962 = vld [vmem:[%s349 + $0x190] sm:$0xff]
          %v1963 = vld [vmem:[%s349 + $0x198] sm:$0xff]
          %v1964 = vld [vmem:[%s349 + $0x1a0] sm:$0xff]
          %v1965 = vld [vmem:[%s349 + $0x1a8] sm:$0xff]
          %v1966 = vld [vmem:[%s349 + $0x1b0] sm:$0xff]
          %v1967 = vld [vmem:[%s349 + $0x1b8] sm:$0xff]
          %v1968 = vld [vmem:[%s349 + $0x1c0] sm:$0xff]
          %v1969 = vld [vmem:[%s349 + $0x1c8] sm:$0xff]
          %v1970 = vld [vmem:[%s349 + $0x1d0] sm:$0xff]
          %v1971 = vld [vmem:[%s349 + $0x1d8] sm:$0xff]
          %v1972 = vld [vmem:[%s349 + $0x1e0] sm:$0xff]
          %v1973 = vld [vmem:[%s349 + $0x1e8] sm:$0xff]
          %v1974 = vld [vmem:[%s349 + $0x1f0] sm:$0xff]
          %v1975 = vld [vmem:[%s349 + $0x1f8] sm:$0xff]
          %1976 = vmatprep.subr.mxu0 %v1913
          %1977 = vmatpush1.msra.mxu0 %v1912
          %1978 = vmatprep.subr.mxu0 %v1917
          %1979 = vmatpush1.msra.mxu0 %v1916
          %1980 = vmatprep.subr.mxu0 %v1921
          %1981 = vmatpush1.msra.mxu0 %v1920
          %1982 = vmatprep.subr.mxu0 %v1925
          %1983 = vmatpush1.msra.mxu0 %v1924
          %1984 = vmatprep.subr.mxu0 %v1929
          %1985 = vmatpush1.msra.mxu0 %v1928
          %1986 = vmatprep.subr.mxu0 %v1933
          %1987 = vmatpush1.msra.mxu0 %v1932
          %1988 = vmatprep.subr.mxu0 %v1937
          %1989 = vmatpush1.msra.mxu0 %v1936
          %1990 = vmatprep.subr.mxu0 %v1941
          %1991 = vmatpush1.msra.mxu0 %v1940
          %1992 = vmatprep.subr.mxu0 %v1945
          %1993 = vmatpush1.msra.mxu0 %v1944
          %1994 = vmatprep.subr.mxu0 %v1949
          %1995 = vmatpush1.msra.mxu0 %v1948
          %1996 = vmatprep.subr.mxu0 %v1953
          %1997 = vmatpush1.msra.mxu0 %v1952
          %1998 = vmatprep.subr.mxu0 %v1957
          %1999 = vmatpush1.msra.mxu0 %v1956
          %2000 = vmatprep.subr.mxu0 %v1961
          %2001 = vmatpush1.msra.mxu0 %v1960
          %2002 = vmatprep.subr.mxu0 %v1965
          %2003 = vmatpush1.msra.mxu0 %v1964
          %2004 = vmatprep.subr.mxu0 %v1969
          %2005 = vmatpush1.msra.mxu0 %v1968
          %2006 = vmatprep.subr.mxu0 %v1973
          %2007 = vmatpush1.msra.mxu0 %v1972
          %2008 = vmatprep.subr.mxu0 0.0
          %2009 = vmatpush1.msra.mxu0 0.0
          %2010 = vmatprep.subr.mxu0 0.0
          %2011 = vmatpush1.msra.mxu0 0.0
          %2012 = vmatprep.subr.mxu0 0.0
          %2013 = vmatpush1.msra.mxu0 0.0
          %2014 = vmatprep.subr.mxu0 0.0
          %2015 = vmatpush1.msra.mxu0 0.0
          %2016 = vmatprep.subr.mxu0 0.0
          %2017 = vmatpush1.msra.mxu0 0.0
          %2018 = vmatprep.subr.mxu0 0.0
          %2019 = vmatpush1.msra.mxu0 0.0
          %2020 = vmatprep.subr.mxu0 0.0
          %2021 = vmatpush1.msra.mxu0 0.0
          %2022 = vmatprep.subr.mxu0 0.0
          %2023 = vmatpush1.msra.mxu0 0.0
          %2024 = vmatprep.subr.mxu0 0.0
          %2025 = vmatpush1.msra.mxu0 0.0
          %2026 = vmatprep.subr.mxu0 0.0
          %2027 = vmatpush1.msra.mxu0 0.0
          %2028 = vmatprep.subr.mxu0 0.0
          %2029 = vmatpush1.msra.mxu0 0.0
          %2030 = vmatprep.subr.mxu0 0.0
          %2031 = vmatpush1.msra.mxu0 0.0
          %2032 = vmatprep.subr.mxu0 0.0
          %2033 = vmatpush1.msra.mxu0 0.0
          %2034 = vmatprep.subr.mxu0 0.0
          %2035 = vmatpush1.msra.mxu0 0.0
          %2036 = vmatprep.subr.mxu0 0.0
          %2037 = vmatpush1.msra.mxu0 0.0
          %2038 = vmatprep.subr.mxu0 0.0
          %2039 = vmatpush1.msra.mxu0 0.0
          %2040 = vmatprep.mubr.f32.mxu0 0.0
          %2041 = vmatmul.mubr.f32.gmra.mrb[0].mxu0 %v1800
          %v2042 = vpop.f32.mrb[0].mxu0
          %v2043 = vadd.f32 0.0, %v2042
          %v2044 = vpop.f32.mrb[0].mxu0
          %v2045 = vadd.f32 0.0, %v2044
          %2046 = vdwg.mxu0
          %2047 = vmatprep.subr.mxu0 %v1915
          %2048 = vmatpush1.msra.mxu0 %v1914
          %2049 = vmatprep.subr.mxu0 %v1919
          %2050 = vmatpush1.msra.mxu0 %v1918
          %2051 = vmatprep.subr.mxu0 %v1923
          %2052 = vmatpush1.msra.mxu0 %v1922
          %2053 = vmatprep.subr.mxu0 %v1927
          %2054 = vmatpush1.msra.mxu0 %v1926
          %2055 = vmatprep.subr.mxu0 %v1931
          %2056 = vmatpush1.msra.mxu0 %v1930
          %2057 = vmatprep.subr.mxu0 %v1935
          %2058 = vmatpush1.msra.mxu0 %v1934
          %2059 = vmatprep.subr.mxu0 %v1939
          %2060 = vmatpush1.msra.mxu0 %v1938
          %2061 = vmatprep.subr.mxu0 %v1943
          %2062 = vmatpush1.msra.mxu0 %v1942
          %2063 = vmatprep.subr.mxu0 %v1947
          %2064 = vmatpush1.msra.mxu0 %v1946
          %2065 = vmatprep.subr.mxu0 %v1951
          %2066 = vmatpush1.msra.mxu0 %v1950
          %2067 = vmatprep.subr.mxu0 %v1955
          %2068 = vmatpush1.msra.mxu0 %v1954
          %2069 = vmatprep.subr.mxu0 %v1959
          %2070 = vmatpush1.msra.mxu0 %v1958
          %2071 = vmatprep.subr.mxu0 %v1963
          %2072 = vmatpush1.msra.mxu0 %v1962
          %2073 = vmatprep.subr.mxu0 %v1967
          %2074 = vmatpush1.msra.mxu0 %v1966
          %2075 = vmatprep.subr.mxu0 %v1971
          %2076 = vmatpush1.msra.mxu0 %v1970
          %2077 = vmatprep.subr.mxu0 %v1975
          %2078 = vmatpush1.msra.mxu0 %v1974
          %2079 = vmatprep.subr.mxu0 0.0
          %2080 = vmatpush1.msra.mxu0 0.0
          %2081 = vmatprep.subr.mxu0 0.0
          %2082 = vmatpush1.msra.mxu0 0.0
          %2083 = vmatprep.subr.mxu0 0.0
          %2084 = vmatpush1.msra.mxu0 0.0
          %2085 = vmatprep.subr.mxu0 0.0
          %2086 = vmatpush1.msra.mxu0 0.0
          %2087 = vmatprep.subr.mxu0 0.0
          %2088 = vmatpush1.msra.mxu0 0.0
          %2089 = vmatprep.subr.mxu0 0.0
          %2090 = vmatpush1.msra.mxu0 0.0
          %2091 = vmatprep.subr.mxu0 0.0
          %2092 = vmatpush1.msra.mxu0 0.0
          %2093 = vmatprep.subr.mxu0 0.0
          %2094 = vmatpush1.msra.mxu0 0.0
          %2095 = vmatprep.subr.mxu0 0.0
          %2096 = vmatpush1.msra.mxu0 0.0
          %2097 = vmatprep.subr.mxu0 0.0
          %2098 = vmatpush1.msra.mxu0 0.0
          %2099 = vmatprep.subr.mxu0 0.0
          %2100 = vmatpush1.msra.mxu0 0.0
          %2101 = vmatprep.subr.mxu0 0.0
          %2102 = vmatpush1.msra.mxu0 0.0
          %2103 = vmatprep.subr.mxu0 0.0
          %2104 = vmatpush1.msra.mxu0 0.0
          %2105 = vmatprep.subr.mxu0 0.0
          %2106 = vmatpush1.msra.mxu0 0.0
          %2107 = vmatprep.subr.mxu0 0.0
          %2108 = vmatpush1.msra.mxu0 0.0
          %2109 = vmatprep.subr.mxu0 0.0
          %2110 = vmatpush1.msra.mxu0 0.0
          %2111 = vmatprep.mubr.f32.mxu0 0.0
          %2112 = vmatmul.mubr.f32.gmra.mrb[0].mxu0 %v1800
          %v2113 = vpop.f32.mrb[0].mxu0
          %v2114 = vadd.f32 0.0, %v2113
          %v2115 = vpop.f32.mrb[0].mxu0
          %v2116 = vadd.f32 0.0, %v2115
          %2117 = vdwg.mxu0
          %v2122 = vcombine.low %v2043, %v2045
          %v2123 = vcombine.low %v2114, %v2116
          %v2125 = vunpack.c.l.s4 1983009808
          %v2126 = vunpack.c.0.s8 %v2125
          %v2127 = vlaneseq
          %v2128 = vshrl.u32 %v2127, 7
          %v2129 = vsub.s32 %v2126, %v2128
          %v2130 = vrot.slane %v2122, %v2129
          %v2132 = vunpack.c.l.s4 1983009808
          %v2133 = vunpack.c.0.s8 %v2132
          %v2134 = vlaneseq
          %v2135 = vshrl.u32 %v2134, 7
          %v2136 = vsub.s32 %v2133, %v2135
          %v2137 = vrot.slane %v2123, %v2136
          %v2138 = vcombine.low %v2130, %v2137
          %v2140 = vadd.f32 %v1911, %v2138
          %v2141 = vxor.u32 %v2140, 2147483648
          %v2142 = vmul.f32 %v2141, 1.442695
          %v2143 = vpow.pop %v2142
          %v2144 = vadd.f32 %v2143, 1.0
          %v2145 = vrcp.pop %v2144
          %v2146 = vmul.f32 1.0, %v2145
          %v2148 = vrot.slane %v2140, 6
          %v2150 = vtanh.pop %v2148
          %v2152 = vrot.slane %v2146, 2
          %v2154 = vmul.f32 %v2152, %v1801
          %v2155 = vmul.f32 %v2146, %v2150
          %v2156 = vadd.f32 %v2154, %v2155
          %v2157 = vtanh.pop %v2156
          %v2158 = vrot.slane %v2146, 4
          %v2160 = vmul.f32 %v2158, %v2157
          %s2161 = sadd.s32 %s439, 4
          %v2162 = vstv %s2161
          %vm2163 = vcmp.lt.s32.totalorder %v2162, %v443
          %v2164 = vsel %vm2163, %v2160, %v1800
          %v2165 = vsel %vm2163, %v2156, %v1801
          %v2166 = vsel %vm2163, %v2160, 0.0
          %v2167 = vpack.c.bf16 %v2166, %v2166
          %v2168 = vld [vmem:[%s406] sm:$0xf]
          %v2169 = vld [vmem:[%s406 + $0x4] sm:$0xf]
          %v2170 = vld [vmem:[%s406 + $0x8] sm:$0xf]
          %v2171 = vld [vmem:[%s406 + $0xc] sm:$0xf]
          %v2172 = vld [vmem:[%s406 + $0x10] sm:$0xf]
          %v2173 = vld [vmem:[%s406 + $0x14] sm:$0xf]
          %v2174 = vld [vmem:[%s406 + $0x18] sm:$0xf]
          %v2175 = vld [vmem:[%s406 + $0x1c] sm:$0xf]
          %v2176 = vld [vmem:[%s406 + $0x20] sm:$0xf]
          %v2177 = vld [vmem:[%s406 + $0x24] sm:$0xf]
          %v2178 = vld [vmem:[%s406 + $0x28] sm:$0xf]
          %v2179 = vld [vmem:[%s406 + $0x2c] sm:$0xf]
          %v2180 = vld [vmem:[%s406 + $0x30] sm:$0xf]
          %v2181 = vld [vmem:[%s406 + $0x34] sm:$0xf]
          %v2182 = vld [vmem:[%s406 + $0x38] sm:$0xf]
          %v2183 = vld [vmem:[%s406 + $0x3c] sm:$0xf]
          %v2200 = vunpack.c.l.b16 %v2168
          %v2201 = vunpack.c.l.b16 %v2169
          %v2202 = vunpack.c.l.b16 %v2170
          %v2203 = vunpack.c.l.b16 %v2171
          %v2204 = vunpack.c.l.b16 %v2172
          %v2205 = vunpack.c.l.b16 %v2173
          %v2206 = vunpack.c.l.b16 %v2174
          %v2207 = vunpack.c.l.b16 %v2175
          %v2208 = vunpack.c.l.b16 %v2176
          %v2209 = vunpack.c.l.b16 %v2177
          %v2210 = vunpack.c.l.b16 %v2178
          %v2211 = vunpack.c.l.b16 %v2179
          %v2212 = vunpack.c.l.b16 %v2180
          %v2213 = vunpack.c.l.b16 %v2181
          %v2214 = vunpack.c.l.b16 %v2182
          %v2215 = vunpack.c.l.b16 %v2183
          %v2216 = vpack.c.b16 %v2201, %v2200
          %v2217 = vpack.c.b16 %v2203, %v2202
          %v2218 = vpack.c.b16 %v2205, %v2204
          %v2219 = vpack.c.b16 %v2207, %v2206
          %v2220 = vpack.c.b16 %v2209, %v2208
          %v2221 = vpack.c.b16 %v2211, %v2210
          %v2222 = vpack.c.b16 %v2213, %v2212
          %v2223 = vpack.c.b16 %v2215, %v2214
          %2232 = vmatprep.subr.bf16.mxu0 0
          %2233 = vmatpush1.bf16.msra.mxu0 %v2216
          %2234 = vmatprep.subr.bf16.mxu0 0
          %2235 = vmatpush1.bf16.msra.mxu0 %v2217
          %2236 = vmatprep.subr.bf16.mxu0 0
          %2237 = vmatpush1.bf16.msra.mxu0 %v2218
          %2238 = vmatprep.subr.bf16.mxu0 0
          %2239 = vmatpush1.bf16.msra.mxu0 %v2219
          %2240 = vmatprep.subr.bf16.mxu0 0
          %2241 = vmatpush1.bf16.msra.mxu0 %v2220
          %2242 = vmatprep.subr.bf16.mxu0 0
          %2243 = vmatpush1.bf16.msra.mxu0 %v2221
          %2244 = vmatprep.subr.bf16.mxu0 0
          %2245 = vmatpush1.bf16.msra.mxu0 %v2222
          %2246 = vmatprep.subr.bf16.mxu0 0
          %2247 = vmatpush1.bf16.msra.mxu0 %v2223
          %2248 = vmatprep.subr.bf16.mxu0 0
          %2249 = vmatpush1.bf16.msra.mxu0 0
          %2250 = vmatprep.subr.bf16.mxu0 0
          %2251 = vmatpush1.bf16.msra.mxu0 0
          %2252 = vmatprep.subr.bf16.mxu0 0
          %2253 = vmatpush1.bf16.msra.mxu0 0
          %2254 = vmatprep.subr.bf16.mxu0 0
          %2255 = vmatpush1.bf16.msra.mxu0 0
          %2256 = vmatprep.subr.bf16.mxu0 0
          %2257 = vmatpush1.bf16.msra.mxu0 0
          %2258 = vmatprep.subr.bf16.mxu0 0
          %2259 = vmatpush1.bf16.msra.mxu0 0
          %2260 = vmatprep.subr.bf16.mxu0 0
          %2261 = vmatpush1.bf16.msra.mxu0 0
          %2262 = vmatprep.subr.bf16.mxu0 0
          %2263 = vmatpush1.bf16.msra.mxu0 0
          %2264 = vmatprep.mubr.bf16.mxu0 0
          %2265 = vmatmul.mubr.bf16.gmra.mrb[0].mxu0 %v2167
          %v2266 = vpop.f32.mrb[0].mxu0
          %v2267 = vadd.f32 %v449, %v2266
          %v2268 = vpop.f32.mrb[0].mxu0
          %v2269 = vpop.f32.mrb[0].mxu0
          %v2270 = vpop.f32.mrb[0].mxu0
          %2271 = vdwg.mxu0
          %s2272 = scalar_lea.vmem %s422, 8
          %2273 = vst [vmem:[%s2272] sm:$0x3] %v2267
          %s2274 = scalar_lea.vmem %s341, 40 [#allocation4]
          %v2275 = vld [vmem:[%s2274] sm:$0xff]
          %v2276 = vld [vmem:[%s349] sm:$0xff]
          %v2277 = vld [vmem:[%s349 + $0x8] sm:$0xff]
          %v2278 = vld [vmem:[%s349 + $0x10] sm:$0xff]
          %v2279 = vld [vmem:[%s349 + $0x18] sm:$0xff]
          %v2280 = vld [vmem:[%s349 + $0x20] sm:$0xff]
          %v2281 = vld [vmem:[%s349 + $0x28] sm:$0xff]
          %v2282 = vld [vmem:[%s349 + $0x30] sm:$0xff]
          %v2283 = vld [vmem:[%s349 + $0x38] sm:$0xff]
          %v2284 = vld [vmem:[%s349 + $0x40] sm:$0xff]
          %v2285 = vld [vmem:[%s349 + $0x48] sm:$0xff]
          %v2286 = vld [vmem:[%s349 + $0x50] sm:$0xff]
          %v2287 = vld [vmem:[%s349 + $0x58] sm:$0xff]
          %v2288 = vld [vmem:[%s349 + $0x60] sm:$0xff]
          %v2289 = vld [vmem:[%s349 + $0x68] sm:$0xff]
          %v2290 = vld [vmem:[%s349 + $0x70] sm:$0xff]
          %v2291 = vld [vmem:[%s349 + $0x78] sm:$0xff]
          %v2292 = vld [vmem:[%s349 + $0x80] sm:$0xff]
          %v2293 = vld [vmem:[%s349 + $0x88] sm:$0xff]
          %v2294 = vld [vmem:[%s349 + $0x90] sm:$0xff]
          %v2295 = vld [vmem:[%s349 + $0x98] sm:$0xff]
          %v2296 = vld [vmem:[%s349 + $0xa0] sm:$0xff]
          %v2297 = vld [vmem:[%s349 + $0xa8] sm:$0xff]
          %v2298 = vld [vmem:[%s349 + $0xb0] sm:$0xff]
          %v2299 = vld [vmem:[%s349 + $0xb8] sm:$0xff]
          %v2300 = vld [vmem:[%s349 + $0xc0] sm:$0xff]
          %v2301 = vld [vmem:[%s349 + $0xc8] sm:$0xff]
          %v2302 = vld [vmem:[%s349 + $0xd0] sm:$0xff]
          %v2303 = vld [vmem:[%s349 + $0xd8] sm:$0xff]
          %v2304 = vld [vmem:[%s349 + $0xe0] sm:$0xff]
          %v2305 = vld [vmem:[%s349 + $0xe8] sm:$0xff]
          %v2306 = vld [vmem:[%s349 + $0xf0] sm:$0xff]
          %v2307 = vld [vmem:[%s349 + $0xf8] sm:$0xff]
          %v2308 = vld [vmem:[%s349 + $0x100] sm:$0xff]
          %v2309 = vld [vmem:[%s349 + $0x108] sm:$0xff]
          %v2310 = vld [vmem:[%s349 + $0x110] sm:$0xff]
          %v2311 = vld [vmem:[%s349 + $0x118] sm:$0xff]
          %v2312 = vld [vmem:[%s349 + $0x120] sm:$0xff]
          %v2313 = vld [vmem:[%s349 + $0x128] sm:$0xff]
          %v2314 = vld [vmem:[%s349 + $0x130] sm:$0xff]
          %v2315 = vld [vmem:[%s349 + $0x138] sm:$0xff]
          %v2316 = vld [vmem:[%s349 + $0x140] sm:$0xff]
          %v2317 = vld [vmem:[%s349 + $0x148] sm:$0xff]
          %v2318 = vld [vmem:[%s349 + $0x150] sm:$0xff]
          %v2319 = vld [vmem:[%s349 + $0x158] sm:$0xff]
          %v2320 = vld [vmem:[%s349 + $0x160] sm:$0xff]
          %v2321 = vld [vmem:[%s349 + $0x168] sm:$0xff]
          %v2322 = vld [vmem:[%s349 + $0x170] sm:$0xff]
          %v2323 = vld [vmem:[%s349 + $0x178] sm:$0xff]
          %v2324 = vld [vmem:[%s349 + $0x180] sm:$0xff]
          %v2325 = vld [vmem:[%s349 + $0x188] sm:$0xff]
          %v2326 = vld [vmem:[%s349 + $0x190] sm:$0xff]
          %v2327 = vld [vmem:[%s349 + $0x198] sm:$0xff]
          %v2328 = vld [vmem:[%s349 + $0x1a0] sm:$0xff]
          %v2329 = vld [vmem:[%s349 + $0x1a8] sm:$0xff]
          %v2330 = vld [vmem:[%s349 + $0x1b0] sm:$0xff]
          %v2331 = vld [vmem:[%s349 + $0x1b8] sm:$0xff]
          %v2332 = vld [vmem:[%s349 + $0x1c0] sm:$0xff]
          %v2333 = vld [vmem:[%s349 + $0x1c8] sm:$0xff]
          %v2334 = vld [vmem:[%s349 + $0x1d0] sm:$0xff]
          %v2335 = vld [vmem:[%s349 + $0x1d8] sm:$0xff]
          %v2336 = vld [vmem:[%s349 + $0x1e0] sm:$0xff]
          %v2337 = vld [vmem:[%s349 + $0x1e8] sm:$0xff]
          %v2338 = vld [vmem:[%s349 + $0x1f0] sm:$0xff]
          %v2339 = vld [vmem:[%s349 + $0x1f8] sm:$0xff]
          %2340 = vmatprep.subr.mxu0 %v2277
          %2341 = vmatpush1.msra.mxu0 %v2276
          %2342 = vmatprep.subr.mxu0 %v2281
          %2343 = vmatpush1.msra.mxu0 %v2280
          %2344 = vmatprep.subr.mxu0 %v2285
          %2345 = vmatpush1.msra.mxu0 %v2284
          %2346 = vmatprep.subr.mxu0 %v2289
          %2347 = vmatpush1.msra.mxu0 %v2288
          %2348 = vmatprep.subr.mxu0 %v2293
          %2349 = vmatpush1.msra.mxu0 %v2292
          %2350 = vmatprep.subr.mxu0 %v2297
          %2351 = vmatpush1.msra.mxu0 %v2296
          %2352 = vmatprep.subr.mxu0 %v2301
          %2353 = vmatpush1.msra.mxu0 %v2300
          %2354 = vmatprep.subr.mxu0 %v2305
          %2355 = vmatpush1.msra.mxu0 %v2304
          %2356 = vmatprep.subr.mxu0 %v2309
          %2357 = vmatpush1.msra.mxu0 %v2308
          %2358 = vmatprep.subr.mxu0 %v2313
          %2359 = vmatpush1.msra.mxu0 %v2312
          %2360 = vmatprep.subr.mxu0 %v2317
          %2361 = vmatpush1.msra.mxu0 %v2316
          %2362 = vmatprep.subr.mxu0 %v2321
          %2363 = vmatpush1.msra.mxu0 %v2320
          %2364 = vmatprep.subr.mxu0 %v2325
          %2365 = vmatpush1.msra.mxu0 %v2324
          %2366 = vmatprep.subr.mxu0 %v2329
          %2367 = vmatpush1.msra.mxu0 %v2328
          %2368 = vmatprep.subr.mxu0 %v2333
          %2369 = vmatpush1.msra.mxu0 %v2332
          %2370 = vmatprep.subr.mxu0 %v2337
          %2371 = vmatpush1.msra.mxu0 %v2336
          %2372 = vmatprep.subr.mxu0 0.0
          %2373 = vmatpush1.msra.mxu0 0.0
          %2374 = vmatprep.subr.mxu0 0.0
          %2375 = vmatpush1.msra.mxu0 0.0
          %2376 = vmatprep.subr.mxu0 0.0
          %2377 = vmatpush1.msra.mxu0 0.0
          %2378 = vmatprep.subr.mxu0 0.0
          %2379 = vmatpush1.msra.mxu0 0.0
          %2380 = vmatprep.subr.mxu0 0.0
          %2381 = vmatpush1.msra.mxu0 0.0
          %2382 = vmatprep.subr.mxu0 0.0
          %2383 = vmatpush1.msra.mxu0 0.0
          %2384 = vmatprep.subr.mxu0 0.0
          %2385 = vmatpush1.msra.mxu0 0.0
          %2386 = vmatprep.subr.mxu0 0.0
          %2387 = vmatpush1.msra.mxu0 0.0
          %2388 = vmatprep.subr.mxu0 0.0
          %2389 = vmatpush1.msra.mxu0 0.0
          %2390 = vmatprep.subr.mxu0 0.0
          %2391 = vmatpush1.msra.mxu0 0.0
          %2392 = vmatprep.subr.mxu0 0.0
          %2393 = vmatpush1.msra.mxu0 0.0
          %2394 = vmatprep.subr.mxu0 0.0
          %2395 = vmatpush1.msra.mxu0 0.0
          %2396 = vmatprep.subr.mxu0 0.0
          %2397 = vmatpush1.msra.mxu0 0.0
          %2398 = vmatprep.subr.mxu0 0.0
          %2399 = vmatpush1.msra.mxu0 0.0
          %2400 = vmatprep.subr.mxu0 0.0
          %2401 = vmatpush1.msra.mxu0 0.0
          %2402 = vmatprep.subr.mxu0 0.0
          %2403 = vmatpush1.msra.mxu0 0.0
          %2404 = vmatprep.mubr.f32.mxu0 0.0
          %2405 = vmatmul.mubr.f32.gmra.mrb[0].mxu0 %v2164
          %v2406 = vpop.f32.mrb[0].mxu0
          %v2407 = vadd.f32 0.0, %v2406
          %v2408 = vpop.f32.mrb[0].mxu0
          %v2409 = vadd.f32 0.0, %v2408
          %2410 = vdwg.mxu0
          %2411 = vmatprep.subr.mxu0 %v2279
          %2412 = vmatpush1.msra.mxu0 %v2278
          %2413 = vmatprep.subr.mxu0 %v2283
          %2414 = vmatpush1.msra.mxu0 %v2282
          %2415 = vmatprep.subr.mxu0 %v2287
          %2416 = vmatpush1.msra.mxu0 %v2286
          %2417 = vmatprep.subr.mxu0 %v2291
          %2418 = vmatpush1.msra.mxu0 %v2290
          %2419 = vmatprep.subr.mxu0 %v2295
          %2420 = vmatpush1.msra.mxu0 %v2294
          %2421 = vmatprep.subr.mxu0 %v2299
          %2422 = vmatpush1.msra.mxu0 %v2298
          %2423 = vmatprep.subr.mxu0 %v2303
          %2424 = vmatpush1.msra.mxu0 %v2302
          %2425 = vmatprep.subr.mxu0 %v2307
          %2426 = vmatpush1.msra.mxu0 %v2306
          %2427 = vmatprep.subr.mxu0 %v2311
          %2428 = vmatpush1.msra.mxu0 %v2310
          %2429 = vmatprep.subr.mxu0 %v2315
          %2430 = vmatpush1.msra.mxu0 %v2314
          %2431 = vmatprep.subr.mxu0 %v2319
          %2432 = vmatpush1.msra.mxu0 %v2318
          %2433 = vmatprep.subr.mxu0 %v2323
          %2434 = vmatpush1.msra.mxu0 %v2322
          %2435 = vmatprep.subr.mxu0 %v2327
          %2436 = vmatpush1.msra.mxu0 %v2326
          %2437 = vmatprep.subr.mxu0 %v2331
          %2438 = vmatpush1.msra.mxu0 %v2330
          %2439 = vmatprep.subr.mxu0 %v2335
          %2440 = vmatpush1.msra.mxu0 %v2334
          %2441 = vmatprep.subr.mxu0 %v2339
          %2442 = vmatpush1.msra.mxu0 %v2338
          %2443 = vmatprep.subr.mxu0 0.0
          %2444 = vmatpush1.msra.mxu0 0.0
          %2445 = vmatprep.subr.mxu0 0.0
          %2446 = vmatpush1.msra.mxu0 0.0
          %2447 = vmatprep.subr.mxu0 0.0
          %2448 = vmatpush1.msra.mxu0 0.0
          %2449 = vmatprep.subr.mxu0 0.0
          %2450 = vmatpush1.msra.mxu0 0.0
          %2451 = vmatprep.subr.mxu0 0.0
          %2452 = vmatpush1.msra.mxu0 0.0
          %2453 = vmatprep.subr.mxu0 0.0
          %2454 = vmatpush1.msra.mxu0 0.0
          %2455 = vmatprep.subr.mxu0 0.0
          %2456 = vmatpush1.msra.mxu0 0.0
          %2457 = vmatprep.subr.mxu0 0.0
          %2458 = vmatpush1.msra.mxu0 0.0
          %2459 = vmatprep.subr.mxu0 0.0
          %2460 = vmatpush1.msra.mxu0 0.0
          %2461 = vmatprep.subr.mxu0 0.0
          %2462 = vmatpush1.msra.mxu0 0.0
          %2463 = vmatprep.subr.mxu0 0.0
          %2464 = vmatpush1.msra.mxu0 0.0
          %2465 = vmatprep.subr.mxu0 0.0
          %2466 = vmatpush1.msra.mxu0 0.0
          %2467 = vmatprep.subr.mxu0 0.0
          %2468 = vmatpush1.msra.mxu0 0.0
          %2469 = vmatprep.subr.mxu0 0.0
          %2470 = vmatpush1.msra.mxu0 0.0
          %2471 = vmatprep.subr.mxu0 0.0
          %2472 = vmatpush1.msra.mxu0 0.0
          %2473 = vmatprep.subr.mxu0 0.0
          %2474 = vmatpush1.msra.mxu0 0.0
          %2475 = vmatprep.mubr.f32.mxu0 0.0
          %2476 = vmatmul.mubr.f32.gmra.mrb[0].mxu0 %v2164
          %v2477 = vpop.f32.mrb[0].mxu0
          %v2478 = vadd.f32 0.0, %v2477
          %v2479 = vpop.f32.mrb[0].mxu0
          %v2480 = vadd.f32 0.0, %v2479
          %2481 = vdwg.mxu0
          %v2486 = vcombine.low %v2407, %v2409
          %v2487 = vcombine.low %v2478, %v2480
          %v2489 = vunpack.c.l.s4 1983009808
          %v2490 = vunpack.c.0.s8 %v2489
          %v2491 = vlaneseq
          %v2492 = vshrl.u32 %v2491, 7
          %v2493 = vsub.s32 %v2490, %v2492
          %v2494 = vrot.slane %v2486, %v2493
          %v2496 = vunpack.c.l.s4 1983009808
          %v2497 = vunpack.c.0.s8 %v2496
          %v2498 = vlaneseq
          %v2499 = vshrl.u32 %v2498, 7
          %v2500 = vsub.s32 %v2497, %v2499
          %v2501 = vrot.slane %v2487, %v2500
          %v2502 = vcombine.low %v2494, %v2501
          %v2504 = vadd.f32 %v2275, %v2502
          %v2505 = vxor.u32 %v2504, 2147483648
          %v2506 = vmul.f32 %v2505, 1.442695
          %v2507 = vpow.pop %v2506
          %v2508 = vadd.f32 %v2507, 1.0
          %v2509 = vrcp.pop %v2508
          %v2510 = vmul.f32 1.0, %v2509
          %v2512 = vrot.slane %v2504, 6
          %v2514 = vtanh.pop %v2512
          %v2516 = vrot.slane %v2510, 2
          %v2518 = vmul.f32 %v2516, %v2165
          %v2519 = vmul.f32 %v2510, %v2514
          %v2520 = vadd.f32 %v2518, %v2519
          %v2521 = vtanh.pop %v2520
          %v2522 = vrot.slane %v2510, 4
          %v2524 = vmul.f32 %v2522, %v2521
          %s2525 = sadd.s32 %s439, 5
          %v2526 = vstv %s2525
          %vm2527 = vcmp.lt.s32.totalorder %v2526, %v443
          %v2528 = vsel %vm2527, %v2524, %v2164
          %v2529 = vsel %vm2527, %v2520, %v2165
          %v2530 = vsel %vm2527, %v2524, 0.0
          %v2531 = vpack.c.bf16 %v2530, %v2530
          %v2532 = vld [vmem:[%s406] sm:$0xf]
          %v2533 = vld [vmem:[%s406 + $0x4] sm:$0xf]
          %v2534 = vld [vmem:[%s406 + $0x8] sm:$0xf]
          %v2535 = vld [vmem:[%s406 + $0xc] sm:$0xf]
          %v2536 = vld [vmem:[%s406 + $0x10] sm:$0xf]
          %v2537 = vld [vmem:[%s406 + $0x14] sm:$0xf]
          %v2538 = vld [vmem:[%s406 + $0x18] sm:$0xf]
          %v2539 = vld [vmem:[%s406 + $0x1c] sm:$0xf]
          %v2540 = vld [vmem:[%s406 + $0x20] sm:$0xf]
          %v2541 = vld [vmem:[%s406 + $0x24] sm:$0xf]
          %v2542 = vld [vmem:[%s406 + $0x28] sm:$0xf]
          %v2543 = vld [vmem:[%s406 + $0x2c] sm:$0xf]
          %v2544 = vld [vmem:[%s406 + $0x30] sm:$0xf]
          %v2545 = vld [vmem:[%s406 + $0x34] sm:$0xf]
          %v2546 = vld [vmem:[%s406 + $0x38] sm:$0xf]
          %v2547 = vld [vmem:[%s406 + $0x3c] sm:$0xf]
          %v2564 = vunpack.c.l.b16 %v2532
          %v2565 = vunpack.c.l.b16 %v2533
          %v2566 = vunpack.c.l.b16 %v2534
          %v2567 = vunpack.c.l.b16 %v2535
          %v2568 = vunpack.c.l.b16 %v2536
          %v2569 = vunpack.c.l.b16 %v2537
          %v2570 = vunpack.c.l.b16 %v2538
          %v2571 = vunpack.c.l.b16 %v2539
          %v2572 = vunpack.c.l.b16 %v2540
          %v2573 = vunpack.c.l.b16 %v2541
          %v2574 = vunpack.c.l.b16 %v2542
          %v2575 = vunpack.c.l.b16 %v2543
          %v2576 = vunpack.c.l.b16 %v2544
          %v2577 = vunpack.c.l.b16 %v2545
          %v2578 = vunpack.c.l.b16 %v2546
          %v2579 = vunpack.c.l.b16 %v2547
          %v2580 = vpack.c.b16 %v2565, %v2564
          %v2581 = vpack.c.b16 %v2567, %v2566
          %v2582 = vpack.c.b16 %v2569, %v2568
          %v2583 = vpack.c.b16 %v2571, %v2570
          %v2584 = vpack.c.b16 %v2573, %v2572
          %v2585 = vpack.c.b16 %v2575, %v2574
          %v2586 = vpack.c.b16 %v2577, %v2576
          %v2587 = vpack.c.b16 %v2579, %v2578
          %2596 = vmatprep.subr.bf16.mxu0 0
          %2597 = vmatpush1.bf16.msra.mxu0 %v2580
          %2598 = vmatprep.subr.bf16.mxu0 0
          %2599 = vmatpush1.bf16.msra.mxu0 %v2581
          %2600 = vmatprep.subr.bf16.mxu0 0
          %2601 = vmatpush1.bf16.msra.mxu0 %v2582
          %2602 = vmatprep.subr.bf16.mxu0 0
          %2603 = vmatpush1.bf16.msra.mxu0 %v2583
          %2604 = vmatprep.subr.bf16.mxu0 0
          %2605 = vmatpush1.bf16.msra.mxu0 %v2584
          %2606 = vmatprep.subr.bf16.mxu0 0
          %2607 = vmatpush1.bf16.msra.mxu0 %v2585
          %2608 = vmatprep.subr.bf16.mxu0 0
          %2609 = vmatpush1.bf16.msra.mxu0 %v2586
          %2610 = vmatprep.subr.bf16.mxu0 0
          %2611 = vmatpush1.bf16.msra.mxu0 %v2587
          %2612 = vmatprep.subr.bf16.mxu0 0
          %2613 = vmatpush1.bf16.msra.mxu0 0
          %2614 = vmatprep.subr.bf16.mxu0 0
          %2615 = vmatpush1.bf16.msra.mxu0 0
          %2616 = vmatprep.subr.bf16.mxu0 0
          %2617 = vmatpush1.bf16.msra.mxu0 0
          %2618 = vmatprep.subr.bf16.mxu0 0
          %2619 = vmatpush1.bf16.msra.mxu0 0
          %2620 = vmatprep.subr.bf16.mxu0 0
          %2621 = vmatpush1.bf16.msra.mxu0 0
          %2622 = vmatprep.subr.bf16.mxu0 0
          %2623 = vmatpush1.bf16.msra.mxu0 0
          %2624 = vmatprep.subr.bf16.mxu0 0
          %2625 = vmatpush1.bf16.msra.mxu0 0
          %2626 = vmatprep.subr.bf16.mxu0 0
          %2627 = vmatpush1.bf16.msra.mxu0 0
          %2628 = vmatprep.mubr.bf16.mxu0 0
          %2629 = vmatmul.mubr.bf16.gmra.mrb[0].mxu0 %v2531
          %v2630 = vpop.f32.mrb[0].mxu0
          %v2631 = vadd.f32 %v449, %v2630
          %v2632 = vpop.f32.mrb[0].mxu0
          %v2633 = vpop.f32.mrb[0].mxu0
          %v2634 = vpop.f32.mrb[0].mxu0
          %2635 = vdwg.mxu0
          %s2636 = scalar_lea.vmem %s422, 10
          %2637 = vst [vmem:[%s2636] sm:$0x3] %v2631
          %s2638 = scalar_lea.vmem %s341, 48 [#allocation4]
          %v2639 = vld [vmem:[%s2638] sm:$0xff]
          %v2640 = vld [vmem:[%s349] sm:$0xff]
          %v2641 = vld [vmem:[%s349 + $0x8] sm:$0xff]
          %v2642 = vld [vmem:[%s349 + $0x10] sm:$0xff]
          %v2643 = vld [vmem:[%s349 + $0x18] sm:$0xff]
          %v2644 = vld [vmem:[%s349 + $0x20] sm:$0xff]
          %v2645 = vld [vmem:[%s349 + $0x28] sm:$0xff]
          %v2646 = vld [vmem:[%s349 + $0x30] sm:$0xff]
          %v2647 = vld [vmem:[%s349 + $0x38] sm:$0xff]
          %v2648 = vld [vmem:[%s349 + $0x40] sm:$0xff]
          %v2649 = vld [vmem:[%s349 + $0x48] sm:$0xff]
          %v2650 = vld [vmem:[%s349 + $0x50] sm:$0xff]
          %v2651 = vld [vmem:[%s349 + $0x58] sm:$0xff]
          %v2652 = vld [vmem:[%s349 + $0x60] sm:$0xff]
          %v2653 = vld [vmem:[%s349 + $0x68] sm:$0xff]
          %v2654 = vld [vmem:[%s349 + $0x70] sm:$0xff]
          %v2655 = vld [vmem:[%s349 + $0x78] sm:$0xff]
          %v2656 = vld [vmem:[%s349 + $0x80] sm:$0xff]
          %v2657 = vld [vmem:[%s349 + $0x88] sm:$0xff]
          %v2658 = vld [vmem:[%s349 + $0x90] sm:$0xff]
          %v2659 = vld [vmem:[%s349 + $0x98] sm:$0xff]
          %v2660 = vld [vmem:[%s349 + $0xa0] sm:$0xff]
          %v2661 = vld [vmem:[%s349 + $0xa8] sm:$0xff]
          %v2662 = vld [vmem:[%s349 + $0xb0] sm:$0xff]
          %v2663 = vld [vmem:[%s349 + $0xb8] sm:$0xff]
          %v2664 = vld [vmem:[%s349 + $0xc0] sm:$0xff]
          %v2665 = vld [vmem:[%s349 + $0xc8] sm:$0xff]
          %v2666 = vld [vmem:[%s349 + $0xd0] sm:$0xff]
          %v2667 = vld [vmem:[%s349 + $0xd8] sm:$0xff]
          %v2668 = vld [vmem:[%s349 + $0xe0] sm:$0xff]
          %v2669 = vld [vmem:[%s349 + $0xe8] sm:$0xff]
          %v2670 = vld [vmem:[%s349 + $0xf0] sm:$0xff]
          %v2671 = vld [vmem:[%s349 + $0xf8] sm:$0xff]
          %v2672 = vld [vmem:[%s349 + $0x100] sm:$0xff]
          %v2673 = vld [vmem:[%s349 + $0x108] sm:$0xff]
          %v2674 = vld [vmem:[%s349 + $0x110] sm:$0xff]
          %v2675 = vld [vmem:[%s349 + $0x118] sm:$0xff]
          %v2676 = vld [vmem:[%s349 + $0x120] sm:$0xff]
          %v2677 = vld [vmem:[%s349 + $0x128] sm:$0xff]
          %v2678 = vld [vmem:[%s349 + $0x130] sm:$0xff]
          %v2679 = vld [vmem:[%s349 + $0x138] sm:$0xff]
          %v2680 = vld [vmem:[%s349 + $0x140] sm:$0xff]
          %v2681 = vld [vmem:[%s349 + $0x148] sm:$0xff]
          %v2682 = vld [vmem:[%s349 + $0x150] sm:$0xff]
          %v2683 = vld [vmem:[%s349 + $0x158] sm:$0xff]
          %v2684 = vld [vmem:[%s349 + $0x160] sm:$0xff]
          %v2685 = vld [vmem:[%s349 + $0x168] sm:$0xff]
          %v2686 = vld [vmem:[%s349 + $0x170] sm:$0xff]
          %v2687 = vld [vmem:[%s349 + $0x178] sm:$0xff]
          %v2688 = vld [vmem:[%s349 + $0x180] sm:$0xff]
          %v2689 = vld [vmem:[%s349 + $0x188] sm:$0xff]
          %v2690 = vld [vmem:[%s349 + $0x190] sm:$0xff]
          %v2691 = vld [vmem:[%s349 + $0x198] sm:$0xff]
          %v2692 = vld [vmem:[%s349 + $0x1a0] sm:$0xff]
          %v2693 = vld [vmem:[%s349 + $0x1a8] sm:$0xff]
          %v2694 = vld [vmem:[%s349 + $0x1b0] sm:$0xff]
          %v2695 = vld [vmem:[%s349 + $0x1b8] sm:$0xff]
          %v2696 = vld [vmem:[%s349 + $0x1c0] sm:$0xff]
          %v2697 = vld [vmem:[%s349 + $0x1c8] sm:$0xff]
          %v2698 = vld [vmem:[%s349 + $0x1d0] sm:$0xff]
          %v2699 = vld [vmem:[%s349 + $0x1d8] sm:$0xff]
          %v2700 = vld [vmem:[%s349 + $0x1e0] sm:$0xff]
          %v2701 = vld [vmem:[%s349 + $0x1e8] sm:$0xff]
          %v2702 = vld [vmem:[%s349 + $0x1f0] sm:$0xff]
          %v2703 = vld [vmem:[%s349 + $0x1f8] sm:$0xff]
          %2704 = vmatprep.subr.mxu0 %v2641
          %2705 = vmatpush1.msra.mxu0 %v2640
          %2706 = vmatprep.subr.mxu0 %v2645
          %2707 = vmatpush1.msra.mxu0 %v2644
          %2708 = vmatprep.subr.mxu0 %v2649
          %2709 = vmatpush1.msra.mxu0 %v2648
          %2710 = vmatprep.subr.mxu0 %v2653
          %2711 = vmatpush1.msra.mxu0 %v2652
          %2712 = vmatprep.subr.mxu0 %v2657
          %2713 = vmatpush1.msra.mxu0 %v2656
          %2714 = vmatprep.subr.mxu0 %v2661
          %2715 = vmatpush1.msra.mxu0 %v2660
          %2716 = vmatprep.subr.mxu0 %v2665
          %2717 = vmatpush1.msra.mxu0 %v2664
          %2718 = vmatprep.subr.mxu0 %v2669
          %2719 = vmatpush1.msra.mxu0 %v2668
          %2720 = vmatprep.subr.mxu0 %v2673
          %2721 = vmatpush1.msra.mxu0 %v2672
          %2722 = vmatprep.subr.mxu0 %v2677
          %2723 = vmatpush1.msra.mxu0 %v2676
          %2724 = vmatprep.subr.mxu0 %v2681
          %2725 = vmatpush1.msra.mxu0 %v2680
          %2726 = vmatprep.subr.mxu0 %v2685
          %2727 = vmatpush1.msra.mxu0 %v2684
          %2728 = vmatprep.subr.mxu0 %v2689
          %2729 = vmatpush1.msra.mxu0 %v2688
          %2730 = vmatprep.subr.mxu0 %v2693
          %2731 = vmatpush1.msra.mxu0 %v2692
          %2732 = vmatprep.subr.mxu0 %v2697
          %2733 = vmatpush1.msra.mxu0 %v2696
          %2734 = vmatprep.subr.mxu0 %v2701
          %2735 = vmatpush1.msra.mxu0 %v2700
          %2736 = vmatprep.subr.mxu0 0.0
          %2737 = vmatpush1.msra.mxu0 0.0
          %2738 = vmatprep.subr.mxu0 0.0
          %2739 = vmatpush1.msra.mxu0 0.0
          %2740 = vmatprep.subr.mxu0 0.0
          %2741 = vmatpush1.msra.mxu0 0.0
          %2742 = vmatprep.subr.mxu0 0.0
          %2743 = vmatpush1.msra.mxu0 0.0
          %2744 = vmatprep.subr.mxu0 0.0
          %2745 = vmatpush1.msra.mxu0 0.0
          %2746 = vmatprep.subr.mxu0 0.0
          %2747 = vmatpush1.msra.mxu0 0.0
          %2748 = vmatprep.subr.mxu0 0.0
          %2749 = vmatpush1.msra.mxu0 0.0
          %2750 = vmatprep.subr.mxu0 0.0
          %2751 = vmatpush1.msra.mxu0 0.0
          %2752 = vmatprep.subr.mxu0 0.0
          %2753 = vmatpush1.msra.mxu0 0.0
          %2754 = vmatprep.subr.mxu0 0.0
          %2755 = vmatpush1.msra.mxu0 0.0
          %2756 = vmatprep.subr.mxu0 0.0
          %2757 = vmatpush1.msra.mxu0 0.0
          %2758 = vmatprep.subr.mxu0 0.0
          %2759 = vmatpush1.msra.mxu0 0.0
          %2760 = vmatprep.subr.mxu0 0.0
          %2761 = vmatpush1.msra.mxu0 0.0
          %2762 = vmatprep.subr.mxu0 0.0
          %2763 = vmatpush1.msra.mxu0 0.0
          %2764 = vmatprep.subr.mxu0 0.0
          %2765 = vmatpush1.msra.mxu0 0.0
          %2766 = vmatprep.subr.mxu0 0.0
          %2767 = vmatpush1.msra.mxu0 0.0
          %2768 = vmatprep.mubr.f32.mxu0 0.0
          %2769 = vmatmul.mubr.f32.gmra.mrb[0].mxu0 %v2528
          %v2770 = vpop.f32.mrb[0].mxu0
          %v2771 = vadd.f32 0.0, %v2770
          %v2772 = vpop.f32.mrb[0].mxu0
          %v2773 = vadd.f32 0.0, %v2772
          %2774 = vdwg.mxu0
          %2775 = vmatprep.subr.mxu0 %v2643
          %2776 = vmatpush1.msra.mxu0 %v2642
          %2777 = vmatprep.subr.mxu0 %v2647
          %2778 = vmatpush1.msra.mxu0 %v2646
          %2779 = vmatprep.subr.mxu0 %v2651
          %2780 = vmatpush1.msra.mxu0 %v2650
          %2781 = vmatprep.subr.mxu0 %v2655
          %2782 = vmatpush1.msra.mxu0 %v2654
          %2783 = vmatprep.subr.mxu0 %v2659
          %2784 = vmatpush1.msra.mxu0 %v2658
          %2785 = vmatprep.subr.mxu0 %v2663
          %2786 = vmatpush1.msra.mxu0 %v2662
          %2787 = vmatprep.subr.mxu0 %v2667
          %2788 = vmatpush1.msra.mxu0 %v2666
          %2789 = vmatprep.subr.mxu0 %v2671
          %2790 = vmatpush1.msra.mxu0 %v2670
          %2791 = vmatprep.subr.mxu0 %v2675
          %2792 = vmatpush1.msra.mxu0 %v2674
          %2793 = vmatprep.subr.mxu0 %v2679
          %2794 = vmatpush1.msra.mxu0 %v2678
          %2795 = vmatprep.subr.mxu0 %v2683
          %2796 = vmatpush1.msra.mxu0 %v2682
          %2797 = vmatprep.subr.mxu0 %v2687
          %2798 = vmatpush1.msra.mxu0 %v2686
          %2799 = vmatprep.subr.mxu0 %v2691
          %2800 = vmatpush1.msra.mxu0 %v2690
          %2801 = vmatprep.subr.mxu0 %v2695
          %2802 = vmatpush1.msra.mxu0 %v2694
          %2803 = vmatprep.subr.mxu0 %v2699
          %2804 = vmatpush1.msra.mxu0 %v2698
          %2805 = vmatprep.subr.mxu0 %v2703
          %2806 = vmatpush1.msra.mxu0 %v2702
          %2807 = vmatprep.subr.mxu0 0.0
          %2808 = vmatpush1.msra.mxu0 0.0
          %2809 = vmatprep.subr.mxu0 0.0
          %2810 = vmatpush1.msra.mxu0 0.0
          %2811 = vmatprep.subr.mxu0 0.0
          %2812 = vmatpush1.msra.mxu0 0.0
          %2813 = vmatprep.subr.mxu0 0.0
          %2814 = vmatpush1.msra.mxu0 0.0
          %2815 = vmatprep.subr.mxu0 0.0
          %2816 = vmatpush1.msra.mxu0 0.0
          %2817 = vmatprep.subr.mxu0 0.0
          %2818 = vmatpush1.msra.mxu0 0.0
          %2819 = vmatprep.subr.mxu0 0.0
          %2820 = vmatpush1.msra.mxu0 0.0
          %2821 = vmatprep.subr.mxu0 0.0
          %2822 = vmatpush1.msra.mxu0 0.0
          %2823 = vmatprep.subr.mxu0 0.0
          %2824 = vmatpush1.msra.mxu0 0.0
          %2825 = vmatprep.subr.mxu0 0.0
          %2826 = vmatpush1.msra.mxu0 0.0
          %2827 = vmatprep.subr.mxu0 0.0
          %2828 = vmatpush1.msra.mxu0 0.0
          %2829 = vmatprep.subr.mxu0 0.0
          %2830 = vmatpush1.msra.mxu0 0.0
          %2831 = vmatprep.subr.mxu0 0.0
          %2832 = vmatpush1.msra.mxu0 0.0
          %2833 = vmatprep.subr.mxu0 0.0
          %2834 = vmatpush1.msra.mxu0 0.0
          %2835 = vmatprep.subr.mxu0 0.0
          %2836 = vmatpush1.msra.mxu0 0.0
          %2837 = vmatprep.subr.mxu0 0.0
          %2838 = vmatpush1.msra.mxu0 0.0
          %2839 = vmatprep.mubr.f32.mxu0 0.0
          %2840 = vmatmul.mubr.f32.gmra.mrb[0].mxu0 %v2528
          %v2841 = vpop.f32.mrb[0].mxu0
          %v2842 = vadd.f32 0.0, %v2841
          %v2843 = vpop.f32.mrb[0].mxu0
          %v2844 = vadd.f32 0.0, %v2843
          %2845 = vdwg.mxu0
          %v2850 = vcombine.low %v2771, %v2773
          %v2851 = vcombine.low %v2842, %v2844
          %v2853 = vunpack.c.l.s4 1983009808
          %v2854 = vunpack.c.0.s8 %v2853
          %v2855 = vlaneseq
          %v2856 = vshrl.u32 %v2855, 7
          %v2857 = vsub.s32 %v2854, %v2856
          %v2858 = vrot.slane %v2850, %v2857
          %v2860 = vunpack.c.l.s4 1983009808
          %v2861 = vunpack.c.0.s8 %v2860
          %v2862 = vlaneseq
          %v2863 = vshrl.u32 %v2862, 7
          %v2864 = vsub.s32 %v2861, %v2863
          %v2865 = vrot.slane %v2851, %v2864
          %v2866 = vcombine.low %v2858, %v2865
          %v2868 = vadd.f32 %v2639, %v2866
          %v2869 = vxor.u32 %v2868, 2147483648
          %v2870 = vmul.f32 %v2869, 1.442695
          %v2871 = vpow.pop %v2870
          %v2872 = vadd.f32 %v2871, 1.0
          %v2873 = vrcp.pop %v2872
          %v2874 = vmul.f32 1.0, %v2873
          %v2876 = vrot.slane %v2868, 6
          %v2878 = vtanh.pop %v2876
          %v2880 = vrot.slane %v2874, 2
          %v2882 = vmul.f32 %v2880, %v2529
          %v2883 = vmul.f32 %v2874, %v2878
          %v2884 = vadd.f32 %v2882, %v2883
          %v2885 = vtanh.pop %v2884
          %v2886 = vrot.slane %v2874, 4
          %v2888 = vmul.f32 %v2886, %v2885
          %s2889 = sadd.s32 %s439, 6
          %v2890 = vstv %s2889
          %vm2891 = vcmp.lt.s32.totalorder %v2890, %v443
          %v2892 = vsel %vm2891, %v2888, %v2528
          %v2893 = vsel %vm2891, %v2884, %v2529
          %v2894 = vsel %vm2891, %v2888, 0.0
          %v2895 = vpack.c.bf16 %v2894, %v2894
          %v2896 = vld [vmem:[%s406] sm:$0xf]
          %v2897 = vld [vmem:[%s406 + $0x4] sm:$0xf]
          %v2898 = vld [vmem:[%s406 + $0x8] sm:$0xf]
          %v2899 = vld [vmem:[%s406 + $0xc] sm:$0xf]
          %v2900 = vld [vmem:[%s406 + $0x10] sm:$0xf]
          %v2901 = vld [vmem:[%s406 + $0x14] sm:$0xf]
          %v2902 = vld [vmem:[%s406 + $0x18] sm:$0xf]
          %v2903 = vld [vmem:[%s406 + $0x1c] sm:$0xf]
          %v2904 = vld [vmem:[%s406 + $0x20] sm:$0xf]
          %v2905 = vld [vmem:[%s406 + $0x24] sm:$0xf]
          %v2906 = vld [vmem:[%s406 + $0x28] sm:$0xf]
          %v2907 = vld [vmem:[%s406 + $0x2c] sm:$0xf]
          %v2908 = vld [vmem:[%s406 + $0x30] sm:$0xf]
          %v2909 = vld [vmem:[%s406 + $0x34] sm:$0xf]
          %v2910 = vld [vmem:[%s406 + $0x38] sm:$0xf]
          %v2911 = vld [vmem:[%s406 + $0x3c] sm:$0xf]
          %v2928 = vunpack.c.l.b16 %v2896
          %v2929 = vunpack.c.l.b16 %v2897
          %v2930 = vunpack.c.l.b16 %v2898
          %v2931 = vunpack.c.l.b16 %v2899
          %v2932 = vunpack.c.l.b16 %v2900
          %v2933 = vunpack.c.l.b16 %v2901
          %v2934 = vunpack.c.l.b16 %v2902
          %v2935 = vunpack.c.l.b16 %v2903
          %v2936 = vunpack.c.l.b16 %v2904
          %v2937 = vunpack.c.l.b16 %v2905
          %v2938 = vunpack.c.l.b16 %v2906
          %v2939 = vunpack.c.l.b16 %v2907
          %v2940 = vunpack.c.l.b16 %v2908
          %v2941 = vunpack.c.l.b16 %v2909
          %v2942 = vunpack.c.l.b16 %v2910
          %v2943 = vunpack.c.l.b16 %v2911
          %v2944 = vpack.c.b16 %v2929, %v2928
          %v2945 = vpack.c.b16 %v2931, %v2930
          %v2946 = vpack.c.b16 %v2933, %v2932
          %v2947 = vpack.c.b16 %v2935, %v2934
          %v2948 = vpack.c.b16 %v2937, %v2936
          %v2949 = vpack.c.b16 %v2939, %v2938
          %v2950 = vpack.c.b16 %v2941, %v2940
          %v2951 = vpack.c.b16 %v2943, %v2942
          %2960 = vmatprep.subr.bf16.mxu0 0
          %2961 = vmatpush1.bf16.msra.mxu0 %v2944
          %2962 = vmatprep.subr.bf16.mxu0 0
          %2963 = vmatpush1.bf16.msra.mxu0 %v2945
          %2964 = vmatprep.subr.bf16.mxu0 0
          %2965 = vmatpush1.bf16.msra.mxu0 %v2946
          %2966 = vmatprep.subr.bf16.mxu0 0
          %2967 = vmatpush1.bf16.msra.mxu0 %v2947
          %2968 = vmatprep.subr.bf16.mxu0 0
          %2969 = vmatpush1.bf16.msra.mxu0 %v2948
          %2970 = vmatprep.subr.bf16.mxu0 0
          %2971 = vmatpush1.bf16.msra.mxu0 %v2949
          %2972 = vmatprep.subr.bf16.mxu0 0
          %2973 = vmatpush1.bf16.msra.mxu0 %v2950
          %2974 = vmatprep.subr.bf16.mxu0 0
          %2975 = vmatpush1.bf16.msra.mxu0 %v2951
          %2976 = vmatprep.subr.bf16.mxu0 0
          %2977 = vmatpush1.bf16.msra.mxu0 0
          %2978 = vmatprep.subr.bf16.mxu0 0
          %2979 = vmatpush1.bf16.msra.mxu0 0
          %2980 = vmatprep.subr.bf16.mxu0 0
          %2981 = vmatpush1.bf16.msra.mxu0 0
          %2982 = vmatprep.subr.bf16.mxu0 0
          %2983 = vmatpush1.bf16.msra.mxu0 0
          %2984 = vmatprep.subr.bf16.mxu0 0
          %2985 = vmatpush1.bf16.msra.mxu0 0
          %2986 = vmatprep.subr.bf16.mxu0 0
          %2987 = vmatpush1.bf16.msra.mxu0 0
          %2988 = vmatprep.subr.bf16.mxu0 0
          %2989 = vmatpush1.bf16.msra.mxu0 0
          %2990 = vmatprep.subr.bf16.mxu0 0
          %2991 = vmatpush1.bf16.msra.mxu0 0
          %2992 = vmatprep.mubr.bf16.mxu0 0
          %2993 = vmatmul.mubr.bf16.gmra.mrb[0].mxu0 %v2895
          %v2994 = vpop.f32.mrb[0].mxu0
          %v2995 = vadd.f32 %v449, %v2994
          %v2996 = vpop.f32.mrb[0].mxu0
          %v2997 = vpop.f32.mrb[0].mxu0
          %v2998 = vpop.f32.mrb[0].mxu0
          %2999 = vdwg.mxu0
          %s3000 = scalar_lea.vmem %s422, 12
          %3001 = vst [vmem:[%s3000] sm:$0x3] %v2995
          %s3002 = scalar_lea.vmem %s341, 56 [#allocation4]
          %v3003 = vld [vmem:[%s3002] sm:$0xff]
          %v3004 = vld [vmem:[%s349] sm:$0xff]
          %v3005 = vld [vmem:[%s349 + $0x8] sm:$0xff]
          %v3006 = vld [vmem:[%s349 + $0x10] sm:$0xff]
          %v3007 = vld [vmem:[%s349 + $0x18] sm:$0xff]
          %v3008 = vld [vmem:[%s349 + $0x20] sm:$0xff]
          %v3009 = vld [vmem:[%s349 + $0x28] sm:$0xff]
          %v3010 = vld [vmem:[%s349 + $0x30] sm:$0xff]
          %v3011 = vld [vmem:[%s349 + $0x38] sm:$0xff]
          %v3012 = vld [vmem:[%s349 + $0x40] sm:$0xff]
          %v3013 = vld [vmem:[%s349 + $0x48] sm:$0xff]
          %v3014 = vld [vmem:[%s349 + $0x50] sm:$0xff]
          %v3015 = vld [vmem:[%s349 + $0x58] sm:$0xff]
          %v3016 = vld [vmem:[%s349 + $0x60] sm:$0xff]
          %v3017 = vld [vmem:[%s349 + $0x68] sm:$0xff]
          %v3018 = vld [vmem:[%s349 + $0x70] sm:$0xff]
          %v3019 = vld [vmem:[%s349 + $0x78] sm:$0xff]
          %v3020 = vld [vmem:[%s349 + $0x80] sm:$0xff]
          %v3021 = vld [vmem:[%s349 + $0x88] sm:$0xff]
          %v3022 = vld [vmem:[%s349 + $0x90] sm:$0xff]
          %v3023 = vld [vmem:[%s349 + $0x98] sm:$0xff]
          %v3024 = vld [vmem:[%s349 + $0xa0] sm:$0xff]
          %v3025 = vld [vmem:[%s349 + $0xa8] sm:$0xff]
          %v3026 = vld [vmem:[%s349 + $0xb0] sm:$0xff]
          %v3027 = vld [vmem:[%s349 + $0xb8] sm:$0xff]
          %v3028 = vld [vmem:[%s349 + $0xc0] sm:$0xff]
          %v3029 = vld [vmem:[%s349 + $0xc8] sm:$0xff]
          %v3030 = vld [vmem:[%s349 + $0xd0] sm:$0xff]
          %v3031 = vld [vmem:[%s349 + $0xd8] sm:$0xff]
          %v3032 = vld [vmem:[%s349 + $0xe0] sm:$0xff]
          %v3033 = vld [vmem:[%s349 + $0xe8] sm:$0xff]
          %v3034 = vld [vmem:[%s349 + $0xf0] sm:$0xff]
          %v3035 = vld [vmem:[%s349 + $0xf8] sm:$0xff]
          %v3036 = vld [vmem:[%s349 + $0x100] sm:$0xff]
          %v3037 = vld [vmem:[%s349 + $0x108] sm:$0xff]
          %v3038 = vld [vmem:[%s349 + $0x110] sm:$0xff]
          %v3039 = vld [vmem:[%s349 + $0x118] sm:$0xff]
          %v3040 = vld [vmem:[%s349 + $0x120] sm:$0xff]
          %v3041 = vld [vmem:[%s349 + $0x128] sm:$0xff]
          %v3042 = vld [vmem:[%s349 + $0x130] sm:$0xff]
          %v3043 = vld [vmem:[%s349 + $0x138] sm:$0xff]
          %v3044 = vld [vmem:[%s349 + $0x140] sm:$0xff]
          %v3045 = vld [vmem:[%s349 + $0x148] sm:$0xff]
          %v3046 = vld [vmem:[%s349 + $0x150] sm:$0xff]
          %v3047 = vld [vmem:[%s349 + $0x158] sm:$0xff]
          %v3048 = vld [vmem:[%s349 + $0x160] sm:$0xff]
          %v3049 = vld [vmem:[%s349 + $0x168] sm:$0xff]
          %v3050 = vld [vmem:[%s349 + $0x170] sm:$0xff]
          %v3051 = vld [vmem:[%s349 + $0x178] sm:$0xff]
          %v3052 = vld [vmem:[%s349 + $0x180] sm:$0xff]
          %v3053 = vld [vmem:[%s349 + $0x188] sm:$0xff]
          %v3054 = vld [vmem:[%s349 + $0x190] sm:$0xff]
          %v3055 = vld [vmem:[%s349 + $0x198] sm:$0xff]
          %v3056 = vld [vmem:[%s349 + $0x1a0] sm:$0xff]
          %v3057 = vld [vmem:[%s349 + $0x1a8] sm:$0xff]
          %v3058 = vld [vmem:[%s349 + $0x1b0] sm:$0xff]
          %v3059 = vld [vmem:[%s349 + $0x1b8] sm:$0xff]
          %v3060 = vld [vmem:[%s349 + $0x1c0] sm:$0xff]
          %v3061 = vld [vmem:[%s349 + $0x1c8] sm:$0xff]
          %v3062 = vld [vmem:[%s349 + $0x1d0] sm:$0xff]
          %v3063 = vld [vmem:[%s349 + $0x1d8] sm:$0xff]
          %v3064 = vld [vmem:[%s349 + $0x1e0] sm:$0xff]
          %v3065 = vld [vmem:[%s349 + $0x1e8] sm:$0xff]
          %v3066 = vld [vmem:[%s349 + $0x1f0] sm:$0xff]
          %v3067 = vld [vmem:[%s349 + $0x1f8] sm:$0xff]
          %3068 = vmatprep.subr.mxu0 %v3005
          %3069 = vmatpush1.msra.mxu0 %v3004
          %3070 = vmatprep.subr.mxu0 %v3009
          %3071 = vmatpush1.msra.mxu0 %v3008
          %3072 = vmatprep.subr.mxu0 %v3013
          %3073 = vmatpush1.msra.mxu0 %v3012
          %3074 = vmatprep.subr.mxu0 %v3017
          %3075 = vmatpush1.msra.mxu0 %v3016
          %3076 = vmatprep.subr.mxu0 %v3021
          %3077 = vmatpush1.msra.mxu0 %v3020
          %3078 = vmatprep.subr.mxu0 %v3025
          %3079 = vmatpush1.msra.mxu0 %v3024
          %3080 = vmatprep.subr.mxu0 %v3029
          %3081 = vmatpush1.msra.mxu0 %v3028
          %3082 = vmatprep.subr.mxu0 %v3033
          %3083 = vmatpush1.msra.mxu0 %v3032
          %3084 = vmatprep.subr.mxu0 %v3037
          %3085 = vmatpush1.msra.mxu0 %v3036
          %3086 = vmatprep.subr.mxu0 %v3041
          %3087 = vmatpush1.msra.mxu0 %v3040
          %3088 = vmatprep.subr.mxu0 %v3045
          %3089 = vmatpush1.msra.mxu0 %v3044
          %3090 = vmatprep.subr.mxu0 %v3049
          %3091 = vmatpush1.msra.mxu0 %v3048
          %3092 = vmatprep.subr.mxu0 %v3053
          %3093 = vmatpush1.msra.mxu0 %v3052
          %3094 = vmatprep.subr.mxu0 %v3057
          %3095 = vmatpush1.msra.mxu0 %v3056
          %3096 = vmatprep.subr.mxu0 %v3061
          %3097 = vmatpush1.msra.mxu0 %v3060
          %3098 = vmatprep.subr.mxu0 %v3065
          %3099 = vmatpush1.msra.mxu0 %v3064
          %3100 = vmatprep.subr.mxu0 0.0
          %3101 = vmatpush1.msra.mxu0 0.0
          %3102 = vmatprep.subr.mxu0 0.0
          %3103 = vmatpush1.msra.mxu0 0.0
          %3104 = vmatprep.subr.mxu0 0.0
          %3105 = vmatpush1.msra.mxu0 0.0
          %3106 = vmatprep.subr.mxu0 0.0
          %3107 = vmatpush1.msra.mxu0 0.0
          %3108 = vmatprep.subr.mxu0 0.0
          %3109 = vmatpush1.msra.mxu0 0.0
          %3110 = vmatprep.subr.mxu0 0.0
          %3111 = vmatpush1.msra.mxu0 0.0
          %3112 = vmatprep.subr.mxu0 0.0
          %3113 = vmatpush1.msra.mxu0 0.0
          %3114 = vmatprep.subr.mxu0 0.0
          %3115 = vmatpush1.msra.mxu0 0.0
          %3116 = vmatprep.subr.mxu0 0.0
          %3117 = vmatpush1.msra.mxu0 0.0
          %3118 = vmatprep.subr.mxu0 0.0
          %3119 = vmatpush1.msra.mxu0 0.0
          %3120 = vmatprep.subr.mxu0 0.0
          %3121 = vmatpush1.msra.mxu0 0.0
          %3122 = vmatprep.subr.mxu0 0.0
          %3123 = vmatpush1.msra.mxu0 0.0
          %3124 = vmatprep.subr.mxu0 0.0
          %3125 = vmatpush1.msra.mxu0 0.0
          %3126 = vmatprep.subr.mxu0 0.0
          %3127 = vmatpush1.msra.mxu0 0.0
          %3128 = vmatprep.subr.mxu0 0.0
          %3129 = vmatpush1.msra.mxu0 0.0
          %3130 = vmatprep.subr.mxu0 0.0
          %3131 = vmatpush1.msra.mxu0 0.0
          %3132 = vmatprep.mubr.f32.mxu0 0.0
          %3133 = vmatmul.mubr.f32.gmra.mrb[0].mxu0 %v2892
          %v3134 = vpop.f32.mrb[0].mxu0
          %v3135 = vadd.f32 0.0, %v3134
          %v3136 = vpop.f32.mrb[0].mxu0
          %v3137 = vadd.f32 0.0, %v3136
          %3138 = vdwg.mxu0
          %3139 = vmatprep.subr.mxu0 %v3007
          %3140 = vmatpush1.msra.mxu0 %v3006
          %3141 = vmatprep.subr.mxu0 %v3011
          %3142 = vmatpush1.msra.mxu0 %v3010
          %3143 = vmatprep.subr.mxu0 %v3015
          %3144 = vmatpush1.msra.mxu0 %v3014
          %3145 = vmatprep.subr.mxu0 %v3019
          %3146 = vmatpush1.msra.mxu0 %v3018
          %3147 = vmatprep.subr.mxu0 %v3023
          %3148 = vmatpush1.msra.mxu0 %v3022
          %3149 = vmatprep.subr.mxu0 %v3027
          %3150 = vmatpush1.msra.mxu0 %v3026
          %3151 = vmatprep.subr.mxu0 %v3031
          %3152 = vmatpush1.msra.mxu0 %v3030
          %3153 = vmatprep.subr.mxu0 %v3035
          %3154 = vmatpush1.msra.mxu0 %v3034
          %3155 = vmatprep.subr.mxu0 %v3039
          %3156 = vmatpush1.msra.mxu0 %v3038
          %3157 = vmatprep.subr.mxu0 %v3043
          %3158 = vmatpush1.msra.mxu0 %v3042
          %3159 = vmatprep.subr.mxu0 %v3047
          %3160 = vmatpush1.msra.mxu0 %v3046
          %3161 = vmatprep.subr.mxu0 %v3051
          %3162 = vmatpush1.msra.mxu0 %v3050
          %3163 = vmatprep.subr.mxu0 %v3055
          %3164 = vmatpush1.msra.mxu0 %v3054
          %3165 = vmatprep.subr.mxu0 %v3059
          %3166 = vmatpush1.msra.mxu0 %v3058
          %3167 = vmatprep.subr.mxu0 %v3063
          %3168 = vmatpush1.msra.mxu0 %v3062
          %3169 = vmatprep.subr.mxu0 %v3067
          %3170 = vmatpush1.msra.mxu0 %v3066
          %3171 = vmatprep.subr.mxu0 0.0
          %3172 = vmatpush1.msra.mxu0 0.0
          %3173 = vmatprep.subr.mxu0 0.0
          %3174 = vmatpush1.msra.mxu0 0.0
          %3175 = vmatprep.subr.mxu0 0.0
          %3176 = vmatpush1.msra.mxu0 0.0
          %3177 = vmatprep.subr.mxu0 0.0
          %3178 = vmatpush1.msra.mxu0 0.0
          %3179 = vmatprep.subr.mxu0 0.0
          %3180 = vmatpush1.msra.mxu0 0.0
          %3181 = vmatprep.subr.mxu0 0.0
          %3182 = vmatpush1.msra.mxu0 0.0
          %3183 = vmatprep.subr.mxu0 0.0
          %3184 = vmatpush1.msra.mxu0 0.0
          %3185 = vmatprep.subr.mxu0 0.0
          %3186 = vmatpush1.msra.mxu0 0.0
          %3187 = vmatprep.subr.mxu0 0.0
          %3188 = vmatpush1.msra.mxu0 0.0
          %3189 = vmatprep.subr.mxu0 0.0
          %3190 = vmatpush1.msra.mxu0 0.0
          %3191 = vmatprep.subr.mxu0 0.0
          %3192 = vmatpush1.msra.mxu0 0.0
          %3193 = vmatprep.subr.mxu0 0.0
          %3194 = vmatpush1.msra.mxu0 0.0
          %3195 = vmatprep.subr.mxu0 0.0
          %3196 = vmatpush1.msra.mxu0 0.0
          %3197 = vmatprep.subr.mxu0 0.0
          %3198 = vmatpush1.msra.mxu0 0.0
          %3199 = vmatprep.subr.mxu0 0.0
          %3200 = vmatpush1.msra.mxu0 0.0
          %3201 = vmatprep.subr.mxu0 0.0
          %3202 = vmatpush1.msra.mxu0 0.0
          %3203 = vmatprep.mubr.f32.mxu0 0.0
          %3204 = vmatmul.mubr.f32.gmra.mrb[0].mxu0 %v2892
          %v3205 = vpop.f32.mrb[0].mxu0
          %v3206 = vadd.f32 0.0, %v3205
          %v3207 = vpop.f32.mrb[0].mxu0
          %v3208 = vadd.f32 0.0, %v3207
          %3209 = vdwg.mxu0
          %v3214 = vcombine.low %v3135, %v3137
          %v3215 = vcombine.low %v3206, %v3208
          %v3217 = vunpack.c.l.s4 1983009808
          %v3218 = vunpack.c.0.s8 %v3217
          %v3219 = vlaneseq
          %v3220 = vshrl.u32 %v3219, 7
          %v3221 = vsub.s32 %v3218, %v3220
          %v3222 = vrot.slane %v3214, %v3221
          %v3224 = vunpack.c.l.s4 1983009808
          %v3225 = vunpack.c.0.s8 %v3224
          %v3226 = vlaneseq
          %v3227 = vshrl.u32 %v3226, 7
          %v3228 = vsub.s32 %v3225, %v3227
          %v3229 = vrot.slane %v3215, %v3228
          %v3230 = vcombine.low %v3222, %v3229
          %v3232 = vadd.f32 %v3003, %v3230
          %v3233 = vxor.u32 %v3232, 2147483648
          %v3234 = vmul.f32 %v3233, 1.442695
          %v3235 = vpow.pop %v3234
          %v3236 = vadd.f32 %v3235, 1.0
          %v3237 = vrcp.pop %v3236
          %v3238 = vmul.f32 1.0, %v3237
          %v3240 = vrot.slane %v3232, 6
          %v3242 = vtanh.pop %v3240
          %v3244 = vrot.slane %v3238, 2
          %v3246 = vmul.f32 %v3244, %v2893
          %v3247 = vmul.f32 %v3238, %v3242
          %v3248 = vadd.f32 %v3246, %v3247
          %v3249 = vtanh.pop %v3248
          %v3250 = vrot.slane %v3238, 4
          %v3252 = vmul.f32 %v3250, %v3249
          %s3253 = sadd.s32 %s439, 7
          %v3254 = vstv %s3253
          %vm3255 = vcmp.lt.s32.totalorder %v3254, %v443
          %v3256 = vsel %vm3255, %v3252, %v2892
          %v3257 = vsel %vm3255, %v3248, %v2893
          %v3258 = vsel %vm3255, %v3252, 0.0
          %v3259 = vpack.c.bf16 %v3258, %v3258
          %v3260 = vld [vmem:[%s406] sm:$0xf]
          %v3261 = vld [vmem:[%s406 + $0x4] sm:$0xf]
          %v3262 = vld [vmem:[%s406 + $0x8] sm:$0xf]
          %v3263 = vld [vmem:[%s406 + $0xc] sm:$0xf]
          %v3264 = vld [vmem:[%s406 + $0x10] sm:$0xf]
          %v3265 = vld [vmem:[%s406 + $0x14] sm:$0xf]
          %v3266 = vld [vmem:[%s406 + $0x18] sm:$0xf]
          %v3267 = vld [vmem:[%s406 + $0x1c] sm:$0xf]
          %v3268 = vld [vmem:[%s406 + $0x20] sm:$0xf]
          %v3269 = vld [vmem:[%s406 + $0x24] sm:$0xf]
          %v3270 = vld [vmem:[%s406 + $0x28] sm:$0xf]
          %v3271 = vld [vmem:[%s406 + $0x2c] sm:$0xf]
          %v3272 = vld [vmem:[%s406 + $0x30] sm:$0xf]
          %v3273 = vld [vmem:[%s406 + $0x34] sm:$0xf]
          %v3274 = vld [vmem:[%s406 + $0x38] sm:$0xf]
          %v3275 = vld [vmem:[%s406 + $0x3c] sm:$0xf]
          %v3292 = vunpack.c.l.b16 %v3260
          %v3293 = vunpack.c.l.b16 %v3261
          %v3294 = vunpack.c.l.b16 %v3262
          %v3295 = vunpack.c.l.b16 %v3263
          %v3296 = vunpack.c.l.b16 %v3264
          %v3297 = vunpack.c.l.b16 %v3265
          %v3298 = vunpack.c.l.b16 %v3266
          %v3299 = vunpack.c.l.b16 %v3267
          %v3300 = vunpack.c.l.b16 %v3268
          %v3301 = vunpack.c.l.b16 %v3269
          %v3302 = vunpack.c.l.b16 %v3270
          %v3303 = vunpack.c.l.b16 %v3271
          %v3304 = vunpack.c.l.b16 %v3272
          %v3305 = vunpack.c.l.b16 %v3273
          %v3306 = vunpack.c.l.b16 %v3274
          %v3307 = vunpack.c.l.b16 %v3275
          %v3308 = vpack.c.b16 %v3293, %v3292
          %v3309 = vpack.c.b16 %v3295, %v3294
          %v3310 = vpack.c.b16 %v3297, %v3296
          %v3311 = vpack.c.b16 %v3299, %v3298
          %v3312 = vpack.c.b16 %v3301, %v3300
          %v3313 = vpack.c.b16 %v3303, %v3302
          %v3314 = vpack.c.b16 %v3305, %v3304
          %v3315 = vpack.c.b16 %v3307, %v3306
          %3324 = vmatprep.subr.bf16.mxu0 0
          %3325 = vmatpush1.bf16.msra.mxu0 %v3308
          %3326 = vmatprep.subr.bf16.mxu0 0
          %3327 = vmatpush1.bf16.msra.mxu0 %v3309
          %3328 = vmatprep.subr.bf16.mxu0 0
          %3329 = vmatpush1.bf16.msra.mxu0 %v3310
          %3330 = vmatprep.subr.bf16.mxu0 0
          %3331 = vmatpush1.bf16.msra.mxu0 %v3311
          %3332 = vmatprep.subr.bf16.mxu0 0
          %3333 = vmatpush1.bf16.msra.mxu0 %v3312
          %3334 = vmatprep.subr.bf16.mxu0 0
          %3335 = vmatpush1.bf16.msra.mxu0 %v3313
          %3336 = vmatprep.subr.bf16.mxu0 0
          %3337 = vmatpush1.bf16.msra.mxu0 %v3314
          %3338 = vmatprep.subr.bf16.mxu0 0
          %3339 = vmatpush1.bf16.msra.mxu0 %v3315
          %3340 = vmatprep.subr.bf16.mxu0 0
          %3341 = vmatpush1.bf16.msra.mxu0 0
          %3342 = vmatprep.subr.bf16.mxu0 0
          %3343 = vmatpush1.bf16.msra.mxu0 0
          %3344 = vmatprep.subr.bf16.mxu0 0
          %3345 = vmatpush1.bf16.msra.mxu0 0
          %3346 = vmatprep.subr.bf16.mxu0 0
          %3347 = vmatpush1.bf16.msra.mxu0 0
          %3348 = vmatprep.subr.bf16.mxu0 0
          %3349 = vmatpush1.bf16.msra.mxu0 0
          %3350 = vmatprep.subr.bf16.mxu0 0
          %3351 = vmatpush1.bf16.msra.mxu0 0
          %3352 = vmatprep.subr.bf16.mxu0 0
          %3353 = vmatpush1.bf16.msra.mxu0 0
          %3354 = vmatprep.subr.bf16.mxu0 0
          %3355 = vmatpush1.bf16.msra.mxu0 0
          %3356 = vmatprep.mubr.bf16.mxu0 0
          %3357 = vmatmul.mubr.bf16.gmra.mrb[0].mxu0 %v3259
          %v3358 = vpop.f32.mrb[0].mxu0
          %v3359 = vadd.f32 %v449, %v3358
          %v3360 = vpop.f32.mrb[0].mxu0
          %v3361 = vpop.f32.mrb[0].mxu0
          %v3362 = vpop.f32.mrb[0].mxu0
          %3363 = vdwg.mxu0
          %s3364 = scalar_lea.vmem %s422, 14
          %3365 = vst [vmem:[%s3364] sm:$0x3] %v3359
          %3366 = vst [vmem:[#allocation2] sm:$0x3] %v3256
          %3367 = vst [vmem:[#allocation3] sm:$0x3] %v3257
        $region90: #{mner_forward.3} parent=73 // pred_fallthru
          _
        %p3368 = scmp.ne.s32.totalorder %s23, 0
        // Predicated region
        $region91: #{mner_forward.3} parent=73 // pred_check
          %p3369 = pneg %p3368
        $region92: #{mner_forward.3} parent=73 // pred_check_branch
          %3371 = sbr.rel (%p3369) target = $region94
        $region93: #{mner_forward.3} parent=73 // pred_region
          %v3372 = vld [vmem:[#allocation2] sm:$0x3]
          %v3373 = vld [vmem:[#allocation3] sm:$0x3]
          %s3374 = scalar_lea.vmem %s341, 56 [#allocation4]
          %v3375 = vld [vmem:[%s3374] sm:$0xff]
          %v3376 = vld [vmem:[%s349] sm:$0xff]
          %v3377 = vld [vmem:[%s349 + $0x8] sm:$0xff]
          %v3378 = vld [vmem:[%s349 + $0x10] sm:$0xff]
          %v3379 = vld [vmem:[%s349 + $0x18] sm:$0xff]
          %v3380 = vld [vmem:[%s349 + $0x20] sm:$0xff]
          %v3381 = vld [vmem:[%s349 + $0x28] sm:$0xff]
          %v3382 = vld [vmem:[%s349 + $0x30] sm:$0xff]
          %v3383 = vld [vmem:[%s349 + $0x38] sm:$0xff]
          %v3384 = vld [vmem:[%s349 + $0x40] sm:$0xff]
          %v3385 = vld [vmem:[%s349 + $0x48] sm:$0xff]
          %v3386 = vld [vmem:[%s349 + $0x50] sm:$0xff]
          %v3387 = vld [vmem:[%s349 + $0x58] sm:$0xff]
          %v3388 = vld [vmem:[%s349 + $0x60] sm:$0xff]
          %v3389 = vld [vmem:[%s349 + $0x68] sm:$0xff]
          %v3390 = vld [vmem:[%s349 + $0x70] sm:$0xff]
          %v3391 = vld [vmem:[%s349 + $0x78] sm:$0xff]
          %v3392 = vld [vmem:[%s349 + $0x80] sm:$0xff]
          %v3393 = vld [vmem:[%s349 + $0x88] sm:$0xff]
          %v3394 = vld [vmem:[%s349 + $0x90] sm:$0xff]
          %v3395 = vld [vmem:[%s349 + $0x98] sm:$0xff]
          %v3396 = vld [vmem:[%s349 + $0xa0] sm:$0xff]
          %v3397 = vld [vmem:[%s349 + $0xa8] sm:$0xff]
          %v3398 = vld [vmem:[%s349 + $0xb0] sm:$0xff]
          %v3399 = vld [vmem:[%s349 + $0xb8] sm:$0xff]
          %v3400 = vld [vmem:[%s349 + $0xc0] sm:$0xff]
          %v3401 = vld [vmem:[%s349 + $0xc8] sm:$0xff]
          %v3402 = vld [vmem:[%s349 + $0xd0] sm:$0xff]
          %v3403 = vld [vmem:[%s349 + $0xd8] sm:$0xff]
          %v3404 = vld [vmem:[%s349 + $0xe0] sm:$0xff]
          %v3405 = vld [vmem:[%s349 + $0xe8] sm:$0xff]
          %v3406 = vld [vmem:[%s349 + $0xf0] sm:$0xff]
          %v3407 = vld [vmem:[%s349 + $0xf8] sm:$0xff]
          %v3408 = vld [vmem:[%s349 + $0x100] sm:$0xff]
          %v3409 = vld [vmem:[%s349 + $0x108] sm:$0xff]
          %v3410 = vld [vmem:[%s349 + $0x110] sm:$0xff]
          %v3411 = vld [vmem:[%s349 + $0x118] sm:$0xff]
          %v3412 = vld [vmem:[%s349 + $0x120] sm:$0xff]
          %v3413 = vld [vmem:[%s349 + $0x128] sm:$0xff]
          %v3414 = vld [vmem:[%s349 + $0x130] sm:$0xff]
          %v3415 = vld [vmem:[%s349 + $0x138] sm:$0xff]
          %v3416 = vld [vmem:[%s349 + $0x140] sm:$0xff]
          %v3417 = vld [vmem:[%s349 + $0x148] sm:$0xff]
          %v3418 = vld [vmem:[%s349 + $0x150] sm:$0xff]
          %v3419 = vld [vmem:[%s349 + $0x158] sm:$0xff]
          %v3420 = vld [vmem:[%s349 + $0x160] sm:$0xff]
          %v3421 = vld [vmem:[%s349 + $0x168] sm:$0xff]
          %v3422 = vld [vmem:[%s349 + $0x170] sm:$0xff]
          %v3423 = vld [vmem:[%s349 + $0x178] sm:$0xff]
          %v3424 = vld [vmem:[%s349 + $0x180] sm:$0xff]
          %v3425 = vld [vmem:[%s349 + $0x188] sm:$0xff]
          %v3426 = vld [vmem:[%s349 + $0x190] sm:$0xff]
          %v3427 = vld [vmem:[%s349 + $0x198] sm:$0xff]
          %v3428 = vld [vmem:[%s349 + $0x1a0] sm:$0xff]
          %v3429 = vld [vmem:[%s349 + $0x1a8] sm:$0xff]
          %v3430 = vld [vmem:[%s349 + $0x1b0] sm:$0xff]
          %v3431 = vld [vmem:[%s349 + $0x1b8] sm:$0xff]
          %v3432 = vld [vmem:[%s349 + $0x1c0] sm:$0xff]
          %v3433 = vld [vmem:[%s349 + $0x1c8] sm:$0xff]
          %v3434 = vld [vmem:[%s349 + $0x1d0] sm:$0xff]
          %v3435 = vld [vmem:[%s349 + $0x1d8] sm:$0xff]
          %v3436 = vld [vmem:[%s349 + $0x1e0] sm:$0xff]
          %v3437 = vld [vmem:[%s349 + $0x1e8] sm:$0xff]
          %v3438 = vld [vmem:[%s349 + $0x1f0] sm:$0xff]
          %v3439 = vld [vmem:[%s349 + $0x1f8] sm:$0xff]
          %3440 = vmatprep.subr.mxu0 %v3377
          %3441 = vmatpush1.msra.mxu0 %v3376
          %3442 = vmatprep.subr.mxu0 %v3381
          %3443 = vmatpush1.msra.mxu0 %v3380
          %3444 = vmatprep.subr.mxu0 %v3385
          %3445 = vmatpush1.msra.mxu0 %v3384
          %3446 = vmatprep.subr.mxu0 %v3389
          %3447 = vmatpush1.msra.mxu0 %v3388
          %3448 = vmatprep.subr.mxu0 %v3393
          %3449 = vmatpush1.msra.mxu0 %v3392
          %3450 = vmatprep.subr.mxu0 %v3397
          %3451 = vmatpush1.msra.mxu0 %v3396
          %3452 = vmatprep.subr.mxu0 %v3401
          %3453 = vmatpush1.msra.mxu0 %v3400
          %3454 = vmatprep.subr.mxu0 %v3405
          %3455 = vmatpush1.msra.mxu0 %v3404
          %3456 = vmatprep.subr.mxu0 %v3409
          %3457 = vmatpush1.msra.mxu0 %v3408
          %3458 = vmatprep.subr.mxu0 %v3413
          %3459 = vmatpush1.msra.mxu0 %v3412
          %3460 = vmatprep.subr.mxu0 %v3417
          %3461 = vmatpush1.msra.mxu0 %v3416
          %3462 = vmatprep.subr.mxu0 %v3421
          %3463 = vmatpush1.msra.mxu0 %v3420
          %3464 = vmatprep.subr.mxu0 %v3425
          %3465 = vmatpush1.msra.mxu0 %v3424
          %3466 = vmatprep.subr.mxu0 %v3429
          %3467 = vmatpush1.msra.mxu0 %v3428
          %3468 = vmatprep.subr.mxu0 %v3433
          %3469 = vmatpush1.msra.mxu0 %v3432
          %3470 = vmatprep.subr.mxu0 %v3437
          %3471 = vmatpush1.msra.mxu0 %v3436
          %3472 = vmatprep.subr.mxu0 0.0
          %3473 = vmatpush1.msra.mxu0 0.0
          %3474 = vmatprep.subr.mxu0 0.0
          %3475 = vmatpush1.msra.mxu0 0.0
          %3476 = vmatprep.subr.mxu0 0.0
          %3477 = vmatpush1.msra.mxu0 0.0
          %3478 = vmatprep.subr.mxu0 0.0
          %3479 = vmatpush1.msra.mxu0 0.0
          %3480 = vmatprep.subr.mxu0 0.0
          %3481 = vmatpush1.msra.mxu0 0.0
          %3482 = vmatprep.subr.mxu0 0.0
          %3483 = vmatpush1.msra.mxu0 0.0
          %3484 = vmatprep.subr.mxu0 0.0
          %3485 = vmatpush1.msra.mxu0 0.0
          %3486 = vmatprep.subr.mxu0 0.0
          %3487 = vmatpush1.msra.mxu0 0.0
          %3488 = vmatprep.subr.mxu0 0.0
          %3489 = vmatpush1.msra.mxu0 0.0
          %3490 = vmatprep.subr.mxu0 0.0
          %3491 = vmatpush1.msra.mxu0 0.0
          %3492 = vmatprep.subr.mxu0 0.0
          %3493 = vmatpush1.msra.mxu0 0.0
          %3494 = vmatprep.subr.mxu0 0.0
          %3495 = vmatpush1.msra.mxu0 0.0
          %3496 = vmatprep.subr.mxu0 0.0
          %3497 = vmatpush1.msra.mxu0 0.0
          %3498 = vmatprep.subr.mxu0 0.0
          %3499 = vmatpush1.msra.mxu0 0.0
          %3500 = vmatprep.subr.mxu0 0.0
          %3501 = vmatpush1.msra.mxu0 0.0
          %3502 = vmatprep.subr.mxu0 0.0
          %3503 = vmatpush1.msra.mxu0 0.0
          %3504 = vmatprep.mubr.f32.mxu0 0.0
          %3505 = vmatmul.mubr.f32.gmra.mrb[0].mxu0 %v3372
          %v3506 = vpop.f32.mrb[0].mxu0
          %v3507 = vadd.f32 0.0, %v3506
          %v3508 = vpop.f32.mrb[0].mxu0
          %v3509 = vadd.f32 0.0, %v3508
          %3510 = vdwg.mxu0
          %3511 = vmatprep.subr.mxu0 %v3379
          %3512 = vmatpush1.msra.mxu0 %v3378
          %3513 = vmatprep.subr.mxu0 %v3383
          %3514 = vmatpush1.msra.mxu0 %v3382
          %3515 = vmatprep.subr.mxu0 %v3387
          %3516 = vmatpush1.msra.mxu0 %v3386
          %3517 = vmatprep.subr.mxu0 %v3391
          %3518 = vmatpush1.msra.mxu0 %v3390
          %3519 = vmatprep.subr.mxu0 %v3395
          %3520 = vmatpush1.msra.mxu0 %v3394
          %3521 = vmatprep.subr.mxu0 %v3399
          %3522 = vmatpush1.msra.mxu0 %v3398
          %3523 = vmatprep.subr.mxu0 %v3403
          %3524 = vmatpush1.msra.mxu0 %v3402
          %3525 = vmatprep.subr.mxu0 %v3407
          %3526 = vmatpush1.msra.mxu0 %v3406
          %3527 = vmatprep.subr.mxu0 %v3411
          %3528 = vmatpush1.msra.mxu0 %v3410
          %3529 = vmatprep.subr.mxu0 %v3415
          %3530 = vmatpush1.msra.mxu0 %v3414
          %3531 = vmatprep.subr.mxu0 %v3419
          %3532 = vmatpush1.msra.mxu0 %v3418
          %3533 = vmatprep.subr.mxu0 %v3423
          %3534 = vmatpush1.msra.mxu0 %v3422
          %3535 = vmatprep.subr.mxu0 %v3427
          %3536 = vmatpush1.msra.mxu0 %v3426
          %3537 = vmatprep.subr.mxu0 %v3431
          %3538 = vmatpush1.msra.mxu0 %v3430
          %3539 = vmatprep.subr.mxu0 %v3435
          %3540 = vmatpush1.msra.mxu0 %v3434
          %3541 = vmatprep.subr.mxu0 %v3439
          %3542 = vmatpush1.msra.mxu0 %v3438
          %3543 = vmatprep.subr.mxu0 0.0
          %3544 = vmatpush1.msra.mxu0 0.0
          %3545 = vmatprep.subr.mxu0 0.0
          %3546 = vmatpush1.msra.mxu0 0.0
          %3547 = vmatprep.subr.mxu0 0.0
          %3548 = vmatpush1.msra.mxu0 0.0
          %3549 = vmatprep.subr.mxu0 0.0
          %3550 = vmatpush1.msra.mxu0 0.0
          %3551 = vmatprep.subr.mxu0 0.0
          %3552 = vmatpush1.msra.mxu0 0.0
          %3553 = vmatprep.subr.mxu0 0.0
          %3554 = vmatpush1.msra.mxu0 0.0
          %3555 = vmatprep.subr.mxu0 0.0
          %3556 = vmatpush1.msra.mxu0 0.0
          %3557 = vmatprep.subr.mxu0 0.0
          %3558 = vmatpush1.msra.mxu0 0.0
          %3559 = vmatprep.subr.mxu0 0.0
          %3560 = vmatpush1.msra.mxu0 0.0
          %3561 = vmatprep.subr.mxu0 0.0
          %3562 = vmatpush1.msra.mxu0 0.0
          %3563 = vmatprep.subr.mxu0 0.0
          %3564 = vmatpush1.msra.mxu0 0.0
          %3565 = vmatprep.subr.mxu0 0.0
          %3566 = vmatpush1.msra.mxu0 0.0
          %3567 = vmatprep.subr.mxu0 0.0
          %3568 = vmatpush1.msra.mxu0 0.0
          %3569 = vmatprep.subr.mxu0 0.0
          %3570 = vmatpush1.msra.mxu0 0.0
          %3571 = vmatprep.subr.mxu0 0.0
          %3572 = vmatpush1.msra.mxu0 0.0
          %3573 = vmatprep.subr.mxu0 0.0
          %3574 = vmatpush1.msra.mxu0 0.0
          %3575 = vmatprep.mubr.f32.mxu0 0.0
          %3576 = vmatmul.mubr.f32.gmra.mrb[0].mxu0 %v3372
          %v3577 = vpop.f32.mrb[0].mxu0
          %v3578 = vadd.f32 0.0, %v3577
          %v3579 = vpop.f32.mrb[0].mxu0
          %v3580 = vadd.f32 0.0, %v3579
          %3581 = vdwg.mxu0
          %v3586 = vcombine.low %v3507, %v3509
          %v3587 = vcombine.low %v3578, %v3580
          %v3589 = vunpack.c.l.s4 1983009808
          %v3590 = vunpack.c.0.s8 %v3589
          %v3591 = vlaneseq
          %v3592 = vshrl.u32 %v3591, 7
          %v3593 = vsub.s32 %v3590, %v3592
          %v3594 = vrot.slane %v3586, %v3593
          %v3596 = vunpack.c.l.s4 1983009808
          %v3597 = vunpack.c.0.s8 %v3596
          %v3598 = vlaneseq
          %v3599 = vshrl.u32 %v3598, 7
          %v3600 = vsub.s32 %v3597, %v3599
          %v3601 = vrot.slane %v3587, %v3600
          %v3602 = vcombine.low %v3594, %v3601
          %v3604 = vadd.f32 %v3375, %v3602
          %v3605 = vxor.u32 %v3604, 2147483648
          %v3606 = vmul.f32 %v3605, 1.442695
          %v3607 = vpow.pop %v3606
          %v3608 = vadd.f32 %v3607, 1.0
          %v3609 = vrcp.pop %v3608
          %v3610 = vmul.f32 1.0, %v3609
          %v3612 = vrot.slane %v3604, 6
          %v3614 = vtanh.pop %v3612
          %v3616 = vrot.slane %v3610, 2
          %v3618 = vmul.f32 %v3616, %v3373
          %v3619 = vmul.f32 %v3610, %v3614
          %v3620 = vadd.f32 %v3618, %v3619
          %v3621 = vtanh.pop %v3620
          %v3622 = vrot.slane %v3610, 4
          %v3624 = vmul.f32 %v3622, %v3621
          %s3625 = sadd.s32 %s439, 7
          %v3626 = vstv %s3625
          %vm3627 = vcmp.lt.s32.totalorder %v3626, %v443
          %v3628 = vsel %vm3627, %v3624, %v3372
          %v3629 = vsel %vm3627, %v3620, %v3373
          %v3630 = vsel %vm3627, %v3624, 0.0
          %v3631 = vpack.c.bf16 %v3630, %v3630
          %v3632 = vld [vmem:[%s406] sm:$0xf]
          %v3633 = vld [vmem:[%s406 + $0x4] sm:$0xf]
          %v3634 = vld [vmem:[%s406 + $0x8] sm:$0xf]
          %v3635 = vld [vmem:[%s406 + $0xc] sm:$0xf]
          %v3636 = vld [vmem:[%s406 + $0x10] sm:$0xf]
          %v3637 = vld [vmem:[%s406 + $0x14] sm:$0xf]
          %v3638 = vld [vmem:[%s406 + $0x18] sm:$0xf]
          %v3639 = vld [vmem:[%s406 + $0x1c] sm:$0xf]
          %v3640 = vld [vmem:[%s406 + $0x20] sm:$0xf]
          %v3641 = vld [vmem:[%s406 + $0x24] sm:$0xf]
          %v3642 = vld [vmem:[%s406 + $0x28] sm:$0xf]
          %v3643 = vld [vmem:[%s406 + $0x2c] sm:$0xf]
          %v3644 = vld [vmem:[%s406 + $0x30] sm:$0xf]
          %v3645 = vld [vmem:[%s406 + $0x34] sm:$0xf]
          %v3646 = vld [vmem:[%s406 + $0x38] sm:$0xf]
          %v3647 = vld [vmem:[%s406 + $0x3c] sm:$0xf]
          %v3664 = vunpack.c.l.b16 %v3632
          %v3665 = vunpack.c.l.b16 %v3633
          %v3666 = vunpack.c.l.b16 %v3634
          %v3667 = vunpack.c.l.b16 %v3635
          %v3668 = vunpack.c.l.b16 %v3636
          %v3669 = vunpack.c.l.b16 %v3637
          %v3670 = vunpack.c.l.b16 %v3638
          %v3671 = vunpack.c.l.b16 %v3639
          %v3672 = vunpack.c.l.b16 %v3640
          %v3673 = vunpack.c.l.b16 %v3641
          %v3674 = vunpack.c.l.b16 %v3642
          %v3675 = vunpack.c.l.b16 %v3643
          %v3676 = vunpack.c.l.b16 %v3644
          %v3677 = vunpack.c.l.b16 %v3645
          %v3678 = vunpack.c.l.b16 %v3646
          %v3679 = vunpack.c.l.b16 %v3647
          %v3680 = vpack.c.b16 %v3665, %v3664
          %v3681 = vpack.c.b16 %v3667, %v3666
          %v3682 = vpack.c.b16 %v3669, %v3668
          %v3683 = vpack.c.b16 %v3671, %v3670
          %v3684 = vpack.c.b16 %v3673, %v3672
          %v3685 = vpack.c.b16 %v3675, %v3674
          %v3686 = vpack.c.b16 %v3677, %v3676
          %v3687 = vpack.c.b16 %v3679, %v3678
          %3696 = vmatprep.subr.bf16.mxu0 0
          %3697 = vmatpush1.bf16.msra.mxu0 %v3680
          %3698 = vmatprep.subr.bf16.mxu0 0
          %3699 = vmatpush1.bf16.msra.mxu0 %v3681
          %3700 = vmatprep.subr.bf16.mxu0 0
          %3701 = vmatpush1.bf16.msra.mxu0 %v3682
          %3702 = vmatprep.subr.bf16.mxu0 0
          %3703 = vmatpush1.bf16.msra.mxu0 %v3683
          %3704 = vmatprep.subr.bf16.mxu0 0
          %3705 = vmatpush1.bf16.msra.mxu0 %v3684
          %3706 = vmatprep.subr.bf16.mxu0 0
          %3707 = vmatpush1.bf16.msra.mxu0 %v3685
          %3708 = vmatprep.subr.bf16.mxu0 0
          %3709 = vmatpush1.bf16.msra.mxu0 %v3686
          %3710 = vmatprep.subr.bf16.mxu0 0
          %3711 = vmatpush1.bf16.msra.mxu0 %v3687
          %3712 = vmatprep.subr.bf16.mxu0 0
          %3713 = vmatpush1.bf16.msra.mxu0 0
          %3714 = vmatprep.subr.bf16.mxu0 0
          %3715 = vmatpush1.bf16.msra.mxu0 0
          %3716 = vmatprep.subr.bf16.mxu0 0
          %3717 = vmatpush1.bf16.msra.mxu0 0
          %3718 = vmatprep.subr.bf16.mxu0 0
          %3719 = vmatpush1.bf16.msra.mxu0 0
          %3720 = vmatprep.subr.bf16.mxu0 0
          %3721 = vmatpush1.bf16.msra.mxu0 0
          %3722 = vmatprep.subr.bf16.mxu0 0
          %3723 = vmatpush1.bf16.msra.mxu0 0
          %3724 = vmatprep.subr.bf16.mxu0 0
          %3725 = vmatpush1.bf16.msra.mxu0 0
          %3726 = vmatprep.subr.bf16.mxu0 0
          %3727 = vmatpush1.bf16.msra.mxu0 0
          %3728 = vmatprep.mubr.bf16.mxu0 0
          %3729 = vmatmul.mubr.bf16.gmra.mrb[0].mxu0 %v3631
          %v3730 = vpop.f32.mrb[0].mxu0
          %v3731 = vadd.f32 %v449, %v3730
          %v3732 = vpop.f32.mrb[0].mxu0
          %v3733 = vpop.f32.mrb[0].mxu0
          %v3734 = vpop.f32.mrb[0].mxu0
          %3735 = vdwg.mxu0
          %s3736 = scalar_lea.vmem %s422, 14
          %3737 = vst [vmem:[%s3736] sm:$0x3] %v3731
          %s3738 = scalar_lea.vmem %s341, 48 [#allocation4]
          %v3739 = vld [vmem:[%s3738] sm:$0xff]
          %v3740 = vld [vmem:[%s349] sm:$0xff]
          %v3741 = vld [vmem:[%s349 + $0x8] sm:$0xff]
          %v3742 = vld [vmem:[%s349 + $0x10] sm:$0xff]
          %v3743 = vld [vmem:[%s349 + $0x18] sm:$0xff]
          %v3744 = vld [vmem:[%s349 + $0x20] sm:$0xff]
          %v3745 = vld [vmem:[%s349 + $0x28] sm:$0xff]
          %v3746 = vld [vmem:[%s349 + $0x30] sm:$0xff]
          %v3747 = vld [vmem:[%s349 + $0x38] sm:$0xff]
          %v3748 = vld [vmem:[%s349 + $0x40] sm:$0xff]
          %v3749 = vld [vmem:[%s349 + $0x48] sm:$0xff]
          %v3750 = vld [vmem:[%s349 + $0x50] sm:$0xff]
          %v3751 = vld [vmem:[%s349 + $0x58] sm:$0xff]
          %v3752 = vld [vmem:[%s349 + $0x60] sm:$0xff]
          %v3753 = vld [vmem:[%s349 + $0x68] sm:$0xff]
          %v3754 = vld [vmem:[%s349 + $0x70] sm:$0xff]
          %v3755 = vld [vmem:[%s349 + $0x78] sm:$0xff]
          %v3756 = vld [vmem:[%s349 + $0x80] sm:$0xff]
          %v3757 = vld [vmem:[%s349 + $0x88] sm:$0xff]
          %v3758 = vld [vmem:[%s349 + $0x90] sm:$0xff]
          %v3759 = vld [vmem:[%s349 + $0x98] sm:$0xff]
          %v3760 = vld [vmem:[%s349 + $0xa0] sm:$0xff]
          %v3761 = vld [vmem:[%s349 + $0xa8] sm:$0xff]
          %v3762 = vld [vmem:[%s349 + $0xb0] sm:$0xff]
          %v3763 = vld [vmem:[%s349 + $0xb8] sm:$0xff]
          %v3764 = vld [vmem:[%s349 + $0xc0] sm:$0xff]
          %v3765 = vld [vmem:[%s349 + $0xc8] sm:$0xff]
          %v3766 = vld [vmem:[%s349 + $0xd0] sm:$0xff]
          %v3767 = vld [vmem:[%s349 + $0xd8] sm:$0xff]
          %v3768 = vld [vmem:[%s349 + $0xe0] sm:$0xff]
          %v3769 = vld [vmem:[%s349 + $0xe8] sm:$0xff]
          %v3770 = vld [vmem:[%s349 + $0xf0] sm:$0xff]
          %v3771 = vld [vmem:[%s349 + $0xf8] sm:$0xff]
          %v3772 = vld [vmem:[%s349 + $0x100] sm:$0xff]
          %v3773 = vld [vmem:[%s349 + $0x108] sm:$0xff]
          %v3774 = vld [vmem:[%s349 + $0x110] sm:$0xff]
          %v3775 = vld [vmem:[%s349 + $0x118] sm:$0xff]
          %v3776 = vld [vmem:[%s349 + $0x120] sm:$0xff]
          %v3777 = vld [vmem:[%s349 + $0x128] sm:$0xff]
          %v3778 = vld [vmem:[%s349 + $0x130] sm:$0xff]
          %v3779 = vld [vmem:[%s349 + $0x138] sm:$0xff]
          %v3780 = vld [vmem:[%s349 + $0x140] sm:$0xff]
          %v3781 = vld [vmem:[%s349 + $0x148] sm:$0xff]
          %v3782 = vld [vmem:[%s349 + $0x150] sm:$0xff]
          %v3783 = vld [vmem:[%s349 + $0x158] sm:$0xff]
          %v3784 = vld [vmem:[%s349 + $0x160] sm:$0xff]
          %v3785 = vld [vmem:[%s349 + $0x168] sm:$0xff]
          %v3786 = vld [vmem:[%s349 + $0x170] sm:$0xff]
          %v3787 = vld [vmem:[%s349 + $0x178] sm:$0xff]
          %v3788 = vld [vmem:[%s349 + $0x180] sm:$0xff]
          %v3789 = vld [vmem:[%s349 + $0x188] sm:$0xff]
          %v3790 = vld [vmem:[%s349 + $0x190] sm:$0xff]
          %v3791 = vld [vmem:[%s349 + $0x198] sm:$0xff]
          %v3792 = vld [vmem:[%s349 + $0x1a0] sm:$0xff]
          %v3793 = vld [vmem:[%s349 + $0x1a8] sm:$0xff]
          %v3794 = vld [vmem:[%s349 + $0x1b0] sm:$0xff]
          %v3795 = vld [vmem:[%s349 + $0x1b8] sm:$0xff]
          %v3796 = vld [vmem:[%s349 + $0x1c0] sm:$0xff]
          %v3797 = vld [vmem:[%s349 + $0x1c8] sm:$0xff]
          %v3798 = vld [vmem:[%s349 + $0x1d0] sm:$0xff]
          %v3799 = vld [vmem:[%s349 + $0x1d8] sm:$0xff]
          %v3800 = vld [vmem:[%s349 + $0x1e0] sm:$0xff]
          %v3801 = vld [vmem:[%s349 + $0x1e8] sm:$0xff]
          %v3802 = vld [vmem:[%s349 + $0x1f0] sm:$0xff]
          %v3803 = vld [vmem:[%s349 + $0x1f8] sm:$0xff]
          %3804 = vmatprep.subr.mxu0 %v3741
          %3805 = vmatpush1.msra.mxu0 %v3740
          %3806 = vmatprep.subr.mxu0 %v3745
          %3807 = vmatpush1.msra.mxu0 %v3744
          %3808 = vmatprep.subr.mxu0 %v3749
          %3809 = vmatpush1.msra.mxu0 %v3748
          %3810 = vmatprep.subr.mxu0 %v3753
          %3811 = vmatpush1.msra.mxu0 %v3752
          %3812 = vmatprep.subr.mxu0 %v3757
          %3813 = vmatpush1.msra.mxu0 %v3756
          %3814 = vmatprep.subr.mxu0 %v3761
          %3815 = vmatpush1.msra.mxu0 %v3760
          %3816 = vmatprep.subr.mxu0 %v3765
          %3817 = vmatpush1.msra.mxu0 %v3764
          %3818 = vmatprep.subr.mxu0 %v3769
          %3819 = vmatpush1.msra.mxu0 %v3768
          %3820 = vmatprep.subr.mxu0 %v3773
          %3821 = vmatpush1.msra.mxu0 %v3772
          %3822 = vmatprep.subr.mxu0 %v3777
          %3823 = vmatpush1.msra.mxu0 %v3776
          %3824 = vmatprep.subr.mxu0 %v3781
          %3825 = vmatpush1.msra.mxu0 %v3780
          %3826 = vmatprep.subr.mxu0 %v3785
          %3827 = vmatpush1.msra.mxu0 %v3784
          %3828 = vmatprep.subr.mxu0 %v3789
          %3829 = vmatpush1.msra.mxu0 %v3788
          %3830 = vmatprep.subr.mxu0 %v3793
          %3831 = vmatpush1.msra.mxu0 %v3792
          %3832 = vmatprep.subr.mxu0 %v3797
          %3833 = vmatpush1.msra.mxu0 %v3796
          %3834 = vmatprep.subr.mxu0 %v3801
          %3835 = vmatpush1.msra.mxu0 %v3800
          %3836 = vmatprep.subr.mxu0 0.0
          %3837 = vmatpush1.msra.mxu0 0.0
          %3838 = vmatprep.subr.mxu0 0.0
          %3839 = vmatpush1.msra.mxu0 0.0
          %3840 = vmatprep.subr.mxu0 0.0
          %3841 = vmatpush1.msra.mxu0 0.0
          %3842 = vmatprep.subr.mxu0 0.0
          %3843 = vmatpush1.msra.mxu0 0.0
          %3844 = vmatprep.subr.mxu0 0.0
          %3845 = vmatpush1.msra.mxu0 0.0
          %3846 = vmatprep.subr.mxu0 0.0
          %3847 = vmatpush1.msra.mxu0 0.0
          %3848 = vmatprep.subr.mxu0 0.0
          %3849 = vmatpush1.msra.mxu0 0.0
          %3850 = vmatprep.subr.mxu0 0.0
          %3851 = vmatpush1.msra.mxu0 0.0
          %3852 = vmatprep.subr.mxu0 0.0
          %3853 = vmatpush1.msra.mxu0 0.0
          %3854 = vmatprep.subr.mxu0 0.0
          %3855 = vmatpush1.msra.mxu0 0.0
          %3856 = vmatprep.subr.mxu0 0.0
          %3857 = vmatpush1.msra.mxu0 0.0
          %3858 = vmatprep.subr.mxu0 0.0
          %3859 = vmatpush1.msra.mxu0 0.0
          %3860 = vmatprep.subr.mxu0 0.0
          %3861 = vmatpush1.msra.mxu0 0.0
          %3862 = vmatprep.subr.mxu0 0.0
          %3863 = vmatpush1.msra.mxu0 0.0
          %3864 = vmatprep.subr.mxu0 0.0
          %3865 = vmatpush1.msra.mxu0 0.0
          %3866 = vmatprep.subr.mxu0 0.0
          %3867 = vmatpush1.msra.mxu0 0.0
          %3868 = vmatprep.mubr.f32.mxu0 0.0
          %3869 = vmatmul.mubr.f32.gmra.mrb[0].mxu0 %v3628
          %v3870 = vpop.f32.mrb[0].mxu0
          %v3871 = vadd.f32 0.0, %v3870
          %v3872 = vpop.f32.mrb[0].mxu0
          %v3873 = vadd.f32 0.0, %v3872
          %3874 = vdwg.mxu0
          %3875 = vmatprep.subr.mxu0 %v3743
          %3876 = vmatpush1.msra.mxu0 %v3742
          %3877 = vmatprep.subr.mxu0 %v3747
          %3878 = vmatpush1.msra.mxu0 %v3746
          %3879 = vmatprep.subr.mxu0 %v3751
          %3880 = vmatpush1.msra.mxu0 %v3750
          %3881 = vmatprep.subr.mxu0 %v3755
          %3882 = vmatpush1.msra.mxu0 %v3754
          %3883 = vmatprep.subr.mxu0 %v3759
          %3884 = vmatpush1.msra.mxu0 %v3758
          %3885 = vmatprep.subr.mxu0 %v3763
          %3886 = vmatpush1.msra.mxu0 %v3762
          %3887 = vmatprep.subr.mxu0 %v3767
          %3888 = vmatpush1.msra.mxu0 %v3766
          %3889 = vmatprep.subr.mxu0 %v3771
          %3890 = vmatpush1.msra.mxu0 %v3770
          %3891 = vmatprep.subr.mxu0 %v3775
          %3892 = vmatpush1.msra.mxu0 %v3774
          %3893 = vmatprep.subr.mxu0 %v3779
          %3894 = vmatpush1.msra.mxu0 %v3778
          %3895 = vmatprep.subr.mxu0 %v3783
          %3896 = vmatpush1.msra.mxu0 %v3782
          %3897 = vmatprep.subr.mxu0 %v3787
          %3898 = vmatpush1.msra.mxu0 %v3786
          %3899 = vmatprep.subr.mxu0 %v3791
          %3900 = vmatpush1.msra.mxu0 %v3790
          %3901 = vmatprep.subr.mxu0 %v3795
          %3902 = vmatpush1.msra.mxu0 %v3794
          %3903 = vmatprep.subr.mxu0 %v3799
          %3904 = vmatpush1.msra.mxu0 %v3798
          %3905 = vmatprep.subr.mxu0 %v3803
          %3906 = vmatpush1.msra.mxu0 %v3802
          %3907 = vmatprep.subr.mxu0 0.0
          %3908 = vmatpush1.msra.mxu0 0.0
          %3909 = vmatprep.subr.mxu0 0.0
          %3910 = vmatpush1.msra.mxu0 0.0
          %3911 = vmatprep.subr.mxu0 0.0
          %3912 = vmatpush1.msra.mxu0 0.0
          %3913 = vmatprep.subr.mxu0 0.0
          %3914 = vmatpush1.msra.mxu0 0.0
          %3915 = vmatprep.subr.mxu0 0.0
          %3916 = vmatpush1.msra.mxu0 0.0
          %3917 = vmatprep.subr.mxu0 0.0
          %3918 = vmatpush1.msra.mxu0 0.0
          %3919 = vmatprep.subr.mxu0 0.0
          %3920 = vmatpush1.msra.mxu0 0.0
          %3921 = vmatprep.subr.mxu0 0.0
          %3922 = vmatpush1.msra.mxu0 0.0
          %3923 = vmatprep.subr.mxu0 0.0
          %3924 = vmatpush1.msra.mxu0 0.0
          %3925 = vmatprep.subr.mxu0 0.0
          %3926 = vmatpush1.msra.mxu0 0.0
          %3927 = vmatprep.subr.mxu0 0.0
          %3928 = vmatpush1.msra.mxu0 0.0
          %3929 = vmatprep.subr.mxu0 0.0
          %3930 = vmatpush1.msra.mxu0 0.0
          %3931 = vmatprep.subr.mxu0 0.0
          %3932 = vmatpush1.msra.mxu0 0.0
          %3933 = vmatprep.subr.mxu0 0.0
          %3934 = vmatpush1.msra.mxu0 0.0
          %3935 = vmatprep.subr.mxu0 0.0
          %3936 = vmatpush1.msra.mxu0 0.0
          %3937 = vmatprep.subr.mxu0 0.0
          %3938 = vmatpush1.msra.mxu0 0.0
          %3939 = vmatprep.mubr.f32.mxu0 0.0
          %3940 = vmatmul.mubr.f32.gmra.mrb[0].mxu0 %v3628
          %v3941 = vpop.f32.mrb[0].mxu0
          %v3942 = vadd.f32 0.0, %v3941
          %v3943 = vpop.f32.mrb[0].mxu0
          %v3944 = vadd.f32 0.0, %v3943
          %3945 = vdwg.mxu0
          %v3950 = vcombine.low %v3871, %v3873
          %v3951 = vcombine.low %v3942, %v3944
          %v3953 = vunpack.c.l.s4 1983009808
          %v3954 = vunpack.c.0.s8 %v3953
          %v3955 = vlaneseq
          %v3956 = vshrl.u32 %v3955, 7
          %v3957 = vsub.s32 %v3954, %v3956
          %v3958 = vrot.slane %v3950, %v3957
          %v3960 = vunpack.c.l.s4 1983009808
          %v3961 = vunpack.c.0.s8 %v3960
          %v3962 = vlaneseq
          %v3963 = vshrl.u32 %v3962, 7
          %v3964 = vsub.s32 %v3961, %v3963
          %v3965 = vrot.slane %v3951, %v3964
          %v3966 = vcombine.low %v3958, %v3965
          %v3968 = vadd.f32 %v3739, %v3966
          %v3969 = vxor.u32 %v3968, 2147483648
          %v3970 = vmul.f32 %v3969, 1.442695
          %v3971 = vpow.pop %v3970
          %v3972 = vadd.f32 %v3971, 1.0
          %v3973 = vrcp.pop %v3972
          %v3974 = vmul.f32 1.0, %v3973
          %v3976 = vrot.slane %v3968, 6
          %v3978 = vtanh.pop %v3976
          %v3980 = vrot.slane %v3974, 2
          %v3982 = vmul.f32 %v3980, %v3629
          %v3983 = vmul.f32 %v3974, %v3978
          %v3984 = vadd.f32 %v3982, %v3983
          %v3985 = vtanh.pop %v3984
          %v3986 = vrot.slane %v3974, 4
          %v3988 = vmul.f32 %v3986, %v3985
          %s3989 = sadd.s32 %s439, 6
          %v3990 = vstv %s3989
          %vm3991 = vcmp.lt.s32.totalorder %v3990, %v443
          %v3992 = vsel %vm3991, %v3988, %v3628
          %v3993 = vsel %vm3991, %v3984, %v3629
          %v3994 = vsel %vm3991, %v3988, 0.0
          %v3995 = vpack.c.bf16 %v3994, %v3994
          %v3996 = vld [vmem:[%s406] sm:$0xf]
          %v3997 = vld [vmem:[%s406 + $0x4] sm:$0xf]
          %v3998 = vld [vmem:[%s406 + $0x8] sm:$0xf]
          %v3999 = vld [vmem:[%s406 + $0xc] sm:$0xf]
          %v4000 = vld [vmem:[%s406 + $0x10] sm:$0xf]
          %v4001 = vld [vmem:[%s406 + $0x14] sm:$0xf]
          %v4002 = vld [vmem:[%s406 + $0x18] sm:$0xf]
          %v4003 = vld [vmem:[%s406 + $0x1c] sm:$0xf]
          %v4004 = vld [vmem:[%s406 + $0x20] sm:$0xf]
          %v4005 = vld [vmem:[%s406 + $0x24] sm:$0xf]
          %v4006 = vld [vmem:[%s406 + $0x28] sm:$0xf]
          %v4007 = vld [vmem:[%s406 + $0x2c] sm:$0xf]
          %v4008 = vld [vmem:[%s406 + $0x30] sm:$0xf]
          %v4009 = vld [vmem:[%s406 + $0x34] sm:$0xf]
          %v4010 = vld [vmem:[%s406 + $0x38] sm:$0xf]
          %v4011 = vld [vmem:[%s406 + $0x3c] sm:$0xf]
          %v4028 = vunpack.c.l.b16 %v3996
          %v4029 = vunpack.c.l.b16 %v3997
          %v4030 = vunpack.c.l.b16 %v3998
          %v4031 = vunpack.c.l.b16 %v3999
          %v4032 = vunpack.c.l.b16 %v4000
          %v4033 = vunpack.c.l.b16 %v4001
          %v4034 = vunpack.c.l.b16 %v4002
          %v4035 = vunpack.c.l.b16 %v4003
          %v4036 = vunpack.c.l.b16 %v4004
          %v4037 = vunpack.c.l.b16 %v4005
          %v4038 = vunpack.c.l.b16 %v4006
          %v4039 = vunpack.c.l.b16 %v4007
          %v4040 = vunpack.c.l.b16 %v4008
          %v4041 = vunpack.c.l.b16 %v4009
          %v4042 = vunpack.c.l.b16 %v4010
          %v4043 = vunpack.c.l.b16 %v4011
          %v4044 = vpack.c.b16 %v4029, %v4028
          %v4045 = vpack.c.b16 %v4031, %v4030
          %v4046 = vpack.c.b16 %v4033, %v4032
          %v4047 = vpack.c.b16 %v4035, %v4034
          %v4048 = vpack.c.b16 %v4037, %v4036
          %v4049 = vpack.c.b16 %v4039, %v4038
          %v4050 = vpack.c.b16 %v4041, %v4040
          %v4051 = vpack.c.b16 %v4043, %v4042
          %4060 = vmatprep.subr.bf16.mxu0 0
          %4061 = vmatpush1.bf16.msra.mxu0 %v4044
          %4062 = vmatprep.subr.bf16.mxu0 0
          %4063 = vmatpush1.bf16.msra.mxu0 %v4045
          %4064 = vmatprep.subr.bf16.mxu0 0
          %4065 = vmatpush1.bf16.msra.mxu0 %v4046
          %4066 = vmatprep.subr.bf16.mxu0 0
          %4067 = vmatpush1.bf16.msra.mxu0 %v4047
          %4068 = vmatprep.subr.bf16.mxu0 0
          %4069 = vmatpush1.bf16.msra.mxu0 %v4048
          %4070 = vmatprep.subr.bf16.mxu0 0
          %4071 = vmatpush1.bf16.msra.mxu0 %v4049
          %4072 = vmatprep.subr.bf16.mxu0 0
          %4073 = vmatpush1.bf16.msra.mxu0 %v4050
          %4074 = vmatprep.subr.bf16.mxu0 0
          %4075 = vmatpush1.bf16.msra.mxu0 %v4051
          %4076 = vmatprep.subr.bf16.mxu0 0
          %4077 = vmatpush1.bf16.msra.mxu0 0
          %4078 = vmatprep.subr.bf16.mxu0 0
          %4079 = vmatpush1.bf16.msra.mxu0 0
          %4080 = vmatprep.subr.bf16.mxu0 0
          %4081 = vmatpush1.bf16.msra.mxu0 0
          %4082 = vmatprep.subr.bf16.mxu0 0
          %4083 = vmatpush1.bf16.msra.mxu0 0
          %4084 = vmatprep.subr.bf16.mxu0 0
          %4085 = vmatpush1.bf16.msra.mxu0 0
          %4086 = vmatprep.subr.bf16.mxu0 0
          %4087 = vmatpush1.bf16.msra.mxu0 0
          %4088 = vmatprep.subr.bf16.mxu0 0
          %4089 = vmatpush1.bf16.msra.mxu0 0
          %4090 = vmatprep.subr.bf16.mxu0 0
          %4091 = vmatpush1.bf16.msra.mxu0 0
          %4092 = vmatprep.mubr.bf16.mxu0 0
          %4093 = vmatmul.mubr.bf16.gmra.mrb[0].mxu0 %v3995
          %v4094 = vpop.f32.mrb[0].mxu0
          %v4095 = vadd.f32 %v449, %v4094
          %v4096 = vpop.f32.mrb[0].mxu0
          %v4097 = vpop.f32.mrb[0].mxu0
          %v4098 = vpop.f32.mrb[0].mxu0
          %4099 = vdwg.mxu0
          %s4100 = scalar_lea.vmem %s422, 12
          %4101 = vst [vmem:[%s4100] sm:$0x3] %v4095
          %s4102 = scalar_lea.vmem %s341, 40 [#allocation4]
          %v4103 = vld [vmem:[%s4102] sm:$0xff]
          %v4104 = vld [vmem:[%s349] sm:$0xff]
          %v4105 = vld [vmem:[%s349 + $0x8] sm:$0xff]
          %v4106 = vld [vmem:[%s349 + $0x10] sm:$0xff]
          %v4107 = vld [vmem:[%s349 + $0x18] sm:$0xff]
          %v4108 = vld [vmem:[%s349 + $0x20] sm:$0xff]
          %v4109 = vld [vmem:[%s349 + $0x28] sm:$0xff]
          %v4110 = vld [vmem:[%s349 + $0x30] sm:$0xff]
          %v4111 = vld [vmem:[%s349 + $0x38] sm:$0xff]
          %v4112 = vld [vmem:[%s349 + $0x40] sm:$0xff]
          %v4113 = vld [vmem:[%s349 + $0x48] sm:$0xff]
          %v4114 = vld [vmem:[%s349 + $0x50] sm:$0xff]
          %v4115 = vld [vmem:[%s349 + $0x58] sm:$0xff]
          %v4116 = vld [vmem:[%s349 + $0x60] sm:$0xff]
          %v4117 = vld [vmem:[%s349 + $0x68] sm:$0xff]
          %v4118 = vld [vmem:[%s349 + $0x70] sm:$0xff]
          %v4119 = vld [vmem:[%s349 + $0x78] sm:$0xff]
          %v4120 = vld [vmem:[%s349 + $0x80] sm:$0xff]
          %v4121 = vld [vmem:[%s349 + $0x88] sm:$0xff]
          %v4122 = vld [vmem:[%s349 + $0x90] sm:$0xff]
          %v4123 = vld [vmem:[%s349 + $0x98] sm:$0xff]
          %v4124 = vld [vmem:[%s349 + $0xa0] sm:$0xff]
          %v4125 = vld [vmem:[%s349 + $0xa8] sm:$0xff]
          %v4126 = vld [vmem:[%s349 + $0xb0] sm:$0xff]
          %v4127 = vld [vmem:[%s349 + $0xb8] sm:$0xff]
          %v4128 = vld [vmem:[%s349 + $0xc0] sm:$0xff]
          %v4129 = vld [vmem:[%s349 + $0xc8] sm:$0xff]
          %v4130 = vld [vmem:[%s349 + $0xd0] sm:$0xff]
          %v4131 = vld [vmem:[%s349 + $0xd8] sm:$0xff]
          %v4132 = vld [vmem:[%s349 + $0xe0] sm:$0xff]
          %v4133 = vld [vmem:[%s349 + $0xe8] sm:$0xff]
          %v4134 = vld [vmem:[%s349 + $0xf0] sm:$0xff]
          %v4135 = vld [vmem:[%s349 + $0xf8] sm:$0xff]
          %v4136 = vld [vmem:[%s349 + $0x100] sm:$0xff]
          %v4137 = vld [vmem:[%s349 + $0x108] sm:$0xff]
          %v4138 = vld [vmem:[%s349 + $0x110] sm:$0xff]
          %v4139 = vld [vmem:[%s349 + $0x118] sm:$0xff]
          %v4140 = vld [vmem:[%s349 + $0x120] sm:$0xff]
          %v4141 = vld [vmem:[%s349 + $0x128] sm:$0xff]
          %v4142 = vld [vmem:[%s349 + $0x130] sm:$0xff]
          %v4143 = vld [vmem:[%s349 + $0x138] sm:$0xff]
          %v4144 = vld [vmem:[%s349 + $0x140] sm:$0xff]
          %v4145 = vld [vmem:[%s349 + $0x148] sm:$0xff]
          %v4146 = vld [vmem:[%s349 + $0x150] sm:$0xff]
          %v4147 = vld [vmem:[%s349 + $0x158] sm:$0xff]
          %v4148 = vld [vmem:[%s349 + $0x160] sm:$0xff]
          %v4149 = vld [vmem:[%s349 + $0x168] sm:$0xff]
          %v4150 = vld [vmem:[%s349 + $0x170] sm:$0xff]
          %v4151 = vld [vmem:[%s349 + $0x178] sm:$0xff]
          %v4152 = vld [vmem:[%s349 + $0x180] sm:$0xff]
          %v4153 = vld [vmem:[%s349 + $0x188] sm:$0xff]
          %v4154 = vld [vmem:[%s349 + $0x190] sm:$0xff]
          %v4155 = vld [vmem:[%s349 + $0x198] sm:$0xff]
          %v4156 = vld [vmem:[%s349 + $0x1a0] sm:$0xff]
          %v4157 = vld [vmem:[%s349 + $0x1a8] sm:$0xff]
          %v4158 = vld [vmem:[%s349 + $0x1b0] sm:$0xff]
          %v4159 = vld [vmem:[%s349 + $0x1b8] sm:$0xff]
          %v4160 = vld [vmem:[%s349 + $0x1c0] sm:$0xff]
          %v4161 = vld [vmem:[%s349 + $0x1c8] sm:$0xff]
          %v4162 = vld [vmem:[%s349 + $0x1d0] sm:$0xff]
          %v4163 = vld [vmem:[%s349 + $0x1d8] sm:$0xff]
          %v4164 = vld [vmem:[%s349 + $0x1e0] sm:$0xff]
          %v4165 = vld [vmem:[%s349 + $0x1e8] sm:$0xff]
          %v4166 = vld [vmem:[%s349 + $0x1f0] sm:$0xff]
          %v4167 = vld [vmem:[%s349 + $0x1f8] sm:$0xff]
          %4168 = vmatprep.subr.mxu0 %v4105
          %4169 = vmatpush1.msra.mxu0 %v4104
          %4170 = vmatprep.subr.mxu0 %v4109
          %4171 = vmatpush1.msra.mxu0 %v4108
          %4172 = vmatprep.subr.mxu0 %v4113
          %4173 = vmatpush1.msra.mxu0 %v4112
          %4174 = vmatprep.subr.mxu0 %v4117
          %4175 = vmatpush1.msra.mxu0 %v4116
          %4176 = vmatprep.subr.mxu0 %v4121
          %4177 = vmatpush1.msra.mxu0 %v4120
          %4178 = vmatprep.subr.mxu0 %v4125
          %4179 = vmatpush1.msra.mxu0 %v4124
          %4180 = vmatprep.subr.mxu0 %v4129
          %4181 = vmatpush1.msra.mxu0 %v4128
          %4182 = vmatprep.subr.mxu0 %v4133
          %4183 = vmatpush1.msra.mxu0 %v4132
          %4184 = vmatprep.subr.mxu0 %v4137
          %4185 = vmatpush1.msra.mxu0 %v4136
          %4186 = vmatprep.subr.mxu0 %v4141
          %4187 = vmatpush1.msra.mxu0 %v4140
          %4188 = vmatprep.subr.mxu0 %v4145
          %4189 = vmatpush1.msra.mxu0 %v4144
          %4190 = vmatprep.subr.mxu0 %v4149
          %4191 = vmatpush1.msra.mxu0 %v4148
          %4192 = vmatprep.subr.mxu0 %v4153
          %4193 = vmatpush1.msra.mxu0 %v4152
          %4194 = vmatprep.subr.mxu0 %v4157
          %4195 = vmatpush1.msra.mxu0 %v4156
          %4196 = vmatprep.subr.mxu0 %v4161
          %4197 = vmatpush1.msra.mxu0 %v4160
          %4198 = vmatprep.subr.mxu0 %v4165
          %4199 = vmatpush1.msra.mxu0 %v4164
          %4200 = vmatprep.subr.mxu0 0.0
          %4201 = vmatpush1.msra.mxu0 0.0
          %4202 = vmatprep.subr.mxu0 0.0
          %4203 = vmatpush1.msra.mxu0 0.0
          %4204 = vmatprep.subr.mxu0 0.0
          %4205 = vmatpush1.msra.mxu0 0.0
          %4206 = vmatprep.subr.mxu0 0.0
          %4207 = vmatpush1.msra.mxu0 0.0
          %4208 = vmatprep.subr.mxu0 0.0
          %4209 = vmatpush1.msra.mxu0 0.0
          %4210 = vmatprep.subr.mxu0 0.0
          %4211 = vmatpush1.msra.mxu0 0.0
          %4212 = vmatprep.subr.mxu0 0.0
          %4213 = vmatpush1.msra.mxu0 0.0
          %4214 = vmatprep.subr.mxu0 0.0
          %4215 = vmatpush1.msra.mxu0 0.0
          %4216 = vmatprep.subr.mxu0 0.0
          %4217 = vmatpush1.msra.mxu0 0.0
          %4218 = vmatprep.subr.mxu0 0.0
          %4219 = vmatpush1.msra.mxu0 0.0
          %4220 = vmatprep.subr.mxu0 0.0
          %4221 = vmatpush1.msra.mxu0 0.0
          %4222 = vmatprep.subr.mxu0 0.0
          %4223 = vmatpush1.msra.mxu0 0.0
          %4224 = vmatprep.subr.mxu0 0.0
          %4225 = vmatpush1.msra.mxu0 0.0
          %4226 = vmatprep.subr.mxu0 0.0
          %4227 = vmatpush1.msra.mxu0 0.0
          %4228 = vmatprep.subr.mxu0 0.0
          %4229 = vmatpush1.msra.mxu0 0.0
          %4230 = vmatprep.subr.mxu0 0.0
          %4231 = vmatpush1.msra.mxu0 0.0
          %4232 = vmatprep.mubr.f32.mxu0 0.0
          %4233 = vmatmul.mubr.f32.gmra.mrb[0].mxu0 %v3992
          %v4234 = vpop.f32.mrb[0].mxu0
          %v4235 = vadd.f32 0.0, %v4234
          %v4236 = vpop.f32.mrb[0].mxu0
          %v4237 = vadd.f32 0.0, %v4236
          %4238 = vdwg.mxu0
          %4239 = vmatprep.subr.mxu0 %v4107
          %4240 = vmatpush1.msra.mxu0 %v4106
          %4241 = vmatprep.subr.mxu0 %v4111
          %4242 = vmatpush1.msra.mxu0 %v4110
          %4243 = vmatprep.subr.mxu0 %v4115
          %4244 = vmatpush1.msra.mxu0 %v4114
          %4245 = vmatprep.subr.mxu0 %v4119
          %4246 = vmatpush1.msra.mxu0 %v4118
          %4247 = vmatprep.subr.mxu0 %v4123
          %4248 = vmatpush1.msra.mxu0 %v4122
          %4249 = vmatprep.subr.mxu0 %v4127
          %4250 = vmatpush1.msra.mxu0 %v4126
          %4251 = vmatprep.subr.mxu0 %v4131
          %4252 = vmatpush1.msra.mxu0 %v4130
          %4253 = vmatprep.subr.mxu0 %v4135
          %4254 = vmatpush1.msra.mxu0 %v4134
          %4255 = vmatprep.subr.mxu0 %v4139
          %4256 = vmatpush1.msra.mxu0 %v4138
          %4257 = vmatprep.subr.mxu0 %v4143
          %4258 = vmatpush1.msra.mxu0 %v4142
          %4259 = vmatprep.subr.mxu0 %v4147
          %4260 = vmatpush1.msra.mxu0 %v4146
          %4261 = vmatprep.subr.mxu0 %v4151
          %4262 = vmatpush1.msra.mxu0 %v4150
          %4263 = vmatprep.subr.mxu0 %v4155
          %4264 = vmatpush1.msra.mxu0 %v4154
          %4265 = vmatprep.subr.mxu0 %v4159
          %4266 = vmatpush1.msra.mxu0 %v4158
          %4267 = vmatprep.subr.mxu0 %v4163
          %4268 = vmatpush1.msra.mxu0 %v4162
          %4269 = vmatprep.subr.mxu0 %v4167
          %4270 = vmatpush1.msra.mxu0 %v4166
          %4271 = vmatprep.subr.mxu0 0.0
          %4272 = vmatpush1.msra.mxu0 0.0
          %4273 = vmatprep.subr.mxu0 0.0
          %4274 = vmatpush1.msra.mxu0 0.0
          %4275 = vmatprep.subr.mxu0 0.0
          %4276 = vmatpush1.msra.mxu0 0.0
          %4277 = vmatprep.subr.mxu0 0.0
          %4278 = vmatpush1.msra.mxu0 0.0
          %4279 = vmatprep.subr.mxu0 0.0
          %4280 = vmatpush1.msra.mxu0 0.0
          %4281 = vmatprep.subr.mxu0 0.0
          %4282 = vmatpush1.msra.mxu0 0.0
          %4283 = vmatprep.subr.mxu0 0.0
          %4284 = vmatpush1.msra.mxu0 0.0
          %4285 = vmatprep.subr.mxu0 0.0
          %4286 = vmatpush1.msra.mxu0 0.0
          %4287 = vmatprep.subr.mxu0 0.0
          %4288 = vmatpush1.msra.mxu0 0.0
          %4289 = vmatprep.subr.mxu0 0.0
          %4290 = vmatpush1.msra.mxu0 0.0
          %4291 = vmatprep.subr.mxu0 0.0
          %4292 = vmatpush1.msra.mxu0 0.0
          %4293 = vmatprep.subr.mxu0 0.0
          %4294 = vmatpush1.msra.mxu0 0.0
          %4295 = vmatprep.subr.mxu0 0.0
          %4296 = vmatpush1.msra.mxu0 0.0
          %4297 = vmatprep.subr.mxu0 0.0
          %4298 = vmatpush1.msra.mxu0 0.0
          %4299 = vmatprep.subr.mxu0 0.0
          %4300 = vmatpush1.msra.mxu0 0.0
          %4301 = vmatprep.subr.mxu0 0.0
          %4302 = vmatpush1.msra.mxu0 0.0
          %4303 = vmatprep.mubr.f32.mxu0 0.0
          %4304 = vmatmul.mubr.f32.gmra.mrb[0].mxu0 %v3992
          %v4305 = vpop.f32.mrb[0].mxu0
          %v4306 = vadd.f32 0.0, %v4305
          %v4307 = vpop.f32.mrb[0].mxu0
          %v4308 = vadd.f32 0.0, %v4307
          %4309 = vdwg.mxu0
          %v4314 = vcombine.low %v4235, %v4237
          %v4315 = vcombine.low %v4306, %v4308
          %v4317 = vunpack.c.l.s4 1983009808
          %v4318 = vunpack.c.0.s8 %v4317
          %v4319 = vlaneseq
          %v4320 = vshrl.u32 %v4319, 7
          %v4321 = vsub.s32 %v4318, %v4320
          %v4322 = vrot.slane %v4314, %v4321
          %v4324 = vunpack.c.l.s4 1983009808
          %v4325 = vunpack.c.0.s8 %v4324
          %v4326 = vlaneseq
          %v4327 = vshrl.u32 %v4326, 7
          %v4328 = vsub.s32 %v4325, %v4327
          %v4329 = vrot.slane %v4315, %v4328
          %v4330 = vcombine.low %v4322, %v4329
          %v4332 = vadd.f32 %v4103, %v4330
          %v4333 = vxor.u32 %v4332, 2147483648
          %v4334 = vmul.f32 %v4333, 1.442695
          %v4335 = vpow.pop %v4334
          %v4336 = vadd.f32 %v4335, 1.0
          %v4337 = vrcp.pop %v4336
          %v4338 = vmul.f32 1.0, %v4337
          %v4340 = vrot.slane %v4332, 6
          %v4342 = vtanh.pop %v4340
          %v4344 = vrot.slane %v4338, 2
          %v4346 = vmul.f32 %v4344, %v3993
          %v4347 = vmul.f32 %v4338, %v4342
          %v4348 = vadd.f32 %v4346, %v4347
          %v4349 = vtanh.pop %v4348
          %v4350 = vrot.slane %v4338, 4
          %v4352 = vmul.f32 %v4350, %v4349
          %s4353 = sadd.s32 %s439, 5
          %v4354 = vstv %s4353
          %vm4355 = vcmp.lt.s32.totalorder %v4354, %v443
          %v4356 = vsel %vm4355, %v4352, %v3992
          %v4357 = vsel %vm4355, %v4348, %v3993
          %v4358 = vsel %vm4355, %v4352, 0.0
          %v4359 = vpack.c.bf16 %v4358, %v4358
          %v4360 = vld [vmem:[%s406] sm:$0xf]
          %v4361 = vld [vmem:[%s406 + $0x4] sm:$0xf]
          %v4362 = vld [vmem:[%s406 + $0x8] sm:$0xf]
          %v4363 = vld [vmem:[%s406 + $0xc] sm:$0xf]
          %v4364 = vld [vmem:[%s406 + $0x10] sm:$0xf]
          %v4365 = vld [vmem:[%s406 + $0x14] sm:$0xf]
          %v4366 = vld [vmem:[%s406 + $0x18] sm:$0xf]
          %v4367 = vld [vmem:[%s406 + $0x1c] sm:$0xf]
          %v4368 = vld [vmem:[%s406 + $0x20] sm:$0xf]
          %v4369 = vld [vmem:[%s406 + $0x24] sm:$0xf]
          %v4370 = vld [vmem:[%s406 + $0x28] sm:$0xf]
          %v4371 = vld [vmem:[%s406 + $0x2c] sm:$0xf]
          %v4372 = vld [vmem:[%s406 + $0x30] sm:$0xf]
          %v4373 = vld [vmem:[%s406 + $0x34] sm:$0xf]
          %v4374 = vld [vmem:[%s406 + $0x38] sm:$0xf]
          %v4375 = vld [vmem:[%s406 + $0x3c] sm:$0xf]
          %v4392 = vunpack.c.l.b16 %v4360
          %v4393 = vunpack.c.l.b16 %v4361
          %v4394 = vunpack.c.l.b16 %v4362
          %v4395 = vunpack.c.l.b16 %v4363
          %v4396 = vunpack.c.l.b16 %v4364
          %v4397 = vunpack.c.l.b16 %v4365
          %v4398 = vunpack.c.l.b16 %v4366
          %v4399 = vunpack.c.l.b16 %v4367
          %v4400 = vunpack.c.l.b16 %v4368
          %v4401 = vunpack.c.l.b16 %v4369
          %v4402 = vunpack.c.l.b16 %v4370
          %v4403 = vunpack.c.l.b16 %v4371
          %v4404 = vunpack.c.l.b16 %v4372
          %v4405 = vunpack.c.l.b16 %v4373
          %v4406 = vunpack.c.l.b16 %v4374
          %v4407 = vunpack.c.l.b16 %v4375
          %v4408 = vpack.c.b16 %v4393, %v4392
          %v4409 = vpack.c.b16 %v4395, %v4394
          %v4410 = vpack.c.b16 %v4397, %v4396
          %v4411 = vpack.c.b16 %v4399, %v4398
          %v4412 = vpack.c.b16 %v4401, %v4400
          %v4413 = vpack.c.b16 %v4403, %v4402
          %v4414 = vpack.c.b16 %v4405, %v4404
          %v4415 = vpack.c.b16 %v4407, %v4406
          %4424 = vmatprep.subr.bf16.mxu0 0
          %4425 = vmatpush1.bf16.msra.mxu0 %v4408
          %4426 = vmatprep.subr.bf16.mxu0 0
          %4427 = vmatpush1.bf16.msra.mxu0 %v4409
          %4428 = vmatprep.subr.bf16.mxu0 0
          %4429 = vmatpush1.bf16.msra.mxu0 %v4410
          %4430 = vmatprep.subr.bf16.mxu0 0
          %4431 = vmatpush1.bf16.msra.mxu0 %v4411
          %4432 = vmatprep.subr.bf16.mxu0 0
          %4433 = vmatpush1.bf16.msra.mxu0 %v4412
          %4434 = vmatprep.subr.bf16.mxu0 0
          %4435 = vmatpush1.bf16.msra.mxu0 %v4413
          %4436 = vmatprep.subr.bf16.mxu0 0
          %4437 = vmatpush1.bf16.msra.mxu0 %v4414
          %4438 = vmatprep.subr.bf16.mxu0 0
          %4439 = vmatpush1.bf16.msra.mxu0 %v4415
          %4440 = vmatprep.subr.bf16.mxu0 0
          %4441 = vmatpush1.bf16.msra.mxu0 0
          %4442 = vmatprep.subr.bf16.mxu0 0
          %4443 = vmatpush1.bf16.msra.mxu0 0
          %4444 = vmatprep.subr.bf16.mxu0 0
          %4445 = vmatpush1.bf16.msra.mxu0 0
          %4446 = vmatprep.subr.bf16.mxu0 0
          %4447 = vmatpush1.bf16.msra.mxu0 0
          %4448 = vmatprep.subr.bf16.mxu0 0
          %4449 = vmatpush1.bf16.msra.mxu0 0
          %4450 = vmatprep.subr.bf16.mxu0 0
          %4451 = vmatpush1.bf16.msra.mxu0 0
          %4452 = vmatprep.subr.bf16.mxu0 0
          %4453 = vmatpush1.bf16.msra.mxu0 0
          %4454 = vmatprep.subr.bf16.mxu0 0
          %4455 = vmatpush1.bf16.msra.mxu0 0
          %4456 = vmatprep.mubr.bf16.mxu0 0
          %4457 = vmatmul.mubr.bf16.gmra.mrb[0].mxu0 %v4359
          %v4458 = vpop.f32.mrb[0].mxu0
          %v4459 = vadd.f32 %v449, %v4458
          %v4460 = vpop.f32.mrb[0].mxu0
          %v4461 = vpop.f32.mrb[0].mxu0
          %v4462 = vpop.f32.mrb[0].mxu0
          %4463 = vdwg.mxu0
          %s4464 = scalar_lea.vmem %s422, 10
          %4465 = vst [vmem:[%s4464] sm:$0x3] %v4459
          %s4466 = scalar_lea.vmem %s341, 32 [#allocation4]
          %v4467 = vld [vmem:[%s4466] sm:$0xff]
          %v4468 = vld [vmem:[%s349] sm:$0xff]
          %v4469 = vld [vmem:[%s349 + $0x8] sm:$0xff]
          %v4470 = vld [vmem:[%s349 + $0x10] sm:$0xff]
          %v4471 = vld [vmem:[%s349 + $0x18] sm:$0xff]
          %v4472 = vld [vmem:[%s349 + $0x20] sm:$0xff]
          %v4473 = vld [vmem:[%s349 + $0x28] sm:$0xff]
          %v4474 = vld [vmem:[%s349 + $0x30] sm:$0xff]
          %v4475 = vld [vmem:[%s349 + $0x38] sm:$0xff]
          %v4476 = vld [vmem:[%s349 + $0x40] sm:$0xff]
          %v4477 = vld [vmem:[%s349 + $0x48] sm:$0xff]
          %v4478 = vld [vmem:[%s349 + $0x50] sm:$0xff]
          %v4479 = vld [vmem:[%s349 + $0x58] sm:$0xff]
          %v4480 = vld [vmem:[%s349 + $0x60] sm:$0xff]
          %v4481 = vld [vmem:[%s349 + $0x68] sm:$0xff]
          %v4482 = vld [vmem:[%s349 + $0x70] sm:$0xff]
          %v4483 = vld [vmem:[%s349 + $0x78] sm:$0xff]
          %v4484 = vld [vmem:[%s349 + $0x80] sm:$0xff]
          %v4485 = vld [vmem:[%s349 + $0x88] sm:$0xff]
          %v4486 = vld [vmem:[%s349 + $0x90] sm:$0xff]
          %v4487 = vld [vmem:[%s349 + $0x98] sm:$0xff]
          %v4488 = vld [vmem:[%s349 + $0xa0] sm:$0xff]
          %v4489 = vld [vmem:[%s349 + $0xa8] sm:$0xff]
          %v4490 = vld [vmem:[%s349 + $0xb0] sm:$0xff]
          %v4491 = vld [vmem:[%s349 + $0xb8] sm:$0xff]
          %v4492 = vld [vmem:[%s349 + $0xc0] sm:$0xff]
          %v4493 = vld [vmem:[%s349 + $0xc8] sm:$0xff]
          %v4494 = vld [vmem:[%s349 + $0xd0] sm:$0xff]
          %v4495 = vld [vmem:[%s349 + $0xd8] sm:$0xff]
          %v4496 = vld [vmem:[%s349 + $0xe0] sm:$0xff]
          %v4497 = vld [vmem:[%s349 + $0xe8] sm:$0xff]
          %v4498 = vld [vmem:[%s349 + $0xf0] sm:$0xff]
          %v4499 = vld [vmem:[%s349 + $0xf8] sm:$0xff]
          %v4500 = vld [vmem:[%s349 + $0x100] sm:$0xff]
          %v4501 = vld [vmem:[%s349 + $0x108] sm:$0xff]
          %v4502 = vld [vmem:[%s349 + $0x110] sm:$0xff]
          %v4503 = vld [vmem:[%s349 + $0x118] sm:$0xff]
          %v4504 = vld [vmem:[%s349 + $0x120] sm:$0xff]
          %v4505 = vld [vmem:[%s349 + $0x128] sm:$0xff]
          %v4506 = vld [vmem:[%s349 + $0x130] sm:$0xff]
          %v4507 = vld [vmem:[%s349 + $0x138] sm:$0xff]
          %v4508 = vld [vmem:[%s349 + $0x140] sm:$0xff]
          %v4509 = vld [vmem:[%s349 + $0x148] sm:$0xff]
          %v4510 = vld [vmem:[%s349 + $0x150] sm:$0xff]
          %v4511 = vld [vmem:[%s349 + $0x158] sm:$0xff]
          %v4512 = vld [vmem:[%s349 + $0x160] sm:$0xff]
          %v4513 = vld [vmem:[%s349 + $0x168] sm:$0xff]
          %v4514 = vld [vmem:[%s349 + $0x170] sm:$0xff]
          %v4515 = vld [vmem:[%s349 + $0x178] sm:$0xff]
          %v4516 = vld [vmem:[%s349 + $0x180] sm:$0xff]
          %v4517 = vld [vmem:[%s349 + $0x188] sm:$0xff]
          %v4518 = vld [vmem:[%s349 + $0x190] sm:$0xff]
          %v4519 = vld [vmem:[%s349 + $0x198] sm:$0xff]
          %v4520 = vld [vmem:[%s349 + $0x1a0] sm:$0xff]
          %v4521 = vld [vmem:[%s349 + $0x1a8] sm:$0xff]
          %v4522 = vld [vmem:[%s349 + $0x1b0] sm:$0xff]
          %v4523 = vld [vmem:[%s349 + $0x1b8] sm:$0xff]
          %v4524 = vld [vmem:[%s349 + $0x1c0] sm:$0xff]
          %v4525 = vld [vmem:[%s349 + $0x1c8] sm:$0xff]
          %v4526 = vld [vmem:[%s349 + $0x1d0] sm:$0xff]
          %v4527 = vld [vmem:[%s349 + $0x1d8] sm:$0xff]
          %v4528 = vld [vmem:[%s349 + $0x1e0] sm:$0xff]
          %v4529 = vld [vmem:[%s349 + $0x1e8] sm:$0xff]
          %v4530 = vld [vmem:[%s349 + $0x1f0] sm:$0xff]
          %v4531 = vld [vmem:[%s349 + $0x1f8] sm:$0xff]
          %4532 = vmatprep.subr.mxu0 %v4469
          %4533 = vmatpush1.msra.mxu0 %v4468
          %4534 = vmatprep.subr.mxu0 %v4473
          %4535 = vmatpush1.msra.mxu0 %v4472
          %4536 = vmatprep.subr.mxu0 %v4477
          %4537 = vmatpush1.msra.mxu0 %v4476
          %4538 = vmatprep.subr.mxu0 %v4481
          %4539 = vmatpush1.msra.mxu0 %v4480
          %4540 = vmatprep.subr.mxu0 %v4485
          %4541 = vmatpush1.msra.mxu0 %v4484
          %4542 = vmatprep.subr.mxu0 %v4489
          %4543 = vmatpush1.msra.mxu0 %v4488
          %4544 = vmatprep.subr.mxu0 %v4493
          %4545 = vmatpush1.msra.mxu0 %v4492
          %4546 = vmatprep.subr.mxu0 %v4497
          %4547 = vmatpush1.msra.mxu0 %v4496
          %4548 = vmatprep.subr.mxu0 %v4501
          %4549 = vmatpush1.msra.mxu0 %v4500
          %4550 = vmatprep.subr.mxu0 %v4505
          %4551 = vmatpush1.msra.mxu0 %v4504
          %4552 = vmatprep.subr.mxu0 %v4509
          %4553 = vmatpush1.msra.mxu0 %v4508
          %4554 = vmatprep.subr.mxu0 %v4513
          %4555 = vmatpush1.msra.mxu0 %v4512
          %4556 = vmatprep.subr.mxu0 %v4517
          %4557 = vmatpush1.msra.mxu0 %v4516
          %4558 = vmatprep.subr.mxu0 %v4521
          %4559 = vmatpush1.msra.mxu0 %v4520
          %4560 = vmatprep.subr.mxu0 %v4525
          %4561 = vmatpush1.msra.mxu0 %v4524
          %4562 = vmatprep.subr.mxu0 %v4529
          %4563 = vmatpush1.msra.mxu0 %v4528
          %4564 = vmatprep.subr.mxu0 0.0
          %4565 = vmatpush1.msra.mxu0 0.0
          %4566 = vmatprep.subr.mxu0 0.0
          %4567 = vmatpush1.msra.mxu0 0.0
          %4568 = vmatprep.subr.mxu0 0.0
          %4569 = vmatpush1.msra.mxu0 0.0
          %4570 = vmatprep.subr.mxu0 0.0
          %4571 = vmatpush1.msra.mxu0 0.0
          %4572 = vmatprep.subr.mxu0 0.0
          %4573 = vmatpush1.msra.mxu0 0.0
          %4574 = vmatprep.subr.mxu0 0.0
          %4575 = vmatpush1.msra.mxu0 0.0
          %4576 = vmatprep.subr.mxu0 0.0
          %4577 = vmatpush1.msra.mxu0 0.0
          %4578 = vmatprep.subr.mxu0 0.0
          %4579 = vmatpush1.msra.mxu0 0.0
          %4580 = vmatprep.subr.mxu0 0.0
          %4581 = vmatpush1.msra.mxu0 0.0
          %4582 = vmatprep.subr.mxu0 0.0
          %4583 = vmatpush1.msra.mxu0 0.0
          %4584 = vmatprep.subr.mxu0 0.0
          %4585 = vmatpush1.msra.mxu0 0.0
          %4586 = vmatprep.subr.mxu0 0.0
          %4587 = vmatpush1.msra.mxu0 0.0
          %4588 = vmatprep.subr.mxu0 0.0
          %4589 = vmatpush1.msra.mxu0 0.0
          %4590 = vmatprep.subr.mxu0 0.0
          %4591 = vmatpush1.msra.mxu0 0.0
          %4592 = vmatprep.subr.mxu0 0.0
          %4593 = vmatpush1.msra.mxu0 0.0
          %4594 = vmatprep.subr.mxu0 0.0
          %4595 = vmatpush1.msra.mxu0 0.0
          %4596 = vmatprep.mubr.f32.mxu0 0.0
          %4597 = vmatmul.mubr.f32.gmra.mrb[0].mxu0 %v4356
          %v4598 = vpop.f32.mrb[0].mxu0
          %v4599 = vadd.f32 0.0, %v4598
          %v4600 = vpop.f32.mrb[0].mxu0
          %v4601 = vadd.f32 0.0, %v4600
          %4602 = vdwg.mxu0
          %4603 = vmatprep.subr.mxu0 %v4471
          %4604 = vmatpush1.msra.mxu0 %v4470
          %4605 = vmatprep.subr.mxu0 %v4475
          %4606 = vmatpush1.msra.mxu0 %v4474
          %4607 = vmatprep.subr.mxu0 %v4479
          %4608 = vmatpush1.msra.mxu0 %v4478
          %4609 = vmatprep.subr.mxu0 %v4483
          %4610 = vmatpush1.msra.mxu0 %v4482
          %4611 = vmatprep.subr.mxu0 %v4487
          %4612 = vmatpush1.msra.mxu0 %v4486
          %4613 = vmatprep.subr.mxu0 %v4491
          %4614 = vmatpush1.msra.mxu0 %v4490
          %4615 = vmatprep.subr.mxu0 %v4495
          %4616 = vmatpush1.msra.mxu0 %v4494
          %4617 = vmatprep.subr.mxu0 %v4499
          %4618 = vmatpush1.msra.mxu0 %v4498
          %4619 = vmatprep.subr.mxu0 %v4503
          %4620 = vmatpush1.msra.mxu0 %v4502
          %4621 = vmatprep.subr.mxu0 %v4507
          %4622 = vmatpush1.msra.mxu0 %v4506
          %4623 = vmatprep.subr.mxu0 %v4511
          %4624 = vmatpush1.msra.mxu0 %v4510
          %4625 = vmatprep.subr.mxu0 %v4515
          %4626 = vmatpush1.msra.mxu0 %v4514
          %4627 = vmatprep.subr.mxu0 %v4519
          %4628 = vmatpush1.msra.mxu0 %v4518
          %4629 = vmatprep.subr.mxu0 %v4523
          %4630 = vmatpush1.msra.mxu0 %v4522
          %4631 = vmatprep.subr.mxu0 %v4527
          %4632 = vmatpush1.msra.mxu0 %v4526
          %4633 = vmatprep.subr.mxu0 %v4531
          %4634 = vmatpush1.msra.mxu0 %v4530
          %4635 = vmatprep.subr.mxu0 0.0
          %4636 = vmatpush1.msra.mxu0 0.0
          %4637 = vmatprep.subr.mxu0 0.0
          %4638 = vmatpush1.msra.mxu0 0.0
          %4639 = vmatprep.subr.mxu0 0.0
          %4640 = vmatpush1.msra.mxu0 0.0
          %4641 = vmatprep.subr.mxu0 0.0
          %4642 = vmatpush1.msra.mxu0 0.0
          %4643 = vmatprep.subr.mxu0 0.0
          %4644 = vmatpush1.msra.mxu0 0.0
          %4645 = vmatprep.subr.mxu0 0.0
          %4646 = vmatpush1.msra.mxu0 0.0
          %4647 = vmatprep.subr.mxu0 0.0
          %4648 = vmatpush1.msra.mxu0 0.0
          %4649 = vmatprep.subr.mxu0 0.0
          %4650 = vmatpush1.msra.mxu0 0.0
          %4651 = vmatprep.subr.mxu0 0.0
          %4652 = vmatpush1.msra.mxu0 0.0
          %4653 = vmatprep.subr.mxu0 0.0
          %4654 = vmatpush1.msra.mxu0 0.0
          %4655 = vmatprep.subr.mxu0 0.0
          %4656 = vmatpush1.msra.mxu0 0.0
          %4657 = vmatprep.subr.mxu0 0.0
          %4658 = vmatpush1.msra.mxu0 0.0
          %4659 = vmatprep.subr.mxu0 0.0
          %4660 = vmatpush1.msra.mxu0 0.0
          %4661 = vmatprep.subr.mxu0 0.0
          %4662 = vmatpush1.msra.mxu0 0.0
          %4663 = vmatprep.subr.mxu0 0.0
          %4664 = vmatpush1.msra.mxu0 0.0
          %4665 = vmatprep.subr.mxu0 0.0
          %4666 = vmatpush1.msra.mxu0 0.0
          %4667 = vmatprep.mubr.f32.mxu0 0.0
          %4668 = vmatmul.mubr.f32.gmra.mrb[0].mxu0 %v4356
          %v4669 = vpop.f32.mrb[0].mxu0
          %v4670 = vadd.f32 0.0, %v4669
          %v4671 = vpop.f32.mrb[0].mxu0
          %v4672 = vadd.f32 0.0, %v4671
          %4673 = vdwg.mxu0
          %v4678 = vcombine.low %v4599, %v4601
          %v4679 = vcombine.low %v4670, %v4672
          %v4681 = vunpack.c.l.s4 1983009808
          %v4682 = vunpack.c.0.s8 %v4681
          %v4683 = vlaneseq
          %v4684 = vshrl.u32 %v4683, 7
          %v4685 = vsub.s32 %v4682, %v4684
          %v4686 = vrot.slane %v4678, %v4685
          %v4688 = vunpack.c.l.s4 1983009808
          %v4689 = vunpack.c.0.s8 %v4688
          %v4690 = vlaneseq
          %v4691 = vshrl.u32 %v4690, 7
          %v4692 = vsub.s32 %v4689, %v4691
          %v4693 = vrot.slane %v4679, %v4692
          %v4694 = vcombine.low %v4686, %v4693
          %v4696 = vadd.f32 %v4467, %v4694
          %v4697 = vxor.u32 %v4696, 2147483648
          %v4698 = vmul.f32 %v4697, 1.442695
          %v4699 = vpow.pop %v4698
          %v4700 = vadd.f32 %v4699, 1.0
          %v4701 = vrcp.pop %v4700
          %v4702 = vmul.f32 1.0, %v4701
          %v4704 = vrot.slane %v4696, 6
          %v4706 = vtanh.pop %v4704
          %v4708 = vrot.slane %v4702, 2
          %v4710 = vmul.f32 %v4708, %v4357
          %v4711 = vmul.f32 %v4702, %v4706
          %v4712 = vadd.f32 %v4710, %v4711
          %v4713 = vtanh.pop %v4712
          %v4714 = vrot.slane %v4702, 4
          %v4716 = vmul.f32 %v4714, %v4713
          %s4717 = sadd.s32 %s439, 4
          %v4718 = vstv %s4717
          %vm4719 = vcmp.lt.s32.totalorder %v4718, %v443
          %v4720 = vsel %vm4719, %v4716, %v4356
          %v4721 = vsel %vm4719, %v4712, %v4357
          %v4722 = vsel %vm4719, %v4716, 0.0
          %v4723 = vpack.c.bf16 %v4722, %v4722
          %v4724 = vld [vmem:[%s406] sm:$0xf]
          %v4725 = vld [vmem:[%s406 + $0x4] sm:$0xf]
          %v4726 = vld [vmem:[%s406 + $0x8] sm:$0xf]
          %v4727 = vld [vmem:[%s406 + $0xc] sm:$0xf]
          %v4728 = vld [vmem:[%s406 + $0x10] sm:$0xf]
          %v4729 = vld [vmem:[%s406 + $0x14] sm:$0xf]
          %v4730 = vld [vmem:[%s406 + $0x18] sm:$0xf]
          %v4731 = vld [vmem:[%s406 + $0x1c] sm:$0xf]
          %v4732 = vld [vmem:[%s406 + $0x20] sm:$0xf]
          %v4733 = vld [vmem:[%s406 + $0x24] sm:$0xf]
          %v4734 = vld [vmem:[%s406 + $0x28] sm:$0xf]
          %v4735 = vld [vmem:[%s406 + $0x2c] sm:$0xf]
          %v4736 = vld [vmem:[%s406 + $0x30] sm:$0xf]
          %v4737 = vld [vmem:[%s406 + $0x34] sm:$0xf]
          %v4738 = vld [vmem:[%s406 + $0x38] sm:$0xf]
          %v4739 = vld [vmem:[%s406 + $0x3c] sm:$0xf]
          %v4756 = vunpack.c.l.b16 %v4724
          %v4757 = vunpack.c.l.b16 %v4725
          %v4758 = vunpack.c.l.b16 %v4726
          %v4759 = vunpack.c.l.b16 %v4727
          %v4760 = vunpack.c.l.b16 %v4728
          %v4761 = vunpack.c.l.b16 %v4729
          %v4762 = vunpack.c.l.b16 %v4730
          %v4763 = vunpack.c.l.b16 %v4731
          %v4764 = vunpack.c.l.b16 %v4732
          %v4765 = vunpack.c.l.b16 %v4733
          %v4766 = vunpack.c.l.b16 %v4734
          %v4767 = vunpack.c.l.b16 %v4735
          %v4768 = vunpack.c.l.b16 %v4736
          %v4769 = vunpack.c.l.b16 %v4737
          %v4770 = vunpack.c.l.b16 %v4738
          %v4771 = vunpack.c.l.b16 %v4739
          %v4772 = vpack.c.b16 %v4757, %v4756
          %v4773 = vpack.c.b16 %v4759, %v4758
          %v4774 = vpack.c.b16 %v4761, %v4760
          %v4775 = vpack.c.b16 %v4763, %v4762
          %v4776 = vpack.c.b16 %v4765, %v4764
          %v4777 = vpack.c.b16 %v4767, %v4766
          %v4778 = vpack.c.b16 %v4769, %v4768
          %v4779 = vpack.c.b16 %v4771, %v4770
          %4788 = vmatprep.subr.bf16.mxu0 0
          %4789 = vmatpush1.bf16.msra.mxu0 %v4772
          %4790 = vmatprep.subr.bf16.mxu0 0
          %4791 = vmatpush1.bf16.msra.mxu0 %v4773
          %4792 = vmatprep.subr.bf16.mxu0 0
          %4793 = vmatpush1.bf16.msra.mxu0 %v4774
          %4794 = vmatprep.subr.bf16.mxu0 0
          %4795 = vmatpush1.bf16.msra.mxu0 %v4775
          %4796 = vmatprep.subr.bf16.mxu0 0
          %4797 = vmatpush1.bf16.msra.mxu0 %v4776
          %4798 = vmatprep.subr.bf16.mxu0 0
          %4799 = vmatpush1.bf16.msra.mxu0 %v4777
          %4800 = vmatprep.subr.bf16.mxu0 0
          %4801 = vmatpush1.bf16.msra.mxu0 %v4778
          %4802 = vmatprep.subr.bf16.mxu0 0
          %4803 = vmatpush1.bf16.msra.mxu0 %v4779
          %4804 = vmatprep.subr.bf16.mxu0 0
          %4805 = vmatpush1.bf16.msra.mxu0 0
          %4806 = vmatprep.subr.bf16.mxu0 0
          %4807 = vmatpush1.bf16.msra.mxu0 0
          %4808 = vmatprep.subr.bf16.mxu0 0
          %4809 = vmatpush1.bf16.msra.mxu0 0
          %4810 = vmatprep.subr.bf16.mxu0 0
          %4811 = vmatpush1.bf16.msra.mxu0 0
          %4812 = vmatprep.subr.bf16.mxu0 0
          %4813 = vmatpush1.bf16.msra.mxu0 0
          %4814 = vmatprep.subr.bf16.mxu0 0
          %4815 = vmatpush1.bf16.msra.mxu0 0
          %4816 = vmatprep.subr.bf16.mxu0 0
          %4817 = vmatpush1.bf16.msra.mxu0 0
          %4818 = vmatprep.subr.bf16.mxu0 0
          %4819 = vmatpush1.bf16.msra.mxu0 0
          %4820 = vmatprep.mubr.bf16.mxu0 0
          %4821 = vmatmul.mubr.bf16.gmra.mrb[0].mxu0 %v4723
          %v4822 = vpop.f32.mrb[0].mxu0
          %v4823 = vadd.f32 %v449, %v4822
          %v4824 = vpop.f32.mrb[0].mxu0
          %v4825 = vpop.f32.mrb[0].mxu0
          %v4826 = vpop.f32.mrb[0].mxu0
          %4827 = vdwg.mxu0
          %s4828 = scalar_lea.vmem %s422, 8
          %4829 = vst [vmem:[%s4828] sm:$0x3] %v4823
          %s4830 = scalar_lea.vmem %s341, 24 [#allocation4]
          %v4831 = vld [vmem:[%s4830] sm:$0xff]
          %v4832 = vld [vmem:[%s349] sm:$0xff]
          %v4833 = vld [vmem:[%s349 + $0x8] sm:$0xff]
          %v4834 = vld [vmem:[%s349 + $0x10] sm:$0xff]
          %v4835 = vld [vmem:[%s349 + $0x18] sm:$0xff]
          %v4836 = vld [vmem:[%s349 + $0x20] sm:$0xff]
          %v4837 = vld [vmem:[%s349 + $0x28] sm:$0xff]
          %v4838 = vld [vmem:[%s349 + $0x30] sm:$0xff]
          %v4839 = vld [vmem:[%s349 + $0x38] sm:$0xff]
          %v4840 = vld [vmem:[%s349 + $0x40] sm:$0xff]
          %v4841 = vld [vmem:[%s349 + $0x48] sm:$0xff]
          %v4842 = vld [vmem:[%s349 + $0x50] sm:$0xff]
          %v4843 = vld [vmem:[%s349 + $0x58] sm:$0xff]
          %v4844 = vld [vmem:[%s349 + $0x60] sm:$0xff]
          %v4845 = vld [vmem:[%s349 + $0x68] sm:$0xff]
          %v4846 = vld [vmem:[%s349 + $0x70] sm:$0xff]
          %v4847 = vld [vmem:[%s349 + $0x78] sm:$0xff]
          %v4848 = vld [vmem:[%s349 + $0x80] sm:$0xff]
          %v4849 = vld [vmem:[%s349 + $0x88] sm:$0xff]
          %v4850 = vld [vmem:[%s349 + $0x90] sm:$0xff]
          %v4851 = vld [vmem:[%s349 + $0x98] sm:$0xff]
          %v4852 = vld [vmem:[%s349 + $0xa0] sm:$0xff]
          %v4853 = vld [vmem:[%s349 + $0xa8] sm:$0xff]
          %v4854 = vld [vmem:[%s349 + $0xb0] sm:$0xff]
          %v4855 = vld [vmem:[%s349 + $0xb8] sm:$0xff]
          %v4856 = vld [vmem:[%s349 + $0xc0] sm:$0xff]
          %v4857 = vld [vmem:[%s349 + $0xc8] sm:$0xff]
          %v4858 = vld [vmem:[%s349 + $0xd0] sm:$0xff]
          %v4859 = vld [vmem:[%s349 + $0xd8] sm:$0xff]
          %v4860 = vld [vmem:[%s349 + $0xe0] sm:$0xff]
          %v4861 = vld [vmem:[%s349 + $0xe8] sm:$0xff]
          %v4862 = vld [vmem:[%s349 + $0xf0] sm:$0xff]
          %v4863 = vld [vmem:[%s349 + $0xf8] sm:$0xff]
          %v4864 = vld [vmem:[%s349 + $0x100] sm:$0xff]
          %v4865 = vld [vmem:[%s349 + $0x108] sm:$0xff]
          %v4866 = vld [vmem:[%s349 + $0x110] sm:$0xff]
          %v4867 = vld [vmem:[%s349 + $0x118] sm:$0xff]
          %v4868 = vld [vmem:[%s349 + $0x120] sm:$0xff]
          %v4869 = vld [vmem:[%s349 + $0x128] sm:$0xff]
          %v4870 = vld [vmem:[%s349 + $0x130] sm:$0xff]
          %v4871 = vld [vmem:[%s349 + $0x138] sm:$0xff]
          %v4872 = vld [vmem:[%s349 + $0x140] sm:$0xff]
          %v4873 = vld [vmem:[%s349 + $0x148] sm:$0xff]
          %v4874 = vld [vmem:[%s349 + $0x150] sm:$0xff]
          %v4875 = vld [vmem:[%s349 + $0x158] sm:$0xff]
          %v4876 = vld [vmem:[%s349 + $0x160] sm:$0xff]
          %v4877 = vld [vmem:[%s349 + $0x168] sm:$0xff]
          %v4878 = vld [vmem:[%s349 + $0x170] sm:$0xff]
          %v4879 = vld [vmem:[%s349 + $0x178] sm:$0xff]
          %v4880 = vld [vmem:[%s349 + $0x180] sm:$0xff]
          %v4881 = vld [vmem:[%s349 + $0x188] sm:$0xff]
          %v4882 = vld [vmem:[%s349 + $0x190] sm:$0xff]
          %v4883 = vld [vmem:[%s349 + $0x198] sm:$0xff]
          %v4884 = vld [vmem:[%s349 + $0x1a0] sm:$0xff]
          %v4885 = vld [vmem:[%s349 + $0x1a8] sm:$0xff]
          %v4886 = vld [vmem:[%s349 + $0x1b0] sm:$0xff]
          %v4887 = vld [vmem:[%s349 + $0x1b8] sm:$0xff]
          %v4888 = vld [vmem:[%s349 + $0x1c0] sm:$0xff]
          %v4889 = vld [vmem:[%s349 + $0x1c8] sm:$0xff]
          %v4890 = vld [vmem:[%s349 + $0x1d0] sm:$0xff]
          %v4891 = vld [vmem:[%s349 + $0x1d8] sm:$0xff]
          %v4892 = vld [vmem:[%s349 + $0x1e0] sm:$0xff]
          %v4893 = vld [vmem:[%s349 + $0x1e8] sm:$0xff]
          %v4894 = vld [vmem:[%s349 + $0x1f0] sm:$0xff]
          %v4895 = vld [vmem:[%s349 + $0x1f8] sm:$0xff]
          %4896 = vmatprep.subr.mxu0 %v4833
          %4897 = vmatpush1.msra.mxu0 %v4832
          %4898 = vmatprep.subr.mxu0 %v4837
          %4899 = vmatpush1.msra.mxu0 %v4836
          %4900 = vmatprep.subr.mxu0 %v4841
          %4901 = vmatpush1.msra.mxu0 %v4840
          %4902 = vmatprep.subr.mxu0 %v4845
          %4903 = vmatpush1.msra.mxu0 %v4844
          %4904 = vmatprep.subr.mxu0 %v4849
          %4905 = vmatpush1.msra.mxu0 %v4848
          %4906 = vmatprep.subr.mxu0 %v4853
          %4907 = vmatpush1.msra.mxu0 %v4852
          %4908 = vmatprep.subr.mxu0 %v4857
          %4909 = vmatpush1.msra.mxu0 %v4856
          %4910 = vmatprep.subr.mxu0 %v4861
          %4911 = vmatpush1.msra.mxu0 %v4860
          %4912 = vmatprep.subr.mxu0 %v4865
          %4913 = vmatpush1.msra.mxu0 %v4864
          %4914 = vmatprep.subr.mxu0 %v4869
          %4915 = vmatpush1.msra.mxu0 %v4868
          %4916 = vmatprep.subr.mxu0 %v4873
          %4917 = vmatpush1.msra.mxu0 %v4872
          %4918 = vmatprep.subr.mxu0 %v4877
          %4919 = vmatpush1.msra.mxu0 %v4876
          %4920 = vmatprep.subr.mxu0 %v4881
          %4921 = vmatpush1.msra.mxu0 %v4880
          %4922 = vmatprep.subr.mxu0 %v4885
          %4923 = vmatpush1.msra.mxu0 %v4884
          %4924 = vmatprep.subr.mxu0 %v4889
          %4925 = vmatpush1.msra.mxu0 %v4888
          %4926 = vmatprep.subr.mxu0 %v4893
          %4927 = vmatpush1.msra.mxu0 %v4892
          %4928 = vmatprep.subr.mxu0 0.0
          %4929 = vmatpush1.msra.mxu0 0.0
          %4930 = vmatprep.subr.mxu0 0.0
          %4931 = vmatpush1.msra.mxu0 0.0
          %4932 = vmatprep.subr.mxu0 0.0
          %4933 = vmatpush1.msra.mxu0 0.0
          %4934 = vmatprep.subr.mxu0 0.0
          %4935 = vmatpush1.msra.mxu0 0.0
          %4936 = vmatprep.subr.mxu0 0.0
          %4937 = vmatpush1.msra.mxu0 0.0
          %4938 = vmatprep.subr.mxu0 0.0
          %4939 = vmatpush1.msra.mxu0 0.0
          %4940 = vmatprep.subr.mxu0 0.0
          %4941 = vmatpush1.msra.mxu0 0.0
          %4942 = vmatprep.subr.mxu0 0.0
          %4943 = vmatpush1.msra.mxu0 0.0
          %4944 = vmatprep.subr.mxu0 0.0
          %4945 = vmatpush1.msra.mxu0 0.0
          %4946 = vmatprep.subr.mxu0 0.0
          %4947 = vmatpush1.msra.mxu0 0.0
          %4948 = vmatprep.subr.mxu0 0.0
          %4949 = vmatpush1.msra.mxu0 0.0
          %4950 = vmatprep.subr.mxu0 0.0
          %4951 = vmatpush1.msra.mxu0 0.0
          %4952 = vmatprep.subr.mxu0 0.0
          %4953 = vmatpush1.msra.mxu0 0.0
          %4954 = vmatprep.subr.mxu0 0.0
          %4955 = vmatpush1.msra.mxu0 0.0
          %4956 = vmatprep.subr.mxu0 0.0
          %4957 = vmatpush1.msra.mxu0 0.0
          %4958 = vmatprep.subr.mxu0 0.0
          %4959 = vmatpush1.msra.mxu0 0.0
          %4960 = vmatprep.mubr.f32.mxu0 0.0
          %4961 = vmatmul.mubr.f32.gmra.mrb[0].mxu0 %v4720
          %v4962 = vpop.f32.mrb[0].mxu0
          %v4963 = vadd.f32 0.0, %v4962
          %v4964 = vpop.f32.mrb[0].mxu0
          %v4965 = vadd.f32 0.0, %v4964
          %4966 = vdwg.mxu0
          %4967 = vmatprep.subr.mxu0 %v4835
          %4968 = vmatpush1.msra.mxu0 %v4834
          %4969 = vmatprep.subr.mxu0 %v4839
          %4970 = vmatpush1.msra.mxu0 %v4838
          %4971 = vmatprep.subr.mxu0 %v4843
          %4972 = vmatpush1.msra.mxu0 %v4842
          %4973 = vmatprep.subr.mxu0 %v4847
          %4974 = vmatpush1.msra.mxu0 %v4846
          %4975 = vmatprep.subr.mxu0 %v4851
          %4976 = vmatpush1.msra.mxu0 %v4850
          %4977 = vmatprep.subr.mxu0 %v4855
          %4978 = vmatpush1.msra.mxu0 %v4854
          %4979 = vmatprep.subr.mxu0 %v4859
          %4980 = vmatpush1.msra.mxu0 %v4858
          %4981 = vmatprep.subr.mxu0 %v4863
          %4982 = vmatpush1.msra.mxu0 %v4862
          %4983 = vmatprep.subr.mxu0 %v4867
          %4984 = vmatpush1.msra.mxu0 %v4866
          %4985 = vmatprep.subr.mxu0 %v4871
          %4986 = vmatpush1.msra.mxu0 %v4870
          %4987 = vmatprep.subr.mxu0 %v4875
          %4988 = vmatpush1.msra.mxu0 %v4874
          %4989 = vmatprep.subr.mxu0 %v4879
          %4990 = vmatpush1.msra.mxu0 %v4878
          %4991 = vmatprep.subr.mxu0 %v4883
          %4992 = vmatpush1.msra.mxu0 %v4882
          %4993 = vmatprep.subr.mxu0 %v4887
          %4994 = vmatpush1.msra.mxu0 %v4886
          %4995 = vmatprep.subr.mxu0 %v4891
          %4996 = vmatpush1.msra.mxu0 %v4890
          %4997 = vmatprep.subr.mxu0 %v4895
          %4998 = vmatpush1.msra.mxu0 %v4894
          %4999 = vmatprep.subr.mxu0 0.0
          %5000 = vmatpush1.msra.mxu0 0.0
          %5001 = vmatprep.subr.mxu0 0.0
          %5002 = vmatpush1.msra.mxu0 0.0
          %5003 = vmatprep.subr.mxu0 0.0
          %5004 = vmatpush1.msra.mxu0 0.0
          %5005 = vmatprep.subr.mxu0 0.0
          %5006 = vmatpush1.msra.mxu0 0.0
          %5007 = vmatprep.subr.mxu0 0.0
          %5008 = vmatpush1.msra.mxu0 0.0
          %5009 = vmatprep.subr.mxu0 0.0
          %5010 = vmatpush1.msra.mxu0 0.0
          %5011 = vmatprep.subr.mxu0 0.0
          %5012 = vmatpush1.msra.mxu0 0.0
          %5013 = vmatprep.subr.mxu0 0.0
          %5014 = vmatpush1.msra.mxu0 0.0
          %5015 = vmatprep.subr.mxu0 0.0
          %5016 = vmatpush1.msra.mxu0 0.0
          %5017 = vmatprep.subr.mxu0 0.0
          %5018 = vmatpush1.msra.mxu0 0.0
          %5019 = vmatprep.subr.mxu0 0.0
          %5020 = vmatpush1.msra.mxu0 0.0
          %5021 = vmatprep.subr.mxu0 0.0
          %5022 = vmatpush1.msra.mxu0 0.0
          %5023 = vmatprep.subr.mxu0 0.0
          %5024 = vmatpush1.msra.mxu0 0.0
          %5025 = vmatprep.subr.mxu0 0.0
          %5026 = vmatpush1.msra.mxu0 0.0
          %5027 = vmatprep.subr.mxu0 0.0
          %5028 = vmatpush1.msra.mxu0 0.0
          %5029 = vmatprep.subr.mxu0 0.0
          %5030 = vmatpush1.msra.mxu0 0.0
          %5031 = vmatprep.mubr.f32.mxu0 0.0
          %5032 = vmatmul.mubr.f32.gmra.mrb[0].mxu0 %v4720
          %v5033 = vpop.f32.mrb[0].mxu0
          %v5034 = vadd.f32 0.0, %v5033
          %v5035 = vpop.f32.mrb[0].mxu0
          %v5036 = vadd.f32 0.0, %v5035
          %5037 = vdwg.mxu0
          %v5042 = vcombine.low %v4963, %v4965
          %v5043 = vcombine.low %v5034, %v5036
          %v5045 = vunpack.c.l.s4 1983009808
          %v5046 = vunpack.c.0.s8 %v5045
          %v5047 = vlaneseq
          %v5048 = vshrl.u32 %v5047, 7
          %v5049 = vsub.s32 %v5046, %v5048
          %v5050 = vrot.slane %v5042, %v5049
          %v5052 = vunpack.c.l.s4 1983009808
          %v5053 = vunpack.c.0.s8 %v5052
          %v5054 = vlaneseq
          %v5055 = vshrl.u32 %v5054, 7
          %v5056 = vsub.s32 %v5053, %v5055
          %v5057 = vrot.slane %v5043, %v5056
          %v5058 = vcombine.low %v5050, %v5057
          %v5060 = vadd.f32 %v4831, %v5058
          %v5061 = vxor.u32 %v5060, 2147483648
          %v5062 = vmul.f32 %v5061, 1.442695
          %v5063 = vpow.pop %v5062
          %v5064 = vadd.f32 %v5063, 1.0
          %v5065 = vrcp.pop %v5064
          %v5066 = vmul.f32 1.0, %v5065
          %v5068 = vrot.slane %v5060, 6
          %v5070 = vtanh.pop %v5068
          %v5072 = vrot.slane %v5066, 2
          %v5074 = vmul.f32 %v5072, %v4721
          %v5075 = vmul.f32 %v5066, %v5070
          %v5076 = vadd.f32 %v5074, %v5075
          %v5077 = vtanh.pop %v5076
          %v5078 = vrot.slane %v5066, 4
          %v5080 = vmul.f32 %v5078, %v5077
          %s5081 = sadd.s32 %s439, 3
          %v5082 = vstv %s5081
          %vm5083 = vcmp.lt.s32.totalorder %v5082, %v443
          %v5084 = vsel %vm5083, %v5080, %v4720
          %v5085 = vsel %vm5083, %v5076, %v4721
          %v5086 = vsel %vm5083, %v5080, 0.0
          %v5087 = vpack.c.bf16 %v5086, %v5086
          %v5088 = vld [vmem:[%s406] sm:$0xf]
          %v5089 = vld [vmem:[%s406 + $0x4] sm:$0xf]
          %v5090 = vld [vmem:[%s406 + $0x8] sm:$0xf]
          %v5091 = vld [vmem:[%s406 + $0xc] sm:$0xf]
          %v5092 = vld [vmem:[%s406 + $0x10] sm:$0xf]
          %v5093 = vld [vmem:[%s406 + $0x14] sm:$0xf]
          %v5094 = vld [vmem:[%s406 + $0x18] sm:$0xf]
          %v5095 = vld [vmem:[%s406 + $0x1c] sm:$0xf]
          %v5096 = vld [vmem:[%s406 + $0x20] sm:$0xf]
          %v5097 = vld [vmem:[%s406 + $0x24] sm:$0xf]
          %v5098 = vld [vmem:[%s406 + $0x28] sm:$0xf]
          %v5099 = vld [vmem:[%s406 + $0x2c] sm:$0xf]
          %v5100 = vld [vmem:[%s406 + $0x30] sm:$0xf]
          %v5101 = vld [vmem:[%s406 + $0x34] sm:$0xf]
          %v5102 = vld [vmem:[%s406 + $0x38] sm:$0xf]
          %v5103 = vld [vmem:[%s406 + $0x3c] sm:$0xf]
          %v5120 = vunpack.c.l.b16 %v5088
          %v5121 = vunpack.c.l.b16 %v5089
          %v5122 = vunpack.c.l.b16 %v5090
          %v5123 = vunpack.c.l.b16 %v5091
          %v5124 = vunpack.c.l.b16 %v5092
          %v5125 = vunpack.c.l.b16 %v5093
          %v5126 = vunpack.c.l.b16 %v5094
          %v5127 = vunpack.c.l.b16 %v5095
          %v5128 = vunpack.c.l.b16 %v5096
          %v5129 = vunpack.c.l.b16 %v5097
          %v5130 = vunpack.c.l.b16 %v5098
          %v5131 = vunpack.c.l.b16 %v5099
          %v5132 = vunpack.c.l.b16 %v5100
          %v5133 = vunpack.c.l.b16 %v5101
          %v5134 = vunpack.c.l.b16 %v5102
          %v5135 = vunpack.c.l.b16 %v5103
          %v5136 = vpack.c.b16 %v5121, %v5120
          %v5137 = vpack.c.b16 %v5123, %v5122
          %v5138 = vpack.c.b16 %v5125, %v5124
          %v5139 = vpack.c.b16 %v5127, %v5126
          %v5140 = vpack.c.b16 %v5129, %v5128
          %v5141 = vpack.c.b16 %v5131, %v5130
          %v5142 = vpack.c.b16 %v5133, %v5132
          %v5143 = vpack.c.b16 %v5135, %v5134
          %5152 = vmatprep.subr.bf16.mxu0 0
          %5153 = vmatpush1.bf16.msra.mxu0 %v5136
          %5154 = vmatprep.subr.bf16.mxu0 0
          %5155 = vmatpush1.bf16.msra.mxu0 %v5137
          %5156 = vmatprep.subr.bf16.mxu0 0
          %5157 = vmatpush1.bf16.msra.mxu0 %v5138
          %5158 = vmatprep.subr.bf16.mxu0 0
          %5159 = vmatpush1.bf16.msra.mxu0 %v5139
          %5160 = vmatprep.subr.bf16.mxu0 0
          %5161 = vmatpush1.bf16.msra.mxu0 %v5140
          %5162 = vmatprep.subr.bf16.mxu0 0
          %5163 = vmatpush1.bf16.msra.mxu0 %v5141
          %5164 = vmatprep.subr.bf16.mxu0 0
          %5165 = vmatpush1.bf16.msra.mxu0 %v5142
          %5166 = vmatprep.subr.bf16.mxu0 0
          %5167 = vmatpush1.bf16.msra.mxu0 %v5143
          %5168 = vmatprep.subr.bf16.mxu0 0
          %5169 = vmatpush1.bf16.msra.mxu0 0
          %5170 = vmatprep.subr.bf16.mxu0 0
          %5171 = vmatpush1.bf16.msra.mxu0 0
          %5172 = vmatprep.subr.bf16.mxu0 0
          %5173 = vmatpush1.bf16.msra.mxu0 0
          %5174 = vmatprep.subr.bf16.mxu0 0
          %5175 = vmatpush1.bf16.msra.mxu0 0
          %5176 = vmatprep.subr.bf16.mxu0 0
          %5177 = vmatpush1.bf16.msra.mxu0 0
          %5178 = vmatprep.subr.bf16.mxu0 0
          %5179 = vmatpush1.bf16.msra.mxu0 0
          %5180 = vmatprep.subr.bf16.mxu0 0
          %5181 = vmatpush1.bf16.msra.mxu0 0
          %5182 = vmatprep.subr.bf16.mxu0 0
          %5183 = vmatpush1.bf16.msra.mxu0 0
          %5184 = vmatprep.mubr.bf16.mxu0 0
          %5185 = vmatmul.mubr.bf16.gmra.mrb[0].mxu0 %v5087
          %v5186 = vpop.f32.mrb[0].mxu0
          %v5187 = vadd.f32 %v449, %v5186
          %v5188 = vpop.f32.mrb[0].mxu0
          %v5189 = vpop.f32.mrb[0].mxu0
          %v5190 = vpop.f32.mrb[0].mxu0
          %5191 = vdwg.mxu0
          %s5192 = scalar_lea.vmem %s422, 6
          %5193 = vst [vmem:[%s5192] sm:$0x3] %v5187
          %s5194 = scalar_lea.vmem %s341, 16 [#allocation4]
          %v5195 = vld [vmem:[%s5194] sm:$0xff]
          %v5196 = vld [vmem:[%s349] sm:$0xff]
          %v5197 = vld [vmem:[%s349 + $0x8] sm:$0xff]
          %v5198 = vld [vmem:[%s349 + $0x10] sm:$0xff]
          %v5199 = vld [vmem:[%s349 + $0x18] sm:$0xff]
          %v5200 = vld [vmem:[%s349 + $0x20] sm:$0xff]
          %v5201 = vld [vmem:[%s349 + $0x28] sm:$0xff]
          %v5202 = vld [vmem:[%s349 + $0x30] sm:$0xff]
          %v5203 = vld [vmem:[%s349 + $0x38] sm:$0xff]
          %v5204 = vld [vmem:[%s349 + $0x40] sm:$0xff]
          %v5205 = vld [vmem:[%s349 + $0x48] sm:$0xff]
          %v5206 = vld [vmem:[%s349 + $0x50] sm:$0xff]
          %v5207 = vld [vmem:[%s349 + $0x58] sm:$0xff]
          %v5208 = vld [vmem:[%s349 + $0x60] sm:$0xff]
          %v5209 = vld [vmem:[%s349 + $0x68] sm:$0xff]
          %v5210 = vld [vmem:[%s349 + $0x70] sm:$0xff]
          %v5211 = vld [vmem:[%s349 + $0x78] sm:$0xff]
          %v5212 = vld [vmem:[%s349 + $0x80] sm:$0xff]
          %v5213 = vld [vmem:[%s349 + $0x88] sm:$0xff]
          %v5214 = vld [vmem:[%s349 + $0x90] sm:$0xff]
          %v5215 = vld [vmem:[%s349 + $0x98] sm:$0xff]
          %v5216 = vld [vmem:[%s349 + $0xa0] sm:$0xff]
          %v5217 = vld [vmem:[%s349 + $0xa8] sm:$0xff]
          %v5218 = vld [vmem:[%s349 + $0xb0] sm:$0xff]
          %v5219 = vld [vmem:[%s349 + $0xb8] sm:$0xff]
          %v5220 = vld [vmem:[%s349 + $0xc0] sm:$0xff]
          %v5221 = vld [vmem:[%s349 + $0xc8] sm:$0xff]
          %v5222 = vld [vmem:[%s349 + $0xd0] sm:$0xff]
          %v5223 = vld [vmem:[%s349 + $0xd8] sm:$0xff]
          %v5224 = vld [vmem:[%s349 + $0xe0] sm:$0xff]
          %v5225 = vld [vmem:[%s349 + $0xe8] sm:$0xff]
          %v5226 = vld [vmem:[%s349 + $0xf0] sm:$0xff]
          %v5227 = vld [vmem:[%s349 + $0xf8] sm:$0xff]
          %v5228 = vld [vmem:[%s349 + $0x100] sm:$0xff]
          %v5229 = vld [vmem:[%s349 + $0x108] sm:$0xff]
          %v5230 = vld [vmem:[%s349 + $0x110] sm:$0xff]
          %v5231 = vld [vmem:[%s349 + $0x118] sm:$0xff]
          %v5232 = vld [vmem:[%s349 + $0x120] sm:$0xff]
          %v5233 = vld [vmem:[%s349 + $0x128] sm:$0xff]
          %v5234 = vld [vmem:[%s349 + $0x130] sm:$0xff]
          %v5235 = vld [vmem:[%s349 + $0x138] sm:$0xff]
          %v5236 = vld [vmem:[%s349 + $0x140] sm:$0xff]
          %v5237 = vld [vmem:[%s349 + $0x148] sm:$0xff]
          %v5238 = vld [vmem:[%s349 + $0x150] sm:$0xff]
          %v5239 = vld [vmem:[%s349 + $0x158] sm:$0xff]
          %v5240 = vld [vmem:[%s349 + $0x160] sm:$0xff]
          %v5241 = vld [vmem:[%s349 + $0x168] sm:$0xff]
          %v5242 = vld [vmem:[%s349 + $0x170] sm:$0xff]
          %v5243 = vld [vmem:[%s349 + $0x178] sm:$0xff]
          %v5244 = vld [vmem:[%s349 + $0x180] sm:$0xff]
          %v5245 = vld [vmem:[%s349 + $0x188] sm:$0xff]
          %v5246 = vld [vmem:[%s349 + $0x190] sm:$0xff]
          %v5247 = vld [vmem:[%s349 + $0x198] sm:$0xff]
          %v5248 = vld [vmem:[%s349 + $0x1a0] sm:$0xff]
          %v5249 = vld [vmem:[%s349 + $0x1a8] sm:$0xff]
          %v5250 = vld [vmem:[%s349 + $0x1b0] sm:$0xff]
          %v5251 = vld [vmem:[%s349 + $0x1b8] sm:$0xff]
          %v5252 = vld [vmem:[%s349 + $0x1c0] sm:$0xff]
          %v5253 = vld [vmem:[%s349 + $0x1c8] sm:$0xff]
          %v5254 = vld [vmem:[%s349 + $0x1d0] sm:$0xff]
          %v5255 = vld [vmem:[%s349 + $0x1d8] sm:$0xff]
          %v5256 = vld [vmem:[%s349 + $0x1e0] sm:$0xff]
          %v5257 = vld [vmem:[%s349 + $0x1e8] sm:$0xff]
          %v5258 = vld [vmem:[%s349 + $0x1f0] sm:$0xff]
          %v5259 = vld [vmem:[%s349 + $0x1f8] sm:$0xff]
          %5260 = vmatprep.subr.mxu0 %v5197
          %5261 = vmatpush1.msra.mxu0 %v5196
          %5262 = vmatprep.subr.mxu0 %v5201
          %5263 = vmatpush1.msra.mxu0 %v5200
          %5264 = vmatprep.subr.mxu0 %v5205
          %5265 = vmatpush1.msra.mxu0 %v5204
          %5266 = vmatprep.subr.mxu0 %v5209
          %5267 = vmatpush1.msra.mxu0 %v5208
          %5268 = vmatprep.subr.mxu0 %v5213
          %5269 = vmatpush1.msra.mxu0 %v5212
          %5270 = vmatprep.subr.mxu0 %v5217
          %5271 = vmatpush1.msra.mxu0 %v5216
          %5272 = vmatprep.subr.mxu0 %v5221
          %5273 = vmatpush1.msra.mxu0 %v5220
          %5274 = vmatprep.subr.mxu0 %v5225
          %5275 = vmatpush1.msra.mxu0 %v5224
          %5276 = vmatprep.subr.mxu0 %v5229
          %5277 = vmatpush1.msra.mxu0 %v5228
          %5278 = vmatprep.subr.mxu0 %v5233
          %5279 = vmatpush1.msra.mxu0 %v5232
          %5280 = vmatprep.subr.mxu0 %v5237
          %5281 = vmatpush1.msra.mxu0 %v5236
          %5282 = vmatprep.subr.mxu0 %v5241
          %5283 = vmatpush1.msra.mxu0 %v5240
          %5284 = vmatprep.subr.mxu0 %v5245
          %5285 = vmatpush1.msra.mxu0 %v5244
          %5286 = vmatprep.subr.mxu0 %v5249
          %5287 = vmatpush1.msra.mxu0 %v5248
          %5288 = vmatprep.subr.mxu0 %v5253
          %5289 = vmatpush1.msra.mxu0 %v5252
          %5290 = vmatprep.subr.mxu0 %v5257
          %5291 = vmatpush1.msra.mxu0 %v5256
          %5292 = vmatprep.subr.mxu0 0.0
          %5293 = vmatpush1.msra.mxu0 0.0
          %5294 = vmatprep.subr.mxu0 0.0
          %5295 = vmatpush1.msra.mxu0 0.0
          %5296 = vmatprep.subr.mxu0 0.0
          %5297 = vmatpush1.msra.mxu0 0.0
          %5298 = vmatprep.subr.mxu0 0.0
          %5299 = vmatpush1.msra.mxu0 0.0
          %5300 = vmatprep.subr.mxu0 0.0
          %5301 = vmatpush1.msra.mxu0 0.0
          %5302 = vmatprep.subr.mxu0 0.0
          %5303 = vmatpush1.msra.mxu0 0.0
          %5304 = vmatprep.subr.mxu0 0.0
          %5305 = vmatpush1.msra.mxu0 0.0
          %5306 = vmatprep.subr.mxu0 0.0
          %5307 = vmatpush1.msra.mxu0 0.0
          %5308 = vmatprep.subr.mxu0 0.0
          %5309 = vmatpush1.msra.mxu0 0.0
          %5310 = vmatprep.subr.mxu0 0.0
          %5311 = vmatpush1.msra.mxu0 0.0
          %5312 = vmatprep.subr.mxu0 0.0
          %5313 = vmatpush1.msra.mxu0 0.0
          %5314 = vmatprep.subr.mxu0 0.0
          %5315 = vmatpush1.msra.mxu0 0.0
          %5316 = vmatprep.subr.mxu0 0.0
          %5317 = vmatpush1.msra.mxu0 0.0
          %5318 = vmatprep.subr.mxu0 0.0
          %5319 = vmatpush1.msra.mxu0 0.0
          %5320 = vmatprep.subr.mxu0 0.0
          %5321 = vmatpush1.msra.mxu0 0.0
          %5322 = vmatprep.subr.mxu0 0.0
          %5323 = vmatpush1.msra.mxu0 0.0
          %5324 = vmatprep.mubr.f32.mxu0 0.0
          %5325 = vmatmul.mubr.f32.gmra.mrb[0].mxu0 %v5084
          %v5326 = vpop.f32.mrb[0].mxu0
          %v5327 = vadd.f32 0.0, %v5326
          %v5328 = vpop.f32.mrb[0].mxu0
          %v5329 = vadd.f32 0.0, %v5328
          %5330 = vdwg.mxu0
          %5331 = vmatprep.subr.mxu0 %v5199
          %5332 = vmatpush1.msra.mxu0 %v5198
          %5333 = vmatprep.subr.mxu0 %v5203
          %5334 = vmatpush1.msra.mxu0 %v5202
          %5335 = vmatprep.subr.mxu0 %v5207
          %5336 = vmatpush1.msra.mxu0 %v5206
          %5337 = vmatprep.subr.mxu0 %v5211
          %5338 = vmatpush1.msra.mxu0 %v5210
          %5339 = vmatprep.subr.mxu0 %v5215
          %5340 = vmatpush1.msra.mxu0 %v5214
          %5341 = vmatprep.subr.mxu0 %v5219
          %5342 = vmatpush1.msra.mxu0 %v5218
          %5343 = vmatprep.subr.mxu0 %v5223
          %5344 = vmatpush1.msra.mxu0 %v5222
          %5345 = vmatprep.subr.mxu0 %v5227
          %5346 = vmatpush1.msra.mxu0 %v5226
          %5347 = vmatprep.subr.mxu0 %v5231
          %5348 = vmatpush1.msra.mxu0 %v5230
          %5349 = vmatprep.subr.mxu0 %v5235
          %5350 = vmatpush1.msra.mxu0 %v5234
          %5351 = vmatprep.subr.mxu0 %v5239
          %5352 = vmatpush1.msra.mxu0 %v5238
          %5353 = vmatprep.subr.mxu0 %v5243
          %5354 = vmatpush1.msra.mxu0 %v5242
          %5355 = vmatprep.subr.mxu0 %v5247
          %5356 = vmatpush1.msra.mxu0 %v5246
          %5357 = vmatprep.subr.mxu0 %v5251
          %5358 = vmatpush1.msra.mxu0 %v5250
          %5359 = vmatprep.subr.mxu0 %v5255
          %5360 = vmatpush1.msra.mxu0 %v5254
          %5361 = vmatprep.subr.mxu0 %v5259
          %5362 = vmatpush1.msra.mxu0 %v5258
          %5363 = vmatprep.subr.mxu0 0.0
          %5364 = vmatpush1.msra.mxu0 0.0
          %5365 = vmatprep.subr.mxu0 0.0
          %5366 = vmatpush1.msra.mxu0 0.0
          %5367 = vmatprep.subr.mxu0 0.0
          %5368 = vmatpush1.msra.mxu0 0.0
          %5369 = vmatprep.subr.mxu0 0.0
          %5370 = vmatpush1.msra.mxu0 0.0
          %5371 = vmatprep.subr.mxu0 0.0
          %5372 = vmatpush1.msra.mxu0 0.0
          %5373 = vmatprep.subr.mxu0 0.0
          %5374 = vmatpush1.msra.mxu0 0.0
          %5375 = vmatprep.subr.mxu0 0.0
          %5376 = vmatpush1.msra.mxu0 0.0
          %5377 = vmatprep.subr.mxu0 0.0
          %5378 = vmatpush1.msra.mxu0 0.0
          %5379 = vmatprep.subr.mxu0 0.0
          %5380 = vmatpush1.msra.mxu0 0.0
          %5381 = vmatprep.subr.mxu0 0.0
          %5382 = vmatpush1.msra.mxu0 0.0
          %5383 = vmatprep.subr.mxu0 0.0
          %5384 = vmatpush1.msra.mxu0 0.0
          %5385 = vmatprep.subr.mxu0 0.0
          %5386 = vmatpush1.msra.mxu0 0.0
          %5387 = vmatprep.subr.mxu0 0.0
          %5388 = vmatpush1.msra.mxu0 0.0
          %5389 = vmatprep.subr.mxu0 0.0
          %5390 = vmatpush1.msra.mxu0 0.0
          %5391 = vmatprep.subr.mxu0 0.0
          %5392 = vmatpush1.msra.mxu0 0.0
          %5393 = vmatprep.subr.mxu0 0.0
          %5394 = vmatpush1.msra.mxu0 0.0
          %5395 = vmatprep.mubr.f32.mxu0 0.0
          %5396 = vmatmul.mubr.f32.gmra.mrb[0].mxu0 %v5084
          %v5397 = vpop.f32.mrb[0].mxu0
          %v5398 = vadd.f32 0.0, %v5397
          %v5399 = vpop.f32.mrb[0].mxu0
          %v5400 = vadd.f32 0.0, %v5399
          %5401 = vdwg.mxu0
          %v5406 = vcombine.low %v5327, %v5329
          %v5407 = vcombine.low %v5398, %v5400
          %v5409 = vunpack.c.l.s4 1983009808
          %v5410 = vunpack.c.0.s8 %v5409
          %v5411 = vlaneseq
          %v5412 = vshrl.u32 %v5411, 7
          %v5413 = vsub.s32 %v5410, %v5412
          %v5414 = vrot.slane %v5406, %v5413
          %v5416 = vunpack.c.l.s4 1983009808
          %v5417 = vunpack.c.0.s8 %v5416
          %v5418 = vlaneseq
          %v5419 = vshrl.u32 %v5418, 7
          %v5420 = vsub.s32 %v5417, %v5419
          %v5421 = vrot.slane %v5407, %v5420
          %v5422 = vcombine.low %v5414, %v5421
          %v5424 = vadd.f32 %v5195, %v5422
          %v5425 = vxor.u32 %v5424, 2147483648
          %v5426 = vmul.f32 %v5425, 1.442695
          %v5427 = vpow.pop %v5426
          %v5428 = vadd.f32 %v5427, 1.0
          %v5429 = vrcp.pop %v5428
          %v5430 = vmul.f32 1.0, %v5429
          %v5432 = vrot.slane %v5424, 6
          %v5434 = vtanh.pop %v5432
          %v5436 = vrot.slane %v5430, 2
          %v5438 = vmul.f32 %v5436, %v5085
          %v5439 = vmul.f32 %v5430, %v5434
          %v5440 = vadd.f32 %v5438, %v5439
          %v5441 = vtanh.pop %v5440
          %v5442 = vrot.slane %v5430, 4
          %v5444 = vmul.f32 %v5442, %v5441
          %s5445 = sadd.s32 %s439, 2
          %v5446 = vstv %s5445
          %vm5447 = vcmp.lt.s32.totalorder %v5446, %v443
          %v5448 = vsel %vm5447, %v5444, %v5084
          %v5449 = vsel %vm5447, %v5440, %v5085
          %v5450 = vsel %vm5447, %v5444, 0.0
          %v5451 = vpack.c.bf16 %v5450, %v5450
          %v5452 = vld [vmem:[%s406] sm:$0xf]
          %v5453 = vld [vmem:[%s406 + $0x4] sm:$0xf]
          %v5454 = vld [vmem:[%s406 + $0x8] sm:$0xf]
          %v5455 = vld [vmem:[%s406 + $0xc] sm:$0xf]
          %v5456 = vld [vmem:[%s406 + $0x10] sm:$0xf]
          %v5457 = vld [vmem:[%s406 + $0x14] sm:$0xf]
          %v5458 = vld [vmem:[%s406 + $0x18] sm:$0xf]
          %v5459 = vld [vmem:[%s406 + $0x1c] sm:$0xf]
          %v5460 = vld [vmem:[%s406 + $0x20] sm:$0xf]
          %v5461 = vld [vmem:[%s406 + $0x24] sm:$0xf]
          %v5462 = vld [vmem:[%s406 + $0x28] sm:$0xf]
          %v5463 = vld [vmem:[%s406 + $0x2c] sm:$0xf]
          %v5464 = vld [vmem:[%s406 + $0x30] sm:$0xf]
          %v5465 = vld [vmem:[%s406 + $0x34] sm:$0xf]
          %v5466 = vld [vmem:[%s406 + $0x38] sm:$0xf]
          %v5467 = vld [vmem:[%s406 + $0x3c] sm:$0xf]
          %v5484 = vunpack.c.l.b16 %v5452
          %v5485 = vunpack.c.l.b16 %v5453
          %v5486 = vunpack.c.l.b16 %v5454
          %v5487 = vunpack.c.l.b16 %v5455
          %v5488 = vunpack.c.l.b16 %v5456
          %v5489 = vunpack.c.l.b16 %v5457
          %v5490 = vunpack.c.l.b16 %v5458
          %v5491 = vunpack.c.l.b16 %v5459
          %v5492 = vunpack.c.l.b16 %v5460
          %v5493 = vunpack.c.l.b16 %v5461
          %v5494 = vunpack.c.l.b16 %v5462
          %v5495 = vunpack.c.l.b16 %v5463
          %v5496 = vunpack.c.l.b16 %v5464
          %v5497 = vunpack.c.l.b16 %v5465
          %v5498 = vunpack.c.l.b16 %v5466
          %v5499 = vunpack.c.l.b16 %v5467
          %v5500 = vpack.c.b16 %v5485, %v5484
          %v5501 = vpack.c.b16 %v5487, %v5486
          %v5502 = vpack.c.b16 %v5489, %v5488
          %v5503 = vpack.c.b16 %v5491, %v5490
          %v5504 = vpack.c.b16 %v5493, %v5492
          %v5505 = vpack.c.b16 %v5495, %v5494
          %v5506 = vpack.c.b16 %v5497, %v5496
          %v5507 = vpack.c.b16 %v5499, %v5498
          %5516 = vmatprep.subr.bf16.mxu0 0
          %5517 = vmatpush1.bf16.msra.mxu0 %v5500
          %5518 = vmatprep.subr.bf16.mxu0 0
          %5519 = vmatpush1.bf16.msra.mxu0 %v5501
          %5520 = vmatprep.subr.bf16.mxu0 0
          %5521 = vmatpush1.bf16.msra.mxu0 %v5502
          %5522 = vmatprep.subr.bf16.mxu0 0
          %5523 = vmatpush1.bf16.msra.mxu0 %v5503
          %5524 = vmatprep.subr.bf16.mxu0 0
          %5525 = vmatpush1.bf16.msra.mxu0 %v5504
          %5526 = vmatprep.subr.bf16.mxu0 0
          %5527 = vmatpush1.bf16.msra.mxu0 %v5505
          %5528 = vmatprep.subr.bf16.mxu0 0
          %5529 = vmatpush1.bf16.msra.mxu0 %v5506
          %5530 = vmatprep.subr.bf16.mxu0 0
          %5531 = vmatpush1.bf16.msra.mxu0 %v5507
          %5532 = vmatprep.subr.bf16.mxu0 0
          %5533 = vmatpush1.bf16.msra.mxu0 0
          %5534 = vmatprep.subr.bf16.mxu0 0
          %5535 = vmatpush1.bf16.msra.mxu0 0
          %5536 = vmatprep.subr.bf16.mxu0 0
          %5537 = vmatpush1.bf16.msra.mxu0 0
          %5538 = vmatprep.subr.bf16.mxu0 0
          %5539 = vmatpush1.bf16.msra.mxu0 0
          %5540 = vmatprep.subr.bf16.mxu0 0
          %5541 = vmatpush1.bf16.msra.mxu0 0
          %5542 = vmatprep.subr.bf16.mxu0 0
          %5543 = vmatpush1.bf16.msra.mxu0 0
          %5544 = vmatprep.subr.bf16.mxu0 0
          %5545 = vmatpush1.bf16.msra.mxu0 0
          %5546 = vmatprep.subr.bf16.mxu0 0
          %5547 = vmatpush1.bf16.msra.mxu0 0
          %5548 = vmatprep.mubr.bf16.mxu0 0
          %5549 = vmatmul.mubr.bf16.gmra.mrb[0].mxu0 %v5451
          %v5550 = vpop.f32.mrb[0].mxu0
          %v5551 = vadd.f32 %v449, %v5550
          %v5552 = vpop.f32.mrb[0].mxu0
          %v5553 = vpop.f32.mrb[0].mxu0
          %v5554 = vpop.f32.mrb[0].mxu0
          %5555 = vdwg.mxu0
          %s5556 = scalar_lea.vmem %s422, 4
          %5557 = vst [vmem:[%s5556] sm:$0x3] %v5551
          %s5558 = scalar_lea.vmem %s341, 8 [#allocation4]
          %v5559 = vld [vmem:[%s5558] sm:$0xff]
          %v5560 = vld [vmem:[%s349] sm:$0xff]
          %v5561 = vld [vmem:[%s349 + $0x8] sm:$0xff]
          %v5562 = vld [vmem:[%s349 + $0x10] sm:$0xff]
          %v5563 = vld [vmem:[%s349 + $0x18] sm:$0xff]
          %v5564 = vld [vmem:[%s349 + $0x20] sm:$0xff]
          %v5565 = vld [vmem:[%s349 + $0x28] sm:$0xff]
          %v5566 = vld [vmem:[%s349 + $0x30] sm:$0xff]
          %v5567 = vld [vmem:[%s349 + $0x38] sm:$0xff]
          %v5568 = vld [vmem:[%s349 + $0x40] sm:$0xff]
          %v5569 = vld [vmem:[%s349 + $0x48] sm:$0xff]
          %v5570 = vld [vmem:[%s349 + $0x50] sm:$0xff]
          %v5571 = vld [vmem:[%s349 + $0x58] sm:$0xff]
          %v5572 = vld [vmem:[%s349 + $0x60] sm:$0xff]
          %v5573 = vld [vmem:[%s349 + $0x68] sm:$0xff]
          %v5574 = vld [vmem:[%s349 + $0x70] sm:$0xff]
          %v5575 = vld [vmem:[%s349 + $0x78] sm:$0xff]
          %v5576 = vld [vmem:[%s349 + $0x80] sm:$0xff]
          %v5577 = vld [vmem:[%s349 + $0x88] sm:$0xff]
          %v5578 = vld [vmem:[%s349 + $0x90] sm:$0xff]
          %v5579 = vld [vmem:[%s349 + $0x98] sm:$0xff]
          %v5580 = vld [vmem:[%s349 + $0xa0] sm:$0xff]
          %v5581 = vld [vmem:[%s349 + $0xa8] sm:$0xff]
          %v5582 = vld [vmem:[%s349 + $0xb0] sm:$0xff]
          %v5583 = vld [vmem:[%s349 + $0xb8] sm:$0xff]
          %v5584 = vld [vmem:[%s349 + $0xc0] sm:$0xff]
          %v5585 = vld [vmem:[%s349 + $0xc8] sm:$0xff]
          %v5586 = vld [vmem:[%s349 + $0xd0] sm:$0xff]
          %v5587 = vld [vmem:[%s349 + $0xd8] sm:$0xff]
          %v5588 = vld [vmem:[%s349 + $0xe0] sm:$0xff]
          %v5589 = vld [vmem:[%s349 + $0xe8] sm:$0xff]
          %v5590 = vld [vmem:[%s349 + $0xf0] sm:$0xff]
          %v5591 = vld [vmem:[%s349 + $0xf8] sm:$0xff]
          %v5592 = vld [vmem:[%s349 + $0x100] sm:$0xff]
          %v5593 = vld [vmem:[%s349 + $0x108] sm:$0xff]
          %v5594 = vld [vmem:[%s349 + $0x110] sm:$0xff]
          %v5595 = vld [vmem:[%s349 + $0x118] sm:$0xff]
          %v5596 = vld [vmem:[%s349 + $0x120] sm:$0xff]
          %v5597 = vld [vmem:[%s349 + $0x128] sm:$0xff]
          %v5598 = vld [vmem:[%s349 + $0x130] sm:$0xff]
          %v5599 = vld [vmem:[%s349 + $0x138] sm:$0xff]
          %v5600 = vld [vmem:[%s349 + $0x140] sm:$0xff]
          %v5601 = vld [vmem:[%s349 + $0x148] sm:$0xff]
          %v5602 = vld [vmem:[%s349 + $0x150] sm:$0xff]
          %v5603 = vld [vmem:[%s349 + $0x158] sm:$0xff]
          %v5604 = vld [vmem:[%s349 + $0x160] sm:$0xff]
          %v5605 = vld [vmem:[%s349 + $0x168] sm:$0xff]
          %v5606 = vld [vmem:[%s349 + $0x170] sm:$0xff]
          %v5607 = vld [vmem:[%s349 + $0x178] sm:$0xff]
          %v5608 = vld [vmem:[%s349 + $0x180] sm:$0xff]
          %v5609 = vld [vmem:[%s349 + $0x188] sm:$0xff]
          %v5610 = vld [vmem:[%s349 + $0x190] sm:$0xff]
          %v5611 = vld [vmem:[%s349 + $0x198] sm:$0xff]
          %v5612 = vld [vmem:[%s349 + $0x1a0] sm:$0xff]
          %v5613 = vld [vmem:[%s349 + $0x1a8] sm:$0xff]
          %v5614 = vld [vmem:[%s349 + $0x1b0] sm:$0xff]
          %v5615 = vld [vmem:[%s349 + $0x1b8] sm:$0xff]
          %v5616 = vld [vmem:[%s349 + $0x1c0] sm:$0xff]
          %v5617 = vld [vmem:[%s349 + $0x1c8] sm:$0xff]
          %v5618 = vld [vmem:[%s349 + $0x1d0] sm:$0xff]
          %v5619 = vld [vmem:[%s349 + $0x1d8] sm:$0xff]
          %v5620 = vld [vmem:[%s349 + $0x1e0] sm:$0xff]
          %v5621 = vld [vmem:[%s349 + $0x1e8] sm:$0xff]
          %v5622 = vld [vmem:[%s349 + $0x1f0] sm:$0xff]
          %v5623 = vld [vmem:[%s349 + $0x1f8] sm:$0xff]
          %5624 = vmatprep.subr.mxu0 %v5561
          %5625 = vmatpush1.msra.mxu0 %v5560
          %5626 = vmatprep.subr.mxu0 %v5565
          %5627 = vmatpush1.msra.mxu0 %v5564
          %5628 = vmatprep.subr.mxu0 %v5569
          %5629 = vmatpush1.msra.mxu0 %v5568
          %5630 = vmatprep.subr.mxu0 %v5573
          %5631 = vmatpush1.msra.mxu0 %v5572
          %5632 = vmatprep.subr.mxu0 %v5577
          %5633 = vmatpush1.msra.mxu0 %v5576
          %5634 = vmatprep.subr.mxu0 %v5581
          %5635 = vmatpush1.msra.mxu0 %v5580
          %5636 = vmatprep.subr.mxu0 %v5585
          %5637 = vmatpush1.msra.mxu0 %v5584
          %5638 = vmatprep.subr.mxu0 %v5589
          %5639 = vmatpush1.msra.mxu0 %v5588
          %5640 = vmatprep.subr.mxu0 %v5593
          %5641 = vmatpush1.msra.mxu0 %v5592
          %5642 = vmatprep.subr.mxu0 %v5597
          %5643 = vmatpush1.msra.mxu0 %v5596
          %5644 = vmatprep.subr.mxu0 %v5601
          %5645 = vmatpush1.msra.mxu0 %v5600
          %5646 = vmatprep.subr.mxu0 %v5605
          %5647 = vmatpush1.msra.mxu0 %v5604
          %5648 = vmatprep.subr.mxu0 %v5609
          %5649 = vmatpush1.msra.mxu0 %v5608
          %5650 = vmatprep.subr.mxu0 %v5613
          %5651 = vmatpush1.msra.mxu0 %v5612
          %5652 = vmatprep.subr.mxu0 %v5617
          %5653 = vmatpush1.msra.mxu0 %v5616
          %5654 = vmatprep.subr.mxu0 %v5621
          %5655 = vmatpush1.msra.mxu0 %v5620
          %5656 = vmatprep.subr.mxu0 0.0
          %5657 = vmatpush1.msra.mxu0 0.0
          %5658 = vmatprep.subr.mxu0 0.0
          %5659 = vmatpush1.msra.mxu0 0.0
          %5660 = vmatprep.subr.mxu0 0.0
          %5661 = vmatpush1.msra.mxu0 0.0
          %5662 = vmatprep.subr.mxu0 0.0
          %5663 = vmatpush1.msra.mxu0 0.0
          %5664 = vmatprep.subr.mxu0 0.0
          %5665 = vmatpush1.msra.mxu0 0.0
          %5666 = vmatprep.subr.mxu0 0.0
          %5667 = vmatpush1.msra.mxu0 0.0
          %5668 = vmatprep.subr.mxu0 0.0
          %5669 = vmatpush1.msra.mxu0 0.0
          %5670 = vmatprep.subr.mxu0 0.0
          %5671 = vmatpush1.msra.mxu0 0.0
          %5672 = vmatprep.subr.mxu0 0.0
          %5673 = vmatpush1.msra.mxu0 0.0
          %5674 = vmatprep.subr.mxu0 0.0
          %5675 = vmatpush1.msra.mxu0 0.0
          %5676 = vmatprep.subr.mxu0 0.0
          %5677 = vmatpush1.msra.mxu0 0.0
          %5678 = vmatprep.subr.mxu0 0.0
          %5679 = vmatpush1.msra.mxu0 0.0
          %5680 = vmatprep.subr.mxu0 0.0
          %5681 = vmatpush1.msra.mxu0 0.0
          %5682 = vmatprep.subr.mxu0 0.0
          %5683 = vmatpush1.msra.mxu0 0.0
          %5684 = vmatprep.subr.mxu0 0.0
          %5685 = vmatpush1.msra.mxu0 0.0
          %5686 = vmatprep.subr.mxu0 0.0
          %5687 = vmatpush1.msra.mxu0 0.0
          %5688 = vmatprep.mubr.f32.mxu0 0.0
          %5689 = vmatmul.mubr.f32.gmra.mrb[0].mxu0 %v5448
          %v5690 = vpop.f32.mrb[0].mxu0
          %v5691 = vadd.f32 0.0, %v5690
          %v5692 = vpop.f32.mrb[0].mxu0
          %v5693 = vadd.f32 0.0, %v5692
          %5694 = vdwg.mxu0
          %5695 = vmatprep.subr.mxu0 %v5563
          %5696 = vmatpush1.msra.mxu0 %v5562
          %5697 = vmatprep.subr.mxu0 %v5567
          %5698 = vmatpush1.msra.mxu0 %v5566
          %5699 = vmatprep.subr.mxu0 %v5571
          %5700 = vmatpush1.msra.mxu0 %v5570
          %5701 = vmatprep.subr.mxu0 %v5575
          %5702 = vmatpush1.msra.mxu0 %v5574
          %5703 = vmatprep.subr.mxu0 %v5579
          %5704 = vmatpush1.msra.mxu0 %v5578
          %5705 = vmatprep.subr.mxu0 %v5583
          %5706 = vmatpush1.msra.mxu0 %v5582
          %5707 = vmatprep.subr.mxu0 %v5587
          %5708 = vmatpush1.msra.mxu0 %v5586
          %5709 = vmatprep.subr.mxu0 %v5591
          %5710 = vmatpush1.msra.mxu0 %v5590
          %5711 = vmatprep.subr.mxu0 %v5595
          %5712 = vmatpush1.msra.mxu0 %v5594
          %5713 = vmatprep.subr.mxu0 %v5599
          %5714 = vmatpush1.msra.mxu0 %v5598
          %5715 = vmatprep.subr.mxu0 %v5603
          %5716 = vmatpush1.msra.mxu0 %v5602
          %5717 = vmatprep.subr.mxu0 %v5607
          %5718 = vmatpush1.msra.mxu0 %v5606
          %5719 = vmatprep.subr.mxu0 %v5611
          %5720 = vmatpush1.msra.mxu0 %v5610
          %5721 = vmatprep.subr.mxu0 %v5615
          %5722 = vmatpush1.msra.mxu0 %v5614
          %5723 = vmatprep.subr.mxu0 %v5619
          %5724 = vmatpush1.msra.mxu0 %v5618
          %5725 = vmatprep.subr.mxu0 %v5623
          %5726 = vmatpush1.msra.mxu0 %v5622
          %5727 = vmatprep.subr.mxu0 0.0
          %5728 = vmatpush1.msra.mxu0 0.0
          %5729 = vmatprep.subr.mxu0 0.0
          %5730 = vmatpush1.msra.mxu0 0.0
          %5731 = vmatprep.subr.mxu0 0.0
          %5732 = vmatpush1.msra.mxu0 0.0
          %5733 = vmatprep.subr.mxu0 0.0
          %5734 = vmatpush1.msra.mxu0 0.0
          %5735 = vmatprep.subr.mxu0 0.0
          %5736 = vmatpush1.msra.mxu0 0.0
          %5737 = vmatprep.subr.mxu0 0.0
          %5738 = vmatpush1.msra.mxu0 0.0
          %5739 = vmatprep.subr.mxu0 0.0
          %5740 = vmatpush1.msra.mxu0 0.0
          %5741 = vmatprep.subr.mxu0 0.0
          %5742 = vmatpush1.msra.mxu0 0.0
          %5743 = vmatprep.subr.mxu0 0.0
          %5744 = vmatpush1.msra.mxu0 0.0
          %5745 = vmatprep.subr.mxu0 0.0
          %5746 = vmatpush1.msra.mxu0 0.0
          %5747 = vmatprep.subr.mxu0 0.0
          %5748 = vmatpush1.msra.mxu0 0.0
          %5749 = vmatprep.subr.mxu0 0.0
          %5750 = vmatpush1.msra.mxu0 0.0
          %5751 = vmatprep.subr.mxu0 0.0
          %5752 = vmatpush1.msra.mxu0 0.0
          %5753 = vmatprep.subr.mxu0 0.0
          %5754 = vmatpush1.msra.mxu0 0.0
          %5755 = vmatprep.subr.mxu0 0.0
          %5756 = vmatpush1.msra.mxu0 0.0
          %5757 = vmatprep.subr.mxu0 0.0
          %5758 = vmatpush1.msra.mxu0 0.0
          %5759 = vmatprep.mubr.f32.mxu0 0.0
          %5760 = vmatmul.mubr.f32.gmra.mrb[0].mxu0 %v5448
          %v5761 = vpop.f32.mrb[0].mxu0
          %v5762 = vadd.f32 0.0, %v5761
          %v5763 = vpop.f32.mrb[0].mxu0
          %v5764 = vadd.f32 0.0, %v5763
          %5765 = vdwg.mxu0
          %v5770 = vcombine.low %v5691, %v5693
          %v5771 = vcombine.low %v5762, %v5764
          %v5773 = vunpack.c.l.s4 1983009808
          %v5774 = vunpack.c.0.s8 %v5773
          %v5775 = vlaneseq
          %v5776 = vshrl.u32 %v5775, 7
          %v5777 = vsub.s32 %v5774, %v5776
          %v5778 = vrot.slane %v5770, %v5777
          %v5780 = vunpack.c.l.s4 1983009808
          %v5781 = vunpack.c.0.s8 %v5780
          %v5782 = vlaneseq
          %v5783 = vshrl.u32 %v5782, 7
          %v5784 = vsub.s32 %v5781, %v5783
          %v5785 = vrot.slane %v5771, %v5784
          %v5786 = vcombine.low %v5778, %v5785
          %v5788 = vadd.f32 %v5559, %v5786
          %v5789 = vxor.u32 %v5788, 2147483648
          %v5790 = vmul.f32 %v5789, 1.442695
          %v5791 = vpow.pop %v5790
          %v5792 = vadd.f32 %v5791, 1.0
          %v5793 = vrcp.pop %v5792
          %v5794 = vmul.f32 1.0, %v5793
          %v5796 = vrot.slane %v5788, 6
          %v5798 = vtanh.pop %v5796
          %v5800 = vrot.slane %v5794, 2
          %v5802 = vmul.f32 %v5800, %v5449
          %v5803 = vmul.f32 %v5794, %v5798
          %v5804 = vadd.f32 %v5802, %v5803
          %v5805 = vtanh.pop %v5804
          %v5806 = vrot.slane %v5794, 4
          %v5808 = vmul.f32 %v5806, %v5805
          %s5809 = sadd.s32 %s439, 1
          %v5810 = vstv %s5809
          %vm5811 = vcmp.lt.s32.totalorder %v5810, %v443
          %v5812 = vsel %vm5811, %v5808, %v5448
          %v5813 = vsel %vm5811, %v5804, %v5449
          %v5814 = vsel %vm5811, %v5808, 0.0
          %v5815 = vpack.c.bf16 %v5814, %v5814
          %v5816 = vld [vmem:[%s406] sm:$0xf]
          %v5817 = vld [vmem:[%s406 + $0x4] sm:$0xf]
          %v5818 = vld [vmem:[%s406 + $0x8] sm:$0xf]
          %v5819 = vld [vmem:[%s406 + $0xc] sm:$0xf]
          %v5820 = vld [vmem:[%s406 + $0x10] sm:$0xf]
          %v5821 = vld [vmem:[%s406 + $0x14] sm:$0xf]
          %v5822 = vld [vmem:[%s406 + $0x18] sm:$0xf]
          %v5823 = vld [vmem:[%s406 + $0x1c] sm:$0xf]
          %v5824 = vld [vmem:[%s406 + $0x20] sm:$0xf]
          %v5825 = vld [vmem:[%s406 + $0x24] sm:$0xf]
          %v5826 = vld [vmem:[%s406 + $0x28] sm:$0xf]
          %v5827 = vld [vmem:[%s406 + $0x2c] sm:$0xf]
          %v5828 = vld [vmem:[%s406 + $0x30] sm:$0xf]
          %v5829 = vld [vmem:[%s406 + $0x34] sm:$0xf]
          %v5830 = vld [vmem:[%s406 + $0x38] sm:$0xf]
          %v5831 = vld [vmem:[%s406 + $0x3c] sm:$0xf]
          %v5848 = vunpack.c.l.b16 %v5816
          %v5849 = vunpack.c.l.b16 %v5817
          %v5850 = vunpack.c.l.b16 %v5818
          %v5851 = vunpack.c.l.b16 %v5819
          %v5852 = vunpack.c.l.b16 %v5820
          %v5853 = vunpack.c.l.b16 %v5821
          %v5854 = vunpack.c.l.b16 %v5822
          %v5855 = vunpack.c.l.b16 %v5823
          %v5856 = vunpack.c.l.b16 %v5824
          %v5857 = vunpack.c.l.b16 %v5825
          %v5858 = vunpack.c.l.b16 %v5826
          %v5859 = vunpack.c.l.b16 %v5827
          %v5860 = vunpack.c.l.b16 %v5828
          %v5861 = vunpack.c.l.b16 %v5829
          %v5862 = vunpack.c.l.b16 %v5830
          %v5863 = vunpack.c.l.b16 %v5831
          %v5864 = vpack.c.b16 %v5849, %v5848
          %v5865 = vpack.c.b16 %v5851, %v5850
          %v5866 = vpack.c.b16 %v5853, %v5852
          %v5867 = vpack.c.b16 %v5855, %v5854
          %v5868 = vpack.c.b16 %v5857, %v5856
          %v5869 = vpack.c.b16 %v5859, %v5858
          %v5870 = vpack.c.b16 %v5861, %v5860
          %v5871 = vpack.c.b16 %v5863, %v5862
          %5880 = vmatprep.subr.bf16.mxu0 0
          %5881 = vmatpush1.bf16.msra.mxu0 %v5864
          %5882 = vmatprep.subr.bf16.mxu0 0
          %5883 = vmatpush1.bf16.msra.mxu0 %v5865
          %5884 = vmatprep.subr.bf16.mxu0 0
          %5885 = vmatpush1.bf16.msra.mxu0 %v5866
          %5886 = vmatprep.subr.bf16.mxu0 0
          %5887 = vmatpush1.bf16.msra.mxu0 %v5867
          %5888 = vmatprep.subr.bf16.mxu0 0
          %5889 = vmatpush1.bf16.msra.mxu0 %v5868
          %5890 = vmatprep.subr.bf16.mxu0 0
          %5891 = vmatpush1.bf16.msra.mxu0 %v5869
          %5892 = vmatprep.subr.bf16.mxu0 0
          %5893 = vmatpush1.bf16.msra.mxu0 %v5870
          %5894 = vmatprep.subr.bf16.mxu0 0
          %5895 = vmatpush1.bf16.msra.mxu0 %v5871
          %5896 = vmatprep.subr.bf16.mxu0 0
          %5897 = vmatpush1.bf16.msra.mxu0 0
          %5898 = vmatprep.subr.bf16.mxu0 0
          %5899 = vmatpush1.bf16.msra.mxu0 0
          %5900 = vmatprep.subr.bf16.mxu0 0
          %5901 = vmatpush1.bf16.msra.mxu0 0
          %5902 = vmatprep.subr.bf16.mxu0 0
          %5903 = vmatpush1.bf16.msra.mxu0 0
          %5904 = vmatprep.subr.bf16.mxu0 0
          %5905 = vmatpush1.bf16.msra.mxu0 0
          %5906 = vmatprep.subr.bf16.mxu0 0
          %5907 = vmatpush1.bf16.msra.mxu0 0
          %5908 = vmatprep.subr.bf16.mxu0 0
          %5909 = vmatpush1.bf16.msra.mxu0 0
          %5910 = vmatprep.subr.bf16.mxu0 0
          %5911 = vmatpush1.bf16.msra.mxu0 0
          %5912 = vmatprep.mubr.bf16.mxu0 0
          %5913 = vmatmul.mubr.bf16.gmra.mrb[0].mxu0 %v5815
          %v5914 = vpop.f32.mrb[0].mxu0
          %v5915 = vadd.f32 %v449, %v5914
          %v5916 = vpop.f32.mrb[0].mxu0
          %v5917 = vpop.f32.mrb[0].mxu0
          %v5918 = vpop.f32.mrb[0].mxu0
          %5919 = vdwg.mxu0
          %s5920 = scalar_lea.vmem %s422, 2
          %5921 = vst [vmem:[%s5920] sm:$0x3] %v5915
          %v5922 = vld [vmem:[%s341] sm:$0xff]
          %v5923 = vld [vmem:[%s349] sm:$0xff]
          %v5924 = vld [vmem:[%s349 + $0x8] sm:$0xff]
          %v5925 = vld [vmem:[%s349 + $0x10] sm:$0xff]
          %v5926 = vld [vmem:[%s349 + $0x18] sm:$0xff]
          %v5927 = vld [vmem:[%s349 + $0x20] sm:$0xff]
          %v5928 = vld [vmem:[%s349 + $0x28] sm:$0xff]
          %v5929 = vld [vmem:[%s349 + $0x30] sm:$0xff]
          %v5930 = vld [vmem:[%s349 + $0x38] sm:$0xff]
          %v5931 = vld [vmem:[%s349 + $0x40] sm:$0xff]
          %v5932 = vld [vmem:[%s349 + $0x48] sm:$0xff]
          %v5933 = vld [vmem:[%s349 + $0x50] sm:$0xff]
          %v5934 = vld [vmem:[%s349 + $0x58] sm:$0xff]
          %v5935 = vld [vmem:[%s349 + $0x60] sm:$0xff]
          %v5936 = vld [vmem:[%s349 + $0x68] sm:$0xff]
          %v5937 = vld [vmem:[%s349 + $0x70] sm:$0xff]
          %v5938 = vld [vmem:[%s349 + $0x78] sm:$0xff]
          %v5939 = vld [vmem:[%s349 + $0x80] sm:$0xff]
          %v5940 = vld [vmem:[%s349 + $0x88] sm:$0xff]
          %v5941 = vld [vmem:[%s349 + $0x90] sm:$0xff]
          %v5942 = vld [vmem:[%s349 + $0x98] sm:$0xff]
          %v5943 = vld [vmem:[%s349 + $0xa0] sm:$0xff]
          %v5944 = vld [vmem:[%s349 + $0xa8] sm:$0xff]
          %v5945 = vld [vmem:[%s349 + $0xb0] sm:$0xff]
          %v5946 = vld [vmem:[%s349 + $0xb8] sm:$0xff]
          %v5947 = vld [vmem:[%s349 + $0xc0] sm:$0xff]
          %v5948 = vld [vmem:[%s349 + $0xc8] sm:$0xff]
          %v5949 = vld [vmem:[%s349 + $0xd0] sm:$0xff]
          %v5950 = vld [vmem:[%s349 + $0xd8] sm:$0xff]
          %v5951 = vld [vmem:[%s349 + $0xe0] sm:$0xff]
          %v5952 = vld [vmem:[%s349 + $0xe8] sm:$0xff]
          %v5953 = vld [vmem:[%s349 + $0xf0] sm:$0xff]
          %v5954 = vld [vmem:[%s349 + $0xf8] sm:$0xff]
          %v5955 = vld [vmem:[%s349 + $0x100] sm:$0xff]
          %v5956 = vld [vmem:[%s349 + $0x108] sm:$0xff]
          %v5957 = vld [vmem:[%s349 + $0x110] sm:$0xff]
          %v5958 = vld [vmem:[%s349 + $0x118] sm:$0xff]
          %v5959 = vld [vmem:[%s349 + $0x120] sm:$0xff]
          %v5960 = vld [vmem:[%s349 + $0x128] sm:$0xff]
          %v5961 = vld [vmem:[%s349 + $0x130] sm:$0xff]
          %v5962 = vld [vmem:[%s349 + $0x138] sm:$0xff]
          %v5963 = vld [vmem:[%s349 + $0x140] sm:$0xff]
          %v5964 = vld [vmem:[%s349 + $0x148] sm:$0xff]
          %v5965 = vld [vmem:[%s349 + $0x150] sm:$0xff]
          %v5966 = vld [vmem:[%s349 + $0x158] sm:$0xff]
          %v5967 = vld [vmem:[%s349 + $0x160] sm:$0xff]
          %v5968 = vld [vmem:[%s349 + $0x168] sm:$0xff]
          %v5969 = vld [vmem:[%s349 + $0x170] sm:$0xff]
          %v5970 = vld [vmem:[%s349 + $0x178] sm:$0xff]
          %v5971 = vld [vmem:[%s349 + $0x180] sm:$0xff]
          %v5972 = vld [vmem:[%s349 + $0x188] sm:$0xff]
          %v5973 = vld [vmem:[%s349 + $0x190] sm:$0xff]
          %v5974 = vld [vmem:[%s349 + $0x198] sm:$0xff]
          %v5975 = vld [vmem:[%s349 + $0x1a0] sm:$0xff]
          %v5976 = vld [vmem:[%s349 + $0x1a8] sm:$0xff]
          %v5977 = vld [vmem:[%s349 + $0x1b0] sm:$0xff]
          %v5978 = vld [vmem:[%s349 + $0x1b8] sm:$0xff]
          %v5979 = vld [vmem:[%s349 + $0x1c0] sm:$0xff]
          %v5980 = vld [vmem:[%s349 + $0x1c8] sm:$0xff]
          %v5981 = vld [vmem:[%s349 + $0x1d0] sm:$0xff]
          %v5982 = vld [vmem:[%s349 + $0x1d8] sm:$0xff]
          %v5983 = vld [vmem:[%s349 + $0x1e0] sm:$0xff]
          %v5984 = vld [vmem:[%s349 + $0x1e8] sm:$0xff]
          %v5985 = vld [vmem:[%s349 + $0x1f0] sm:$0xff]
          %v5986 = vld [vmem:[%s349 + $0x1f8] sm:$0xff]
          %5987 = vmatprep.subr.mxu0 %v5924
          %5988 = vmatpush1.msra.mxu0 %v5923
          %5989 = vmatprep.subr.mxu0 %v5928
          %5990 = vmatpush1.msra.mxu0 %v5927
          %5991 = vmatprep.subr.mxu0 %v5932
          %5992 = vmatpush1.msra.mxu0 %v5931
          %5993 = vmatprep.subr.mxu0 %v5936
          %5994 = vmatpush1.msra.mxu0 %v5935
          %5995 = vmatprep.subr.mxu0 %v5940
          %5996 = vmatpush1.msra.mxu0 %v5939
          %5997 = vmatprep.subr.mxu0 %v5944
          %5998 = vmatpush1.msra.mxu0 %v5943
          %5999 = vmatprep.subr.mxu0 %v5948
          %6000 = vmatpush1.msra.mxu0 %v5947
          %6001 = vmatprep.subr.mxu0 %v5952
          %6002 = vmatpush1.msra.mxu0 %v5951
          %6003 = vmatprep.subr.mxu0 %v5956
          %6004 = vmatpush1.msra.mxu0 %v5955
          %6005 = vmatprep.subr.mxu0 %v5960
          %6006 = vmatpush1.msra.mxu0 %v5959
          %6007 = vmatprep.subr.mxu0 %v5964
          %6008 = vmatpush1.msra.mxu0 %v5963
          %6009 = vmatprep.subr.mxu0 %v5968
          %6010 = vmatpush1.msra.mxu0 %v5967
          %6011 = vmatprep.subr.mxu0 %v5972
          %6012 = vmatpush1.msra.mxu0 %v5971
          %6013 = vmatprep.subr.mxu0 %v5976
          %6014 = vmatpush1.msra.mxu0 %v5975
          %6015 = vmatprep.subr.mxu0 %v5980
          %6016 = vmatpush1.msra.mxu0 %v5979
          %6017 = vmatprep.subr.mxu0 %v5984
          %6018 = vmatpush1.msra.mxu0 %v5983
          %6019 = vmatprep.subr.mxu0 0.0
          %6020 = vmatpush1.msra.mxu0 0.0
          %6021 = vmatprep.subr.mxu0 0.0
          %6022 = vmatpush1.msra.mxu0 0.0
          %6023 = vmatprep.subr.mxu0 0.0
          %6024 = vmatpush1.msra.mxu0 0.0
          %6025 = vmatprep.subr.mxu0 0.0
          %6026 = vmatpush1.msra.mxu0 0.0
          %6027 = vmatprep.subr.mxu0 0.0
          %6028 = vmatpush1.msra.mxu0 0.0
          %6029 = vmatprep.subr.mxu0 0.0
          %6030 = vmatpush1.msra.mxu0 0.0
          %6031 = vmatprep.subr.mxu0 0.0
          %6032 = vmatpush1.msra.mxu0 0.0
          %6033 = vmatprep.subr.mxu0 0.0
          %6034 = vmatpush1.msra.mxu0 0.0
          %6035 = vmatprep.subr.mxu0 0.0
          %6036 = vmatpush1.msra.mxu0 0.0
          %6037 = vmatprep.subr.mxu0 0.0
          %6038 = vmatpush1.msra.mxu0 0.0
          %6039 = vmatprep.subr.mxu0 0.0
          %6040 = vmatpush1.msra.mxu0 0.0
          %6041 = vmatprep.subr.mxu0 0.0
          %6042 = vmatpush1.msra.mxu0 0.0
          %6043 = vmatprep.subr.mxu0 0.0
          %6044 = vmatpush1.msra.mxu0 0.0
          %6045 = vmatprep.subr.mxu0 0.0
          %6046 = vmatpush1.msra.mxu0 0.0
          %6047 = vmatprep.subr.mxu0 0.0
          %6048 = vmatpush1.msra.mxu0 0.0
          %6049 = vmatprep.subr.mxu0 0.0
          %6050 = vmatpush1.msra.mxu0 0.0
          %6051 = vmatprep.mubr.f32.mxu0 0.0
          %6052 = vmatmul.mubr.f32.gmra.mrb[0].mxu0 %v5812
          %v6053 = vpop.f32.mrb[0].mxu0
          %v6054 = vadd.f32 0.0, %v6053
          %v6055 = vpop.f32.mrb[0].mxu0
          %v6056 = vadd.f32 0.0, %v6055
          %6057 = vdwg.mxu0
          %6058 = vmatprep.subr.mxu0 %v5926
          %6059 = vmatpush1.msra.mxu0 %v5925
          %6060 = vmatprep.subr.mxu0 %v5930
          %6061 = vmatpush1.msra.mxu0 %v5929
          %6062 = vmatprep.subr.mxu0 %v5934
          %6063 = vmatpush1.msra.mxu0 %v5933
          %6064 = vmatprep.subr.mxu0 %v5938
          %6065 = vmatpush1.msra.mxu0 %v5937
          %6066 = vmatprep.subr.mxu0 %v5942
          %6067 = vmatpush1.msra.mxu0 %v5941
          %6068 = vmatprep.subr.mxu0 %v5946
          %6069 = vmatpush1.msra.mxu0 %v5945
          %6070 = vmatprep.subr.mxu0 %v5950
          %6071 = vmatpush1.msra.mxu0 %v5949
          %6072 = vmatprep.subr.mxu0 %v5954
          %6073 = vmatpush1.msra.mxu0 %v5953
          %6074 = vmatprep.subr.mxu0 %v5958
          %6075 = vmatpush1.msra.mxu0 %v5957
          %6076 = vmatprep.subr.mxu0 %v5962
          %6077 = vmatpush1.msra.mxu0 %v5961
          %6078 = vmatprep.subr.mxu0 %v5966
          %6079 = vmatpush1.msra.mxu0 %v5965
          %6080 = vmatprep.subr.mxu0 %v5970
          %6081 = vmatpush1.msra.mxu0 %v5969
          %6082 = vmatprep.subr.mxu0 %v5974
          %6083 = vmatpush1.msra.mxu0 %v5973
          %6084 = vmatprep.subr.mxu0 %v5978
          %6085 = vmatpush1.msra.mxu0 %v5977
          %6086 = vmatprep.subr.mxu0 %v5982
          %6087 = vmatpush1.msra.mxu0 %v5981
          %6088 = vmatprep.subr.mxu0 %v5986
          %6089 = vmatpush1.msra.mxu0 %v5985
          %6090 = vmatprep.subr.mxu0 0.0
          %6091 = vmatpush1.msra.mxu0 0.0
          %6092 = vmatprep.subr.mxu0 0.0
          %6093 = vmatpush1.msra.mxu0 0.0
          %6094 = vmatprep.subr.mxu0 0.0
          %6095 = vmatpush1.msra.mxu0 0.0
          %6096 = vmatprep.subr.mxu0 0.0
          %6097 = vmatpush1.msra.mxu0 0.0
          %6098 = vmatprep.subr.mxu0 0.0
          %6099 = vmatpush1.msra.mxu0 0.0
          %6100 = vmatprep.subr.mxu0 0.0
          %6101 = vmatpush1.msra.mxu0 0.0
          %6102 = vmatprep.subr.mxu0 0.0
          %6103 = vmatpush1.msra.mxu0 0.0
          %6104 = vmatprep.subr.mxu0 0.0
          %6105 = vmatpush1.msra.mxu0 0.0
          %6106 = vmatprep.subr.mxu0 0.0
          %6107 = vmatpush1.msra.mxu0 0.0
          %6108 = vmatprep.subr.mxu0 0.0
          %6109 = vmatpush1.msra.mxu0 0.0
          %6110 = vmatprep.subr.mxu0 0.0
          %6111 = vmatpush1.msra.mxu0 0.0
          %6112 = vmatprep.subr.mxu0 0.0
          %6113 = vmatpush1.msra.mxu0 0.0
          %6114 = vmatprep.subr.mxu0 0.0
          %6115 = vmatpush1.msra.mxu0 0.0
          %6116 = vmatprep.subr.mxu0 0.0
          %6117 = vmatpush1.msra.mxu0 0.0
          %6118 = vmatprep.subr.mxu0 0.0
          %6119 = vmatpush1.msra.mxu0 0.0
          %6120 = vmatprep.subr.mxu0 0.0
          %6121 = vmatpush1.msra.mxu0 0.0
          %6122 = vmatprep.mubr.f32.mxu0 0.0
          %6123 = vmatmul.mubr.f32.gmra.mrb[0].mxu0 %v5812
          %v6124 = vpop.f32.mrb[0].mxu0
          %v6125 = vadd.f32 0.0, %v6124
          %v6126 = vpop.f32.mrb[0].mxu0
          %v6127 = vadd.f32 0.0, %v6126
          %6128 = vdwg.mxu0
          %v6133 = vcombine.low %v6054, %v6056
          %v6134 = vcombine.low %v6125, %v6127
          %v6136 = vunpack.c.l.s4 1983009808
          %v6137 = vunpack.c.0.s8 %v6136
          %v6138 = vlaneseq
          %v6139 = vshrl.u32 %v6138, 7
          %v6140 = vsub.s32 %v6137, %v6139
          %v6141 = vrot.slane %v6133, %v6140
          %v6143 = vunpack.c.l.s4 1983009808
          %v6144 = vunpack.c.0.s8 %v6143
          %v6145 = vlaneseq
          %v6146 = vshrl.u32 %v6145, 7
          %v6147 = vsub.s32 %v6144, %v6146
          %v6148 = vrot.slane %v6134, %v6147
          %v6149 = vcombine.low %v6141, %v6148
          %v6151 = vadd.f32 %v5922, %v6149
          %v6152 = vxor.u32 %v6151, 2147483648
          %v6153 = vmul.f32 %v6152, 1.442695
          %v6154 = vpow.pop %v6153
          %v6155 = vadd.f32 %v6154, 1.0
          %v6156 = vrcp.pop %v6155
          %v6157 = vmul.f32 1.0, %v6156
          %v6159 = vrot.slane %v6151, 6
          %v6161 = vtanh.pop %v6159
          %v6163 = vrot.slane %v6157, 2
          %v6165 = vmul.f32 %v6163, %v5813
          %v6166 = vmul.f32 %v6157, %v6161
          %v6167 = vadd.f32 %v6165, %v6166
          %v6168 = vtanh.pop %v6167
          %v6169 = vrot.slane %v6157, 4
          %v6171 = vmul.f32 %v6169, %v6168
          %v6172 = vstv %s439
          %vm6173 = vcmp.lt.s32.totalorder %v6172, %v443
          %v6174 = vsel %vm6173, %v6171, %v5812
          %v6175 = vsel %vm6173, %v6167, %v5813
          %v6176 = vsel %vm6173, %v6171, 0.0
          %v6177 = vpack.c.bf16 %v6176, %v6176
          %v6178 = vld [vmem:[%s406] sm:$0xf]
          %v6179 = vld [vmem:[%s406 + $0x4] sm:$0xf]
          %v6180 = vld [vmem:[%s406 + $0x8] sm:$0xf]
          %v6181 = vld [vmem:[%s406 + $0xc] sm:$0xf]
          %v6182 = vld [vmem:[%s406 + $0x10] sm:$0xf]
          %v6183 = vld [vmem:[%s406 + $0x14] sm:$0xf]
          %v6184 = vld [vmem:[%s406 + $0x18] sm:$0xf]
          %v6185 = vld [vmem:[%s406 + $0x1c] sm:$0xf]
          %v6186 = vld [vmem:[%s406 + $0x20] sm:$0xf]
          %v6187 = vld [vmem:[%s406 + $0x24] sm:$0xf]
          %v6188 = vld [vmem:[%s406 + $0x28] sm:$0xf]
          %v6189 = vld [vmem:[%s406 + $0x2c] sm:$0xf]
          %v6190 = vld [vmem:[%s406 + $0x30] sm:$0xf]
          %v6191 = vld [vmem:[%s406 + $0x34] sm:$0xf]
          %v6192 = vld [vmem:[%s406 + $0x38] sm:$0xf]
          %v6193 = vld [vmem:[%s406 + $0x3c] sm:$0xf]
          %v6210 = vunpack.c.l.b16 %v6178
          %v6211 = vunpack.c.l.b16 %v6179
          %v6212 = vunpack.c.l.b16 %v6180
          %v6213 = vunpack.c.l.b16 %v6181
          %v6214 = vunpack.c.l.b16 %v6182
          %v6215 = vunpack.c.l.b16 %v6183
          %v6216 = vunpack.c.l.b16 %v6184
          %v6217 = vunpack.c.l.b16 %v6185
          %v6218 = vunpack.c.l.b16 %v6186
          %v6219 = vunpack.c.l.b16 %v6187
          %v6220 = vunpack.c.l.b16 %v6188
          %v6221 = vunpack.c.l.b16 %v6189
          %v6222 = vunpack.c.l.b16 %v6190
          %v6223 = vunpack.c.l.b16 %v6191
          %v6224 = vunpack.c.l.b16 %v6192
          %v6225 = vunpack.c.l.b16 %v6193
          %v6226 = vpack.c.b16 %v6211, %v6210
          %v6227 = vpack.c.b16 %v6213, %v6212
          %v6228 = vpack.c.b16 %v6215, %v6214
          %v6229 = vpack.c.b16 %v6217, %v6216
          %v6230 = vpack.c.b16 %v6219, %v6218
          %v6231 = vpack.c.b16 %v6221, %v6220
          %v6232 = vpack.c.b16 %v6223, %v6222
          %v6233 = vpack.c.b16 %v6225, %v6224
          %6242 = vmatprep.subr.bf16.mxu0 0
          %6243 = vmatpush1.bf16.msra.mxu0 %v6226
          %6244 = vmatprep.subr.bf16.mxu0 0
          %6245 = vmatpush1.bf16.msra.mxu0 %v6227
          %6246 = vmatprep.subr.bf16.mxu0 0
          %6247 = vmatpush1.bf16.msra.mxu0 %v6228
          %6248 = vmatprep.subr.bf16.mxu0 0
          %6249 = vmatpush1.bf16.msra.mxu0 %v6229
          %6250 = vmatprep.subr.bf16.mxu0 0
          %6251 = vmatpush1.bf16.msra.mxu0 %v6230
          %6252 = vmatprep.subr.bf16.mxu0 0
          %6253 = vmatpush1.bf16.msra.mxu0 %v6231
          %6254 = vmatprep.subr.bf16.mxu0 0
          %6255 = vmatpush1.bf16.msra.mxu0 %v6232
          %6256 = vmatprep.subr.bf16.mxu0 0
          %6257 = vmatpush1.bf16.msra.mxu0 %v6233
          %6258 = vmatprep.subr.bf16.mxu0 0
          %6259 = vmatpush1.bf16.msra.mxu0 0
          %6260 = vmatprep.subr.bf16.mxu0 0
          %6261 = vmatpush1.bf16.msra.mxu0 0
          %6262 = vmatprep.subr.bf16.mxu0 0
          %6263 = vmatpush1.bf16.msra.mxu0 0
          %6264 = vmatprep.subr.bf16.mxu0 0
          %6265 = vmatpush1.bf16.msra.mxu0 0
          %6266 = vmatprep.subr.bf16.mxu0 0
          %6267 = vmatpush1.bf16.msra.mxu0 0
          %6268 = vmatprep.subr.bf16.mxu0 0
          %6269 = vmatpush1.bf16.msra.mxu0 0
          %6270 = vmatprep.subr.bf16.mxu0 0
          %6271 = vmatpush1.bf16.msra.mxu0 0
          %6272 = vmatprep.subr.bf16.mxu0 0
          %6273 = vmatpush1.bf16.msra.mxu0 0
          %6274 = vmatprep.mubr.bf16.mxu0 0
          %6275 = vmatmul.mubr.bf16.gmra.mrb[0].mxu0 %v6177
          %v6276 = vpop.f32.mrb[0].mxu0
          %v6277 = vadd.f32 %v449, %v6276
          %v6278 = vpop.f32.mrb[0].mxu0
          %v6279 = vpop.f32.mrb[0].mxu0
          %v6280 = vpop.f32.mrb[0].mxu0
          %6281 = vdwg.mxu0
          %6282 = vst [vmem:[%s422] sm:$0x3] %v6277
          %6283 = vst [vmem:[#allocation2] sm:$0x3] %v6174
          %6284 = vst [vmem:[#allocation3] sm:$0x3] %v6175
        $region94: #{mner_forward.3} parent=73 // pred_fallthru
          _
        %s6285 = smul.u32 %s24, 2
        %s6286 = ssub.s32 0, %s6285
        %s6287 = smul.u32 %s23, %s6286
        %s6288 = sadd.s32 %s24, %s6287
        %s6289 = smul.u32 8, %s6288
        %p6290 = scmp.lt.s32.totalorder %s23, 1
        %s6291 = scalar_select %p6290, %s23, 1
        %p6292 = scmp.lt.s32.totalorder %s6289, 7
        %s6293 = scalar_select %p6292, %s6289, 7
        %s6294 = smul.addr %s6291, 8
        %s6295 = sadd.s32 %s6293, %s6294
        %s6296 = smul.addr %s6295, 2
        %s6297 = scalar_lea.vmem %s5, %s6296
        // Predicated region
        $region95: #{mner_forward.3} parent=73 // pred_check
          %p6298 = pneg %p194
        $region96: #{mner_forward.3} parent=73 // pred_check_branch
          %6300 = sbr.rel (%p6298) target = $region98
        $region97: #{mner_forward.3} parent=73 // pred_region
          %s6301 = smul.u32 %s24, 2
          %s6302 = ssub.s32 0, %s6301
          %s6303 = smul.u32 %s23, %s6302
          %s6304 = sadd.s32 %s24, %s6303
          %s6305 = smul.u32 8, %s6304
        $region98: #{mner_forward.3} parent=73 // pred_fallthru
          _
      $region74: #{mner_forward.3} parent=5 // pred_fallthru
        _
      %p6306 = scmp.le.s32.totalorder 2, %s14
      // Predicated region
      $region99: #{mner_forward.3} parent=5 // pred_check
        %p6307 = pneg %p6306
      $region100: #{mner_forward.3} parent=5 // pred_check_branch
        %6309 = sbr.rel (%p6307) target = $region102
      $region101: #{mner_forward.3} parent=5 // pred_region
        %s6310 = ssub.s32 %s14, 2
        // Predicated region
        $region103: #{mner_forward.3} parent=101 // pred_check
          %p6311 = pneg %p200
        $region104: #{mner_forward.3} parent=101 // pred_check_branch
          %6313 = sbr.rel (%p6311) target = $region106
        $region105: #{mner_forward.3} parent=101 // pred_region
          %s6314 = smul.u32 %s26, 2
          %s6315 = ssub.s32 0, %s6314
          %s6316 = smul.u32 %s25, %s6315
          %s6317 = sadd.s32 %s26, %s6316
          %s6318 = smul.u32 8, %s6317
          %p6319 = scmp.lt.s32.totalorder %s25, 1
          %s6320 = scalar_select %p6319, %s25, 1
          %p6321 = scmp.lt.s32.totalorder %s6318, 7
          %s6322 = scalar_select %p6321, %s6318, 7
          %s6323 = smul.addr %s6320, 8
          %s6324 = sadd.s32 %s6322, %s6323
          %s6325 = smul.addr %s6324, 2
          %s6326 = scalar_lea.vmem %s5, %s6325
        $region106: #{mner_forward.3} parent=101 // pred_fallthru
          _
      $region102: #{mner_forward.3} parent=5 // pred_fallthru
        _
    $region6: #{mner_forward.3} parent=1 // loop_footer
      %s18 = sadd.s32 1, %s14
    $region7: #{mner_forward.3} parent=1 // loop_footer_branch
      %13 = sbr.rel target = $region3
    $region8: #{mner_forward.3} parent=1 // loop_exit
      _
    %6327 = vsyncpa [#allocation6], 1
    %s6328 = scalar_lea.sflag [#allocation6], 1
    %6329 = vsyncpa %s6328, 1

</llo_original>
